<compile_context>
chip_gen: v5e
topology: v5e:2x2
jax: 0.10.0
libtpu: 0.0.40
codegen_flags: <defaults>
</compile_context>

<pallas_src>
import functools

import numpy as np
import jax
import jax.numpy as jnp
from jax.experimental import pallas as pl
from jax.experimental.pallas import tpu as pltpu


# ----------------------------------------------------------------------------
# im2col for a 3x3 "same" conv on a row-major flattened (H*W, Cin) activation.
# Only 2 masked selects total: the dj = -1 / +1 column-shifted copies are
# W-edge masked once; the +/-W row shifts reuse them (the masks depend only on
# the w coordinate, which is invariant under +/-W shifts).
# ----------------------------------------------------------------------------
def _im2col3x3(x2d, W, keep_lo, keep_hi):
    HW, cin = x2d.shape
    zero1 = jnp.zeros((1, cin), x2d.dtype)
    zeroW = jnp.zeros((W, cin), x2d.dtype)
    zfull = jnp.zeros_like(x2d)
    # dj-shifted, W-edge-masked copies (dj = -1, 0, +1).
    c_m1 = jnp.where(keep_lo, jnp.concatenate([zero1, x2d[:HW - 1]], axis=0), zfull)
    c_p1 = jnp.where(keep_hi, jnp.concatenate([x2d[1:], zero1], axis=0), zfull)
    cols = (c_m1, x2d, c_p1)
    taps = []
    for di in (-1, 0, 1):          # kernel row kh = di + 1
        for c in cols:             # kernel col kw = dj + 1
            if di == -1:           # tap[p] = c[p - W]
                taps.append(jnp.concatenate([zeroW, c[:HW - W]], axis=0))
            elif di == 1:          # tap[p] = c[p + W]
                taps.append(jnp.concatenate([c[W:], zeroW], axis=0))
            else:
                taps.append(c)
    return jnp.concatenate(taps, axis=1)          # (H*W, 9*Cin)


def _maxpool2x2_flat(x2d, H, W):
    """2x2 stride-2 max pool on a flattened (H*W, C) activation (no strided
    ref loads; plain reshapes + vector max on data already in registers)."""
    C = x2d.shape[-1]
    x = x2d.reshape(H // 2, 2, W // 2, 2, C)
    m = jnp.maximum(jnp.maximum(x[:, 0, :, 0, :], x[:, 0, :, 1, :]),
                    jnp.maximum(x[:, 1, :, 0, :], x[:, 1, :, 1, :]))
    return m.reshape((H // 2) * (W // 2), C)


# ----------------------------------------------------------------------------
# One fused kernel: all 4 pyramid levels for one batch element.
#   per level: CMF conv (+folded BN, ReLU)  ->  fused b/d conv (128-wide out)
#              -> 2x2 max pool of the CMF activation feeds the next level.
# ----------------------------------------------------------------------------
def _make_encoder_kernel(H, W):
    def kernel(x_ref, *refs):
        w_refs, out_refs = refs[:16], refs[16:]
        cur = x_ref[...]                        # (H*W, Cin) bf16
        ch, cw = H, W
        for lvl in range(4):
            wc, bc, wbd, bbd = w_refs[4 * lvl: 4 * lvl + 4]
            hw = ch * cw
            wpos = jax.lax.broadcasted_iota(jnp.int32, (hw, 1), 0) % cw
            keep_lo = wpos != 0
            keep_hi = wpos != (cw - 1)

            # CMF conv (BN folded) + ReLU : one im2col MXU matmul, f32 epilogue.
            patches = _im2col3x3(cur, cw, keep_lo, keep_hi)
            cmf = jnp.maximum(
                jnp.dot(patches, wc[...], preferred_element_type=jnp.float32)
                + bc[...], 0.0)                 # (hw, 64) f32, stays in VMEM

            # Fused b/d branch convs: single (hw, 576) @ (576, 128) matmul,
            # lane-dense 128-wide store (split into b/d in the wrapper).
            pbd = _im2col3x3(cmf.astype(jnp.bfloat16), cw, keep_lo, keep_hi)
            out_refs[lvl][...] = jnp.maximum(
                jnp.dot(pbd, wbd[...], preferred_element_type=jnp.float32)
                + bbd[...], 0.0)

            if lvl < 3:
                # Max-pool fused into the producer; next level's input never
                # leaves VMEM.  Level 4's CMF output is dead and never stored.
                cur = _maxpool2x2_flat(cmf, ch, cw).astype(jnp.bfloat16)
                ch, cw = ch // 2, cw // 2

    return kernel


# ----------------------------------------------------------------------------
# Eval-mode BatchNorm folding + weight packing (plain-JAX glue).
# ----------------------------------------------------------------------------
def _fold_bn(w, b, bn, eps=1e-5):
    scale = bn["gamma"] * jax.lax.rsqrt(bn["var"] + eps)
    return w * scale[None, None, None, :], (b - bn["mean"]) * scale + bn["beta"]


def _prep_conv(w, b, bn, eps=1e-5):
    wf, bf = _fold_bn(w, b, bn, eps)
    cin, cout = wf.shape[2], wf.shape[3]
    # (3,3,Cin,Cout) -> (9*Cin, Cout), row order (kh, kw, cin), bf16 for MXU.
    return wf.reshape(9 * cin, cout).astype(jnp.bfloat16), bf.reshape(1, cout)


def encoder_forward(params, x_nhwc):
    B, H, W, Cin = x_nhwc.shape
    C = params["width"]
    lv = params["levels"]

    weights = []
    in_specs = [pl.BlockSpec((None, H * W, Cin), lambda i: (i, 0, 0))]
    for lvl in range(4):
        cin = Cin if lvl == 0 else C
        wc, bc = _prep_conv(lv[lvl]["cmf_w"], lv[lvl]["cmf_b"], lv[lvl]["cmf_bn"])
        wb, bb = _fold_bn(lv[lvl]["b_w"], lv[lvl]["b_b"], lv[lvl]["b_bn"])
        wd, bd = _fold_bn(lv[lvl]["d_w"], lv[lvl]["d_b"], lv[lvl]["d_bn"])
        # fuse branch b/d weights along Cout -> (9*C, 128), biases -> (1, 128)
        wbd = jnp.concatenate([wb, wd], axis=-1).reshape(9 * C, 2 * C)
        wbd = wbd.astype(jnp.bfloat16)
        bbd = jnp.concatenate([bb, bd], axis=-1).reshape(1, 2 * C)
        weights += [wc, bc, wbd, bbd]
        in_specs += [
            pl.BlockSpec((9 * cin, C), lambda i: (0, 0)),
            pl.BlockSpec((1, C), lambda i: (0, 0)),
            pl.BlockSpec((9 * C, 2 * C), lambda i: (0, 0)),
            pl.BlockSpec((1, 2 * C), lambda i: (0, 0)),
        ]

    sizes = [(H >> s, W >> s) for s in range(4)]
    out_shapes = tuple(jax.ShapeDtypeStruct((B, h * w, 2 * C), jnp.float32)
                       for h, w in sizes)
    out_specs = tuple(pl.BlockSpec((None, h * w, 2 * C), lambda i: (i, 0, 0))
                      for h, w in sizes)

    # bf16 level-1 input: halves the largest HBM->VMEM DMA; MXU path is bf16.
    x_flat = x_nhwc.reshape(B, H * W, Cin).astype(jnp.bfloat16)

    bd_outs = pl.pallas_call(
        _make_encoder_kernel(H, W),
        out_shape=out_shapes,
        grid=(B,),
        in_specs=in_specs,
        out_specs=out_specs,
        compiler_params=pltpu.CompilerParams(
            dimension_semantics=("parallel",)),
    )(x_flat, *weights)

    def split(t, h, w):
        t = t.reshape(B, h, w, 2 * C)
        return t[..., :C], t[..., C:]

    b_outs, d_outs = [], []
    for t, (h, w) in zip(bd_outs, sizes):
        b, d = split(t, h, w)
        b_outs.append(b)
        d_outs.append(d)

    # module return order: (out4b, out3b, out2b, out1b, out4d, out3d, out2d, out1d)
    return (b_outs[3], b_outs[2], b_outs[1], b_outs[0],
            d_outs[3], d_outs[2], d_outs[1], d_outs[0])


# ----------------------------------------------------------------------------
# Parameters (kaiming fan_in conv weights, mildly random BN stats so the
# eval-mode folding is actually exercised).
# ----------------------------------------------------------------------------
def _kaiming(key, cin, cout):
    std = float(np.sqrt(2.0 / (9 * cin)))
    return std * jax.random.normal(key, (3, 3, cin, cout), jnp.float32)


def _bn_params(key, c):
    k1, k2, k3, k4 = jax.random.split(key, 4)
    return {
        "gamma": 1.0 + 0.1 * jax.random.normal(k1, (c,), jnp.float32),
        "beta": 0.1 * jax.random.normal(k2, (c,), jnp.float32),
        "mean": 0.1 * jax.random.normal(k3, (c,), jnp.float32),
        "var": jax.random.uniform(k4, (c,), jnp.float32, 0.8, 1.2),
    }


def init_params(key, cin, width):
    levels = []
    for lvl in range(4):
        key, *ks = jax.random.split(key, 10)
        c_in = cin if lvl == 0 else width
        levels.append({
            "cmf_w": _kaiming(ks[0], c_in, width),
            "cmf_b": 0.05 * jax.random.normal(ks[1], (width,), jnp.float32),
            "cmf_bn": _bn_params(ks[2], width),
            "b_w": _kaiming(ks[3], width, width),
            "b_b": 0.05 * jax.random.normal(ks[4], (width,), jnp.float32),
            "b_bn": _bn_params(ks[5], width),
            "d_w": _kaiming(ks[6], width, width),
            "d_b": 0.05 * jax.random.normal(ks[7], (width,), jnp.float32),
            "d_bn": _bn_params(ks[8], width),
        })
    return {"width": width, "levels": levels}


# ----------------------------------------------------------------------------
# Pure-JAX references for verification only.
#   quantize=True  : mirrors the kernel's bf16 MXU inputs + folded BN
#   quantize=False : exact f32 eval-mode module (bounds the bf16 quant error)
# ----------------------------------------------------------------------------
def _ref_conv(x, w, b, quantize):
    if quantize:
        x = x.astype(jnp.bfloat16)
        w = w.astype(jnp.bfloat16)
    y = jax.lax.conv_general_dilated(
        x, w, window_strides=(1, 1), padding=((1, 1), (1, 1)),
        dimension_numbers=("NHWC", "HWIO", "NHWC"),
        preferred_element_type=jnp.float32)
    return y + b[None, None, None, :].astype(jnp.float32)


def _maxpool2(x):
    B, H, W, C = x.shape
    return x.reshape(B, H // 2, 2, W // 2, 2, C).max(axis=(2, 4))


def encoder_reference(params, x, *, quantize):
    eps = 1e-5

    def block(h, w, b, bn):
        if quantize:
            wf, bf = _fold_bn(w, b, bn, eps)
            y = _ref_conv(h, wf, bf, True)
        else:
            y = _ref_conv(h, w, b, False)
            scale = bn["gamma"] / jnp.sqrt(bn["var"] + eps)
            y = (y - bn["mean"]) * scale + bn["beta"]
        return jnp.maximum(y, 0.0)

    if quantize:
        x = x.astype(jnp.bfloat16).astype(jnp.float32)  # matches wrapper cast

    lv = params["levels"]
    out1 = block(x, lv[0]["cmf_w"], lv[0]["cmf_b"], lv[0]["cmf_bn"])
    out2 = block(_maxpool2(out1), lv[1]["cmf_w"], lv[1]["cmf_b"], lv[1]["cmf_bn"])
    out3 = block(_maxpool2(out2), lv[2]["cmf_w"], lv[2]["cmf_b"], lv[2]["cmf_bn"])
    out4 = block(_maxpool2(out3), lv[3]["cmf_w"], lv[3]["cmf_b"], lv[3]["cmf_bn"])
    outs = [out1, out2, out3, out4]
    outs_b = [block(o, lv[i]["b_w"], lv[i]["b_b"], lv[i]["b_bn"])
              for i, o in enumerate(outs)]
    outs_d = [block(o, lv[i]["d_w"], lv[i]["d_b"], lv[i]["d_bn"])
              for i, o in enumerate(outs)]
    return (outs_b[3], outs_b[2], outs_b[1], outs_b[0],
            outs_d[3], outs_d[2], outs_d[1], outs_d[0])


if __name__ == "__main__":
    key = jax.random.PRNGKey(0)
    # Module channel widths (192 -> 64) at a small spatial size.
    B, CIN, H, W = 2, 192, 16, 16
    WIDTH = 64
    kx, kp = jax.random.split(key)
    x_nchw = jax.random.normal(kx, (B, CIN, H, W), jnp.float32)   # PyTorch NCHW
    params = init_params(kp, CIN, WIDTH)

    x_nhwc = jnp.transpose(x_nchw, (0, 2, 3, 1))                  # -> NHWC
    fwd = jax.jit(functools.partial(encoder_forward, params))
    outs = jax.block_until_ready(fwd(x_nhwc))

    # shapes: (out4b, out3b, out2b, out1b, out4d, out3d, out2d, out1d)
    exp = [(B, H // 8, W // 8, WIDTH), (B, H // 4, W // 4, WIDTH),
           (B, H // 2, W // 2, WIDTH), (B, H, W, WIDTH)] * 2
    for o, s in zip(outs, exp):
        assert o.shape == s, (o.shape, s)

    ref_q = encoder_reference(params, x_nhwc, quantize=True)
    err_q = max(float(jnp.max(jnp.abs(a - b))) for a, b in zip(outs, ref_q))
    ref_f = encoder_reference(params, x_nhwc, quantize=False)
    err_f = max(float(jnp.max(jnp.abs(a - b))) for a, b in zip(outs, ref_f))

    assert np.isfinite(err_q) and err_q < 1e-2, f"bf16-ref max abs err {err_q}"
    assert np.isfinite(err_f) and err_f < 1.5e-1, f"f32-ref max abs err {err_f}"
    print("KERNEL_OK")
</pallas_src>

<mosaic_0001>
module attributes {stable_mosaic.version = 11 : i64} {
  func.func @kernel(%arg0: i32, %arg1: memref<1x256x192xbf16, #tpu.memory_space<vmem>>, %arg2: memref<1728x64xbf16, #tpu.memory_space<vmem>>, %arg3: memref<1x64xf32, #tpu.memory_space<vmem>>, %arg4: memref<576x128xbf16, #tpu.memory_space<vmem>>, %arg5: memref<1x128xf32, #tpu.memory_space<vmem>>, %arg6: memref<576x64xbf16, #tpu.memory_space<vmem>>, %arg7: memref<1x64xf32, #tpu.memory_space<vmem>>, %arg8: memref<576x128xbf16, #tpu.memory_space<vmem>>, %arg9: memref<1x128xf32, #tpu.memory_space<vmem>>, %arg10: memref<576x64xbf16, #tpu.memory_space<vmem>>, %arg11: memref<1x64xf32, #tpu.memory_space<vmem>>, %arg12: memref<576x128xbf16, #tpu.memory_space<vmem>>, %arg13: memref<1x128xf32, #tpu.memory_space<vmem>>, %arg14: memref<576x64xbf16, #tpu.memory_space<vmem>>, %arg15: memref<1x64xf32, #tpu.memory_space<vmem>>, %arg16: memref<576x128xbf16, #tpu.memory_space<vmem>>, %arg17: memref<1x128xf32, #tpu.memory_space<vmem>>, %arg18: memref<1x256x128xf32, #tpu.memory_space<vmem>>, %arg19: memref<1x64x128xf32, #tpu.memory_space<vmem>>, %arg20: memref<1x16x128xf32, #tpu.memory_space<vmem>>, %arg21: memref<1x4x128xf32, #tpu.memory_space<vmem>>) attributes {dimension_semantics = [#tpu.dimension_semantics<parallel>], iteration_bounds = array<i64: 2>, scalar_prefetch = 0 : i64, scratch_operands = 0 : i64, tpu.core_type = #tpu.core_type<tc>, window_params = [{transform_indices = @transform_0, window_bounds = array<i64: 1, 256, 192>}, {pipeline_mode = #tpu.pipeline_mode<synchronous>, transform_indices = @transform_1, window_bounds = array<i64: 1728, 64>}, {pipeline_mode = #tpu.pipeline_mode<synchronous>, transform_indices = @transform_2, window_bounds = array<i64: 1, 64>}, {pipeline_mode = #tpu.pipeline_mode<synchronous>, transform_indices = @transform_3, window_bounds = array<i64: 576, 128>}, {pipeline_mode = #tpu.pipeline_mode<synchronous>, transform_indices = @transform_4, window_bounds = array<i64: 1, 128>}, {pipeline_mode = #tpu.pipeline_mode<synchronous>, transform_indices = @transform_5, window_bounds = array<i64: 576, 64>}, {pipeline_mode = #tpu.pipeline_mode<synchronous>, transform_indices = @transform_6, window_bounds = array<i64: 1, 64>}, {pipeline_mode = #tpu.pipeline_mode<synchronous>, transform_indices = @transform_7, window_bounds = array<i64: 576, 128>}, {pipeline_mode = #tpu.pipeline_mode<synchronous>, transform_indices = @transform_8, window_bounds = array<i64: 1, 128>}, {pipeline_mode = #tpu.pipeline_mode<synchronous>, transform_indices = @transform_9, window_bounds = array<i64: 576, 64>}, {pipeline_mode = #tpu.pipeline_mode<synchronous>, transform_indices = @transform_10, window_bounds = array<i64: 1, 64>}, {pipeline_mode = #tpu.pipeline_mode<synchronous>, transform_indices = @transform_11, window_bounds = array<i64: 576, 128>}, {pipeline_mode = #tpu.pipeline_mode<synchronous>, transform_indices = @transform_12, window_bounds = array<i64: 1, 128>}, {pipeline_mode = #tpu.pipeline_mode<synchronous>, transform_indices = @transform_13, window_bounds = array<i64: 576, 64>}, {pipeline_mode = #tpu.pipeline_mode<synchronous>, transform_indices = @transform_14, window_bounds = array<i64: 1, 64>}, {pipeline_mode = #tpu.pipeline_mode<synchronous>, transform_indices = @transform_15, window_bounds = array<i64: 576, 128>}, {pipeline_mode = #tpu.pipeline_mode<synchronous>, transform_indices = @transform_16, window_bounds = array<i64: 1, 128>}, {transform_indices = @transform_17, window_bounds = array<i64: 1, 256, 128>}, {transform_indices = @transform_18, window_bounds = array<i64: 1, 64, 128>}, {transform_indices = @transform_19, window_bounds = array<i64: 1, 16, 128>}, {transform_indices = @transform_20, window_bounds = array<i64: 1, 4, 128>}]} {
    %c0 = arith.constant 0 : index
    %c0_0 = arith.constant 0 : index
    %c0_1 = arith.constant 0 : index
    %0 = vector.load %arg1[%c0, %c0_0, %c0_1] : memref<1x256x192xbf16, #tpu.memory_space<vmem>>, vector<1x256x192xbf16>
    %1 = vector.shape_cast %0 : vector<1x256x192xbf16> to vector<256x192xbf16>
    %2 = tpu.iota {dimensions = array<i32: 0>} : vector<256x1xi32>
    %c16_i32 = arith.constant 16 : i32
    %c0_i32 = arith.constant 0 : i32
    %3 = arith.cmpi eq, %c16_i32, %c0_i32 : i32
    %c1_i32 = arith.constant 1 : i32
    %4 = arith.select %3, %c1_i32, %c16_i32 : i32
    %5 = vector.broadcast %4 : i32 to vector<256x1xi32>
    %6 = arith.remsi %2, %5 : vector<256x1xi32>
    %c0_i32_2 = arith.constant 0 : i32
    %7 = vector.broadcast %c0_i32_2 : i32 to vector<256x1xi32>
    %8 = arith.cmpi ne, %6, %7 : vector<256x1xi32>
    %c0_i32_3 = arith.constant 0 : i32
    %9 = vector.broadcast %c0_i32_3 : i32 to vector<256x1xi32>
    %10 = arith.cmpi slt, %6, %9 : vector<256x1xi32>
    %c0_i32_4 = arith.constant 0 : i32
    %11 = arith.cmpi slt, %4, %c0_i32_4 : i32
    %12 = vector.broadcast %11 : i1 to vector<256x1xi1>
    %13 = vector.broadcast %12 : vector<256x1xi1> to vector<256x1xi1>
    %14 = arith.xori %10, %13 : vector<256x1xi1>
    %15 = arith.andi %14, %8 : vector<256x1xi1>
    %16 = vector.broadcast %4 : i32 to vector<256x1xi32>
    %17 = arith.addi %6, %16 : vector<256x1xi32>
    %18 = arith.select %15, %17, %6 : vector<256x1xi1>, vector<256x1xi32>
    %c0_i32_5 = arith.constant 0 : i32
    %19 = vector.broadcast %c0_i32_5 : i32 to vector<256x1xi32>
    %20 = arith.cmpi ne, %18, %19 : vector<256x1xi32>
    %c15_i32 = arith.constant 15 : i32
    %21 = vector.broadcast %c15_i32 : i32 to vector<256x1xi32>
    %22 = arith.cmpi ne, %18, %21 : vector<256x1xi32>
    %cst = arith.constant 0.000000e+00 : bf16
    %23 = vector.broadcast %cst : bf16 to vector<1x192xbf16>
    %cst_6 = arith.constant 0.000000e+00 : bf16
    %24 = vector.broadcast %cst_6 : bf16 to vector<16x192xbf16>
    %cst_7 = arith.constant 0.000000e+00 : bf16
    %25 = vector.broadcast %cst_7 : bf16 to vector<256x192xbf16>
    %26 = vector.extract_strided_slice %1 {offsets = [0, 0], sizes = [255, 192], strides = [1, 1]} : vector<256x192xbf16> to vector<255x192xbf16>
    %27 = tpu.concatenate %23, %26 in 0 : vector<1x192xbf16>, vector<255x192xbf16> -> vector<256x192xbf16>
    %28 = vector.shape_cast %20 : vector<256x1xi1> to vector<256x1xi1>
    %29 = vector.broadcast %28 : vector<256x1xi1> to vector<256x192xi1>
    %30 = arith.select %29, %27, %25 : vector<256x192xi1>, vector<256x192xbf16>
    %31 = vector.extract_strided_slice %1 {offsets = [1, 0], sizes = [255, 192], strides = [1, 1]} : vector<256x192xbf16> to vector<255x192xbf16>
    %32 = tpu.concatenate %31, %23 in 0 : vector<255x192xbf16>, vector<1x192xbf16> -> vector<256x192xbf16>
    %33 = vector.shape_cast %22 : vector<256x1xi1> to vector<256x1xi1>
    %34 = vector.broadcast %33 : vector<256x1xi1> to vector<256x192xi1>
    %35 = arith.select %34, %32, %25 : vector<256x192xi1>, vector<256x192xbf16>
    %36 = vector.extract_strided_slice %30 {offsets = [0, 0], sizes = [240, 192], strides = [1, 1]} : vector<256x192xbf16> to vector<240x192xbf16>
    %37 = tpu.concatenate %24, %36 in 0 : vector<16x192xbf16>, vector<240x192xbf16> -> vector<256x192xbf16>
    %38 = vector.extract_strided_slice %1 {offsets = [0, 0], sizes = [240, 192], strides = [1, 1]} : vector<256x192xbf16> to vector<240x192xbf16>
    %39 = tpu.concatenate %24, %38 in 0 : vector<16x192xbf16>, vector<240x192xbf16> -> vector<256x192xbf16>
    %40 = vector.extract_strided_slice %35 {offsets = [0, 0], sizes = [240, 192], strides = [1, 1]} : vector<256x192xbf16> to vector<240x192xbf16>
    %41 = tpu.concatenate %24, %40 in 0 : vector<16x192xbf16>, vector<240x192xbf16> -> vector<256x192xbf16>
    %42 = vector.extract_strided_slice %30 {offsets = [16, 0], sizes = [240, 192], strides = [1, 1]} : vector<256x192xbf16> to vector<240x192xbf16>
    %43 = tpu.concatenate %42, %24 in 0 : vector<240x192xbf16>, vector<16x192xbf16> -> vector<256x192xbf16>
    %44 = vector.extract_strided_slice %1 {offsets = [16, 0], sizes = [240, 192], strides = [1, 1]} : vector<256x192xbf16> to vector<240x192xbf16>
    %45 = tpu.concatenate %44, %24 in 0 : vector<240x192xbf16>, vector<16x192xbf16> -> vector<256x192xbf16>
    %46 = vector.extract_strided_slice %35 {offsets = [16, 0], sizes = [240, 192], strides = [1, 1]} : vector<256x192xbf16> to vector<240x192xbf16>
    %47 = tpu.concatenate %46, %24 in 0 : vector<240x192xbf16>, vector<16x192xbf16> -> vector<256x192xbf16>
    %48 = tpu.concatenate %37, %39, %41, %30, %1, %35, %43, %45, %47 in 1 : vector<256x192xbf16>, vector<256x192xbf16>, vector<256x192xbf16>, vector<256x192xbf16>, vector<256x192xbf16>, vector<256x192xbf16>, vector<256x192xbf16>, vector<256x192xbf16>, vector<256x192xbf16> -> vector<256x1728xbf16>
    %c0_8 = arith.constant 0 : index
    %c0_9 = arith.constant 0 : index
    %49 = vector.load %arg2[%c0_8, %c0_9] : memref<1728x64xbf16, #tpu.memory_space<vmem>>, vector<1728x64xbf16>
    %cst_10 = arith.constant dense<0.000000e+00> : vector<256x64xf32>
    %50 = tpu.matmul %48, %49, %cst_10 {dimension_numbers = #tpu.dot_dimension_numbers<[1], [0], [0], [1], [0, 0, 1, 1], [], []>} : vector<256x1728xbf16>, vector<1728x64xbf16>, vector<256x64xf32> -> vector<256x64xf32>
    %c0_11 = arith.constant 0 : index
    %c0_12 = arith.constant 0 : index
    %51 = vector.load %arg3[%c0_11, %c0_12] : memref<1x64xf32, #tpu.memory_space<vmem>>, vector<1x64xf32>
    %52 = vector.broadcast %51 : vector<1x64xf32> to vector<256x64xf32>
    %53 = arith.addf %50, %52 : vector<256x64xf32>
    %cst_13 = arith.constant 0.000000e+00 : f32
    %54 = vector.broadcast %cst_13 : f32 to vector<256x64xf32>
    %55 = arith.maximumf %53, %54 : vector<256x64xf32>
    %56 = arith.truncf %55 : vector<256x64xf32> to vector<256x64xbf16>
    %cst_14 = arith.constant 0.000000e+00 : bf16
    %57 = vector.broadcast %cst_14 : bf16 to vector<1x64xbf16>
    %cst_15 = arith.constant 0.000000e+00 : bf16
    %58 = vector.broadcast %cst_15 : bf16 to vector<16x64xbf16>
    %cst_16 = arith.constant 0.000000e+00 : bf16
    %59 = vector.broadcast %cst_16 : bf16 to vector<256x64xbf16>
    %60 = vector.extract_strided_slice %56 {offsets = [0, 0], sizes = [255, 64], strides = [1, 1]} : vector<256x64xbf16> to vector<255x64xbf16>
    %61 = tpu.concatenate %57, %60 in 0 : vector<1x64xbf16>, vector<255x64xbf16> -> vector<256x64xbf16>
    %62 = vector.shape_cast %20 : vector<256x1xi1> to vector<256x1xi1>
    %63 = vector.broadcast %62 : vector<256x1xi1> to vector<256x64xi1>
    %64 = arith.select %63, %61, %59 : vector<256x64xi1>, vector<256x64xbf16>
    %65 = vector.extract_strided_slice %56 {offsets = [1, 0], sizes = [255, 64], strides = [1, 1]} : vector<256x64xbf16> to vector<255x64xbf16>
    %66 = tpu.concatenate %65, %57 in 0 : vector<255x64xbf16>, vector<1x64xbf16> -> vector<256x64xbf16>
    %67 = vector.shape_cast %22 : vector<256x1xi1> to vector<256x1xi1>
    %68 = vector.broadcast %67 : vector<256x1xi1> to vector<256x64xi1>
    %69 = arith.select %68, %66, %59 : vector<256x64xi1>, vector<256x64xbf16>
    %70 = vector.extract_strided_slice %64 {offsets = [0, 0], sizes = [240, 64], strides = [1, 1]} : vector<256x64xbf16> to vector<240x64xbf16>
    %71 = tpu.concatenate %58, %70 in 0 : vector<16x64xbf16>, vector<240x64xbf16> -> vector<256x64xbf16>
    %72 = vector.extract_strided_slice %56 {offsets = [0, 0], sizes = [240, 64], strides = [1, 1]} : vector<256x64xbf16> to vector<240x64xbf16>
    %73 = tpu.concatenate %58, %72 in 0 : vector<16x64xbf16>, vector<240x64xbf16> -> vector<256x64xbf16>
    %74 = vector.extract_strided_slice %69 {offsets = [0, 0], sizes = [240, 64], strides = [1, 1]} : vector<256x64xbf16> to vector<240x64xbf16>
    %75 = tpu.concatenate %58, %74 in 0 : vector<16x64xbf16>, vector<240x64xbf16> -> vector<256x64xbf16>
    %76 = vector.extract_strided_slice %64 {offsets = [16, 0], sizes = [240, 64], strides = [1, 1]} : vector<256x64xbf16> to vector<240x64xbf16>
    %77 = tpu.concatenate %76, %58 in 0 : vector<240x64xbf16>, vector<16x64xbf16> -> vector<256x64xbf16>
    %78 = vector.extract_strided_slice %56 {offsets = [16, 0], sizes = [240, 64], strides = [1, 1]} : vector<256x64xbf16> to vector<240x64xbf16>
    %79 = tpu.concatenate %78, %58 in 0 : vector<240x64xbf16>, vector<16x64xbf16> -> vector<256x64xbf16>
    %80 = vector.extract_strided_slice %69 {offsets = [16, 0], sizes = [240, 64], strides = [1, 1]} : vector<256x64xbf16> to vector<240x64xbf16>
    %81 = tpu.concatenate %80, %58 in 0 : vector<240x64xbf16>, vector<16x64xbf16> -> vector<256x64xbf16>
    %82 = tpu.concatenate %71, %73, %75, %64, %56, %69, %77, %79, %81 in 1 : vector<256x64xbf16>, vector<256x64xbf16>, vector<256x64xbf16>, vector<256x64xbf16>, vector<256x64xbf16>, vector<256x64xbf16>, vector<256x64xbf16>, vector<256x64xbf16>, vector<256x64xbf16> -> vector<256x576xbf16>
    %c0_17 = arith.constant 0 : index
    %c0_18 = arith.constant 0 : index
    %83 = vector.load %arg4[%c0_17, %c0_18] : memref<576x128xbf16, #tpu.memory_space<vmem>>, vector<576x128xbf16>
    %cst_19 = arith.constant dense<0.000000e+00> : vector<256x128xf32>
    %84 = tpu.matmul %82, %83, %cst_19 {dimension_numbers = #tpu.dot_dimension_numbers<[1], [0], [0], [1], [0, 0, 1, 1], [], []>} : vector<256x576xbf16>, vector<576x128xbf16>, vector<256x128xf32> -> vector<256x128xf32>
    %c0_20 = arith.constant 0 : index
    %c0_21 = arith.constant 0 : index
    %85 = vector.load %arg5[%c0_20, %c0_21] : memref<1x128xf32, #tpu.memory_space<vmem>>, vector<1x128xf32>
    %86 = vector.broadcast %85 : vector<1x128xf32> to vector<256x128xf32>
    %87 = arith.addf %84, %86 : vector<256x128xf32>
    %cst_22 = arith.constant 0.000000e+00 : f32
    %88 = vector.broadcast %cst_22 : f32 to vector<256x128xf32>
    %89 = arith.maximumf %87, %88 : vector<256x128xf32>
    %c0_23 = arith.constant 0 : index
    %c0_24 = arith.constant 0 : index
    %c0_25 = arith.constant 0 : index
    %90 = vector.load %arg18[%c0_23, %c0_24, %c0_25] : memref<1x256x128xf32, #tpu.memory_space<vmem>>, vector<1x256x128xf32>
    %91 = vector.shape_cast %90 : vector<1x256x128xf32> to vector<256x128xf32>
    %92 = vector.shape_cast %89 : vector<256x128xf32> to vector<1x256x128xf32>
    tpu.vector_store %arg18[%c0_23, %c0_24, %c0_25], %92 {strides = array<i32>} : memref<1x256x128xf32, #tpu.memory_space<vmem>>, vector<1x256x128xf32>,
    %93 = vector.shape_cast %55 : vector<256x64xf32> to vector<8x2x8x2x64xf32>
    %94 = vector.extract_strided_slice %93 {offsets = [0, 0, 0, 0, 0], sizes = [8, 1, 8, 1, 64], strides = [1, 1, 1, 1, 1]} : vector<8x2x8x2x64xf32> to vector<8x1x8x1x64xf32>
    %95 = vector.shape_cast %94 : vector<8x1x8x1x64xf32> to vector<8x8x64xf32>
    %96 = vector.extract_strided_slice %93 {offsets = [0, 0, 0, 1, 0], sizes = [8, 1, 8, 1, 64], strides = [1, 1, 1, 1, 1]} : vector<8x2x8x2x64xf32> to vector<8x1x8x1x64xf32>
    %97 = vector.shape_cast %96 : vector<8x1x8x1x64xf32> to vector<8x8x64xf32>
    %98 = arith.maximumf %95, %97 : vector<8x8x64xf32>
    %99 = vector.extract_strided_slice %93 {offsets = [0, 1, 0, 0, 0], sizes = [8, 1, 8, 1, 64], strides = [1, 1, 1, 1, 1]} : vector<8x2x8x2x64xf32> to vector<8x1x8x1x64xf32>
    %100 = vector.shape_cast %99 : vector<8x1x8x1x64xf32> to vector<8x8x64xf32>
    %101 = vector.extract_strided_slice %93 {offsets = [0, 1, 0, 1, 0], sizes = [8, 1, 8, 1, 64], strides = [1, 1, 1, 1, 1]} : vector<8x2x8x2x64xf32> to vector<8x1x8x1x64xf32>
    %102 = vector.shape_cast %101 : vector<8x1x8x1x64xf32> to vector<8x8x64xf32>
    %103 = arith.maximumf %100, %102 : vector<8x8x64xf32>
    %104 = arith.maximumf %98, %103 : vector<8x8x64xf32>
    %105 = vector.shape_cast %104 : vector<8x8x64xf32> to vector<64x64xf32>
    %106 = arith.truncf %105 : vector<64x64xf32> to vector<64x64xbf16>
    %107 = tpu.iota {dimensions = array<i32: 0>} : vector<64x1xi32>
    %c8_i32 = arith.constant 8 : i32
    %c0_i32_26 = arith.constant 0 : i32
    %108 = arith.cmpi eq, %c8_i32, %c0_i32_26 : i32
    %c1_i32_27 = arith.constant 1 : i32
    %109 = arith.select %108, %c1_i32_27, %c8_i32 : i32
    %110 = vector.broadcast %109 : i32 to vector<64x1xi32>
    %111 = arith.remsi %107, %110 : vector<64x1xi32>
    %c0_i32_28 = arith.constant 0 : i32
    %112 = vector.broadcast %c0_i32_28 : i32 to vector<64x1xi32>
    %113 = arith.cmpi ne, %111, %112 : vector<64x1xi32>
    %c0_i32_29 = arith.constant 0 : i32
    %114 = vector.broadcast %c0_i32_29 : i32 to vector<64x1xi32>
    %115 = arith.cmpi slt, %111, %114 : vector<64x1xi32>
    %c0_i32_30 = arith.constant 0 : i32
    %116 = arith.cmpi slt, %109, %c0_i32_30 : i32
    %117 = vector.broadcast %116 : i1 to vector<64x1xi1>
    %118 = vector.broadcast %117 : vector<64x1xi1> to vector<64x1xi1>
    %119 = arith.xori %115, %118 : vector<64x1xi1>
    %120 = arith.andi %119, %113 : vector<64x1xi1>
    %121 = vector.broadcast %109 : i32 to vector<64x1xi32>
    %122 = arith.addi %111, %121 : vector<64x1xi32>
    %123 = arith.select %120, %122, %111 : vector<64x1xi1>, vector<64x1xi32>
    %c0_i32_31 = arith.constant 0 : i32
    %124 = vector.broadcast %c0_i32_31 : i32 to vector<64x1xi32>
    %125 = arith.cmpi ne, %123, %124 : vector<64x1xi32>
    %c7_i32 = arith.constant 7 : i32
    %126 = vector.broadcast %c7_i32 : i32 to vector<64x1xi32>
    %127 = arith.cmpi ne, %123, %126 : vector<64x1xi32>
    %cst_32 = arith.constant 0.000000e+00 : bf16
    %128 = vector.broadcast %cst_32 : bf16 to vector<1x64xbf16>
    %cst_33 = arith.constant 0.000000e+00 : bf16
    %129 = vector.broadcast %cst_33 : bf16 to vector<8x64xbf16>
    %cst_34 = arith.constant 0.000000e+00 : bf16
    %130 = vector.broadcast %cst_34 : bf16 to vector<64x64xbf16>
    %131 = vector.extract_strided_slice %106 {offsets = [0, 0], sizes = [63, 64], strides = [1, 1]} : vector<64x64xbf16> to vector<63x64xbf16>
    %132 = tpu.concatenate %128, %131 in 0 : vector<1x64xbf16>, vector<63x64xbf16> -> vector<64x64xbf16>
    %133 = vector.shape_cast %125 : vector<64x1xi1> to vector<64x1xi1>
    %134 = vector.broadcast %133 : vector<64x1xi1> to vector<64x64xi1>
    %135 = arith.select %134, %132, %130 : vector<64x64xi1>, vector<64x64xbf16>
    %136 = vector.extract_strided_slice %106 {offsets = [1, 0], sizes = [63, 64], strides = [1, 1]} : vector<64x64xbf16> to vector<63x64xbf16>
    %137 = tpu.concatenate %136, %128 in 0 : vector<63x64xbf16>, vector<1x64xbf16> -> vector<64x64xbf16>
    %138 = vector.shape_cast %127 : vector<64x1xi1> to vector<64x1xi1>
    %139 = vector.broadcast %138 : vector<64x1xi1> to vector<64x64xi1>
    %140 = arith.select %139, %137, %130 : vector<64x64xi1>, vector<64x64xbf16>
    %141 = vector.extract_strided_slice %135 {offsets = [0, 0], sizes = [56, 64], strides = [1, 1]} : vector<64x64xbf16> to vector<56x64xbf16>
    %142 = tpu.concatenate %129, %141 in 0 : vector<8x64xbf16>, vector<56x64xbf16> -> vector<64x64xbf16>
    %143 = vector.extract_strided_slice %106 {offsets = [0, 0], sizes = [56, 64], strides = [1, 1]} : vector<64x64xbf16> to vector<56x64xbf16>
    %144 = tpu.concatenate %129, %143 in 0 : vector<8x64xbf16>, vector<56x64xbf16> -> vector<64x64xbf16>
    %145 = vector.extract_strided_slice %140 {offsets = [0, 0], sizes = [56, 64], strides = [1, 1]} : vector<64x64xbf16> to vector<56x64xbf16>
    %146 = tpu.concatenate %129, %145 in 0 : vector<8x64xbf16>, vector<56x64xbf16> -> vector<64x64xbf16>
    %147 = vector.extract_strided_slice %135 {offsets = [8, 0], sizes = [56, 64], strides = [1, 1]} : vector<64x64xbf16> to vector<56x64xbf16>
    %148 = tpu.concatenate %147, %129 in 0 : vector<56x64xbf16>, vector<8x64xbf16> -> vector<64x64xbf16>
    %149 = vector.extract_strided_slice %106 {offsets = [8, 0], sizes = [56, 64], strides = [1, 1]} : vector<64x64xbf16> to vector<56x64xbf16>
    %150 = tpu.concatenate %149, %129 in 0 : vector<56x64xbf16>, vector<8x64xbf16> -> vector<64x64xbf16>
    %151 = vector.extract_strided_slice %140 {offsets = [8, 0], sizes = [56, 64], strides = [1, 1]} : vector<64x64xbf16> to vector<56x64xbf16>
    %152 = tpu.concatenate %151, %129 in 0 : vector<56x64xbf16>, vector<8x64xbf16> -> vector<64x64xbf16>
    %153 = tpu.concatenate %142, %144, %146, %135, %106, %140, %148, %150, %152 in 1 : vector<64x64xbf16>, vector<64x64xbf16>, vector<64x64xbf16>, vector<64x64xbf16>, vector<64x64xbf16>, vector<64x64xbf16>, vector<64x64xbf16>, vector<64x64xbf16>, vector<64x64xbf16> -> vector<64x576xbf16>
    %c0_35 = arith.constant 0 : index
    %c0_36 = arith.constant 0 : index
    %154 = vector.load %arg6[%c0_35, %c0_36] : memref<576x64xbf16, #tpu.memory_space<vmem>>, vector<576x64xbf16>
    %cst_37 = arith.constant dense<0.000000e+00> : vector<64x64xf32>
    %155 = tpu.matmul %153, %154, %cst_37 {dimension_numbers = #tpu.dot_dimension_numbers<[1], [0], [0], [1], [0, 0, 1, 1], [], []>} : vector<64x576xbf16>, vector<576x64xbf16>, vector<64x64xf32> -> vector<64x64xf32>
    %c0_38 = arith.constant 0 : index
    %c0_39 = arith.constant 0 : index
    %156 = vector.load %arg7[%c0_38, %c0_39] : memref<1x64xf32, #tpu.memory_space<vmem>>, vector<1x64xf32>
    %157 = vector.broadcast %156 : vector<1x64xf32> to vector<64x64xf32>
    %158 = arith.addf %155, %157 : vector<64x64xf32>
    %cst_40 = arith.constant 0.000000e+00 : f32
    %159 = vector.broadcast %cst_40 : f32 to vector<64x64xf32>
    %160 = arith.maximumf %158, %159 : vector<64x64xf32>
    %161 = arith.truncf %160 : vector<64x64xf32> to vector<64x64xbf16>
    %cst_41 = arith.constant 0.000000e+00 : bf16
    %162 = vector.broadcast %cst_41 : bf16 to vector<1x64xbf16>
    %cst_42 = arith.constant 0.000000e+00 : bf16
    %163 = vector.broadcast %cst_42 : bf16 to vector<8x64xbf16>
    %cst_43 = arith.constant 0.000000e+00 : bf16
    %164 = vector.broadcast %cst_43 : bf16 to vector<64x64xbf16>
    %165 = vector.extract_strided_slice %161 {offsets = [0, 0], sizes = [63, 64], strides = [1, 1]} : vector<64x64xbf16> to vector<63x64xbf16>
    %166 = tpu.concatenate %162, %165 in 0 : vector<1x64xbf16>, vector<63x64xbf16> -> vector<64x64xbf16>
    %167 = vector.shape_cast %125 : vector<64x1xi1> to vector<64x1xi1>
    %168 = vector.broadcast %167 : vector<64x1xi1> to vector<64x64xi1>
    %169 = arith.select %168, %166, %164 : vector<64x64xi1>, vector<64x64xbf16>
    %170 = vector.extract_strided_slice %161 {offsets = [1, 0], sizes = [63, 64], strides = [1, 1]} : vector<64x64xbf16> to vector<63x64xbf16>
    %171 = tpu.concatenate %170, %162 in 0 : vector<63x64xbf16>, vector<1x64xbf16> -> vector<64x64xbf16>
    %172 = vector.shape_cast %127 : vector<64x1xi1> to vector<64x1xi1>
    %173 = vector.broadcast %172 : vector<64x1xi1> to vector<64x64xi1>
    %174 = arith.select %173, %171, %164 : vector<64x64xi1>, vector<64x64xbf16>
    %175 = vector.extract_strided_slice %169 {offsets = [0, 0], sizes = [56, 64], strides = [1, 1]} : vector<64x64xbf16> to vector<56x64xbf16>
    %176 = tpu.concatenate %163, %175 in 0 : vector<8x64xbf16>, vector<56x64xbf16> -> vector<64x64xbf16>
    %177 = vector.extract_strided_slice %161 {offsets = [0, 0], sizes = [56, 64], strides = [1, 1]} : vector<64x64xbf16> to vector<56x64xbf16>
    %178 = tpu.concatenate %163, %177 in 0 : vector<8x64xbf16>, vector<56x64xbf16> -> vector<64x64xbf16>
    %179 = vector.extract_strided_slice %174 {offsets = [0, 0], sizes = [56, 64], strides = [1, 1]} : vector<64x64xbf16> to vector<56x64xbf16>
    %180 = tpu.concatenate %163, %179 in 0 : vector<8x64xbf16>, vector<56x64xbf16> -> vector<64x64xbf16>
    %181 = vector.extract_strided_slice %169 {offsets = [8, 0], sizes = [56, 64], strides = [1, 1]} : vector<64x64xbf16> to vector<56x64xbf16>
    %182 = tpu.concatenate %181, %163 in 0 : vector<56x64xbf16>, vector<8x64xbf16> -> vector<64x64xbf16>
    %183 = vector.extract_strided_slice %161 {offsets = [8, 0], sizes = [56, 64], strides = [1, 1]} : vector<64x64xbf16> to vector<56x64xbf16>
    %184 = tpu.concatenate %183, %163 in 0 : vector<56x64xbf16>, vector<8x64xbf16> -> vector<64x64xbf16>
    %185 = vector.extract_strided_slice %174 {offsets = [8, 0], sizes = [56, 64], strides = [1, 1]} : vector<64x64xbf16> to vector<56x64xbf16>
    %186 = tpu.concatenate %185, %163 in 0 : vector<56x64xbf16>, vector<8x64xbf16> -> vector<64x64xbf16>
    %187 = tpu.concatenate %176, %178, %180, %169, %161, %174, %182, %184, %186 in 1 : vector<64x64xbf16>, vector<64x64xbf16>, vector<64x64xbf16>, vector<64x64xbf16>, vector<64x64xbf16>, vector<64x64xbf16>, vector<64x64xbf16>, vector<64x64xbf16>, vector<64x64xbf16> -> vector<64x576xbf16>
    %c0_44 = arith.constant 0 : index
    %c0_45 = arith.constant 0 : index
    %188 = vector.load %arg8[%c0_44, %c0_45] : memref<576x128xbf16, #tpu.memory_space<vmem>>, vector<576x128xbf16>
    %cst_46 = arith.constant dense<0.000000e+00> : vector<64x128xf32>
    %189 = tpu.matmul %187, %188, %cst_46 {dimension_numbers = #tpu.dot_dimension_numbers<[1], [0], [0], [1], [0, 0, 1, 1], [], []>} : vector<64x576xbf16>, vector<576x128xbf16>, vector<64x128xf32> -> vector<64x128xf32>
    %c0_47 = arith.constant 0 : index
    %c0_48 = arith.constant 0 : index
    %190 = vector.load %arg9[%c0_47, %c0_48] : memref<1x128xf32, #tpu.memory_space<vmem>>, vector<1x128xf32>
    %191 = vector.broadcast %190 : vector<1x128xf32> to vector<64x128xf32>
    %192 = arith.addf %189, %191 : vector<64x128xf32>
    %cst_49 = arith.constant 0.000000e+00 : f32
    %193 = vector.broadcast %cst_49 : f32 to vector<64x128xf32>
    %194 = arith.maximumf %192, %193 : vector<64x128xf32>
    %c0_50 = arith.constant 0 : index
    %c0_51 = arith.constant 0 : index
    %c0_52 = arith.constant 0 : index
    %195 = vector.load %arg19[%c0_50, %c0_51, %c0_52] : memref<1x64x128xf32, #tpu.memory_space<vmem>>, vector<1x64x128xf32>
    %196 = vector.shape_cast %195 : vector<1x64x128xf32> to vector<64x128xf32>
    %197 = vector.shape_cast %194 : vector<64x128xf32> to vector<1x64x128xf32>
    tpu.vector_store %arg19[%c0_50, %c0_51, %c0_52], %197 {strides = array<i32>} : memref<1x64x128xf32, #tpu.memory_space<vmem>>, vector<1x64x128xf32>,
    %198 = vector.shape_cast %160 : vector<64x64xf32> to vector<4x2x4x2x64xf32>
    %199 = vector.extract_strided_slice %198 {offsets = [0, 0, 0, 0, 0], sizes = [4, 1, 4, 1, 64], strides = [1, 1, 1, 1, 1]} : vector<4x2x4x2x64xf32> to vector<4x1x4x1x64xf32>
    %200 = vector.shape_cast %199 : vector<4x1x4x1x64xf32> to vector<4x4x64xf32>
    %201 = vector.extract_strided_slice %198 {offsets = [0, 0, 0, 1, 0], sizes = [4, 1, 4, 1, 64], strides = [1, 1, 1, 1, 1]} : vector<4x2x4x2x64xf32> to vector<4x1x4x1x64xf32>
    %202 = vector.shape_cast %201 : vector<4x1x4x1x64xf32> to vector<4x4x64xf32>
    %203 = arith.maximumf %200, %202 : vector<4x4x64xf32>
    %204 = vector.extract_strided_slice %198 {offsets = [0, 1, 0, 0, 0], sizes = [4, 1, 4, 1, 64], strides = [1, 1, 1, 1, 1]} : vector<4x2x4x2x64xf32> to vector<4x1x4x1x64xf32>
    %205 = vector.shape_cast %204 : vector<4x1x4x1x64xf32> to vector<4x4x64xf32>
    %206 = vector.extract_strided_slice %198 {offsets = [0, 1, 0, 1, 0], sizes = [4, 1, 4, 1, 64], strides = [1, 1, 1, 1, 1]} : vector<4x2x4x2x64xf32> to vector<4x1x4x1x64xf32>
    %207 = vector.shape_cast %206 : vector<4x1x4x1x64xf32> to vector<4x4x64xf32>
    %208 = arith.maximumf %205, %207 : vector<4x4x64xf32>
    %209 = arith.maximumf %203, %208 : vector<4x4x64xf32>
    %210 = vector.shape_cast %209 : vector<4x4x64xf32> to vector<16x64xf32>
    %211 = arith.truncf %210 : vector<16x64xf32> to vector<16x64xbf16>
    %212 = tpu.iota {dimensions = array<i32: 0>} : vector<16x1xi32>
    %c4_i32 = arith.constant 4 : i32
    %c0_i32_53 = arith.constant 0 : i32
    %213 = arith.cmpi eq, %c4_i32, %c0_i32_53 : i32
    %c1_i32_54 = arith.constant 1 : i32
    %214 = arith.select %213, %c1_i32_54, %c4_i32 : i32
    %215 = vector.broadcast %214 : i32 to vector<16x1xi32>
    %216 = arith.remsi %212, %215 : vector<16x1xi32>
    %c0_i32_55 = arith.constant 0 : i32
    %217 = vector.broadcast %c0_i32_55 : i32 to vector<16x1xi32>
    %218 = arith.cmpi ne, %216, %217 : vector<16x1xi32>
    %c0_i32_56 = arith.constant 0 : i32
    %219 = vector.broadcast %c0_i32_56 : i32 to vector<16x1xi32>
    %220 = arith.cmpi slt, %216, %219 : vector<16x1xi32>
    %c0_i32_57 = arith.constant 0 : i32
    %221 = arith.cmpi slt, %214, %c0_i32_57 : i32
    %222 = vector.broadcast %221 : i1 to vector<16x1xi1>
    %223 = vector.broadcast %222 : vector<16x1xi1> to vector<16x1xi1>
    %224 = arith.xori %220, %223 : vector<16x1xi1>
    %225 = arith.andi %224, %218 : vector<16x1xi1>
    %226 = vector.broadcast %214 : i32 to vector<16x1xi32>
    %227 = arith.addi %216, %226 : vector<16x1xi32>
    %228 = arith.select %225, %227, %216 : vector<16x1xi1>, vector<16x1xi32>
    %c0_i32_58 = arith.constant 0 : i32
    %229 = vector.broadcast %c0_i32_58 : i32 to vector<16x1xi32>
    %230 = arith.cmpi ne, %228, %229 : vector<16x1xi32>
    %c3_i32 = arith.constant 3 : i32
    %231 = vector.broadcast %c3_i32 : i32 to vector<16x1xi32>
    %232 = arith.cmpi ne, %228, %231 : vector<16x1xi32>
    %cst_59 = arith.constant 0.000000e+00 : bf16
    %233 = vector.broadcast %cst_59 : bf16 to vector<1x64xbf16>
    %cst_60 = arith.constant 0.000000e+00 : bf16
    %234 = vector.broadcast %cst_60 : bf16 to vector<4x64xbf16>
    %cst_61 = arith.constant 0.000000e+00 : bf16
    %235 = vector.broadcast %cst_61 : bf16 to vector<16x64xbf16>
    %236 = vector.extract_strided_slice %211 {offsets = [0, 0], sizes = [15, 64], strides = [1, 1]} : vector<16x64xbf16> to vector<15x64xbf16>
    %237 = tpu.concatenate %233, %236 in 0 : vector<1x64xbf16>, vector<15x64xbf16> -> vector<16x64xbf16>
    %238 = vector.shape_cast %230 : vector<16x1xi1> to vector<16x1xi1>
    %239 = vector.broadcast %238 : vector<16x1xi1> to vector<16x64xi1>
    %240 = arith.select %239, %237, %235 : vector<16x64xi1>, vector<16x64xbf16>
    %241 = vector.extract_strided_slice %211 {offsets = [1, 0], sizes = [15, 64], strides = [1, 1]} : vector<16x64xbf16> to vector<15x64xbf16>
    %242 = tpu.concatenate %241, %233 in 0 : vector<15x64xbf16>, vector<1x64xbf16> -> vector<16x64xbf16>
    %243 = vector.shape_cast %232 : vector<16x1xi1> to vector<16x1xi1>
    %244 = vector.broadcast %243 : vector<16x1xi1> to vector<16x64xi1>
    %245 = arith.select %244, %242, %235 : vector<16x64xi1>, vector<16x64xbf16>
    %246 = vector.extract_strided_slice %240 {offsets = [0, 0], sizes = [12, 64], strides = [1, 1]} : vector<16x64xbf16> to vector<12x64xbf16>
    %247 = tpu.concatenate %234, %246 in 0 : vector<4x64xbf16>, vector<12x64xbf16> -> vector<16x64xbf16>
    %248 = vector.extract_strided_slice %211 {offsets = [0, 0], sizes = [12, 64], strides = [1, 1]} : vector<16x64xbf16> to vector<12x64xbf16>
    %249 = tpu.concatenate %234, %248 in 0 : vector<4x64xbf16>, vector<12x64xbf16> -> vector<16x64xbf16>
    %250 = vector.extract_strided_slice %245 {offsets = [0, 0], sizes = [12, 64], strides = [1, 1]} : vector<16x64xbf16> to vector<12x64xbf16>
    %251 = tpu.concatenate %234, %250 in 0 : vector<4x64xbf16>, vector<12x64xbf16> -> vector<16x64xbf16>
    %252 = vector.extract_strided_slice %240 {offsets = [4, 0], sizes = [12, 64], strides = [1, 1]} : vector<16x64xbf16> to vector<12x64xbf16>
    %253 = tpu.concatenate %252, %234 in 0 : vector<12x64xbf16>, vector<4x64xbf16> -> vector<16x64xbf16>
    %254 = vector.extract_strided_slice %211 {offsets = [4, 0], sizes = [12, 64], strides = [1, 1]} : vector<16x64xbf16> to vector<12x64xbf16>
    %255 = tpu.concatenate %254, %234 in 0 : vector<12x64xbf16>, vector<4x64xbf16> -> vector<16x64xbf16>
    %256 = vector.extract_strided_slice %245 {offsets = [4, 0], sizes = [12, 64], strides = [1, 1]} : vector<16x64xbf16> to vector<12x64xbf16>
    %257 = tpu.concatenate %256, %234 in 0 : vector<12x64xbf16>, vector<4x64xbf16> -> vector<16x64xbf16>
    %258 = tpu.concatenate %247, %249, %251, %240, %211, %245, %253, %255, %257 in 1 : vector<16x64xbf16>, vector<16x64xbf16>, vector<16x64xbf16>, vector<16x64xbf16>, vector<16x64xbf16>, vector<16x64xbf16>, vector<16x64xbf16>, vector<16x64xbf16>, vector<16x64xbf16> -> vector<16x576xbf16>
    %c0_62 = arith.constant 0 : index
    %c0_63 = arith.constant 0 : index
    %259 = vector.load %arg10[%c0_62, %c0_63] : memref<576x64xbf16, #tpu.memory_space<vmem>>, vector<576x64xbf16>
    %cst_64 = arith.constant dense<0.000000e+00> : vector<16x64xf32>
    %260 = tpu.matmul %258, %259, %cst_64 {dimension_numbers = #tpu.dot_dimension_numbers<[1], [0], [0], [1], [0, 0, 1, 1], [], []>} : vector<16x576xbf16>, vector<576x64xbf16>, vector<16x64xf32> -> vector<16x64xf32>
    %c0_65 = arith.constant 0 : index
    %c0_66 = arith.constant 0 : index
    %261 = vector.load %arg11[%c0_65, %c0_66] : memref<1x64xf32, #tpu.memory_space<vmem>>, vector<1x64xf32>
    %262 = vector.broadcast %261 : vector<1x64xf32> to vector<16x64xf32>
    %263 = arith.addf %260, %262 : vector<16x64xf32>
    %cst_67 = arith.constant 0.000000e+00 : f32
    %264 = vector.broadcast %cst_67 : f32 to vector<16x64xf32>
    %265 = arith.maximumf %263, %264 : vector<16x64xf32>
    %266 = arith.truncf %265 : vector<16x64xf32> to vector<16x64xbf16>
    %cst_68 = arith.constant 0.000000e+00 : bf16
    %267 = vector.broadcast %cst_68 : bf16 to vector<1x64xbf16>
    %cst_69 = arith.constant 0.000000e+00 : bf16
    %268 = vector.broadcast %cst_69 : bf16 to vector<4x64xbf16>
    %cst_70 = arith.constant 0.000000e+00 : bf16
    %269 = vector.broadcast %cst_70 : bf16 to vector<16x64xbf16>
    %270 = vector.extract_strided_slice %266 {offsets = [0, 0], sizes = [15, 64], strides = [1, 1]} : vector<16x64xbf16> to vector<15x64xbf16>
    %271 = tpu.concatenate %267, %270 in 0 : vector<1x64xbf16>, vector<15x64xbf16> -> vector<16x64xbf16>
    %272 = vector.shape_cast %230 : vector<16x1xi1> to vector<16x1xi1>
    %273 = vector.broadcast %272 : vector<16x1xi1> to vector<16x64xi1>
    %274 = arith.select %273, %271, %269 : vector<16x64xi1>, vector<16x64xbf16>
    %275 = vector.extract_strided_slice %266 {offsets = [1, 0], sizes = [15, 64], strides = [1, 1]} : vector<16x64xbf16> to vector<15x64xbf16>
    %276 = tpu.concatenate %275, %267 in 0 : vector<15x64xbf16>, vector<1x64xbf16> -> vector<16x64xbf16>
    %277 = vector.shape_cast %232 : vector<16x1xi1> to vector<16x1xi1>
    %278 = vector.broadcast %277 : vector<16x1xi1> to vector<16x64xi1>
    %279 = arith.select %278, %276, %269 : vector<16x64xi1>, vector<16x64xbf16>
    %280 = vector.extract_strided_slice %274 {offsets = [0, 0], sizes = [12, 64], strides = [1, 1]} : vector<16x64xbf16> to vector<12x64xbf16>
    %281 = tpu.concatenate %268, %280 in 0 : vector<4x64xbf16>, vector<12x64xbf16> -> vector<16x64xbf16>
    %282 = vector.extract_strided_slice %266 {offsets = [0, 0], sizes = [12, 64], strides = [1, 1]} : vector<16x64xbf16> to vector<12x64xbf16>
    %283 = tpu.concatenate %268, %282 in 0 : vector<4x64xbf16>, vector<12x64xbf16> -> vector<16x64xbf16>
    %284 = vector.extract_strided_slice %279 {offsets = [0, 0], sizes = [12, 64], strides = [1, 1]} : vector<16x64xbf16> to vector<12x64xbf16>
    %285 = tpu.concatenate %268, %284 in 0 : vector<4x64xbf16>, vector<12x64xbf16> -> vector<16x64xbf16>
    %286 = vector.extract_strided_slice %274 {offsets = [4, 0], sizes = [12, 64], strides = [1, 1]} : vector<16x64xbf16> to vector<12x64xbf16>
    %287 = tpu.concatenate %286, %268 in 0 : vector<12x64xbf16>, vector<4x64xbf16> -> vector<16x64xbf16>
    %288 = vector.extract_strided_slice %266 {offsets = [4, 0], sizes = [12, 64], strides = [1, 1]} : vector<16x64xbf16> to vector<12x64xbf16>
    %289 = tpu.concatenate %288, %268 in 0 : vector<12x64xbf16>, vector<4x64xbf16> -> vector<16x64xbf16>
    %290 = vector.extract_strided_slice %279 {offsets = [4, 0], sizes = [12, 64], strides = [1, 1]} : vector<16x64xbf16> to vector<12x64xbf16>
    %291 = tpu.concatenate %290, %268 in 0 : vector<12x64xbf16>, vector<4x64xbf16> -> vector<16x64xbf16>
    %292 = tpu.concatenate %281, %283, %285, %274, %266, %279, %287, %289, %291 in 1 : vector<16x64xbf16>, vector<16x64xbf16>, vector<16x64xbf16>, vector<16x64xbf16>, vector<16x64xbf16>, vector<16x64xbf16>, vector<16x64xbf16>, vector<16x64xbf16>, vector<16x64xbf16> -> vector<16x576xbf16>
    %c0_71 = arith.constant 0 : index
    %c0_72 = arith.constant 0 : index
    %293 = vector.load %arg12[%c0_71, %c0_72] : memref<576x128xbf16, #tpu.memory_space<vmem>>, vector<576x128xbf16>
    %cst_73 = arith.constant dense<0.000000e+00> : vector<16x128xf32>
    %294 = tpu.matmul %292, %293, %cst_73 {dimension_numbers = #tpu.dot_dimension_numbers<[1], [0], [0], [1], [0, 0, 1, 1], [], []>} : vector<16x576xbf16>, vector<576x128xbf16>, vector<16x128xf32> -> vector<16x128xf32>
    %c0_74 = arith.constant 0 : index
    %c0_75 = arith.constant 0 : index
    %295 = vector.load %arg13[%c0_74, %c0_75] : memref<1x128xf32, #tpu.memory_space<vmem>>, vector<1x128xf32>
    %296 = vector.broadcast %295 : vector<1x128xf32> to vector<16x128xf32>
    %297 = arith.addf %294, %296 : vector<16x128xf32>
    %cst_76 = arith.constant 0.000000e+00 : f32
    %298 = vector.broadcast %cst_76 : f32 to vector<16x128xf32>
    %299 = arith.maximumf %297, %298 : vector<16x128xf32>
    %c0_77 = arith.constant 0 : index
    %c0_78 = arith.constant 0 : index
    %c0_79 = arith.constant 0 : index
    %300 = vector.load %arg20[%c0_77, %c0_78, %c0_79] : memref<1x16x128xf32, #tpu.memory_space<vmem>>, vector<1x16x128xf32>
    %301 = vector.shape_cast %300 : vector<1x16x128xf32> to vector<16x128xf32>
    %302 = vector.shape_cast %299 : vector<16x128xf32> to vector<1x16x128xf32>
    tpu.vector_store %arg20[%c0_77, %c0_78, %c0_79], %302 {strides = array<i32>} : memref<1x16x128xf32, #tpu.memory_space<vmem>>, vector<1x16x128xf32>,
    %303 = vector.shape_cast %265 : vector<16x64xf32> to vector<2x2x2x2x64xf32>
    %304 = vector.extract_strided_slice %303 {offsets = [0, 0, 0, 0, 0], sizes = [2, 1, 2, 1, 64], strides = [1, 1, 1, 1, 1]} : vector<2x2x2x2x64xf32> to vector<2x1x2x1x64xf32>
    %305 = vector.shape_cast %304 : vector<2x1x2x1x64xf32> to vector<2x2x64xf32>
    %306 = vector.extract_strided_slice %303 {offsets = [0, 0, 0, 1, 0], sizes = [2, 1, 2, 1, 64], strides = [1, 1, 1, 1, 1]} : vector<2x2x2x2x64xf32> to vector<2x1x2x1x64xf32>
    %307 = vector.shape_cast %306 : vector<2x1x2x1x64xf32> to vector<2x2x64xf32>
    %308 = arith.maximumf %305, %307 : vector<2x2x64xf32>
    %309 = vector.extract_strided_slice %303 {offsets = [0, 1, 0, 0, 0], sizes = [2, 1, 2, 1, 64], strides = [1, 1, 1, 1, 1]} : vector<2x2x2x2x64xf32> to vector<2x1x2x1x64xf32>
    %310 = vector.shape_cast %309 : vector<2x1x2x1x64xf32> to vector<2x2x64xf32>
    %311 = vector.extract_strided_slice %303 {offsets = [0, 1, 0, 1, 0], sizes = [2, 1, 2, 1, 64], strides = [1, 1, 1, 1, 1]} : vector<2x2x2x2x64xf32> to vector<2x1x2x1x64xf32>
    %312 = vector.shape_cast %311 : vector<2x1x2x1x64xf32> to vector<2x2x64xf32>
    %313 = arith.maximumf %310, %312 : vector<2x2x64xf32>
    %314 = arith.maximumf %308, %313 : vector<2x2x64xf32>
    %315 = vector.shape_cast %314 : vector<2x2x64xf32> to vector<4x64xf32>
    %316 = arith.truncf %315 : vector<4x64xf32> to vector<4x64xbf16>
    %317 = tpu.iota {dimensions = array<i32: 0>} : vector<4x1xi32>
    %c2_i32 = arith.constant 2 : i32
    %c0_i32_80 = arith.constant 0 : i32
    %318 = arith.cmpi eq, %c2_i32, %c0_i32_80 : i32
    %c1_i32_81 = arith.constant 1 : i32
    %319 = arith.select %318, %c1_i32_81, %c2_i32 : i32
    %320 = vector.broadcast %319 : i32 to vector<4x1xi32>
    %321 = arith.remsi %317, %320 : vector<4x1xi32>
    %c0_i32_82 = arith.constant 0 : i32
    %322 = vector.broadcast %c0_i32_82 : i32 to vector<4x1xi32>
    %323 = arith.cmpi ne, %321, %322 : vector<4x1xi32>
    %c0_i32_83 = arith.constant 0 : i32
    %324 = vector.broadcast %c0_i32_83 : i32 to vector<4x1xi32>
    %325 = arith.cmpi slt, %321, %324 : vector<4x1xi32>
    %c0_i32_84 = arith.constant 0 : i32
    %326 = arith.cmpi slt, %319, %c0_i32_84 : i32
    %327 = vector.broadcast %326 : i1 to vector<4x1xi1>
    %328 = vector.broadcast %327 : vector<4x1xi1> to vector<4x1xi1>
    %329 = arith.xori %325, %328 : vector<4x1xi1>
    %330 = arith.andi %329, %323 : vector<4x1xi1>
    %331 = vector.broadcast %319 : i32 to vector<4x1xi32>
    %332 = arith.addi %321, %331 : vector<4x1xi32>
    %333 = arith.select %330, %332, %321 : vector<4x1xi1>, vector<4x1xi32>
    %c0_i32_85 = arith.constant 0 : i32
    %334 = vector.broadcast %c0_i32_85 : i32 to vector<4x1xi32>
    %335 = arith.cmpi ne, %333, %334 : vector<4x1xi32>
    %c1_i32_86 = arith.constant 1 : i32
    %336 = vector.broadcast %c1_i32_86 : i32 to vector<4x1xi32>
    %337 = arith.cmpi ne, %333, %336 : vector<4x1xi32>
    %cst_87 = arith.constant 0.000000e+00 : bf16
    %338 = vector.broadcast %cst_87 : bf16 to vector<1x64xbf16>
    %cst_88 = arith.constant 0.000000e+00 : bf16
    %339 = vector.broadcast %cst_88 : bf16 to vector<2x64xbf16>
    %cst_89 = arith.constant 0.000000e+00 : bf16
    %340 = vector.broadcast %cst_89 : bf16 to vector<4x64xbf16>
    %341 = vector.extract_strided_slice %316 {offsets = [0, 0], sizes = [3, 64], strides = [1, 1]} : vector<4x64xbf16> to vector<3x64xbf16>
    %342 = tpu.concatenate %338, %341 in 0 : vector<1x64xbf16>, vector<3x64xbf16> -> vector<4x64xbf16>
    %343 = vector.shape_cast %335 : vector<4x1xi1> to vector<4x1xi1>
    %344 = vector.broadcast %343 : vector<4x1xi1> to vector<4x64xi1>
    %345 = arith.select %344, %342, %340 : vector<4x64xi1>, vector<4x64xbf16>
    %346 = vector.extract_strided_slice %316 {offsets = [1, 0], sizes = [3, 64], strides = [1, 1]} : vector<4x64xbf16> to vector<3x64xbf16>
    %347 = tpu.concatenate %346, %338 in 0 : vector<3x64xbf16>, vector<1x64xbf16> -> vector<4x64xbf16>
    %348 = vector.shape_cast %337 : vector<4x1xi1> to vector<4x1xi1>
    %349 = vector.broadcast %348 : vector<4x1xi1> to vector<4x64xi1>
    %350 = arith.select %349, %347, %340 : vector<4x64xi1>, vector<4x64xbf16>
    %351 = vector.extract_strided_slice %345 {offsets = [0, 0], sizes = [2, 64], strides = [1, 1]} : vector<4x64xbf16> to vector<2x64xbf16>
    %352 = tpu.concatenate %339, %351 in 0 : vector<2x64xbf16>, vector<2x64xbf16> -> vector<4x64xbf16>
    %353 = vector.extract_strided_slice %316 {offsets = [0, 0], sizes = [2, 64], strides = [1, 1]} : vector<4x64xbf16> to vector<2x64xbf16>
    %354 = tpu.concatenate %339, %353 in 0 : vector<2x64xbf16>, vector<2x64xbf16> -> vector<4x64xbf16>
    %355 = vector.extract_strided_slice %350 {offsets = [0, 0], sizes = [2, 64], strides = [1, 1]} : vector<4x64xbf16> to vector<2x64xbf16>
    %356 = tpu.concatenate %339, %355 in 0 : vector<2x64xbf16>, vector<2x64xbf16> -> vector<4x64xbf16>
    %357 = vector.extract_strided_slice %345 {offsets = [2, 0], sizes = [2, 64], strides = [1, 1]} : vector<4x64xbf16> to vector<2x64xbf16>
    %358 = tpu.concatenate %357, %339 in 0 : vector<2x64xbf16>, vector<2x64xbf16> -> vector<4x64xbf16>
    %359 = vector.extract_strided_slice %316 {offsets = [2, 0], sizes = [2, 64], strides = [1, 1]} : vector<4x64xbf16> to vector<2x64xbf16>
    %360 = tpu.concatenate %359, %339 in 0 : vector<2x64xbf16>, vector<2x64xbf16> -> vector<4x64xbf16>
    %361 = vector.extract_strided_slice %350 {offsets = [2, 0], sizes = [2, 64], strides = [1, 1]} : vector<4x64xbf16> to vector<2x64xbf16>
    %362 = tpu.concatenate %361, %339 in 0 : vector<2x64xbf16>, vector<2x64xbf16> -> vector<4x64xbf16>
    %363 = tpu.concatenate %352, %354, %356, %345, %316, %350, %358, %360, %362 in 1 : vector<4x64xbf16>, vector<4x64xbf16>, vector<4x64xbf16>, vector<4x64xbf16>, vector<4x64xbf16>, vector<4x64xbf16>, vector<4x64xbf16>, vector<4x64xbf16>, vector<4x64xbf16> -> vector<4x576xbf16>
    %c0_90 = arith.constant 0 : index
    %c0_91 = arith.constant 0 : index
    %364 = vector.load %arg14[%c0_90, %c0_91] : memref<576x64xbf16, #tpu.memory_space<vmem>>, vector<576x64xbf16>
    %cst_92 = arith.constant dense<0.000000e+00> : vector<4x64xf32>
    %365 = tpu.matmul %363, %364, %cst_92 {dimension_numbers = #tpu.dot_dimension_numbers<[1], [0], [0], [1], [0, 0, 1, 1], [], []>} : vector<4x576xbf16>, vector<576x64xbf16>, vector<4x64xf32> -> vector<4x64xf32>
    %c0_93 = arith.constant 0 : index
    %c0_94 = arith.constant 0 : index
    %366 = vector.load %arg15[%c0_93, %c0_94] : memref<1x64xf32, #tpu.memory_space<vmem>>, vector<1x64xf32>
    %367 = vector.broadcast %366 : vector<1x64xf32> to vector<4x64xf32>
    %368 = arith.addf %365, %367 : vector<4x64xf32>
    %cst_95 = arith.constant 0.000000e+00 : f32
    %369 = vector.broadcast %cst_95 : f32 to vector<4x64xf32>
    %370 = arith.maximumf %368, %369 : vector<4x64xf32>
    %371 = arith.truncf %370 : vector<4x64xf32> to vector<4x64xbf16>
    %cst_96 = arith.constant 0.000000e+00 : bf16
    %372 = vector.broadcast %cst_96 : bf16 to vector<1x64xbf16>
    %cst_97 = arith.constant 0.000000e+00 : bf16
    %373 = vector.broadcast %cst_97 : bf16 to vector<2x64xbf16>
    %cst_98 = arith.constant 0.000000e+00 : bf16
    %374 = vector.broadcast %cst_98 : bf16 to vector<4x64xbf16>
    %375 = vector.extract_strided_slice %371 {offsets = [0, 0], sizes = [3, 64], strides = [1, 1]} : vector<4x64xbf16> to vector<3x64xbf16>
    %376 = tpu.concatenate %372, %375 in 0 : vector<1x64xbf16>, vector<3x64xbf16> -> vector<4x64xbf16>
    %377 = vector.shape_cast %335 : vector<4x1xi1> to vector<4x1xi1>
    %378 = vector.broadcast %377 : vector<4x1xi1> to vector<4x64xi1>
    %379 = arith.select %378, %376, %374 : vector<4x64xi1>, vector<4x64xbf16>
    %380 = vector.extract_strided_slice %371 {offsets = [1, 0], sizes = [3, 64], strides = [1, 1]} : vector<4x64xbf16> to vector<3x64xbf16>
    %381 = tpu.concatenate %380, %372 in 0 : vector<3x64xbf16>, vector<1x64xbf16> -> vector<4x64xbf16>
    %382 = vector.shape_cast %337 : vector<4x1xi1> to vector<4x1xi1>
    %383 = vector.broadcast %382 : vector<4x1xi1> to vector<4x64xi1>
    %384 = arith.select %383, %381, %374 : vector<4x64xi1>, vector<4x64xbf16>
    %385 = vector.extract_strided_slice %379 {offsets = [0, 0], sizes = [2, 64], strides = [1, 1]} : vector<4x64xbf16> to vector<2x64xbf16>
    %386 = tpu.concatenate %373, %385 in 0 : vector<2x64xbf16>, vector<2x64xbf16> -> vector<4x64xbf16>
    %387 = vector.extract_strided_slice %371 {offsets = [0, 0], sizes = [2, 64], strides = [1, 1]} : vector<4x64xbf16> to vector<2x64xbf16>
    %388 = tpu.concatenate %373, %387 in 0 : vector<2x64xbf16>, vector<2x64xbf16> -> vector<4x64xbf16>
    %389 = vector.extract_strided_slice %384 {offsets = [0, 0], sizes = [2, 64], strides = [1, 1]} : vector<4x64xbf16> to vector<2x64xbf16>
    %390 = tpu.concatenate %373, %389 in 0 : vector<2x64xbf16>, vector<2x64xbf16> -> vector<4x64xbf16>
    %391 = vector.extract_strided_slice %379 {offsets = [2, 0], sizes = [2, 64], strides = [1, 1]} : vector<4x64xbf16> to vector<2x64xbf16>
    %392 = tpu.concatenate %391, %373 in 0 : vector<2x64xbf16>, vector<2x64xbf16> -> vector<4x64xbf16>
    %393 = vector.extract_strided_slice %371 {offsets = [2, 0], sizes = [2, 64], strides = [1, 1]} : vector<4x64xbf16> to vector<2x64xbf16>
    %394 = tpu.concatenate %393, %373 in 0 : vector<2x64xbf16>, vector<2x64xbf16> -> vector<4x64xbf16>
    %395 = vector.extract_strided_slice %384 {offsets = [2, 0], sizes = [2, 64], strides = [1, 1]} : vector<4x64xbf16> to vector<2x64xbf16>
    %396 = tpu.concatenate %395, %373 in 0 : vector<2x64xbf16>, vector<2x64xbf16> -> vector<4x64xbf16>
    %397 = tpu.concatenate %386, %388, %390, %379, %371, %384, %392, %394, %396 in 1 : vector<4x64xbf16>, vector<4x64xbf16>, vector<4x64xbf16>, vector<4x64xbf16>, vector<4x64xbf16>, vector<4x64xbf16>, vector<4x64xbf16>, vector<4x64xbf16>, vector<4x64xbf16> -> vector<4x576xbf16>
    %c0_99 = arith.constant 0 : index
    %c0_100 = arith.constant 0 : index
    %398 = vector.load %arg16[%c0_99, %c0_100] : memref<576x128xbf16, #tpu.memory_space<vmem>>, vector<576x128xbf16>
    %cst_101 = arith.constant dense<0.000000e+00> : vector<4x128xf32>
    %399 = tpu.matmul %397, %398, %cst_101 {dimension_numbers = #tpu.dot_dimension_numbers<[1], [0], [0], [1], [0, 0, 1, 1], [], []>} : vector<4x576xbf16>, vector<576x128xbf16>, vector<4x128xf32> -> vector<4x128xf32>
    %c0_102 = arith.constant 0 : index
    %c0_103 = arith.constant 0 : index
    %400 = vector.load %arg17[%c0_102, %c0_103] : memref<1x128xf32, #tpu.memory_space<vmem>>, vector<1x128xf32>
    %401 = vector.broadcast %400 : vector<1x128xf32> to vector<4x128xf32>
    %402 = arith.addf %399, %401 : vector<4x128xf32>
    %cst_104 = arith.constant 0.000000e+00 : f32
    %403 = vector.broadcast %cst_104 : f32 to vector<4x128xf32>
    %404 = arith.maximumf %402, %403 : vector<4x128xf32>
    %c0_105 = arith.constant 0 : index
    %c0_106 = arith.constant 0 : index
    %c0_107 = arith.constant 0 : index
    %405 = vector.load %arg21[%c0_105, %c0_106, %c0_107] : memref<1x4x128xf32, #tpu.memory_space<vmem>>, vector<1x4x128xf32>
    %406 = vector.shape_cast %405 : vector<1x4x128xf32> to vector<4x128xf32>
    %407 = vector.shape_cast %404 : vector<4x128xf32> to vector<1x4x128xf32>
    tpu.vector_store %arg21[%c0_105, %c0_106, %c0_107], %407 {strides = array<i32>} : memref<1x4x128xf32, #tpu.memory_space<vmem>>, vector<1x4x128xf32>,
    return
  }
  func.func @transform_0(%arg0: i32) -> (i32, i32, i32) {
    %c0_i32 = arith.constant 0 : i32
    %c0_i32_0 = arith.constant 0 : i32
    %c0_i32_1 = arith.constant 0 : i32
    return %arg0, %c0_i32, %c0_i32_0 : i32, i32, i32
  }
  func.func @transform_1(%arg0: i32) -> (i32, i32) {
    %c0_i32 = arith.constant 0 : i32
    %c0_i32_0 = arith.constant 0 : i32
    %c0_i32_1 = arith.constant 0 : i32
    return %c0_i32, %c0_i32_0 : i32, i32
  }
  func.func @transform_2(%arg0: i32) -> (i32, i32) {
    %c0_i32 = arith.constant 0 : i32
    %c0_i32_0 = arith.constant 0 : i32
    %c0_i32_1 = arith.constant 0 : i32
    return %c0_i32, %c0_i32_0 : i32, i32
  }
  func.func @transform_3(%arg0: i32) -> (i32, i32) {
    %c0_i32 = arith.constant 0 : i32
    %c0_i32_0 = arith.constant 0 : i32
    %c0_i32_1 = arith.constant 0 : i32
    return %c0_i32, %c0_i32_0 : i32, i32
  }
  func.func @transform_4(%arg0: i32) -> (i32, i32) {
    %c0_i32 = arith.constant 0 : i32
    %c0_i32_0 = arith.constant 0 : i32
    %c0_i32_1 = arith.constant 0 : i32
    return %c0_i32, %c0_i32_0 : i32, i32
  }
  func.func @transform_5(%arg0: i32) -> (i32, i32) {
    %c0_i32 = arith.constant 0 : i32
    %c0_i32_0 = arith.constant 0 : i32
    %c0_i32_1 = arith.constant 0 : i32
    return %c0_i32, %c0_i32_0 : i32, i32
  }
  func.func @transform_6(%arg0: i32) -> (i32, i32) {
    %c0_i32 = arith.constant 0 : i32
    %c0_i32_0 = arith.constant 0 : i32
    %c0_i32_1 = arith.constant 0 : i32
    return %c0_i32, %c0_i32_0 : i32, i32
  }
  func.func @transform_7(%arg0: i32) -> (i32, i32) {
    %c0_i32 = arith.constant 0 : i32
    %c0_i32_0 = arith.constant 0 : i32
    %c0_i32_1 = arith.constant 0 : i32
    return %c0_i32, %c0_i32_0 : i32, i32
  }
  func.func @transform_8(%arg0: i32) -> (i32, i32) {
    %c0_i32 = arith.constant 0 : i32
    %c0_i32_0 = arith.constant 0 : i32
    %c0_i32_1 = arith.constant 0 : i32
    return %c0_i32, %c0_i32_0 : i32, i32
  }
  func.func @transform_9(%arg0: i32) -> (i32, i32) {
    %c0_i32 = arith.constant 0 : i32
    %c0_i32_0 = arith.constant 0 : i32
    %c0_i32_1 = arith.constant 0 : i32
    return %c0_i32, %c0_i32_0 : i32, i32
  }
  func.func @transform_10(%arg0: i32) -> (i32, i32) {
    %c0_i32 = arith.constant 0 : i32
    %c0_i32_0 = arith.constant 0 : i32
    %c0_i32_1 = arith.constant 0 : i32
    return %c0_i32, %c0_i32_0 : i32, i32
  }
  func.func @transform_11(%arg0: i32) -> (i32, i32) {
    %c0_i32 = arith.constant 0 : i32
    %c0_i32_0 = arith.constant 0 : i32
    %c0_i32_1 = arith.constant 0 : i32
    return %c0_i32, %c0_i32_0 : i32, i32
  }
  func.func @transform_12(%arg0: i32) -> (i32, i32) {
    %c0_i32 = arith.constant 0 : i32
    %c0_i32_0 = arith.constant 0 : i32
    %c0_i32_1 = arith.constant 0 : i32
    return %c0_i32, %c0_i32_0 : i32, i32
  }
  func.func @transform_13(%arg0: i32) -> (i32, i32) {
    %c0_i32 = arith.constant 0 : i32
    %c0_i32_0 = arith.constant 0 : i32
    %c0_i32_1 = arith.constant 0 : i32
    return %c0_i32, %c0_i32_0 : i32, i32
  }
  func.func @transform_14(%arg0: i32) -> (i32, i32) {
    %c0_i32 = arith.constant 0 : i32
    %c0_i32_0 = arith.constant 0 : i32
    %c0_i32_1 = arith.constant 0 : i32
    return %c0_i32, %c0_i32_0 : i32, i32
  }
  func.func @transform_15(%arg0: i32) -> (i32, i32) {
    %c0_i32 = arith.constant 0 : i32
    %c0_i32_0 = arith.constant 0 : i32
    %c0_i32_1 = arith.constant 0 : i32
    return %c0_i32, %c0_i32_0 : i32, i32
  }
  func.func @transform_16(%arg0: i32) -> (i32, i32) {
    %c0_i32 = arith.constant 0 : i32
    %c0_i32_0 = arith.constant 0 : i32
    %c0_i32_1 = arith.constant 0 : i32
    return %c0_i32, %c0_i32_0 : i32, i32
  }
  func.func @transform_17(%arg0: i32) -> (i32, i32, i32) {
    %c0_i32 = arith.constant 0 : i32
    %c0_i32_0 = arith.constant 0 : i32
    %c0_i32_1 = arith.constant 0 : i32
    return %arg0, %c0_i32, %c0_i32_0 : i32, i32, i32
  }
  func.func @transform_18(%arg0: i32) -> (i32, i32, i32) {
    %c0_i32 = arith.constant 0 : i32
    %c0_i32_0 = arith.constant 0 : i32
    %c0_i32_1 = arith.constant 0 : i32
    return %arg0, %c0_i32, %c0_i32_0 : i32, i32, i32
  }
  func.func @transform_19(%arg0: i32) -> (i32, i32, i32) {
    %c0_i32 = arith.constant 0 : i32
    %c0_i32_0 = arith.constant 0 : i32
    %c0_i32_1 = arith.constant 0 : i32
    return %arg0, %c0_i32, %c0_i32_0 : i32, i32, i32
  }
  func.func @transform_20(%arg0: i32) -> (i32, i32, i32) {
    %c0_i32 = arith.constant 0 : i32
    %c0_i32_0 = arith.constant 0 : i32
    %c0_i32_1 = arith.constant 0 : i32
    return %arg0, %c0_i32, %c0_i32_0 : i32, i32, i32
  }
}

</mosaic_0001>

<llo_original>
// kernel: encoder_forward.1
$region0: #{encoder_forward.1}
  #allocation0 [shape = 'u32[]', space=smem, size = 0x4, offset = 0x4, fixed_abs, tag = 'smem constant byte address 0x4 - core index']
  #allocation1 [shape = 'u32[72,128]{1,0:T(1,128)}', space=vmem, size = 0x9000, scoped, tag = 'internal scratch']
  %s0 = inlined_call_operand.vmem [shape: bf16[2,256,192], index: 0, kind: input, shape index: {}]
  %s1 = inlined_call_operand.vmem [shape: bf16[1728,64], index: 1, kind: input, shape index: {}]
  %s2 = inlined_call_operand.vmem [shape: f32[1,64], index: 2, kind: input, shape index: {}]
  %s3 = inlined_call_operand.vmem [shape: bf16[576,128], index: 3, kind: input, shape index: {}]
  %s4 = inlined_call_operand.vmem [shape: f32[1,128], index: 4, kind: input, shape index: {}]
  %s5 = inlined_call_operand.vmem [shape: bf16[576,64], index: 5, kind: input, shape index: {}]
  %s6 = inlined_call_operand.vmem [shape: f32[1,64], index: 6, kind: input, shape index: {}]
  %s7 = inlined_call_operand.hbm [shape: bf16[576,128], index: 7, kind: input, shape index: {}]
  %s8 = inlined_call_operand.vmem [shape: f32[1,128], index: 8, kind: input, shape index: {}]
  %s9 = inlined_call_operand.hbm [shape: bf16[576,64], index: 9, kind: input, shape index: {}]
  %s10 = inlined_call_operand.vmem [shape: f32[1,64], index: 10, kind: input, shape index: {}]
  %s11 = inlined_call_operand.hbm [shape: bf16[576,128], index: 11, kind: input, shape index: {}]
  %s12 = inlined_call_operand.vmem [shape: f32[1,128], index: 12, kind: input, shape index: {}]
  %s13 = inlined_call_operand.hbm [shape: bf16[576,64], index: 13, kind: input, shape index: {}]
  %s14 = inlined_call_operand.vmem [shape: f32[1,64], index: 14, kind: input, shape index: {}]
  %s15 = inlined_call_operand.hbm [shape: bf16[576,128], index: 15, kind: input, shape index: {}]
  %s16 = inlined_call_operand.vmem [shape: f32[1,128], index: 16, kind: input, shape index: {}]
  %s17 = inlined_call_operand.vmem [shape: f32[2,256,128], index: 17, kind: output, shape index: {0}]
  %s18 = inlined_call_operand.vmem [shape: f32[2,64,128], index: 18, kind: output, shape index: {1}]
  %s19 = inlined_call_operand.vmem [shape: f32[2,16,128], index: 19, kind: output, shape index: {2}]
  %s20 = inlined_call_operand.vmem [shape: f32[2,4,128], index: 20, kind: output, shape index: {3}]
  %21 = xla_tuple %s17, %s18, %s19, %s20
  %s22 = sld [smem:[#allocation0]]
  $region145: #{encoder_forward.1} parent=0
    _
  %s24 = ssub.s32 1, %s22
  %s25 = scalar_select 0, %s24, %s22
  $region1: #{encoder_forward.1} parent=0
    #allocation2 [shape = 'u8[147456]{0}', space=vmem, size = 0x24000, scoped, tag = 'input window, operand 7, single buffered']
    #allocation3 [shape = 's32[2]{0}', space=sflag, size = 0x8, scoped, tag = 'scoped memory for encoder_forward.1']
    #allocation4 [shape = 'u8[147456]{0}', space=vmem, size = 0x24000, scoped, tag = 'input window, operand 9, single buffered']
    #allocation5 [shape = 's32[1]{0}', space=sflag, size = 0x4, scoped, tag = 'scoped memory for encoder_forward.1']
    #allocation6 [shape = 'u8[147456]{0}', space=vmem, size = 0x24000, scoped, tag = 'input window, operand 11, single buffered']
    #allocation7 [shape = 'u8[147456]{0}', space=vmem, size = 0x24000, scoped, tag = 'input window, operand 13, single buffered']
    #allocation8 [shape = 's32[1]{0}', space=sflag, size = 0x4, scoped, tag = 'scoped memory for encoder_forward.1']
    #allocation9 [shape = 'u8[147456]{0}', space=vmem, size = 0x24000, scoped, tag = 'input window, operand 15, single buffered']
    %26 = vsyncpa [#allocation3], 0
    %27 = vsyncpa [#allocation5], 0
    %28 = vsyncpa [#allocation8], 0
    loop: start=0, step=1, limit=4
    $region2: #{encoder_forward.1} parent=1 // loop_pre_header
      _
    $region3: #{encoder_forward.1} parent=1 // loop_header
      %s30 = sphi 0, %s34
      %p31 = scmp.ge.s32.totalorder %s30, 4
      %s40 = sphi 0, %s42
      %s43 = sphi 0, %s40
      %s44 = sphi 0, %s43
      %s60 = sphi 0, %s44
      %s64 = sphi 0, %s64
      %s66 = sphi 0, %s64
      %s67 = sphi 0, %s66
      %s81 = sphi 0, %s67
      %s85 = sphi 0, %s85
      %s87 = sphi 0, %s85
      %s88 = sphi 0, %s87
      %s102 = sphi 0, %s88
      %s106 = sphi 0, %s106
      %s108 = sphi 0, %s106
      %s109 = sphi 0, %s108
      %s123 = sphi 0, %s109
      %s127 = sphi 0, %s127
      %s129 = sphi 0, %s127
      %s130 = sphi 0, %s129
      %s144 = sphi 0, %s130
      %s148 = sphi 0, %s148
      %s150 = sphi 0, %s148
      %s151 = sphi 0, %s150
      %s165 = sphi 0, %s151
      %s169 = sphi 0, %s169
      %s171 = sphi 0, %s169
      %s172 = sphi 0, %s171
      %s186 = sphi 0, %s172
      %s190 = sphi 0, %s190
      %s192 = sphi 0, %s190
      %s193 = sphi 0, %s192
      %s207 = sphi 0, %s193
      %s211 = sphi 0, %s211
      %s213 = sphi 0, %s211
      %s214 = sphi 0, %s213
      %s228 = sphi 0, %s214
      %s232 = sphi 0, %s232
      %s234 = sphi 0, %s232
      %s235 = sphi 0, %s234
      %s249 = sphi 0, %s235
      %s253 = sphi 0, %s253
      %s255 = sphi 0, %s253
      %s256 = sphi 0, %s255
      %s270 = sphi 0, %s256
      %s274 = sphi 0, %s274
      %s276 = sphi 0, %s274
      %s277 = sphi 0, %s276
      %s291 = sphi 0, %s277
      %s295 = sphi 0, %s295
      %s297 = sphi 0, %s295
      %s298 = sphi 0, %s297
      %s312 = sphi 0, %s298
      %s316 = sphi 0, %s316
      %s318 = sphi 0, %s316
      %s319 = sphi 0, %s318
      %s333 = sphi 0, %s319
      %s337 = sphi 0, %s337
      %s339 = sphi 0, %s337
      %s340 = sphi 0, %s339
      %s354 = sphi 0, %s340
      %s358 = sphi 0, %s358
      %s360 = sphi 0, %s358
      %s361 = sphi 0, %s360
      %s375 = sphi 0, %s361
      %s379 = sphi 0, %s379
      %s381 = sphi 0, %s379
      %s382 = sphi 0, %s381
      %s396 = sphi 0, %s382
      %s402 = sphi 0, %s404
      %s405 = sphi 0, %s402
      %s406 = sphi 0, %s405
      %s422 = sphi 0, %s406
      %s428 = sphi 0, %s430
      %s431 = sphi 0, %s428
      %s432 = sphi 0, %s431
      %s448 = sphi 0, %s432
      %s454 = sphi 0, %s456
      %s457 = sphi 0, %s454
      %s458 = sphi 0, %s457
      %s474 = sphi 0, %s458
      %s480 = sphi 0, %s482
      %s483 = sphi 0, %s480
      %s484 = sphi 0, %s483
      %s500 = sphi 0, %s484
    $region4: #{encoder_forward.1} parent=1 // loop_header_branch
      %33 = sbr.rel (%p31) target = $region8
    $region5: #{encoder_forward.1} parent=1 // loop_body
      %s35 = ssub.s32 %s30, 1
      %s36 = ssub.s32 %s30, 2
      %s37 = sadd.s32 %s30, 1
      %s38 = ssub.s32 %s30, %s37
      %p39 = scmp.eq.s32.totalorder %s38, 0
      %s41 = sadd.s32 %s40, 1
      %s42 = scalar_select %p39, %s40, %s41
      %p45 = pneg %p39
      %p46 = scmp.eq.s32.totalorder %s30, 1
      %p47 = por %p45, %p46
      %p48 = scmp.ne.s32.totalorder %s40, %s43
      %p49 = scmp.eq.s32.totalorder %s30, 0
      %p50 = por %p48, %p49
      %p51 = scmp.ne.s32.totalorder %s40, %s43
      %p52 = scmp.eq.s32.totalorder %s35, 1
      %p53 = por %p51, %p52
      %p54 = scmp.ne.s32.totalorder %s43, %s44
      %p55 = scmp.eq.s32.totalorder %s35, 0
      %p56 = por %p54, %p55
      %p57 = scmp.ne.s32.totalorder %s43, %s44
      %p58 = scmp.eq.s32.totalorder %s36, 1
      %p59 = por %p57, %p58
      %p61 = scmp.ne.s32.totalorder %s44, %s60
      %p62 = scmp.eq.s32.totalorder %s36, 0
      %p63 = por %p61, %p62
      %s65 = sadd.s32 %s64, 1
      %p68 = scmp.eq.s32.totalorder %s30, 1
      %p69 = scmp.ne.s32.totalorder %s64, %s66
      %p70 = scmp.eq.s32.totalorder %s30, 0
      %p71 = por %p69, %p70
      %p72 = scmp.ne.s32.totalorder %s64, %s66
      %p73 = scmp.eq.s32.totalorder %s35, 1
      %p74 = por %p72, %p73
      %p75 = scmp.ne.s32.totalorder %s66, %s67
      %p76 = scmp.eq.s32.totalorder %s35, 0
      %p77 = por %p75, %p76
      %p78 = scmp.ne.s32.totalorder %s66, %s67
      %p79 = scmp.eq.s32.totalorder %s36, 1
      %p80 = por %p78, %p79
      %p82 = scmp.ne.s32.totalorder %s67, %s81
      %p83 = scmp.eq.s32.totalorder %s36, 0
      %p84 = por %p82, %p83
      %s86 = sadd.s32 %s85, 1
      %p89 = scmp.eq.s32.totalorder %s30, 1
      %p90 = scmp.ne.s32.totalorder %s85, %s87
      %p91 = scmp.eq.s32.totalorder %s30, 0
      %p92 = por %p90, %p91
      %p93 = scmp.ne.s32.totalorder %s85, %s87
      %p94 = scmp.eq.s32.totalorder %s35, 1
      %p95 = por %p93, %p94
      %p96 = scmp.ne.s32.totalorder %s87, %s88
      %p97 = scmp.eq.s32.totalorder %s35, 0
      %p98 = por %p96, %p97
      %p99 = scmp.ne.s32.totalorder %s87, %s88
      %p100 = scmp.eq.s32.totalorder %s36, 1
      %p101 = por %p99, %p100
      %p103 = scmp.ne.s32.totalorder %s88, %s102
      %p104 = scmp.eq.s32.totalorder %s36, 0
      %p105 = por %p103, %p104
      %s107 = sadd.s32 %s106, 1
      %p110 = scmp.eq.s32.totalorder %s30, 1
      %p111 = scmp.ne.s32.totalorder %s106, %s108
      %p112 = scmp.eq.s32.totalorder %s30, 0
      %p113 = por %p111, %p112
      %p114 = scmp.ne.s32.totalorder %s106, %s108
      %p115 = scmp.eq.s32.totalorder %s35, 1
      %p116 = por %p114, %p115
      %p117 = scmp.ne.s32.totalorder %s108, %s109
      %p118 = scmp.eq.s32.totalorder %s35, 0
      %p119 = por %p117, %p118
      %p120 = scmp.ne.s32.totalorder %s108, %s109
      %p121 = scmp.eq.s32.totalorder %s36, 1
      %p122 = por %p120, %p121
      %p124 = scmp.ne.s32.totalorder %s109, %s123
      %p125 = scmp.eq.s32.totalorder %s36, 0
      %p126 = por %p124, %p125
      %s128 = sadd.s32 %s127, 1
      %p131 = scmp.eq.s32.totalorder %s30, 1
      %p132 = scmp.ne.s32.totalorder %s127, %s129
      %p133 = scmp.eq.s32.totalorder %s30, 0
      %p134 = por %p132, %p133
      %p135 = scmp.ne.s32.totalorder %s127, %s129
      %p136 = scmp.eq.s32.totalorder %s35, 1
      %p137 = por %p135, %p136
      %p138 = scmp.ne.s32.totalorder %s129, %s130
      %p139 = scmp.eq.s32.totalorder %s35, 0
      %p140 = por %p138, %p139
      %p141 = scmp.ne.s32.totalorder %s129, %s130
      %p142 = scmp.eq.s32.totalorder %s36, 1
      %p143 = por %p141, %p142
      %p145 = scmp.ne.s32.totalorder %s130, %s144
      %p146 = scmp.eq.s32.totalorder %s36, 0
      %p147 = por %p145, %p146
      %s149 = sadd.s32 %s148, 1
      %p152 = scmp.eq.s32.totalorder %s30, 1
      %p153 = scmp.ne.s32.totalorder %s148, %s150
      %p154 = scmp.eq.s32.totalorder %s30, 0
      %p155 = por %p153, %p154
      %p156 = scmp.ne.s32.totalorder %s148, %s150
      %p157 = scmp.eq.s32.totalorder %s35, 1
      %p158 = por %p156, %p157
      %p159 = scmp.ne.s32.totalorder %s150, %s151
      %p160 = scmp.eq.s32.totalorder %s35, 0
      %p161 = por %p159, %p160
      %p162 = scmp.ne.s32.totalorder %s150, %s151
      %p163 = scmp.eq.s32.totalorder %s36, 1
      %p164 = por %p162, %p163
      %p166 = scmp.ne.s32.totalorder %s151, %s165
      %p167 = scmp.eq.s32.totalorder %s36, 0
      %p168 = por %p166, %p167
      %s170 = sadd.s32 %s169, 1
      %p173 = scmp.eq.s32.totalorder %s30, 1
      %p174 = scmp.ne.s32.totalorder %s169, %s171
      %p175 = scmp.eq.s32.totalorder %s30, 0
      %p176 = por %p174, %p175
      %p177 = scmp.ne.s32.totalorder %s169, %s171
      %p178 = scmp.eq.s32.totalorder %s35, 1
      %p179 = por %p177, %p178
      %p180 = scmp.ne.s32.totalorder %s171, %s172
      %p181 = scmp.eq.s32.totalorder %s35, 0
      %p182 = por %p180, %p181
      %p183 = scmp.ne.s32.totalorder %s171, %s172
      %p184 = scmp.eq.s32.totalorder %s36, 1
      %p185 = por %p183, %p184
      %p187 = scmp.ne.s32.totalorder %s172, %s186
      %p188 = scmp.eq.s32.totalorder %s36, 0
      %p189 = por %p187, %p188
      %s191 = sadd.s32 %s190, 1
      %p194 = scmp.eq.s32.totalorder %s30, 1
      %p195 = scmp.ne.s32.totalorder %s190, %s192
      %p196 = scmp.eq.s32.totalorder %s30, 0
      %p197 = por %p195, %p196
      %p198 = scmp.ne.s32.totalorder %s190, %s192
      %p199 = scmp.eq.s32.totalorder %s35, 1
      %p200 = por %p198, %p199
      %p201 = scmp.ne.s32.totalorder %s192, %s193
      %p202 = scmp.eq.s32.totalorder %s35, 0
      %p203 = por %p201, %p202
      %p204 = scmp.ne.s32.totalorder %s192, %s193
      %p205 = scmp.eq.s32.totalorder %s36, 1
      %p206 = por %p204, %p205
      %p208 = scmp.ne.s32.totalorder %s193, %s207
      %p209 = scmp.eq.s32.totalorder %s36, 0
      %p210 = por %p208, %p209
      %s212 = sadd.s32 %s211, 1
      %p215 = scmp.eq.s32.totalorder %s30, 1
      %p216 = scmp.ne.s32.totalorder %s211, %s213
      %p217 = scmp.eq.s32.totalorder %s30, 0
      %p218 = por %p216, %p217
      %p219 = scmp.ne.s32.totalorder %s211, %s213
      %p220 = scmp.eq.s32.totalorder %s35, 1
      %p221 = por %p219, %p220
      %p222 = scmp.ne.s32.totalorder %s213, %s214
      %p223 = scmp.eq.s32.totalorder %s35, 0
      %p224 = por %p222, %p223
      %p225 = scmp.ne.s32.totalorder %s213, %s214
      %p226 = scmp.eq.s32.totalorder %s36, 1
      %p227 = por %p225, %p226
      %p229 = scmp.ne.s32.totalorder %s214, %s228
      %p230 = scmp.eq.s32.totalorder %s36, 0
      %p231 = por %p229, %p230
      %s233 = sadd.s32 %s232, 1
      %p236 = scmp.eq.s32.totalorder %s30, 1
      %p237 = scmp.ne.s32.totalorder %s232, %s234
      %p238 = scmp.eq.s32.totalorder %s30, 0
      %p239 = por %p237, %p238
      %p240 = scmp.ne.s32.totalorder %s232, %s234
      %p241 = scmp.eq.s32.totalorder %s35, 1
      %p242 = por %p240, %p241
      %p243 = scmp.ne.s32.totalorder %s234, %s235
      %p244 = scmp.eq.s32.totalorder %s35, 0
      %p245 = por %p243, %p244
      %p246 = scmp.ne.s32.totalorder %s234, %s235
      %p247 = scmp.eq.s32.totalorder %s36, 1
      %p248 = por %p246, %p247
      %p250 = scmp.ne.s32.totalorder %s235, %s249
      %p251 = scmp.eq.s32.totalorder %s36, 0
      %p252 = por %p250, %p251
      %s254 = sadd.s32 %s253, 1
      %p257 = scmp.eq.s32.totalorder %s30, 1
      %p258 = scmp.ne.s32.totalorder %s253, %s255
      %p259 = scmp.eq.s32.totalorder %s30, 0
      %p260 = por %p258, %p259
      %p261 = scmp.ne.s32.totalorder %s253, %s255
      %p262 = scmp.eq.s32.totalorder %s35, 1
      %p263 = por %p261, %p262
      %p264 = scmp.ne.s32.totalorder %s255, %s256
      %p265 = scmp.eq.s32.totalorder %s35, 0
      %p266 = por %p264, %p265
      %p267 = scmp.ne.s32.totalorder %s255, %s256
      %p268 = scmp.eq.s32.totalorder %s36, 1
      %p269 = por %p267, %p268
      %p271 = scmp.ne.s32.totalorder %s256, %s270
      %p272 = scmp.eq.s32.totalorder %s36, 0
      %p273 = por %p271, %p272
      %s275 = sadd.s32 %s274, 1
      %p278 = scmp.eq.s32.totalorder %s30, 1
      %p279 = scmp.ne.s32.totalorder %s274, %s276
      %p280 = scmp.eq.s32.totalorder %s30, 0
      %p281 = por %p279, %p280
      %p282 = scmp.ne.s32.totalorder %s274, %s276
      %p283 = scmp.eq.s32.totalorder %s35, 1
      %p284 = por %p282, %p283
      %p285 = scmp.ne.s32.totalorder %s276, %s277
      %p286 = scmp.eq.s32.totalorder %s35, 0
      %p287 = por %p285, %p286
      %p288 = scmp.ne.s32.totalorder %s276, %s277
      %p289 = scmp.eq.s32.totalorder %s36, 1
      %p290 = por %p288, %p289
      %p292 = scmp.ne.s32.totalorder %s277, %s291
      %p293 = scmp.eq.s32.totalorder %s36, 0
      %p294 = por %p292, %p293
      %s296 = sadd.s32 %s295, 1
      %p299 = scmp.eq.s32.totalorder %s30, 1
      %p300 = scmp.ne.s32.totalorder %s295, %s297
      %p301 = scmp.eq.s32.totalorder %s30, 0
      %p302 = por %p300, %p301
      %p303 = scmp.ne.s32.totalorder %s295, %s297
      %p304 = scmp.eq.s32.totalorder %s35, 1
      %p305 = por %p303, %p304
      %p306 = scmp.ne.s32.totalorder %s297, %s298
      %p307 = scmp.eq.s32.totalorder %s35, 0
      %p308 = por %p306, %p307
      %p309 = scmp.ne.s32.totalorder %s297, %s298
      %p310 = scmp.eq.s32.totalorder %s36, 1
      %p311 = por %p309, %p310
      %p313 = scmp.ne.s32.totalorder %s298, %s312
      %p314 = scmp.eq.s32.totalorder %s36, 0
      %p315 = por %p313, %p314
      %s317 = sadd.s32 %s316, 1
      %p320 = scmp.eq.s32.totalorder %s30, 1
      %p321 = scmp.ne.s32.totalorder %s316, %s318
      %p322 = scmp.eq.s32.totalorder %s30, 0
      %p323 = por %p321, %p322
      %p324 = scmp.ne.s32.totalorder %s316, %s318
      %p325 = scmp.eq.s32.totalorder %s35, 1
      %p326 = por %p324, %p325
      %p327 = scmp.ne.s32.totalorder %s318, %s319
      %p328 = scmp.eq.s32.totalorder %s35, 0
      %p329 = por %p327, %p328
      %p330 = scmp.ne.s32.totalorder %s318, %s319
      %p331 = scmp.eq.s32.totalorder %s36, 1
      %p332 = por %p330, %p331
      %p334 = scmp.ne.s32.totalorder %s319, %s333
      %p335 = scmp.eq.s32.totalorder %s36, 0
      %p336 = por %p334, %p335
      %s338 = sadd.s32 %s337, 1
      %p341 = scmp.eq.s32.totalorder %s30, 1
      %p342 = scmp.ne.s32.totalorder %s337, %s339
      %p343 = scmp.eq.s32.totalorder %s30, 0
      %p344 = por %p342, %p343
      %p345 = scmp.ne.s32.totalorder %s337, %s339
      %p346 = scmp.eq.s32.totalorder %s35, 1
      %p347 = por %p345, %p346
      %p348 = scmp.ne.s32.totalorder %s339, %s340
      %p349 = scmp.eq.s32.totalorder %s35, 0
      %p350 = por %p348, %p349
      %p351 = scmp.ne.s32.totalorder %s339, %s340
      %p352 = scmp.eq.s32.totalorder %s36, 1
      %p353 = por %p351, %p352
      %p355 = scmp.ne.s32.totalorder %s340, %s354
      %p356 = scmp.eq.s32.totalorder %s36, 0
      %p357 = por %p355, %p356
      %s359 = sadd.s32 %s358, 1
      %p362 = scmp.eq.s32.totalorder %s30, 1
      %p363 = scmp.ne.s32.totalorder %s358, %s360
      %p364 = scmp.eq.s32.totalorder %s30, 0
      %p365 = por %p363, %p364
      %p366 = scmp.ne.s32.totalorder %s358, %s360
      %p367 = scmp.eq.s32.totalorder %s35, 1
      %p368 = por %p366, %p367
      %p369 = scmp.ne.s32.totalorder %s360, %s361
      %p370 = scmp.eq.s32.totalorder %s35, 0
      %p371 = por %p369, %p370
      %p372 = scmp.ne.s32.totalorder %s360, %s361
      %p373 = scmp.eq.s32.totalorder %s36, 1
      %p374 = por %p372, %p373
      %p376 = scmp.ne.s32.totalorder %s361, %s375
      %p377 = scmp.eq.s32.totalorder %s36, 0
      %p378 = por %p376, %p377
      %s380 = sadd.s32 %s379, 1
      %p383 = scmp.eq.s32.totalorder %s30, 1
      %p384 = scmp.ne.s32.totalorder %s379, %s381
      %p385 = scmp.eq.s32.totalorder %s30, 0
      %p386 = por %p384, %p385
      %p387 = scmp.ne.s32.totalorder %s379, %s381
      %p388 = scmp.eq.s32.totalorder %s35, 1
      %p389 = por %p387, %p388
      %p390 = scmp.ne.s32.totalorder %s381, %s382
      %p391 = scmp.eq.s32.totalorder %s35, 0
      %p392 = por %p390, %p391
      %p393 = scmp.ne.s32.totalorder %s381, %s382
      %p394 = scmp.eq.s32.totalorder %s36, 1
      %p395 = por %p393, %p394
      %p397 = scmp.ne.s32.totalorder %s382, %s396
      %p398 = scmp.eq.s32.totalorder %s36, 0
      %p399 = por %p397, %p398
      %s400 = ssub.s32 %s30, %s37
      %p401 = scmp.eq.s32.totalorder %s400, 0
      %s403 = sadd.s32 %s402, 1
      %s404 = scalar_select %p401, %s402, %s403
      %p407 = pneg %p401
      %p408 = scmp.eq.s32.totalorder %s30, 1
      %p409 = por %p407, %p408
      %p410 = scmp.ne.s32.totalorder %s402, %s405
      %p411 = scmp.eq.s32.totalorder %s30, 0
      %p412 = por %p410, %p411
      %p413 = scmp.ne.s32.totalorder %s402, %s405
      %p414 = scmp.eq.s32.totalorder %s35, 1
      %p415 = por %p413, %p414
      %p416 = scmp.ne.s32.totalorder %s405, %s406
      %p417 = scmp.eq.s32.totalorder %s35, 0
      %p418 = por %p416, %p417
      %p419 = scmp.ne.s32.totalorder %s405, %s406
      %p420 = scmp.eq.s32.totalorder %s36, 1
      %p421 = por %p419, %p420
      %p423 = scmp.ne.s32.totalorder %s406, %s422
      %p424 = scmp.eq.s32.totalorder %s36, 0
      %p425 = por %p423, %p424
      %s426 = ssub.s32 %s30, %s37
      %p427 = scmp.eq.s32.totalorder %s426, 0
      %s429 = sadd.s32 %s428, 1
      %s430 = scalar_select %p427, %s428, %s429
      %p433 = pneg %p427
      %p434 = scmp.eq.s32.totalorder %s30, 1
      %p435 = por %p433, %p434
      %p436 = scmp.ne.s32.totalorder %s428, %s431
      %p437 = scmp.eq.s32.totalorder %s30, 0
      %p438 = por %p436, %p437
      %p439 = scmp.ne.s32.totalorder %s428, %s431
      %p440 = scmp.eq.s32.totalorder %s35, 1
      %p441 = por %p439, %p440
      %p442 = scmp.ne.s32.totalorder %s431, %s432
      %p443 = scmp.eq.s32.totalorder %s35, 0
      %p444 = por %p442, %p443
      %p445 = scmp.ne.s32.totalorder %s431, %s432
      %p446 = scmp.eq.s32.totalorder %s36, 1
      %p447 = por %p445, %p446
      %p449 = scmp.ne.s32.totalorder %s432, %s448
      %p450 = scmp.eq.s32.totalorder %s36, 0
      %p451 = por %p449, %p450
      %s452 = ssub.s32 %s30, %s37
      %p453 = scmp.eq.s32.totalorder %s452, 0
      %s455 = sadd.s32 %s454, 1
      %s456 = scalar_select %p453, %s454, %s455
      %p459 = pneg %p453
      %p460 = scmp.eq.s32.totalorder %s30, 1
      %p461 = por %p459, %p460
      %p462 = scmp.ne.s32.totalorder %s454, %s457
      %p463 = scmp.eq.s32.totalorder %s30, 0
      %p464 = por %p462, %p463
      %p465 = scmp.ne.s32.totalorder %s454, %s457
      %p466 = scmp.eq.s32.totalorder %s35, 1
      %p467 = por %p465, %p466
      %p468 = scmp.ne.s32.totalorder %s457, %s458
      %p469 = scmp.eq.s32.totalorder %s35, 0
      %p470 = por %p468, %p469
      %p471 = scmp.ne.s32.totalorder %s457, %s458
      %p472 = scmp.eq.s32.totalorder %s36, 1
      %p473 = por %p471, %p472
      %p475 = scmp.ne.s32.totalorder %s458, %s474
      %p476 = scmp.eq.s32.totalorder %s36, 0
      %p477 = por %p475, %p476
      %s478 = ssub.s32 %s30, %s37
      %p479 = scmp.eq.s32.totalorder %s478, 0
      %s481 = sadd.s32 %s480, 1
      %s482 = scalar_select %p479, %s480, %s481
      %p485 = pneg %p479
      %p486 = scmp.eq.s32.totalorder %s30, 1
      %p487 = por %p485, %p486
      %p488 = scmp.ne.s32.totalorder %s480, %s483
      %p489 = scmp.eq.s32.totalorder %s30, 0
      %p490 = por %p488, %p489
      %p491 = scmp.ne.s32.totalorder %s480, %s483
      %p492 = scmp.eq.s32.totalorder %s35, 1
      %p493 = por %p491, %p492
      %p494 = scmp.ne.s32.totalorder %s483, %s484
      %p495 = scmp.eq.s32.totalorder %s35, 0
      %p496 = por %p494, %p495
      %p497 = scmp.ne.s32.totalorder %s483, %s484
      %p498 = scmp.eq.s32.totalorder %s36, 1
      %p499 = por %p497, %p498
      %p501 = scmp.ne.s32.totalorder %s484, %s500
      %p502 = scmp.eq.s32.totalorder %s36, 0
      %p503 = por %p501, %p502
      %p504 = scmp.le.s32.totalorder 1, %s30
      %p505 = scmp.lt.s32.totalorder %s30, 3
      %p506 = pnand %p504, %p505
      %p507 = pneg %p506
      // Predicated region
      $region9: #{encoder_forward.1} parent=5 // pred_check
        _
      $region10: #{encoder_forward.1} parent=5 // pred_check_branch
        %509 = sbr.rel (%p506) target = $region12
      $region11: #{encoder_forward.1} parent=5 // pred_region
        %s510 = ssub.s32 %s30, 1
        // Predicated region
        $region13: #{encoder_forward.1} parent=11 // pred_check
          %p511 = pneg %p77
        $region14: #{encoder_forward.1} parent=11 // pred_check_branch
          %513 = sbr.rel (%p511) target = $region16
        $region15: #{encoder_forward.1} parent=11 // pred_region
          _
        $region16: #{encoder_forward.1} parent=11 // pred_fallthru
          _
        // Predicated region
        $region17: #{encoder_forward.1} parent=11 // pred_check
          %p514 = pneg %p98
        $region18: #{encoder_forward.1} parent=11 // pred_check_branch
          %516 = sbr.rel (%p514) target = $region20
        $region19: #{encoder_forward.1} parent=11 // pred_region
          _
        $region20: #{encoder_forward.1} parent=11 // pred_fallthru
          _
        // Predicated region
        $region21: #{encoder_forward.1} parent=11 // pred_check
          %p517 = pneg %p119
        $region22: #{encoder_forward.1} parent=11 // pred_check_branch
          %519 = sbr.rel (%p517) target = $region24
        $region23: #{encoder_forward.1} parent=11 // pred_region
          _
        $region24: #{encoder_forward.1} parent=11 // pred_fallthru
          _
        // Predicated region
        $region25: #{encoder_forward.1} parent=11 // pred_check
          %p520 = pneg %p140
        $region26: #{encoder_forward.1} parent=11 // pred_check_branch
          %522 = sbr.rel (%p520) target = $region28
        $region27: #{encoder_forward.1} parent=11 // pred_region
          _
        $region28: #{encoder_forward.1} parent=11 // pred_fallthru
          _
        // Predicated region
        $region29: #{encoder_forward.1} parent=11 // pred_check
          %p523 = pneg %p161
        $region30: #{encoder_forward.1} parent=11 // pred_check_branch
          %525 = sbr.rel (%p523) target = $region32
        $region31: #{encoder_forward.1} parent=11 // pred_region
          _
        $region32: #{encoder_forward.1} parent=11 // pred_fallthru
          _
        // Predicated region
        $region33: #{encoder_forward.1} parent=11 // pred_check
          %p526 = pneg %p182
        $region34: #{encoder_forward.1} parent=11 // pred_check_branch
          %528 = sbr.rel (%p526) target = $region36
        $region35: #{encoder_forward.1} parent=11 // pred_region
          _
        $region36: #{encoder_forward.1} parent=11 // pred_fallthru
          _
        // Predicated region
        $region37: #{encoder_forward.1} parent=11 // pred_check
          %p529 = pneg %p203
        $region38: #{encoder_forward.1} parent=11 // pred_check_branch
          %531 = sbr.rel (%p529) target = $region40
        $region39: #{encoder_forward.1} parent=11 // pred_region
          %533 = vsyncadd [#allocation3], 0
          %s534 = sshll.u32 %s7, 4
          %s535 = int_to_ptr.hbm [resolvable:$true] %s534
          %s536 = sshll.u32 [#allocation2], 4
          %s537 = int_to_ptr.vmem [resolvable:$true] %s536
          %542 = dma.hbm_to_vmem [thread:$0]  %s535, 4608, %s537, [#allocation3], 64, 64, 4
        $region40: #{encoder_forward.1} parent=11 // pred_fallthru
          _
        // Predicated region
        $region41: #{encoder_forward.1} parent=11 // pred_check
          %p543 = pneg %p224
        $region42: #{encoder_forward.1} parent=11 // pred_check_branch
          %545 = sbr.rel (%p543) target = $region44
        $region43: #{encoder_forward.1} parent=11 // pred_region
          _
        $region44: #{encoder_forward.1} parent=11 // pred_fallthru
          _
        // Predicated region
        $region45: #{encoder_forward.1} parent=11 // pred_check
          %p546 = pneg %p245
        $region46: #{encoder_forward.1} parent=11 // pred_check_branch
          %548 = sbr.rel (%p546) target = $region48
        $region47: #{encoder_forward.1} parent=11 // pred_region
          %550 = vsyncadd [#allocation5], 0
          %s551 = sshll.u32 %s9, 4
          %s552 = int_to_ptr.hbm [resolvable:$true] %s551
          %s553 = sshll.u32 [#allocation4], 4
          %s554 = int_to_ptr.vmem [resolvable:$true] %s553
          %559 = dma.hbm_to_vmem [thread:$0]  %s552, 4608, %s554, [#allocation5], 64, 64, 4
        $region48: #{encoder_forward.1} parent=11 // pred_fallthru
          _
        // Predicated region
        $region49: #{encoder_forward.1} parent=11 // pred_check
          %p560 = pneg %p266
        $region50: #{encoder_forward.1} parent=11 // pred_check_branch
          %562 = sbr.rel (%p560) target = $region52
        $region51: #{encoder_forward.1} parent=11 // pred_region
          _
        $region52: #{encoder_forward.1} parent=11 // pred_fallthru
          _
        // Predicated region
        $region53: #{encoder_forward.1} parent=11 // pred_check
          %p563 = pneg %p287
        $region54: #{encoder_forward.1} parent=11 // pred_check_branch
          %565 = sbr.rel (%p563) target = $region56
        $region55: #{encoder_forward.1} parent=11 // pred_region
          %567 = vsyncadd [#allocation5], 0
          %s568 = sshll.u32 %s11, 4
          %s569 = int_to_ptr.hbm [resolvable:$true] %s568
          %s570 = sshll.u32 [#allocation6], 4
          %s571 = int_to_ptr.vmem [resolvable:$true] %s570
          %576 = dma.hbm_to_vmem [thread:$0]  %s569, 4608, %s571, [#allocation5], 64, 64, 4
        $region56: #{encoder_forward.1} parent=11 // pred_fallthru
          _
        // Predicated region
        $region57: #{encoder_forward.1} parent=11 // pred_check
          %p577 = pneg %p308
        $region58: #{encoder_forward.1} parent=11 // pred_check_branch
          %579 = sbr.rel (%p577) target = $region60
        $region59: #{encoder_forward.1} parent=11 // pred_region
          _
        $region60: #{encoder_forward.1} parent=11 // pred_fallthru
          _
        // Predicated region
        $region61: #{encoder_forward.1} parent=11 // pred_check
          %p580 = pneg %p329
        $region62: #{encoder_forward.1} parent=11 // pred_check_branch
          %582 = sbr.rel (%p580) target = $region64
        $region63: #{encoder_forward.1} parent=11 // pred_region
          %584 = vsyncadd [#allocation8], 0
          %s585 = sshll.u32 %s13, 4
          %s586 = int_to_ptr.hbm [resolvable:$true] %s585
          %s587 = sshll.u32 [#allocation7], 4
          %s588 = int_to_ptr.vmem [resolvable:$true] %s587
          %593 = dma.hbm_to_vmem [thread:$0]  %s586, 4608, %s588, [#allocation8], 64, 64, 4
        $region64: #{encoder_forward.1} parent=11 // pred_fallthru
          _
        // Predicated region
        $region65: #{encoder_forward.1} parent=11 // pred_check
          %p594 = pneg %p350
        $region66: #{encoder_forward.1} parent=11 // pred_check_branch
          %596 = sbr.rel (%p594) target = $region68
        $region67: #{encoder_forward.1} parent=11 // pred_region
          _
        $region68: #{encoder_forward.1} parent=11 // pred_fallthru
          _
        // Predicated region
        $region69: #{encoder_forward.1} parent=11 // pred_check
          %p597 = pneg %p371
        $region70: #{encoder_forward.1} parent=11 // pred_check_branch
          %599 = sbr.rel (%p597) target = $region72
        $region71: #{encoder_forward.1} parent=11 // pred_region
          %601 = vsyncadd [#allocation8], 0
          %s602 = sshll.u32 %s15, 4
          %s603 = int_to_ptr.hbm [resolvable:$true] %s602
          %s604 = sshll.u32 [#allocation9], 4
          %s605 = int_to_ptr.vmem [resolvable:$true] %s604
          %610 = dma.hbm_to_vmem [thread:$0]  %s603, 4608, %s605, [#allocation8], 64, 64, 4
        $region72: #{encoder_forward.1} parent=11 // pred_fallthru
          _
        // Predicated region
        $region73: #{encoder_forward.1} parent=11 // pred_check
          %p611 = pneg %p392
        $region74: #{encoder_forward.1} parent=11 // pred_check_branch
          %613 = sbr.rel (%p611) target = $region76
        $region75: #{encoder_forward.1} parent=11 // pred_region
          _
        $region76: #{encoder_forward.1} parent=11 // pred_fallthru
          _
      $region12: #{encoder_forward.1} parent=5 // pred_fallthru
        _
      %p614 = scmp.lt.s32.totalorder %s30, 2
      // Predicated region
      $region77: #{encoder_forward.1} parent=5 // pred_check
        %p615 = pneg %p614
      $region78: #{encoder_forward.1} parent=5 // pred_check_branch
        %617 = sbr.rel (%p615) target = $region80
      $region79: #{encoder_forward.1} parent=5 // pred_region
        // Predicated region
        $region81: #{encoder_forward.1} parent=79 // pred_check
          %p618 = pneg %p50
        $region82: #{encoder_forward.1} parent=79 // pred_check_branch
          %620 = sbr.rel (%p618) target = $region84
        $region83: #{encoder_forward.1} parent=79 // pred_region
          %p621 = scmp.lt.s32.totalorder %s30, 1
          %s622 = scalar_select %p621, %s30, 1
          %s623 = smul.addr %s622, 64
          %s624 = smul.addr %s623, 4
          %s625 = scalar_lea.vmem %s0, %s624
        $region84: #{encoder_forward.1} parent=79 // pred_fallthru
          _
      $region80: #{encoder_forward.1} parent=5 // pred_fallthru
        _
      %p626 = scmp.le.s32.totalorder 1, %s30
      %p627 = scmp.lt.s32.totalorder %s30, 3
      %p628 = pnand %p626, %p627
      %p629 = pneg %p628
      // Predicated region
      $region85: #{encoder_forward.1} parent=5 // pred_check
        _
      $region86: #{encoder_forward.1} parent=5 // pred_check_branch
        %631 = sbr.rel (%p628) target = $region88
      $region87: #{encoder_forward.1} parent=5 // pred_region
        %s632 = ssub.s32 %s30, 1
        // Predicated region
        $region89: #{encoder_forward.1} parent=87 // pred_check
          %p633 = pneg %p203
        $region90: #{encoder_forward.1} parent=87 // pred_check_branch
          %635 = sbr.rel (%p633) target = $region92
        $region91: #{encoder_forward.1} parent=87 // pred_region
          %637 = dma.done [#allocation3], 4608
        $region92: #{encoder_forward.1} parent=87 // pred_fallthru
          _
        // Predicated region
        $region93: #{encoder_forward.1} parent=87 // pred_check
          %p638 = pneg %p245
        $region94: #{encoder_forward.1} parent=87 // pred_check_branch
          %640 = sbr.rel (%p638) target = $region96
        $region95: #{encoder_forward.1} parent=87 // pred_region
          %642 = dma.done [#allocation5], 4608
        $region96: #{encoder_forward.1} parent=87 // pred_fallthru
          _
        // Predicated region
        $region97: #{encoder_forward.1} parent=87 // pred_check
          %p643 = pneg %p287
        $region98: #{encoder_forward.1} parent=87 // pred_check_branch
          %645 = sbr.rel (%p643) target = $region100
        $region99: #{encoder_forward.1} parent=87 // pred_region
          %647 = dma.done [#allocation5], 4608
        $region100: #{encoder_forward.1} parent=87 // pred_fallthru
          _
        // Predicated region
        $region101: #{encoder_forward.1} parent=87 // pred_check
          %p648 = pneg %p329
        $region102: #{encoder_forward.1} parent=87 // pred_check_branch
          %650 = sbr.rel (%p648) target = $region104
        $region103: #{encoder_forward.1} parent=87 // pred_region
          %652 = dma.done [#allocation8], 4608
        $region104: #{encoder_forward.1} parent=87 // pred_fallthru
          _
        // Predicated region
        $region105: #{encoder_forward.1} parent=87 // pred_check
          %p653 = pneg %p371
        $region106: #{encoder_forward.1} parent=87 // pred_check_branch
          %655 = sbr.rel (%p653) target = $region108
        $region107: #{encoder_forward.1} parent=87 // pred_region
          %657 = dma.done [#allocation8], 4608
        $region108: #{encoder_forward.1} parent=87 // pred_fallthru
          _
        %p658 = scmp.lt.s32.totalorder %s35, 1
        %s659 = scalar_select %p658, %s35, 1
        %s660 = smul.addr %s659, 64
        %s661 = smul.addr %s660, 4
        %s662 = scalar_lea.vmem %s0, %s661
        %p663 = pneg %p56
        %p664 = pneg %p53
        %p665 = pneg %p77
        %p666 = pneg %p74
        %p667 = pneg %p98
        %p668 = pneg %p95
        %p669 = pneg %p119
        %p670 = pneg %p116
        %p671 = pneg %p140
        %p672 = pneg %p137
        %p673 = pneg %p161
        %p674 = pneg %p158
        %p675 = pneg %p182
        %p676 = pneg %p179
        %p677 = pneg %p203
        %p678 = pneg %p200
        %p679 = pneg %p224
        %p680 = pneg %p221
        %p681 = pneg %p245
        %p682 = pneg %p242
        %p683 = pneg %p266
        %p684 = pneg %p263
        %p685 = pneg %p287
        %p686 = pneg %p284
        %p687 = pneg %p308
        %p688 = pneg %p305
        %p689 = pneg %p329
        %p690 = pneg %p326
        %p691 = pneg %p350
        %p692 = pneg %p347
        %p693 = pneg %p371
        %p694 = pneg %p368
        %p695 = pneg %p392
        %p696 = pneg %p389
        %p697 = pneg %p418
        %p698 = pneg %p415
        %p699 = scmp.lt.s32.totalorder %s35, 1
        %s700 = scalar_select %p699, %s35, 1
        %s701 = smul.addr %s700, 32
        %s702 = smul.addr %s701, 8
        %s703 = scalar_lea.vmem %s17, %s702
        %p704 = pneg %p444
        %p705 = pneg %p441
        %p706 = scmp.lt.s32.totalorder %s35, 1
        %s707 = scalar_select %p706, %s35, 1
        %s708 = smul.addr %s707, 8
        %s709 = smul.addr %s708, 8
        %s710 = scalar_lea.vmem %s18, %s709
        %p711 = pneg %p470
        %p712 = pneg %p467
        %p713 = scmp.lt.s32.totalorder %s35, 1
        %s714 = scalar_select %p713, %s35, 1
        %s715 = smul.addr %s714, 2
        %s716 = smul.addr %s715, 8
        %s717 = scalar_lea.vmem %s19, %s716
        %p718 = pneg %p496
        %p719 = pneg %p493
        %p720 = scmp.lt.s32.totalorder %s35, 1
        %s721 = scalar_select %p720, %s35, 1
        %s722 = smul.addr %s721, 4
        %s723 = scalar_lea.vmem %s20, %s722
        %p724 = scmp.lt.s32.totalorder %s35, 1
        %s725 = scalar_select %p724, %s35, 1
        %s726 = smul.addr %s725, 64
        %s727 = smul.addr %s726, 4
        %s728 = scalar_lea.vmem %s0, %s727
        %p729 = scmp.lt.s32.totalorder %s35, 1
        %s730 = scalar_select %p729, %s35, 1
        %s731 = smul.addr %s730, 32
        %s732 = smul.addr %s731, 8
        %s733 = scalar_lea.vmem %s17, %s732
        %p734 = scmp.lt.s32.totalorder %s35, 1
        %s735 = scalar_select %p734, %s35, 1
        %s736 = smul.addr %s735, 8
        %s737 = smul.addr %s736, 8
        %s738 = scalar_lea.vmem %s18, %s737
        %p739 = scmp.lt.s32.totalorder %s35, 1
        %s740 = scalar_select %p739, %s35, 1
        %s741 = smul.addr %s740, 2
        %s742 = smul.addr %s741, 8
        %s743 = scalar_lea.vmem %s19, %s742
        %p744 = scmp.lt.s32.totalorder %s35, 1
        %s745 = scalar_select %p744, %s35, 1
        %s746 = smul.addr %s745, 4
        %s747 = scalar_lea.vmem %s20, %s746
        %v751 = vld [vmem:[%s728] sm:$0xff]
        %v752 = vld [vmem:[%s728 + $0x8] sm:$0xff]
        %v753 = vld [vmem:[%s728 + $0x10] sm:$0xff]
        %v754 = vld [vmem:[%s728 + $0x18] sm:$0xff]
        %v755 = vld [vmem:[%s728 + $0x20] sm:$0xff]
        %v756 = vld [vmem:[%s728 + $0x28] sm:$0xff]
        %v757 = vld [vmem:[%s728 + $0x30] sm:$0xff]
        %v758 = vld [vmem:[%s728 + $0x38] sm:$0xff]
        %v759 = vld [vmem:[%s728 + $0x40] sm:$0xff]
        %v760 = vld [vmem:[%s728 + $0x48] sm:$0xff]
        %v761 = vld [vmem:[%s728 + $0x50] sm:$0xff]
        %v762 = vld [vmem:[%s728 + $0x58] sm:$0xff]
        %v763 = vld [vmem:[%s728 + $0x60] sm:$0xff]
        %v764 = vld [vmem:[%s728 + $0x68] sm:$0xff]
        %v765 = vld [vmem:[%s728 + $0x70] sm:$0xff]
        %v766 = vld [vmem:[%s728 + $0x78] sm:$0xff]
        %v767 = vld [vmem:[%s728 + $0x80] sm:$0xff]
        %v768 = vld [vmem:[%s728 + $0x88] sm:$0xff]
        %v769 = vld [vmem:[%s728 + $0x90] sm:$0xff]
        %v770 = vld [vmem:[%s728 + $0x98] sm:$0xff]
        %v771 = vld [vmem:[%s728 + $0xa0] sm:$0xff]
        %v772 = vld [vmem:[%s728 + $0xa8] sm:$0xff]
        %v773 = vld [vmem:[%s728 + $0xb0] sm:$0xff]
        %v774 = vld [vmem:[%s728 + $0xb8] sm:$0xff]
        %v775 = vld [vmem:[%s728 + $0xc0] sm:$0xff]
        %v776 = vld [vmem:[%s728 + $0xc8] sm:$0xff]
        %v777 = vld [vmem:[%s728 + $0xd0] sm:$0xff]
        %v778 = vld [vmem:[%s728 + $0xd8] sm:$0xff]
        %v779 = vld [vmem:[%s728 + $0xe0] sm:$0xff]
        %v780 = vld [vmem:[%s728 + $0xe8] sm:$0xff]
        %v781 = vld [vmem:[%s728 + $0xf0] sm:$0xff]
        %v782 = vld [vmem:[%s728 + $0xf8] sm:$0xff]
        %v783 = vlaneseq
        %v784 = vshrl.u32 %v783, 7
        %v785 = vadd.s32 %v784, 8
        %v786 = vadd.s32 %v784, 16
        %v787 = vadd.s32 %v784, 24
        %v788 = vadd.s32 %v784, 32
        %v789 = vadd.s32 %v784, 40
        %v790 = vadd.s32 %v784, 48
        %v791 = vadd.s32 %v784, 56
        %v792 = vadd.s32 %v784, 64
        %v793 = vadd.s32 %v784, 72
        %v794 = vadd.s32 %v784, 80
        %v795 = vadd.s32 %v784, 88
        %v796 = vadd.s32 %v784, 96
        %v797 = vadd.s32 %v784, 104
        %v798 = vadd.s32 %v784, 112
        %v799 = vadd.s32 %v784, 120
        %v800 = vadd.s32 %v784, 128
        %v801 = vadd.s32 %v784, 136
        %v802 = vadd.s32 %v784, 144
        %v803 = vadd.s32 %v784, 152
        %v804 = vadd.s32 %v784, 160
        %v805 = vadd.s32 %v784, 168
        %v806 = vadd.s32 %v784, 176
        %v807 = vadd.s32 %v784, 184
        %v808 = vadd.s32 %v784, 192
        %v809 = vadd.s32 %v784, 200
        %v810 = vadd.s32 %v784, 208
        %v811 = vadd.s32 %v784, 216
        %v812 = vadd.s32 %v784, 224
        %v813 = vadd.s32 %v784, 232
        %v814 = vadd.s32 %v784, 240
        %v815 = vadd.s32 %v784, 248
        %vm816 = vcmp.lt.s32.totalorder %v784, 0
        %v817 = vsub.s32 0, %v784
        %v818 = vsel %vm816, %v817, %v784
        %v819 = vshrl.u32 %v818, 4
        %v820 = vand.u32 %v818, 15
        %v821 = vsub.s32 0, %v820
        %v822 = vsel %vm816, %v821, %v820
        %vm823 = vcmp.lt.s32.totalorder %v785, 0
        %v824 = vsub.s32 0, %v785
        %v825 = vsel %vm823, %v824, %v785
        %v826 = vshrl.u32 %v825, 4
        %v827 = vand.u32 %v825, 15
        %v828 = vsub.s32 0, %v827
        %v829 = vsel %vm823, %v828, %v827
        %vm830 = vcmp.lt.s32.totalorder %v786, 0
        %v831 = vsub.s32 0, %v786
        %v832 = vsel %vm830, %v831, %v786
        %v833 = vshrl.u32 %v832, 4
        %v834 = vand.u32 %v832, 15
        %v835 = vsub.s32 0, %v834
        %v836 = vsel %vm830, %v835, %v834
        %vm837 = vcmp.lt.s32.totalorder %v787, 0
        %v838 = vsub.s32 0, %v787
        %v839 = vsel %vm837, %v838, %v787
        %v840 = vshrl.u32 %v839, 4
        %v841 = vand.u32 %v839, 15
        %v842 = vsub.s32 0, %v841
        %v843 = vsel %vm837, %v842, %v841
        %vm844 = vcmp.lt.s32.totalorder %v788, 0
        %v845 = vsub.s32 0, %v788
        %v846 = vsel %vm844, %v845, %v788
        %v847 = vshrl.u32 %v846, 4
        %v848 = vand.u32 %v846, 15
        %v849 = vsub.s32 0, %v848
        %v850 = vsel %vm844, %v849, %v848
        %vm851 = vcmp.lt.s32.totalorder %v789, 0
        %v852 = vsub.s32 0, %v789
        %v853 = vsel %vm851, %v852, %v789
        %v854 = vshrl.u32 %v853, 4
        %v855 = vand.u32 %v853, 15
        %v856 = vsub.s32 0, %v855
        %v857 = vsel %vm851, %v856, %v855
        %vm858 = vcmp.lt.s32.totalorder %v790, 0
        %v859 = vsub.s32 0, %v790
        %v860 = vsel %vm858, %v859, %v790
        %v861 = vshrl.u32 %v860, 4
        %v862 = vand.u32 %v860, 15
        %v863 = vsub.s32 0, %v862
        %v864 = vsel %vm858, %v863, %v862
        %vm865 = vcmp.lt.s32.totalorder %v791, 0
        %v866 = vsub.s32 0, %v791
        %v867 = vsel %vm865, %v866, %v791
        %v868 = vshrl.u32 %v867, 4
        %v869 = vand.u32 %v867, 15
        %v870 = vsub.s32 0, %v869
        %v871 = vsel %vm865, %v870, %v869
        %vm872 = vcmp.lt.s32.totalorder %v792, 0
        %v873 = vsub.s32 0, %v792
        %v874 = vsel %vm872, %v873, %v792
        %v875 = vshrl.u32 %v874, 4
        %v876 = vand.u32 %v874, 15
        %v877 = vsub.s32 0, %v876
        %v878 = vsel %vm872, %v877, %v876
        %vm879 = vcmp.lt.s32.totalorder %v793, 0
        %v880 = vsub.s32 0, %v793
        %v881 = vsel %vm879, %v880, %v793
        %v882 = vshrl.u32 %v881, 4
        %v883 = vand.u32 %v881, 15
        %v884 = vsub.s32 0, %v883
        %v885 = vsel %vm879, %v884, %v883
        %vm886 = vcmp.lt.s32.totalorder %v794, 0
        %v887 = vsub.s32 0, %v794
        %v888 = vsel %vm886, %v887, %v794
        %v889 = vshrl.u32 %v888, 4
        %v890 = vand.u32 %v888, 15
        %v891 = vsub.s32 0, %v890
        %v892 = vsel %vm886, %v891, %v890
        %vm893 = vcmp.lt.s32.totalorder %v795, 0
        %v894 = vsub.s32 0, %v795
        %v895 = vsel %vm893, %v894, %v795
        %v896 = vshrl.u32 %v895, 4
        %v897 = vand.u32 %v895, 15
        %v898 = vsub.s32 0, %v897
        %v899 = vsel %vm893, %v898, %v897
        %vm900 = vcmp.lt.s32.totalorder %v796, 0
        %v901 = vsub.s32 0, %v796
        %v902 = vsel %vm900, %v901, %v796
        %v903 = vshrl.u32 %v902, 4
        %v904 = vand.u32 %v902, 15
        %v905 = vsub.s32 0, %v904
        %v906 = vsel %vm900, %v905, %v904
        %vm907 = vcmp.lt.s32.totalorder %v797, 0
        %v908 = vsub.s32 0, %v797
        %v909 = vsel %vm907, %v908, %v797
        %v910 = vshrl.u32 %v909, 4
        %v911 = vand.u32 %v909, 15
        %v912 = vsub.s32 0, %v911
        %v913 = vsel %vm907, %v912, %v911
        %vm914 = vcmp.lt.s32.totalorder %v798, 0
        %v915 = vsub.s32 0, %v798
        %v916 = vsel %vm914, %v915, %v798
        %v917 = vshrl.u32 %v916, 4
        %v918 = vand.u32 %v916, 15
        %v919 = vsub.s32 0, %v918
        %v920 = vsel %vm914, %v919, %v918
        %vm921 = vcmp.lt.s32.totalorder %v799, 0
        %v922 = vsub.s32 0, %v799
        %v923 = vsel %vm921, %v922, %v799
        %v924 = vshrl.u32 %v923, 4
        %v925 = vand.u32 %v923, 15
        %v926 = vsub.s32 0, %v925
        %v927 = vsel %vm921, %v926, %v925
        %vm928 = vcmp.lt.s32.totalorder %v800, 0
        %v929 = vsub.s32 0, %v800
        %v930 = vsel %vm928, %v929, %v800
        %v931 = vshrl.u32 %v930, 4
        %v932 = vand.u32 %v930, 15
        %v933 = vsub.s32 0, %v932
        %v934 = vsel %vm928, %v933, %v932
        %vm935 = vcmp.lt.s32.totalorder %v801, 0
        %v936 = vsub.s32 0, %v801
        %v937 = vsel %vm935, %v936, %v801
        %v938 = vshrl.u32 %v937, 4
        %v939 = vand.u32 %v937, 15
        %v940 = vsub.s32 0, %v939
        %v941 = vsel %vm935, %v940, %v939
        %vm942 = vcmp.lt.s32.totalorder %v802, 0
        %v943 = vsub.s32 0, %v802
        %v944 = vsel %vm942, %v943, %v802
        %v945 = vshrl.u32 %v944, 4
        %v946 = vand.u32 %v944, 15
        %v947 = vsub.s32 0, %v946
        %v948 = vsel %vm942, %v947, %v946
        %vm949 = vcmp.lt.s32.totalorder %v803, 0
        %v950 = vsub.s32 0, %v803
        %v951 = vsel %vm949, %v950, %v803
        %v952 = vshrl.u32 %v951, 4
        %v953 = vand.u32 %v951, 15
        %v954 = vsub.s32 0, %v953
        %v955 = vsel %vm949, %v954, %v953
        %vm956 = vcmp.lt.s32.totalorder %v804, 0
        %v957 = vsub.s32 0, %v804
        %v958 = vsel %vm956, %v957, %v804
        %v959 = vshrl.u32 %v958, 4
        %v960 = vand.u32 %v958, 15
        %v961 = vsub.s32 0, %v960
        %v962 = vsel %vm956, %v961, %v960
        %vm963 = vcmp.lt.s32.totalorder %v805, 0
        %v964 = vsub.s32 0, %v805
        %v965 = vsel %vm963, %v964, %v805
        %v966 = vshrl.u32 %v965, 4
        %v967 = vand.u32 %v965, 15
        %v968 = vsub.s32 0, %v967
        %v969 = vsel %vm963, %v968, %v967
        %vm970 = vcmp.lt.s32.totalorder %v806, 0
        %v971 = vsub.s32 0, %v806
        %v972 = vsel %vm970, %v971, %v806
        %v973 = vshrl.u32 %v972, 4
        %v974 = vand.u32 %v972, 15
        %v975 = vsub.s32 0, %v974
        %v976 = vsel %vm970, %v975, %v974
        %vm977 = vcmp.lt.s32.totalorder %v807, 0
        %v978 = vsub.s32 0, %v807
        %v979 = vsel %vm977, %v978, %v807
        %v980 = vshrl.u32 %v979, 4
        %v981 = vand.u32 %v979, 15
        %v982 = vsub.s32 0, %v981
        %v983 = vsel %vm977, %v982, %v981
        %vm984 = vcmp.lt.s32.totalorder %v808, 0
        %v985 = vsub.s32 0, %v808
        %v986 = vsel %vm984, %v985, %v808
        %v987 = vshrl.u32 %v986, 4
        %v988 = vand.u32 %v986, 15
        %v989 = vsub.s32 0, %v988
        %v990 = vsel %vm984, %v989, %v988
        %vm991 = vcmp.lt.s32.totalorder %v809, 0
        %v992 = vsub.s32 0, %v809
        %v993 = vsel %vm991, %v992, %v809
        %v994 = vshrl.u32 %v993, 4
        %v995 = vand.u32 %v993, 15
        %v996 = vsub.s32 0, %v995
        %v997 = vsel %vm991, %v996, %v995
        %vm998 = vcmp.lt.s32.totalorder %v810, 0
        %v999 = vsub.s32 0, %v810
        %v1000 = vsel %vm998, %v999, %v810
        %v1001 = vshrl.u32 %v1000, 4
        %v1002 = vand.u32 %v1000, 15
        %v1003 = vsub.s32 0, %v1002
        %v1004 = vsel %vm998, %v1003, %v1002
        %vm1005 = vcmp.lt.s32.totalorder %v811, 0
        %v1006 = vsub.s32 0, %v811
        %v1007 = vsel %vm1005, %v1006, %v811
        %v1008 = vshrl.u32 %v1007, 4
        %v1009 = vand.u32 %v1007, 15
        %v1010 = vsub.s32 0, %v1009
        %v1011 = vsel %vm1005, %v1010, %v1009
        %vm1012 = vcmp.lt.s32.totalorder %v812, 0
        %v1013 = vsub.s32 0, %v812
        %v1014 = vsel %vm1012, %v1013, %v812
        %v1015 = vshrl.u32 %v1014, 4
        %v1016 = vand.u32 %v1014, 15
        %v1017 = vsub.s32 0, %v1016
        %v1018 = vsel %vm1012, %v1017, %v1016
        %vm1019 = vcmp.lt.s32.totalorder %v813, 0
        %v1020 = vsub.s32 0, %v813
        %v1021 = vsel %vm1019, %v1020, %v813
        %v1022 = vshrl.u32 %v1021, 4
        %v1023 = vand.u32 %v1021, 15
        %v1024 = vsub.s32 0, %v1023
        %v1025 = vsel %vm1019, %v1024, %v1023
        %vm1026 = vcmp.lt.s32.totalorder %v814, 0
        %v1027 = vsub.s32 0, %v814
        %v1028 = vsel %vm1026, %v1027, %v814
        %v1029 = vshrl.u32 %v1028, 4
        %v1030 = vand.u32 %v1028, 15
        %v1031 = vsub.s32 0, %v1030
        %v1032 = vsel %vm1026, %v1031, %v1030
        %vm1033 = vcmp.lt.s32.totalorder %v815, 0
        %v1034 = vsub.s32 0, %v815
        %v1035 = vsel %vm1033, %v1034, %v815
        %v1036 = vshrl.u32 %v1035, 4
        %v1037 = vand.u32 %v1035, 15
        %v1038 = vsub.s32 0, %v1037
        %v1039 = vsel %vm1033, %v1038, %v1037
        %vm1040 = vcmp.ne.s32.totalorder %v822, 0
        %vm1041 = vcmp.ne.s32.totalorder %v829, 0
        %vm1042 = vcmp.ne.s32.totalorder %v836, 0
        %vm1043 = vcmp.ne.s32.totalorder %v843, 0
        %vm1044 = vcmp.ne.s32.totalorder %v850, 0
        %vm1045 = vcmp.ne.s32.totalorder %v857, 0
        %vm1046 = vcmp.ne.s32.totalorder %v864, 0
        %vm1047 = vcmp.ne.s32.totalorder %v871, 0
        %vm1048 = vcmp.ne.s32.totalorder %v878, 0
        %vm1049 = vcmp.ne.s32.totalorder %v885, 0
        %vm1050 = vcmp.ne.s32.totalorder %v892, 0
        %vm1051 = vcmp.ne.s32.totalorder %v899, 0
        %vm1052 = vcmp.ne.s32.totalorder %v906, 0
        %vm1053 = vcmp.ne.s32.totalorder %v913, 0
        %vm1054 = vcmp.ne.s32.totalorder %v920, 0
        %vm1055 = vcmp.ne.s32.totalorder %v927, 0
        %vm1056 = vcmp.ne.s32.totalorder %v934, 0
        %vm1057 = vcmp.ne.s32.totalorder %v941, 0
        %vm1058 = vcmp.ne.s32.totalorder %v948, 0
        %vm1059 = vcmp.ne.s32.totalorder %v955, 0
        %vm1060 = vcmp.ne.s32.totalorder %v962, 0
        %vm1061 = vcmp.ne.s32.totalorder %v969, 0
        %vm1062 = vcmp.ne.s32.totalorder %v976, 0
        %vm1063 = vcmp.ne.s32.totalorder %v983, 0
        %vm1064 = vcmp.ne.s32.totalorder %v990, 0
        %vm1065 = vcmp.ne.s32.totalorder %v997, 0
        %vm1066 = vcmp.ne.s32.totalorder %v1004, 0
        %vm1067 = vcmp.ne.s32.totalorder %v1011, 0
        %vm1068 = vcmp.ne.s32.totalorder %v1018, 0
        %vm1069 = vcmp.ne.s32.totalorder %v1025, 0
        %vm1070 = vcmp.ne.s32.totalorder %v1032, 0
        %vm1071 = vcmp.ne.s32.totalorder %v1039, 0
        %vm1072 = vcmp.lt.s32.totalorder %v822, 0
        %vm1073 = vcmp.lt.s32.totalorder %v829, 0
        %vm1074 = vcmp.lt.s32.totalorder %v836, 0
        %vm1075 = vcmp.lt.s32.totalorder %v843, 0
        %vm1076 = vcmp.lt.s32.totalorder %v850, 0
        %vm1077 = vcmp.lt.s32.totalorder %v857, 0
        %vm1078 = vcmp.lt.s32.totalorder %v864, 0
        %vm1079 = vcmp.lt.s32.totalorder %v871, 0
        %vm1080 = vcmp.lt.s32.totalorder %v878, 0
        %vm1081 = vcmp.lt.s32.totalorder %v885, 0
        %vm1082 = vcmp.lt.s32.totalorder %v892, 0
        %vm1083 = vcmp.lt.s32.totalorder %v899, 0
        %vm1084 = vcmp.lt.s32.totalorder %v906, 0
        %vm1085 = vcmp.lt.s32.totalorder %v913, 0
        %vm1086 = vcmp.lt.s32.totalorder %v920, 0
        %vm1087 = vcmp.lt.s32.totalorder %v927, 0
        %vm1088 = vcmp.lt.s32.totalorder %v934, 0
        %vm1089 = vcmp.lt.s32.totalorder %v941, 0
        %vm1090 = vcmp.lt.s32.totalorder %v948, 0
        %vm1091 = vcmp.lt.s32.totalorder %v955, 0
        %vm1092 = vcmp.lt.s32.totalorder %v962, 0
        %vm1093 = vcmp.lt.s32.totalorder %v969, 0
        %vm1094 = vcmp.lt.s32.totalorder %v976, 0
        %vm1095 = vcmp.lt.s32.totalorder %v983, 0
        %vm1096 = vcmp.lt.s32.totalorder %v990, 0
        %vm1097 = vcmp.lt.s32.totalorder %v997, 0
        %vm1098 = vcmp.lt.s32.totalorder %v1004, 0
        %vm1099 = vcmp.lt.s32.totalorder %v1011, 0
        %vm1100 = vcmp.lt.s32.totalorder %v1018, 0
        %vm1101 = vcmp.lt.s32.totalorder %v1025, 0
        %vm1102 = vcmp.lt.s32.totalorder %v1032, 0
        %vm1103 = vcmp.lt.s32.totalorder %v1039, 0
        %vm1104 = vmand %vm1072, %vm1040
        %vm1105 = vmand %vm1073, %vm1041
        %vm1106 = vmand %vm1074, %vm1042
        %vm1107 = vmand %vm1075, %vm1043
        %vm1108 = vmand %vm1076, %vm1044
        %vm1109 = vmand %vm1077, %vm1045
        %vm1110 = vmand %vm1078, %vm1046
        %vm1111 = vmand %vm1079, %vm1047
        %vm1112 = vmand %vm1080, %vm1048
        %vm1113 = vmand %vm1081, %vm1049
        %vm1114 = vmand %vm1082, %vm1050
        %vm1115 = vmand %vm1083, %vm1051
        %vm1116 = vmand %vm1084, %vm1052
        %vm1117 = vmand %vm1085, %vm1053
        %vm1118 = vmand %vm1086, %vm1054
        %vm1119 = vmand %vm1087, %vm1055
        %vm1120 = vmand %vm1088, %vm1056
        %vm1121 = vmand %vm1089, %vm1057
        %vm1122 = vmand %vm1090, %vm1058
        %vm1123 = vmand %vm1091, %vm1059
        %vm1124 = vmand %vm1092, %vm1060
        %vm1125 = vmand %vm1093, %vm1061
        %vm1126 = vmand %vm1094, %vm1062
        %vm1127 = vmand %vm1095, %vm1063
        %vm1128 = vmand %vm1096, %vm1064
        %vm1129 = vmand %vm1097, %vm1065
        %vm1130 = vmand %vm1098, %vm1066
        %vm1131 = vmand %vm1099, %vm1067
        %vm1132 = vmand %vm1100, %vm1068
        %vm1133 = vmand %vm1101, %vm1069
        %vm1134 = vmand %vm1102, %vm1070
        %vm1135 = vmand %vm1103, %vm1071
        %v1136 = vadd.s32 %v822, 16
        %v1137 = vadd.s32 %v829, 16
        %v1138 = vadd.s32 %v836, 16
        %v1139 = vadd.s32 %v843, 16
        %v1140 = vadd.s32 %v850, 16
        %v1141 = vadd.s32 %v857, 16
        %v1142 = vadd.s32 %v864, 16
        %v1143 = vadd.s32 %v871, 16
        %v1144 = vadd.s32 %v878, 16
        %v1145 = vadd.s32 %v885, 16
        %v1146 = vadd.s32 %v892, 16
        %v1147 = vadd.s32 %v899, 16
        %v1148 = vadd.s32 %v906, 16
        %v1149 = vadd.s32 %v913, 16
        %v1150 = vadd.s32 %v920, 16
        %v1151 = vadd.s32 %v927, 16
        %v1152 = vadd.s32 %v934, 16
        %v1153 = vadd.s32 %v941, 16
        %v1154 = vadd.s32 %v948, 16
        %v1155 = vadd.s32 %v955, 16
        %v1156 = vadd.s32 %v962, 16
        %v1157 = vadd.s32 %v969, 16
        %v1158 = vadd.s32 %v976, 16
        %v1159 = vadd.s32 %v983, 16
        %v1160 = vadd.s32 %v990, 16
        %v1161 = vadd.s32 %v997, 16
        %v1162 = vadd.s32 %v1004, 16
        %v1163 = vadd.s32 %v1011, 16
        %v1164 = vadd.s32 %v1018, 16
        %v1165 = vadd.s32 %v1025, 16
        %v1166 = vadd.s32 %v1032, 16
        %v1167 = vadd.s32 %v1039, 16
        %v1168 = vsel %vm1104, %v1136, %v822
        %v1169 = vsel %vm1105, %v1137, %v829
        %v1170 = vsel %vm1106, %v1138, %v836
        %v1171 = vsel %vm1107, %v1139, %v843
        %v1172 = vsel %vm1108, %v1140, %v850
        %v1173 = vsel %vm1109, %v1141, %v857
        %v1174 = vsel %vm1110, %v1142, %v864
        %v1175 = vsel %vm1111, %v1143, %v871
        %v1176 = vsel %vm1112, %v1144, %v878
        %v1177 = vsel %vm1113, %v1145, %v885
        %v1178 = vsel %vm1114, %v1146, %v892
        %v1179 = vsel %vm1115, %v1147, %v899
        %v1180 = vsel %vm1116, %v1148, %v906
        %v1181 = vsel %vm1117, %v1149, %v913
        %v1182 = vsel %vm1118, %v1150, %v920
        %v1183 = vsel %vm1119, %v1151, %v927
        %v1184 = vsel %vm1120, %v1152, %v934
        %v1185 = vsel %vm1121, %v1153, %v941
        %v1186 = vsel %vm1122, %v1154, %v948
        %v1187 = vsel %vm1123, %v1155, %v955
        %v1188 = vsel %vm1124, %v1156, %v962
        %v1189 = vsel %vm1125, %v1157, %v969
        %v1190 = vsel %vm1126, %v1158, %v976
        %v1191 = vsel %vm1127, %v1159, %v983
        %v1192 = vsel %vm1128, %v1160, %v990
        %v1193 = vsel %vm1129, %v1161, %v997
        %v1194 = vsel %vm1130, %v1162, %v1004
        %v1195 = vsel %vm1131, %v1163, %v1011
        %v1196 = vsel %vm1132, %v1164, %v1018
        %v1197 = vsel %vm1133, %v1165, %v1025
        %v1198 = vsel %vm1134, %v1166, %v1032
        %v1199 = vsel %vm1135, %v1167, %v1039
        %vm1200 = vcmp.ne.s32.totalorder %v1168, 0
        %vm1201 = vcmp.ne.s32.totalorder %v1169, 0
        %vm1202 = vcmp.ne.s32.totalorder %v1170, 0
        %vm1203 = vcmp.ne.s32.totalorder %v1171, 0
        %vm1204 = vcmp.ne.s32.totalorder %v1172, 0
        %vm1205 = vcmp.ne.s32.totalorder %v1173, 0
        %vm1206 = vcmp.ne.s32.totalorder %v1174, 0
        %vm1207 = vcmp.ne.s32.totalorder %v1175, 0
        %vm1208 = vcmp.ne.s32.totalorder %v1176, 0
        %vm1209 = vcmp.ne.s32.totalorder %v1177, 0
        %vm1210 = vcmp.ne.s32.totalorder %v1178, 0
        %vm1211 = vcmp.ne.s32.totalorder %v1179, 0
        %vm1212 = vcmp.ne.s32.totalorder %v1180, 0
        %vm1213 = vcmp.ne.s32.totalorder %v1181, 0
        %vm1214 = vcmp.ne.s32.totalorder %v1182, 0
        %vm1215 = vcmp.ne.s32.totalorder %v1183, 0
        %vm1216 = vcmp.ne.s32.totalorder %v1184, 0
        %vm1217 = vcmp.ne.s32.totalorder %v1185, 0
        %vm1218 = vcmp.ne.s32.totalorder %v1186, 0
        %vm1219 = vcmp.ne.s32.totalorder %v1187, 0
        %vm1220 = vcmp.ne.s32.totalorder %v1188, 0
        %vm1221 = vcmp.ne.s32.totalorder %v1189, 0
        %vm1222 = vcmp.ne.s32.totalorder %v1190, 0
        %vm1223 = vcmp.ne.s32.totalorder %v1191, 0
        %vm1224 = vcmp.ne.s32.totalorder %v1192, 0
        %vm1225 = vcmp.ne.s32.totalorder %v1193, 0
        %vm1226 = vcmp.ne.s32.totalorder %v1194, 0
        %vm1227 = vcmp.ne.s32.totalorder %v1195, 0
        %vm1228 = vcmp.ne.s32.totalorder %v1196, 0
        %vm1229 = vcmp.ne.s32.totalorder %v1197, 0
        %vm1230 = vcmp.ne.s32.totalorder %v1198, 0
        %vm1231 = vcmp.ne.s32.totalorder %v1199, 0
        %vm1232 = vcmp.ne.s32.totalorder %v1168, 15
        %vm1233 = vcmp.ne.s32.totalorder %v1169, 15
        %vm1234 = vcmp.ne.s32.totalorder %v1170, 15
        %vm1235 = vcmp.ne.s32.totalorder %v1171, 15
        %vm1236 = vcmp.ne.s32.totalorder %v1172, 15
        %vm1237 = vcmp.ne.s32.totalorder %v1173, 15
        %vm1238 = vcmp.ne.s32.totalorder %v1174, 15
        %vm1239 = vcmp.ne.s32.totalorder %v1175, 15
        %vm1240 = vcmp.ne.s32.totalorder %v1176, 15
        %vm1241 = vcmp.ne.s32.totalorder %v1177, 15
        %vm1242 = vcmp.ne.s32.totalorder %v1178, 15
        %vm1243 = vcmp.ne.s32.totalorder %v1179, 15
        %vm1244 = vcmp.ne.s32.totalorder %v1180, 15
        %vm1245 = vcmp.ne.s32.totalorder %v1181, 15
        %vm1246 = vcmp.ne.s32.totalorder %v1182, 15
        %vm1247 = vcmp.ne.s32.totalorder %v1183, 15
        %vm1248 = vcmp.ne.s32.totalorder %v1184, 15
        %vm1249 = vcmp.ne.s32.totalorder %v1185, 15
        %vm1250 = vcmp.ne.s32.totalorder %v1186, 15
        %vm1251 = vcmp.ne.s32.totalorder %v1187, 15
        %vm1252 = vcmp.ne.s32.totalorder %v1188, 15
        %vm1253 = vcmp.ne.s32.totalorder %v1189, 15
        %vm1254 = vcmp.ne.s32.totalorder %v1190, 15
        %vm1255 = vcmp.ne.s32.totalorder %v1191, 15
        %vm1256 = vcmp.ne.s32.totalorder %v1192, 15
        %vm1257 = vcmp.ne.s32.totalorder %v1193, 15
        %vm1258 = vcmp.ne.s32.totalorder %v1194, 15
        %vm1259 = vcmp.ne.s32.totalorder %v1195, 15
        %vm1260 = vcmp.ne.s32.totalorder %v1196, 15
        %vm1261 = vcmp.ne.s32.totalorder %v1197, 15
        %vm1262 = vcmp.ne.s32.totalorder %v1198, 15
        %vm1263 = vcmp.ne.s32.totalorder %v1199, 15
        %v1296 = vunpack.c.l.b16 %v751
        %v1297 = vunpack.c.h.b16 %v751
        %v1298 = vunpack.c.l.b16 %v752
        %v1299 = vunpack.c.h.b16 %v752
        %v1300 = vunpack.c.l.b16 %v753
        %v1301 = vunpack.c.h.b16 %v753
        %v1302 = vunpack.c.l.b16 %v754
        %v1303 = vunpack.c.h.b16 %v754
        %v1304 = vunpack.c.l.b16 %v755
        %v1305 = vunpack.c.h.b16 %v755
        %v1306 = vunpack.c.l.b16 %v756
        %v1307 = vunpack.c.h.b16 %v756
        %v1308 = vunpack.c.l.b16 %v757
        %v1309 = vunpack.c.h.b16 %v757
        %v1310 = vunpack.c.l.b16 %v758
        %v1311 = vunpack.c.h.b16 %v758
        %v1312 = vunpack.c.l.b16 %v759
        %v1313 = vunpack.c.h.b16 %v759
        %v1314 = vunpack.c.l.b16 %v760
        %v1315 = vunpack.c.h.b16 %v760
        %v1316 = vunpack.c.l.b16 %v761
        %v1317 = vunpack.c.h.b16 %v761
        %v1318 = vunpack.c.l.b16 %v762
        %v1319 = vunpack.c.h.b16 %v762
        %v1320 = vunpack.c.l.b16 %v763
        %v1321 = vunpack.c.h.b16 %v763
        %v1322 = vunpack.c.l.b16 %v764
        %v1323 = vunpack.c.h.b16 %v764
        %v1324 = vunpack.c.l.b16 %v765
        %v1325 = vunpack.c.h.b16 %v765
        %v1326 = vunpack.c.l.b16 %v766
        %v1327 = vunpack.c.h.b16 %v766
        %v1328 = vunpack.c.l.b16 %v767
        %v1329 = vunpack.c.h.b16 %v767
        %v1330 = vunpack.c.l.b16 %v768
        %v1331 = vunpack.c.h.b16 %v768
        %v1332 = vunpack.c.l.b16 %v769
        %v1333 = vunpack.c.h.b16 %v769
        %v1334 = vunpack.c.l.b16 %v770
        %v1335 = vunpack.c.h.b16 %v770
        %v1336 = vunpack.c.l.b16 %v771
        %v1337 = vunpack.c.h.b16 %v771
        %v1338 = vunpack.c.l.b16 %v772
        %v1339 = vunpack.c.h.b16 %v772
        %v1340 = vunpack.c.l.b16 %v773
        %v1341 = vunpack.c.h.b16 %v773
        %v1342 = vunpack.c.l.b16 %v774
        %v1343 = vunpack.c.h.b16 %v774
        %v1344 = vunpack.c.l.b16 %v775
        %v1345 = vunpack.c.h.b16 %v775
        %v1346 = vunpack.c.l.b16 %v776
        %v1347 = vunpack.c.h.b16 %v776
        %v1348 = vunpack.c.l.b16 %v777
        %v1349 = vunpack.c.h.b16 %v777
        %v1350 = vunpack.c.l.b16 %v778
        %v1351 = vunpack.c.h.b16 %v778
        %v1352 = vunpack.c.l.b16 %v779
        %v1353 = vunpack.c.h.b16 %v779
        %v1354 = vunpack.c.l.b16 %v780
        %v1355 = vunpack.c.h.b16 %v780
        %v1356 = vunpack.c.l.b16 %v781
        %v1357 = vunpack.c.h.b16 %v781
        %v1358 = vunpack.c.l.b16 %v782
        %v1359 = vunpack.c.h.b16 %v782
        %v1360 = vpack.c.b16 %v1298, %v1296
        %v1361 = vpack.c.b16 %v1299, %v1297
        %v1362 = vpack.c.b16 %v1302, %v1300
        %v1363 = vpack.c.b16 %v1303, %v1301
        %v1364 = vpack.c.b16 %v1306, %v1304
        %v1365 = vpack.c.b16 %v1307, %v1305
        %v1366 = vpack.c.b16 %v1310, %v1308
        %v1367 = vpack.c.b16 %v1311, %v1309
        %v1368 = vpack.c.b16 %v1314, %v1312
        %v1369 = vpack.c.b16 %v1315, %v1313
        %v1370 = vpack.c.b16 %v1318, %v1316
        %v1371 = vpack.c.b16 %v1319, %v1317
        %v1372 = vpack.c.b16 %v1322, %v1320
        %v1373 = vpack.c.b16 %v1323, %v1321
        %v1374 = vpack.c.b16 %v1326, %v1324
        %v1375 = vpack.c.b16 %v1327, %v1325
        %v1376 = vpack.c.b16 %v1330, %v1328
        %v1377 = vpack.c.b16 %v1331, %v1329
        %v1378 = vpack.c.b16 %v1334, %v1332
        %v1379 = vpack.c.b16 %v1335, %v1333
        %v1380 = vpack.c.b16 %v1338, %v1336
        %v1381 = vpack.c.b16 %v1339, %v1337
        %v1382 = vpack.c.b16 %v1342, %v1340
        %v1383 = vpack.c.b16 %v1343, %v1341
        %v1384 = vpack.c.b16 %v1346, %v1344
        %v1385 = vpack.c.b16 %v1347, %v1345
        %v1386 = vpack.c.b16 %v1350, %v1348
        %v1387 = vpack.c.b16 %v1351, %v1349
        %v1388 = vpack.c.b16 %v1354, %v1352
        %v1389 = vpack.c.b16 %v1355, %v1353
        %v1390 = vpack.c.b16 %v1358, %v1356
        %v1391 = vpack.c.b16 %v1359, %v1357
        %vm1392 = vsmask.f32 256
        %v1394 = vshrl.u32 %v1360, 16
        %v1396 = vrot.slane %v1394, 7
        %v1397 = vshll.u32 %v1360, 16
        %v1399 = vor.u32 %v1396, %v1397
        %v1401 = vshrl.u32 %v1361, 16
        %v1403 = vrot.slane %v1401, 7
        %v1404 = vshll.u32 %v1361, 16
        %v1406 = vor.u32 %v1403, %v1404
        %v1408 = vshrl.u32 %v1362, 16
        %v1410 = vrot.slane %v1408, 7
        %v1411 = vshll.u32 %v1362, 16
        %v1413 = vor.u32 %v1410, %v1411
        %v1414 = vsel %vm1392, %v1396, %v1413
        %v1416 = vshrl.u32 %v1363, 16
        %v1418 = vrot.slane %v1416, 7
        %v1419 = vshll.u32 %v1363, 16
        %v1421 = vor.u32 %v1418, %v1419
        %v1422 = vsel %vm1392, %v1403, %v1421
        %v1424 = vshrl.u32 %v1364, 16
        %v1426 = vrot.slane %v1424, 7
        %v1427 = vshll.u32 %v1364, 16
        %v1429 = vor.u32 %v1426, %v1427
        %v1430 = vsel %vm1392, %v1410, %v1429
        %v1432 = vshrl.u32 %v1365, 16
        %v1434 = vrot.slane %v1432, 7
        %v1435 = vshll.u32 %v1365, 16
        %v1437 = vor.u32 %v1434, %v1435
        %v1438 = vsel %vm1392, %v1418, %v1437
        %v1440 = vshrl.u32 %v1366, 16
        %v1442 = vrot.slane %v1440, 7
        %v1443 = vshll.u32 %v1366, 16
        %v1445 = vor.u32 %v1442, %v1443
        %v1446 = vsel %vm1392, %v1426, %v1445
        %v1448 = vshrl.u32 %v1367, 16
        %v1450 = vrot.slane %v1448, 7
        %v1451 = vshll.u32 %v1367, 16
        %v1453 = vor.u32 %v1450, %v1451
        %v1454 = vsel %vm1392, %v1434, %v1453
        %v1456 = vshrl.u32 %v1368, 16
        %v1458 = vrot.slane %v1456, 7
        %v1459 = vshll.u32 %v1368, 16
        %v1461 = vor.u32 %v1458, %v1459
        %v1462 = vsel %vm1392, %v1442, %v1461
        %v1464 = vshrl.u32 %v1369, 16
        %v1466 = vrot.slane %v1464, 7
        %v1467 = vshll.u32 %v1369, 16
        %v1469 = vor.u32 %v1466, %v1467
        %v1470 = vsel %vm1392, %v1450, %v1469
        %v1472 = vshrl.u32 %v1370, 16
        %v1474 = vrot.slane %v1472, 7
        %v1475 = vshll.u32 %v1370, 16
        %v1477 = vor.u32 %v1474, %v1475
        %v1478 = vsel %vm1392, %v1458, %v1477
        %v1480 = vshrl.u32 %v1371, 16
        %v1482 = vrot.slane %v1480, 7
        %v1483 = vshll.u32 %v1371, 16
        %v1485 = vor.u32 %v1482, %v1483
        %v1486 = vsel %vm1392, %v1466, %v1485
        %v1488 = vshrl.u32 %v1372, 16
        %v1490 = vrot.slane %v1488, 7
        %v1491 = vshll.u32 %v1372, 16
        %v1493 = vor.u32 %v1490, %v1491
        %v1494 = vsel %vm1392, %v1474, %v1493
        %v1496 = vshrl.u32 %v1373, 16
        %v1498 = vrot.slane %v1496, 7
        %v1499 = vshll.u32 %v1373, 16
        %v1501 = vor.u32 %v1498, %v1499
        %v1502 = vsel %vm1392, %v1482, %v1501
        %v1504 = vshrl.u32 %v1374, 16
        %v1506 = vrot.slane %v1504, 7
        %v1507 = vshll.u32 %v1374, 16
        %v1509 = vor.u32 %v1506, %v1507
        %v1510 = vsel %vm1392, %v1490, %v1509
        %v1512 = vshrl.u32 %v1375, 16
        %v1514 = vrot.slane %v1512, 7
        %v1515 = vshll.u32 %v1375, 16
        %v1517 = vor.u32 %v1514, %v1515
        %v1518 = vsel %vm1392, %v1498, %v1517
        %v1520 = vshrl.u32 %v1376, 16
        %v1522 = vrot.slane %v1520, 7
        %v1523 = vshll.u32 %v1376, 16
        %v1525 = vor.u32 %v1522, %v1523
        %v1526 = vsel %vm1392, %v1506, %v1525
        %v1528 = vshrl.u32 %v1377, 16
        %v1530 = vrot.slane %v1528, 7
        %v1531 = vshll.u32 %v1377, 16
        %v1533 = vor.u32 %v1530, %v1531
        %v1534 = vsel %vm1392, %v1514, %v1533
        %v1536 = vshrl.u32 %v1378, 16
        %v1538 = vrot.slane %v1536, 7
        %v1539 = vshll.u32 %v1378, 16
        %v1541 = vor.u32 %v1538, %v1539
        %v1542 = vsel %vm1392, %v1522, %v1541
        %v1544 = vshrl.u32 %v1379, 16
        %v1546 = vrot.slane %v1544, 7
        %v1547 = vshll.u32 %v1379, 16
        %v1549 = vor.u32 %v1546, %v1547
        %v1550 = vsel %vm1392, %v1530, %v1549
        %v1552 = vshrl.u32 %v1380, 16
        %v1554 = vrot.slane %v1552, 7
        %v1555 = vshll.u32 %v1380, 16
        %v1557 = vor.u32 %v1554, %v1555
        %v1558 = vsel %vm1392, %v1538, %v1557
        %v1560 = vshrl.u32 %v1381, 16
        %v1562 = vrot.slane %v1560, 7
        %v1563 = vshll.u32 %v1381, 16
        %v1565 = vor.u32 %v1562, %v1563
        %v1566 = vsel %vm1392, %v1546, %v1565
        %v1568 = vshrl.u32 %v1382, 16
        %v1570 = vrot.slane %v1568, 7
        %v1571 = vshll.u32 %v1382, 16
        %v1573 = vor.u32 %v1570, %v1571
        %v1574 = vsel %vm1392, %v1554, %v1573
        %v1576 = vshrl.u32 %v1383, 16
        %v1578 = vrot.slane %v1576, 7
        %v1579 = vshll.u32 %v1383, 16
        %v1581 = vor.u32 %v1578, %v1579
        %v1582 = vsel %vm1392, %v1562, %v1581
        %v1584 = vshrl.u32 %v1384, 16
        %v1586 = vrot.slane %v1584, 7
        %v1587 = vshll.u32 %v1384, 16
        %v1589 = vor.u32 %v1586, %v1587
        %v1590 = vsel %vm1392, %v1570, %v1589
        %v1592 = vshrl.u32 %v1385, 16
        %v1594 = vrot.slane %v1592, 7
        %v1595 = vshll.u32 %v1385, 16
        %v1597 = vor.u32 %v1594, %v1595
        %v1598 = vsel %vm1392, %v1578, %v1597
        %v1600 = vshrl.u32 %v1386, 16
        %v1602 = vrot.slane %v1600, 7
        %v1603 = vshll.u32 %v1386, 16
        %v1605 = vor.u32 %v1602, %v1603
        %v1606 = vsel %vm1392, %v1586, %v1605
        %v1608 = vshrl.u32 %v1387, 16
        %v1610 = vrot.slane %v1608, 7
        %v1611 = vshll.u32 %v1387, 16
        %v1613 = vor.u32 %v1610, %v1611
        %v1614 = vsel %vm1392, %v1594, %v1613
        %v1616 = vshrl.u32 %v1388, 16
        %v1618 = vrot.slane %v1616, 7
        %v1619 = vshll.u32 %v1388, 16
        %v1621 = vor.u32 %v1618, %v1619
        %v1622 = vsel %vm1392, %v1602, %v1621
        %v1624 = vshrl.u32 %v1389, 16
        %v1626 = vrot.slane %v1624, 7
        %v1627 = vshll.u32 %v1389, 16
        %v1629 = vor.u32 %v1626, %v1627
        %v1630 = vsel %vm1392, %v1610, %v1629
        %v1632 = vshrl.u32 %v1390, 16
        %v1634 = vrot.slane %v1632, 7
        %v1635 = vshll.u32 %v1390, 16
        %v1637 = vor.u32 %v1634, %v1635
        %v1638 = vsel %vm1392, %v1618, %v1637
        %v1640 = vshrl.u32 %v1391, 16
        %v1642 = vrot.slane %v1640, 7
        %v1643 = vshll.u32 %v1391, 16
        %v1645 = vor.u32 %v1642, %v1643
        %v1646 = vsel %vm1392, %v1626, %v1645
        %vm1679 = vcmask 1040384
        %vm1680 = vmand %vm1679, %vm1392
        %v1681 = vsel %vm1680, 0, %v1399
        %v1682 = vsel %vm1680, 0, %v1406
        %v1683 = vsel %vm1200, 1, 0
        %v1684 = vsel %vm1201, 1, 0
        %v1685 = vsel %vm1202, 1, 0
        %v1686 = vsel %vm1203, 1, 0
        %v1687 = vsel %vm1204, 1, 0
        %v1688 = vsel %vm1205, 1, 0
        %v1689 = vsel %vm1206, 1, 0
        %v1690 = vsel %vm1207, 1, 0
        %v1691 = vsel %vm1208, 1, 0
        %v1692 = vsel %vm1209, 1, 0
        %v1693 = vsel %vm1210, 1, 0
        %v1694 = vsel %vm1211, 1, 0
        %v1695 = vsel %vm1212, 1, 0
        %v1696 = vsel %vm1213, 1, 0
        %v1697 = vsel %vm1214, 1, 0
        %v1698 = vsel %vm1215, 1, 0
        %v1699 = vsel %vm1216, 1, 0
        %v1700 = vsel %vm1217, 1, 0
        %v1701 = vsel %vm1218, 1, 0
        %v1702 = vsel %vm1219, 1, 0
        %v1703 = vsel %vm1220, 1, 0
        %v1704 = vsel %vm1221, 1, 0
        %v1705 = vsel %vm1222, 1, 0
        %v1706 = vsel %vm1223, 1, 0
        %v1707 = vsel %vm1224, 1, 0
        %v1708 = vsel %vm1225, 1, 0
        %v1709 = vsel %vm1226, 1, 0
        %v1710 = vsel %vm1227, 1, 0
        %v1711 = vsel %vm1228, 1, 0
        %v1712 = vsel %vm1229, 1, 0
        %v1713 = vsel %vm1230, 1, 0
        %v1714 = vsel %vm1231, 1, 0
        %vm1715 = vcmp.eq.s32.totalorder %v1683, 1
        %vm1716 = vcmp.eq.s32.totalorder %v1684, 1
        %vm1717 = vcmp.eq.s32.totalorder %v1685, 1
        %vm1718 = vcmp.eq.s32.totalorder %v1686, 1
        %vm1719 = vcmp.eq.s32.totalorder %v1687, 1
        %vm1720 = vcmp.eq.s32.totalorder %v1688, 1
        %vm1721 = vcmp.eq.s32.totalorder %v1689, 1
        %vm1722 = vcmp.eq.s32.totalorder %v1690, 1
        %vm1723 = vcmp.eq.s32.totalorder %v1691, 1
        %vm1724 = vcmp.eq.s32.totalorder %v1692, 1
        %vm1725 = vcmp.eq.s32.totalorder %v1693, 1
        %vm1726 = vcmp.eq.s32.totalorder %v1694, 1
        %vm1727 = vcmp.eq.s32.totalorder %v1695, 1
        %vm1728 = vcmp.eq.s32.totalorder %v1696, 1
        %vm1729 = vcmp.eq.s32.totalorder %v1697, 1
        %vm1730 = vcmp.eq.s32.totalorder %v1698, 1
        %vm1731 = vcmp.eq.s32.totalorder %v1699, 1
        %vm1732 = vcmp.eq.s32.totalorder %v1700, 1
        %vm1733 = vcmp.eq.s32.totalorder %v1701, 1
        %vm1734 = vcmp.eq.s32.totalorder %v1702, 1
        %vm1735 = vcmp.eq.s32.totalorder %v1703, 1
        %vm1736 = vcmp.eq.s32.totalorder %v1704, 1
        %vm1737 = vcmp.eq.s32.totalorder %v1705, 1
        %vm1738 = vcmp.eq.s32.totalorder %v1706, 1
        %vm1739 = vcmp.eq.s32.totalorder %v1707, 1
        %vm1740 = vcmp.eq.s32.totalorder %v1708, 1
        %vm1741 = vcmp.eq.s32.totalorder %v1709, 1
        %vm1742 = vcmp.eq.s32.totalorder %v1710, 1
        %vm1743 = vcmp.eq.s32.totalorder %v1711, 1
        %vm1744 = vcmp.eq.s32.totalorder %v1712, 1
        %vm1745 = vcmp.eq.s32.totalorder %v1713, 1
        %vm1746 = vcmp.eq.s32.totalorder %v1714, 1
        %vm1747 = vmpackc.low %vm1715, %vm1715
        %vm1748 = vmpackc.low %vm1716, %vm1716
        %vm1749 = vmpackc.low %vm1717, %vm1717
        %vm1750 = vmpackc.low %vm1718, %vm1718
        %vm1751 = vmpackc.low %vm1719, %vm1719
        %vm1752 = vmpackc.low %vm1720, %vm1720
        %vm1753 = vmpackc.low %vm1721, %vm1721
        %vm1754 = vmpackc.low %vm1722, %vm1722
        %vm1755 = vmpackc.low %vm1723, %vm1723
        %vm1756 = vmpackc.low %vm1724, %vm1724
        %vm1757 = vmpackc.low %vm1725, %vm1725
        %vm1758 = vmpackc.low %vm1726, %vm1726
        %vm1759 = vmpackc.low %vm1727, %vm1727
        %vm1760 = vmpackc.low %vm1728, %vm1728
        %vm1761 = vmpackc.low %vm1729, %vm1729
        %vm1762 = vmpackc.low %vm1730, %vm1730
        %vm1763 = vmpackc.low %vm1731, %vm1731
        %vm1764 = vmpackc.low %vm1732, %vm1732
        %vm1765 = vmpackc.low %vm1733, %vm1733
        %vm1766 = vmpackc.low %vm1734, %vm1734
        %vm1767 = vmpackc.low %vm1735, %vm1735
        %vm1768 = vmpackc.low %vm1736, %vm1736
        %vm1769 = vmpackc.low %vm1737, %vm1737
        %vm1770 = vmpackc.low %vm1738, %vm1738
        %vm1771 = vmpackc.low %vm1739, %vm1739
        %vm1772 = vmpackc.low %vm1740, %vm1740
        %vm1773 = vmpackc.low %vm1741, %vm1741
        %vm1774 = vmpackc.low %vm1742, %vm1742
        %vm1775 = vmpackc.low %vm1743, %vm1743
        %vm1776 = vmpackc.low %vm1744, %vm1744
        %vm1777 = vmpackc.low %vm1745, %vm1745
        %vm1778 = vmpackc.low %vm1746, %vm1746
        %v1779 = vsel %vm1747, 65537, 0
        %v1780 = vsel %vm1748, 65537, 0
        %v1781 = vsel %vm1749, 65537, 0
        %v1782 = vsel %vm1750, 65537, 0
        %v1783 = vsel %vm1751, 65537, 0
        %v1784 = vsel %vm1752, 65537, 0
        %v1785 = vsel %vm1753, 65537, 0
        %v1786 = vsel %vm1754, 65537, 0
        %v1787 = vsel %vm1755, 65537, 0
        %v1788 = vsel %vm1756, 65537, 0
        %v1789 = vsel %vm1757, 65537, 0
        %v1790 = vsel %vm1758, 65537, 0
        %v1791 = vsel %vm1759, 65537, 0
        %v1792 = vsel %vm1760, 65537, 0
        %v1793 = vsel %vm1761, 65537, 0
        %v1794 = vsel %vm1762, 65537, 0
        %v1795 = vsel %vm1763, 65537, 0
        %v1796 = vsel %vm1764, 65537, 0
        %v1797 = vsel %vm1765, 65537, 0
        %v1798 = vsel %vm1766, 65537, 0
        %v1799 = vsel %vm1767, 65537, 0
        %v1800 = vsel %vm1768, 65537, 0
        %v1801 = vsel %vm1769, 65537, 0
        %v1802 = vsel %vm1770, 65537, 0
        %v1803 = vsel %vm1771, 65537, 0
        %v1804 = vsel %vm1772, 65537, 0
        %v1805 = vsel %vm1773, 65537, 0
        %v1806 = vsel %vm1774, 65537, 0
        %v1807 = vsel %vm1775, 65537, 0
        %v1808 = vsel %vm1776, 65537, 0
        %v1809 = vsel %vm1777, 65537, 0
        %v1810 = vsel %vm1778, 65537, 0
        %v1811 = vunpack.c.l.b16 %v1779
        %v1812 = vunpack.c.l.b16 %v1780
        %v1813 = vunpack.c.l.b16 %v1781
        %v1814 = vunpack.c.l.b16 %v1782
        %v1815 = vunpack.c.l.b16 %v1783
        %v1816 = vunpack.c.l.b16 %v1784
        %v1817 = vunpack.c.l.b16 %v1785
        %v1818 = vunpack.c.l.b16 %v1786
        %v1819 = vunpack.c.l.b16 %v1787
        %v1820 = vunpack.c.l.b16 %v1788
        %v1821 = vunpack.c.l.b16 %v1789
        %v1822 = vunpack.c.l.b16 %v1790
        %v1823 = vunpack.c.l.b16 %v1791
        %v1824 = vunpack.c.l.b16 %v1792
        %v1825 = vunpack.c.l.b16 %v1793
        %v1826 = vunpack.c.l.b16 %v1794
        %v1827 = vunpack.c.l.b16 %v1795
        %v1828 = vunpack.c.l.b16 %v1796
        %v1829 = vunpack.c.l.b16 %v1797
        %v1830 = vunpack.c.l.b16 %v1798
        %v1831 = vunpack.c.l.b16 %v1799
        %v1832 = vunpack.c.l.b16 %v1800
        %v1833 = vunpack.c.l.b16 %v1801
        %v1834 = vunpack.c.l.b16 %v1802
        %v1835 = vunpack.c.l.b16 %v1803
        %v1836 = vunpack.c.l.b16 %v1804
        %v1837 = vunpack.c.l.b16 %v1805
        %v1838 = vunpack.c.l.b16 %v1806
        %v1839 = vunpack.c.l.b16 %v1807
        %v1840 = vunpack.c.l.b16 %v1808
        %v1841 = vunpack.c.l.b16 %v1809
        %v1842 = vunpack.c.l.b16 %v1810
        %v1843 = vpack.c.b16 %v1812, %v1811
        %v1844 = vpack.c.b16 %v1814, %v1813
        %v1845 = vpack.c.b16 %v1816, %v1815
        %v1846 = vpack.c.b16 %v1818, %v1817
        %v1847 = vpack.c.b16 %v1820, %v1819
        %v1848 = vpack.c.b16 %v1822, %v1821
        %v1849 = vpack.c.b16 %v1824, %v1823
        %v1850 = vpack.c.b16 %v1826, %v1825
        %v1851 = vpack.c.b16 %v1828, %v1827
        %v1852 = vpack.c.b16 %v1830, %v1829
        %v1853 = vpack.c.b16 %v1832, %v1831
        %v1854 = vpack.c.b16 %v1834, %v1833
        %v1855 = vpack.c.b16 %v1836, %v1835
        %v1856 = vpack.c.b16 %v1838, %v1837
        %v1857 = vpack.c.b16 %v1840, %v1839
        %v1858 = vpack.c.b16 %v1842, %v1841
        %v1859 = vunpack.c.l.b16 %v1843
        %v1860 = vunpack.c.h.b16 %v1843
        %v1861 = vunpack.c.l.b16 0
        %v1862 = vunpack.c.h.b16 0
        %vm1863 = vcmp.ne.s32.totalorder %v1859, %v1861
        %vm1864 = vcmp.ne.s32.totalorder %v1860, %v1862
        %vm1865 = vmpackc.low %vm1864, %vm1863
        %v1866 = vunpack.c.l.b16 %v1844
        %v1867 = vunpack.c.h.b16 %v1844
        %v1868 = vunpack.c.l.b16 0
        %v1869 = vunpack.c.h.b16 0
        %vm1870 = vcmp.ne.s32.totalorder %v1866, %v1868
        %vm1871 = vcmp.ne.s32.totalorder %v1867, %v1869
        %vm1872 = vmpackc.low %vm1871, %vm1870
        %v1873 = vunpack.c.l.b16 %v1845
        %v1874 = vunpack.c.h.b16 %v1845
        %v1875 = vunpack.c.l.b16 0
        %v1876 = vunpack.c.h.b16 0
        %vm1877 = vcmp.ne.s32.totalorder %v1873, %v1875
        %vm1878 = vcmp.ne.s32.totalorder %v1874, %v1876
        %vm1879 = vmpackc.low %vm1878, %vm1877
        %v1880 = vunpack.c.l.b16 %v1846
        %v1881 = vunpack.c.h.b16 %v1846
        %v1882 = vunpack.c.l.b16 0
        %v1883 = vunpack.c.h.b16 0
        %vm1884 = vcmp.ne.s32.totalorder %v1880, %v1882
        %vm1885 = vcmp.ne.s32.totalorder %v1881, %v1883
        %vm1886 = vmpackc.low %vm1885, %vm1884
        %v1887 = vunpack.c.l.b16 %v1847
        %v1888 = vunpack.c.h.b16 %v1847
        %v1889 = vunpack.c.l.b16 0
        %v1890 = vunpack.c.h.b16 0
        %vm1891 = vcmp.ne.s32.totalorder %v1887, %v1889
        %vm1892 = vcmp.ne.s32.totalorder %v1888, %v1890
        %vm1893 = vmpackc.low %vm1892, %vm1891
        %v1894 = vunpack.c.l.b16 %v1848
        %v1895 = vunpack.c.h.b16 %v1848
        %v1896 = vunpack.c.l.b16 0
        %v1897 = vunpack.c.h.b16 0
        %vm1898 = vcmp.ne.s32.totalorder %v1894, %v1896
        %vm1899 = vcmp.ne.s32.totalorder %v1895, %v1897
        %vm1900 = vmpackc.low %vm1899, %vm1898
        %v1901 = vunpack.c.l.b16 %v1849
        %v1902 = vunpack.c.h.b16 %v1849
        %v1903 = vunpack.c.l.b16 0
        %v1904 = vunpack.c.h.b16 0
        %vm1905 = vcmp.ne.s32.totalorder %v1901, %v1903
        %vm1906 = vcmp.ne.s32.totalorder %v1902, %v1904
        %vm1907 = vmpackc.low %vm1906, %vm1905
        %v1908 = vunpack.c.l.b16 %v1850
        %v1909 = vunpack.c.h.b16 %v1850
        %v1910 = vunpack.c.l.b16 0
        %v1911 = vunpack.c.h.b16 0
        %vm1912 = vcmp.ne.s32.totalorder %v1908, %v1910
        %vm1913 = vcmp.ne.s32.totalorder %v1909, %v1911
        %vm1914 = vmpackc.low %vm1913, %vm1912
        %v1915 = vunpack.c.l.b16 %v1851
        %v1916 = vunpack.c.h.b16 %v1851
        %v1917 = vunpack.c.l.b16 0
        %v1918 = vunpack.c.h.b16 0
        %vm1919 = vcmp.ne.s32.totalorder %v1915, %v1917
        %vm1920 = vcmp.ne.s32.totalorder %v1916, %v1918
        %vm1921 = vmpackc.low %vm1920, %vm1919
        %v1922 = vunpack.c.l.b16 %v1852
        %v1923 = vunpack.c.h.b16 %v1852
        %v1924 = vunpack.c.l.b16 0
        %v1925 = vunpack.c.h.b16 0
        %vm1926 = vcmp.ne.s32.totalorder %v1922, %v1924
        %vm1927 = vcmp.ne.s32.totalorder %v1923, %v1925
        %vm1928 = vmpackc.low %vm1927, %vm1926
        %v1929 = vunpack.c.l.b16 %v1853
        %v1930 = vunpack.c.h.b16 %v1853
        %v1931 = vunpack.c.l.b16 0
        %v1932 = vunpack.c.h.b16 0
        %vm1933 = vcmp.ne.s32.totalorder %v1929, %v1931
        %vm1934 = vcmp.ne.s32.totalorder %v1930, %v1932
        %vm1935 = vmpackc.low %vm1934, %vm1933
        %v1936 = vunpack.c.l.b16 %v1854
        %v1937 = vunpack.c.h.b16 %v1854
        %v1938 = vunpack.c.l.b16 0
        %v1939 = vunpack.c.h.b16 0
        %vm1940 = vcmp.ne.s32.totalorder %v1936, %v1938
        %vm1941 = vcmp.ne.s32.totalorder %v1937, %v1939
        %vm1942 = vmpackc.low %vm1941, %vm1940
        %v1943 = vunpack.c.l.b16 %v1855
        %v1944 = vunpack.c.h.b16 %v1855
        %v1945 = vunpack.c.l.b16 0
        %v1946 = vunpack.c.h.b16 0
        %vm1947 = vcmp.ne.s32.totalorder %v1943, %v1945
        %vm1948 = vcmp.ne.s32.totalorder %v1944, %v1946
        %vm1949 = vmpackc.low %vm1948, %vm1947
        %v1950 = vunpack.c.l.b16 %v1856
        %v1951 = vunpack.c.h.b16 %v1856
        %v1952 = vunpack.c.l.b16 0
        %v1953 = vunpack.c.h.b16 0
        %vm1954 = vcmp.ne.s32.totalorder %v1950, %v1952
        %vm1955 = vcmp.ne.s32.totalorder %v1951, %v1953
        %vm1956 = vmpackc.low %vm1955, %vm1954
        %v1957 = vunpack.c.l.b16 %v1857
        %v1958 = vunpack.c.h.b16 %v1857
        %v1959 = vunpack.c.l.b16 0
        %v1960 = vunpack.c.h.b16 0
        %vm1961 = vcmp.ne.s32.totalorder %v1957, %v1959
        %vm1962 = vcmp.ne.s32.totalorder %v1958, %v1960
        %vm1963 = vmpackc.low %vm1962, %vm1961
        %v1964 = vunpack.c.l.b16 %v1858
        %v1965 = vunpack.c.h.b16 %v1858
        %v1966 = vunpack.c.l.b16 0
        %v1967 = vunpack.c.h.b16 0
        %vm1968 = vcmp.ne.s32.totalorder %v1964, %v1966
        %vm1969 = vcmp.ne.s32.totalorder %v1965, %v1967
        %vm1970 = vmpackc.low %vm1969, %vm1968
        %v1971 = vsel %vm1865, %v1681, 0
        %v1972 = vsel %vm1865, %v1682, 0
        %v1973 = vsel %vm1872, %v1414, 0
        %v1974 = vsel %vm1872, %v1422, 0
        %v1975 = vsel %vm1879, %v1430, 0
        %v1976 = vsel %vm1879, %v1438, 0
        %v1977 = vsel %vm1886, %v1446, 0
        %v1978 = vsel %vm1886, %v1454, 0
        %v1979 = vsel %vm1893, %v1462, 0
        %v1980 = vsel %vm1893, %v1470, 0
        %v1981 = vsel %vm1900, %v1478, 0
        %v1982 = vsel %vm1900, %v1486, 0
        %v1983 = vsel %vm1907, %v1494, 0
        %v1984 = vsel %vm1907, %v1502, 0
        %v1985 = vsel %vm1914, %v1510, 0
        %v1986 = vsel %vm1914, %v1518, 0
        %v1987 = vsel %vm1921, %v1526, 0
        %v1988 = vsel %vm1921, %v1534, 0
        %v1989 = vsel %vm1928, %v1542, 0
        %v1990 = vsel %vm1928, %v1550, 0
        %v1991 = vsel %vm1935, %v1558, 0
        %v1992 = vsel %vm1935, %v1566, 0
        %v1993 = vsel %vm1942, %v1574, 0
        %v1994 = vsel %vm1942, %v1582, 0
        %v1995 = vsel %vm1949, %v1590, 0
        %v1996 = vsel %vm1949, %v1598, 0
        %v1997 = vsel %vm1956, %v1606, 0
        %v1998 = vsel %vm1956, %v1614, 0
        %v1999 = vsel %vm1963, %v1622, 0
        %v2000 = vsel %vm1963, %v1630, 0
        %v2001 = vsel %vm1970, %v1638, 0
        %v2002 = vsel %vm1970, %v1646, 0
        %vm2003 = vsmask.f32 7424
        %v2004 = vrot.slane %v1397, 1
        %v2005 = vor.u32 %v1394, %v2004
        %v2006 = vrot.slane %v1411, 1
        %v2007 = vsel %vm2003, %v2005, %v2006
        %v2008 = vrot.slane %v1404, 1
        %v2009 = vor.u32 %v1401, %v2008
        %v2010 = vrot.slane %v1419, 1
        %v2011 = vsel %vm2003, %v2009, %v2010
        %v2012 = vor.u32 %v1408, %v2006
        %v2013 = vrot.slane %v1427, 1
        %v2014 = vsel %vm2003, %v2012, %v2013
        %v2015 = vor.u32 %v1416, %v2010
        %v2016 = vrot.slane %v1435, 1
        %v2017 = vsel %vm2003, %v2015, %v2016
        %v2018 = vor.u32 %v1424, %v2013
        %v2019 = vrot.slane %v1443, 1
        %v2020 = vsel %vm2003, %v2018, %v2019
        %v2021 = vor.u32 %v1432, %v2016
        %v2022 = vrot.slane %v1451, 1
        %v2023 = vsel %vm2003, %v2021, %v2022
        %v2024 = vor.u32 %v1440, %v2019
        %v2025 = vrot.slane %v1459, 1
        %v2026 = vsel %vm2003, %v2024, %v2025
        %v2027 = vor.u32 %v1448, %v2022
        %v2028 = vrot.slane %v1467, 1
        %v2029 = vsel %vm2003, %v2027, %v2028
        %v2030 = vor.u32 %v1456, %v2025
        %v2031 = vrot.slane %v1475, 1
        %v2032 = vsel %vm2003, %v2030, %v2031
        %v2033 = vor.u32 %v1464, %v2028
        %v2034 = vrot.slane %v1483, 1
        %v2035 = vsel %vm2003, %v2033, %v2034
        %v2036 = vor.u32 %v1472, %v2031
        %v2037 = vrot.slane %v1491, 1
        %v2038 = vsel %vm2003, %v2036, %v2037
        %v2039 = vor.u32 %v1480, %v2034
        %v2040 = vrot.slane %v1499, 1
        %v2041 = vsel %vm2003, %v2039, %v2040
        %v2042 = vor.u32 %v1488, %v2037
        %v2043 = vrot.slane %v1507, 1
        %v2044 = vsel %vm2003, %v2042, %v2043
        %v2045 = vor.u32 %v1496, %v2040
        %v2046 = vrot.slane %v1515, 1
        %v2047 = vsel %vm2003, %v2045, %v2046
        %v2048 = vor.u32 %v1504, %v2043
        %v2049 = vrot.slane %v1523, 1
        %v2050 = vsel %vm2003, %v2048, %v2049
        %v2051 = vor.u32 %v1512, %v2046
        %v2052 = vrot.slane %v1531, 1
        %v2053 = vsel %vm2003, %v2051, %v2052
        %v2054 = vor.u32 %v1520, %v2049
        %v2055 = vrot.slane %v1539, 1
        %v2056 = vsel %vm2003, %v2054, %v2055
        %v2057 = vor.u32 %v1528, %v2052
        %v2058 = vrot.slane %v1547, 1
        %v2059 = vsel %vm2003, %v2057, %v2058
        %v2060 = vor.u32 %v1536, %v2055
        %v2061 = vrot.slane %v1555, 1
        %v2062 = vsel %vm2003, %v2060, %v2061
        %v2063 = vor.u32 %v1544, %v2058
        %v2064 = vrot.slane %v1563, 1
        %v2065 = vsel %vm2003, %v2063, %v2064
        %v2066 = vor.u32 %v1552, %v2061
        %v2067 = vrot.slane %v1571, 1
        %v2068 = vsel %vm2003, %v2066, %v2067
        %v2069 = vor.u32 %v1560, %v2064
        %v2070 = vrot.slane %v1579, 1
        %v2071 = vsel %vm2003, %v2069, %v2070
        %v2072 = vor.u32 %v1568, %v2067
        %v2073 = vrot.slane %v1587, 1
        %v2074 = vsel %vm2003, %v2072, %v2073
        %v2075 = vor.u32 %v1576, %v2070
        %v2076 = vrot.slane %v1595, 1
        %v2077 = vsel %vm2003, %v2075, %v2076
        %v2078 = vor.u32 %v1584, %v2073
        %v2079 = vrot.slane %v1603, 1
        %v2080 = vsel %vm2003, %v2078, %v2079
        %v2081 = vor.u32 %v1592, %v2076
        %v2082 = vrot.slane %v1611, 1
        %v2083 = vsel %vm2003, %v2081, %v2082
        %v2084 = vor.u32 %v1600, %v2079
        %v2085 = vrot.slane %v1619, 1
        %v2086 = vsel %vm2003, %v2084, %v2085
        %v2087 = vor.u32 %v1608, %v2082
        %v2088 = vrot.slane %v1627, 1
        %v2089 = vsel %vm2003, %v2087, %v2088
        %v2090 = vor.u32 %v1616, %v2085
        %v2091 = vrot.slane %v1635, 1
        %v2092 = vsel %vm2003, %v2090, %v2091
        %v2093 = vor.u32 %v1624, %v2088
        %v2094 = vrot.slane %v1643, 1
        %v2095 = vsel %vm2003, %v2093, %v2094
        %v2096 = vor.u32 %v1632, %v2091
        %v2097 = vor.u32 %v1640, %v2094
        %vm2130 = vcmask 1047552
        %vm2131 = vmand %vm2130, %vm2003
        %v2132 = vsel %vm2131, %v2096, 0
        %v2133 = vsel %vm2131, %v2097, 0
        %v2134 = vsel %vm1232, 1, 0
        %v2135 = vsel %vm1233, 1, 0
        %v2136 = vsel %vm1234, 1, 0
        %v2137 = vsel %vm1235, 1, 0
        %v2138 = vsel %vm1236, 1, 0
        %v2139 = vsel %vm1237, 1, 0
        %v2140 = vsel %vm1238, 1, 0
        %v2141 = vsel %vm1239, 1, 0
        %v2142 = vsel %vm1240, 1, 0
        %v2143 = vsel %vm1241, 1, 0
        %v2144 = vsel %vm1242, 1, 0
        %v2145 = vsel %vm1243, 1, 0
        %v2146 = vsel %vm1244, 1, 0
        %v2147 = vsel %vm1245, 1, 0
        %v2148 = vsel %vm1246, 1, 0
        %v2149 = vsel %vm1247, 1, 0
        %v2150 = vsel %vm1248, 1, 0
        %v2151 = vsel %vm1249, 1, 0
        %v2152 = vsel %vm1250, 1, 0
        %v2153 = vsel %vm1251, 1, 0
        %v2154 = vsel %vm1252, 1, 0
        %v2155 = vsel %vm1253, 1, 0
        %v2156 = vsel %vm1254, 1, 0
        %v2157 = vsel %vm1255, 1, 0
        %v2158 = vsel %vm1256, 1, 0
        %v2159 = vsel %vm1257, 1, 0
        %v2160 = vsel %vm1258, 1, 0
        %v2161 = vsel %vm1259, 1, 0
        %v2162 = vsel %vm1260, 1, 0
        %v2163 = vsel %vm1261, 1, 0
        %v2164 = vsel %vm1262, 1, 0
        %v2165 = vsel %vm1263, 1, 0
        %vm2166 = vcmp.eq.s32.totalorder %v2134, 1
        %vm2167 = vcmp.eq.s32.totalorder %v2135, 1
        %vm2168 = vcmp.eq.s32.totalorder %v2136, 1
        %vm2169 = vcmp.eq.s32.totalorder %v2137, 1
        %vm2170 = vcmp.eq.s32.totalorder %v2138, 1
        %vm2171 = vcmp.eq.s32.totalorder %v2139, 1
        %vm2172 = vcmp.eq.s32.totalorder %v2140, 1
        %vm2173 = vcmp.eq.s32.totalorder %v2141, 1
        %vm2174 = vcmp.eq.s32.totalorder %v2142, 1
        %vm2175 = vcmp.eq.s32.totalorder %v2143, 1
        %vm2176 = vcmp.eq.s32.totalorder %v2144, 1
        %vm2177 = vcmp.eq.s32.totalorder %v2145, 1
        %vm2178 = vcmp.eq.s32.totalorder %v2146, 1
        %vm2179 = vcmp.eq.s32.totalorder %v2147, 1
        %vm2180 = vcmp.eq.s32.totalorder %v2148, 1
        %vm2181 = vcmp.eq.s32.totalorder %v2149, 1
        %vm2182 = vcmp.eq.s32.totalorder %v2150, 1
        %vm2183 = vcmp.eq.s32.totalorder %v2151, 1
        %vm2184 = vcmp.eq.s32.totalorder %v2152, 1
        %vm2185 = vcmp.eq.s32.totalorder %v2153, 1
        %vm2186 = vcmp.eq.s32.totalorder %v2154, 1
        %vm2187 = vcmp.eq.s32.totalorder %v2155, 1
        %vm2188 = vcmp.eq.s32.totalorder %v2156, 1
        %vm2189 = vcmp.eq.s32.totalorder %v2157, 1
        %vm2190 = vcmp.eq.s32.totalorder %v2158, 1
        %vm2191 = vcmp.eq.s32.totalorder %v2159, 1
        %vm2192 = vcmp.eq.s32.totalorder %v2160, 1
        %vm2193 = vcmp.eq.s32.totalorder %v2161, 1
        %vm2194 = vcmp.eq.s32.totalorder %v2162, 1
        %vm2195 = vcmp.eq.s32.totalorder %v2163, 1
        %vm2196 = vcmp.eq.s32.totalorder %v2164, 1
        %vm2197 = vcmp.eq.s32.totalorder %v2165, 1
        %vm2198 = vmpackc.low %vm2166, %vm2166
        %vm2199 = vmpackc.low %vm2167, %vm2167
        %vm2200 = vmpackc.low %vm2168, %vm2168
        %vm2201 = vmpackc.low %vm2169, %vm2169
        %vm2202 = vmpackc.low %vm2170, %vm2170
        %vm2203 = vmpackc.low %vm2171, %vm2171
        %vm2204 = vmpackc.low %vm2172, %vm2172
        %vm2205 = vmpackc.low %vm2173, %vm2173
        %vm2206 = vmpackc.low %vm2174, %vm2174
        %vm2207 = vmpackc.low %vm2175, %vm2175
        %vm2208 = vmpackc.low %vm2176, %vm2176
        %vm2209 = vmpackc.low %vm2177, %vm2177
        %vm2210 = vmpackc.low %vm2178, %vm2178
        %vm2211 = vmpackc.low %vm2179, %vm2179
        %vm2212 = vmpackc.low %vm2180, %vm2180
        %vm2213 = vmpackc.low %vm2181, %vm2181
        %vm2214 = vmpackc.low %vm2182, %vm2182
        %vm2215 = vmpackc.low %vm2183, %vm2183
        %vm2216 = vmpackc.low %vm2184, %vm2184
        %vm2217 = vmpackc.low %vm2185, %vm2185
        %vm2218 = vmpackc.low %vm2186, %vm2186
        %vm2219 = vmpackc.low %vm2187, %vm2187
        %vm2220 = vmpackc.low %vm2188, %vm2188
        %vm2221 = vmpackc.low %vm2189, %vm2189
        %vm2222 = vmpackc.low %vm2190, %vm2190
        %vm2223 = vmpackc.low %vm2191, %vm2191
        %vm2224 = vmpackc.low %vm2192, %vm2192
        %vm2225 = vmpackc.low %vm2193, %vm2193
        %vm2226 = vmpackc.low %vm2194, %vm2194
        %vm2227 = vmpackc.low %vm2195, %vm2195
        %vm2228 = vmpackc.low %vm2196, %vm2196
        %vm2229 = vmpackc.low %vm2197, %vm2197
        %v2230 = vsel %vm2198, 65537, 0
        %v2231 = vsel %vm2199, 65537, 0
        %v2232 = vsel %vm2200, 65537, 0
        %v2233 = vsel %vm2201, 65537, 0
        %v2234 = vsel %vm2202, 65537, 0
        %v2235 = vsel %vm2203, 65537, 0
        %v2236 = vsel %vm2204, 65537, 0
        %v2237 = vsel %vm2205, 65537, 0
        %v2238 = vsel %vm2206, 65537, 0
        %v2239 = vsel %vm2207, 65537, 0
        %v2240 = vsel %vm2208, 65537, 0
        %v2241 = vsel %vm2209, 65537, 0
        %v2242 = vsel %vm2210, 65537, 0
        %v2243 = vsel %vm2211, 65537, 0
        %v2244 = vsel %vm2212, 65537, 0
        %v2245 = vsel %vm2213, 65537, 0
        %v2246 = vsel %vm2214, 65537, 0
        %v2247 = vsel %vm2215, 65537, 0
        %v2248 = vsel %vm2216, 65537, 0
        %v2249 = vsel %vm2217, 65537, 0
        %v2250 = vsel %vm2218, 65537, 0
        %v2251 = vsel %vm2219, 65537, 0
        %v2252 = vsel %vm2220, 65537, 0
        %v2253 = vsel %vm2221, 65537, 0
        %v2254 = vsel %vm2222, 65537, 0
        %v2255 = vsel %vm2223, 65537, 0
        %v2256 = vsel %vm2224, 65537, 0
        %v2257 = vsel %vm2225, 65537, 0
        %v2258 = vsel %vm2226, 65537, 0
        %v2259 = vsel %vm2227, 65537, 0
        %v2260 = vsel %vm2228, 65537, 0
        %v2261 = vsel %vm2229, 65537, 0
        %v2262 = vunpack.c.l.b16 %v2230
        %v2263 = vunpack.c.l.b16 %v2231
        %v2264 = vunpack.c.l.b16 %v2232
        %v2265 = vunpack.c.l.b16 %v2233
        %v2266 = vunpack.c.l.b16 %v2234
        %v2267 = vunpack.c.l.b16 %v2235
        %v2268 = vunpack.c.l.b16 %v2236
        %v2269 = vunpack.c.l.b16 %v2237
        %v2270 = vunpack.c.l.b16 %v2238
        %v2271 = vunpack.c.l.b16 %v2239
        %v2272 = vunpack.c.l.b16 %v2240
        %v2273 = vunpack.c.l.b16 %v2241
        %v2274 = vunpack.c.l.b16 %v2242
        %v2275 = vunpack.c.l.b16 %v2243
        %v2276 = vunpack.c.l.b16 %v2244
        %v2277 = vunpack.c.l.b16 %v2245
        %v2278 = vunpack.c.l.b16 %v2246
        %v2279 = vunpack.c.l.b16 %v2247
        %v2280 = vunpack.c.l.b16 %v2248
        %v2281 = vunpack.c.l.b16 %v2249
        %v2282 = vunpack.c.l.b16 %v2250
        %v2283 = vunpack.c.l.b16 %v2251
        %v2284 = vunpack.c.l.b16 %v2252
        %v2285 = vunpack.c.l.b16 %v2253
        %v2286 = vunpack.c.l.b16 %v2254
        %v2287 = vunpack.c.l.b16 %v2255
        %v2288 = vunpack.c.l.b16 %v2256
        %v2289 = vunpack.c.l.b16 %v2257
        %v2290 = vunpack.c.l.b16 %v2258
        %v2291 = vunpack.c.l.b16 %v2259
        %v2292 = vunpack.c.l.b16 %v2260
        %v2293 = vunpack.c.l.b16 %v2261
        %v2294 = vpack.c.b16 %v2263, %v2262
        %v2295 = vpack.c.b16 %v2265, %v2264
        %v2296 = vpack.c.b16 %v2267, %v2266
        %v2297 = vpack.c.b16 %v2269, %v2268
        %v2298 = vpack.c.b16 %v2271, %v2270
        %v2299 = vpack.c.b16 %v2273, %v2272
        %v2300 = vpack.c.b16 %v2275, %v2274
        %v2301 = vpack.c.b16 %v2277, %v2276
        %v2302 = vpack.c.b16 %v2279, %v2278
        %v2303 = vpack.c.b16 %v2281, %v2280
        %v2304 = vpack.c.b16 %v2283, %v2282
        %v2305 = vpack.c.b16 %v2285, %v2284
        %v2306 = vpack.c.b16 %v2287, %v2286
        %v2307 = vpack.c.b16 %v2289, %v2288
        %v2308 = vpack.c.b16 %v2291, %v2290
        %v2309 = vpack.c.b16 %v2293, %v2292
        %v2310 = vunpack.c.l.b16 %v2294
        %v2311 = vunpack.c.h.b16 %v2294
        %v2312 = vunpack.c.l.b16 0
        %v2313 = vunpack.c.h.b16 0
        %vm2314 = vcmp.ne.s32.totalorder %v2310, %v2312
        %vm2315 = vcmp.ne.s32.totalorder %v2311, %v2313
        %vm2316 = vmpackc.low %vm2315, %vm2314
        %v2317 = vunpack.c.l.b16 %v2295
        %v2318 = vunpack.c.h.b16 %v2295
        %v2319 = vunpack.c.l.b16 0
        %v2320 = vunpack.c.h.b16 0
        %vm2321 = vcmp.ne.s32.totalorder %v2317, %v2319
        %vm2322 = vcmp.ne.s32.totalorder %v2318, %v2320
        %vm2323 = vmpackc.low %vm2322, %vm2321
        %v2324 = vunpack.c.l.b16 %v2296
        %v2325 = vunpack.c.h.b16 %v2296
        %v2326 = vunpack.c.l.b16 0
        %v2327 = vunpack.c.h.b16 0
        %vm2328 = vcmp.ne.s32.totalorder %v2324, %v2326
        %vm2329 = vcmp.ne.s32.totalorder %v2325, %v2327
        %vm2330 = vmpackc.low %vm2329, %vm2328
        %v2331 = vunpack.c.l.b16 %v2297
        %v2332 = vunpack.c.h.b16 %v2297
        %v2333 = vunpack.c.l.b16 0
        %v2334 = vunpack.c.h.b16 0
        %vm2335 = vcmp.ne.s32.totalorder %v2331, %v2333
        %vm2336 = vcmp.ne.s32.totalorder %v2332, %v2334
        %vm2337 = vmpackc.low %vm2336, %vm2335
        %v2338 = vunpack.c.l.b16 %v2298
        %v2339 = vunpack.c.h.b16 %v2298
        %v2340 = vunpack.c.l.b16 0
        %v2341 = vunpack.c.h.b16 0
        %vm2342 = vcmp.ne.s32.totalorder %v2338, %v2340
        %vm2343 = vcmp.ne.s32.totalorder %v2339, %v2341
        %vm2344 = vmpackc.low %vm2343, %vm2342
        %v2345 = vunpack.c.l.b16 %v2299
        %v2346 = vunpack.c.h.b16 %v2299
        %v2347 = vunpack.c.l.b16 0
        %v2348 = vunpack.c.h.b16 0
        %vm2349 = vcmp.ne.s32.totalorder %v2345, %v2347
        %vm2350 = vcmp.ne.s32.totalorder %v2346, %v2348
        %vm2351 = vmpackc.low %vm2350, %vm2349
        %v2352 = vunpack.c.l.b16 %v2300
        %v2353 = vunpack.c.h.b16 %v2300
        %v2354 = vunpack.c.l.b16 0
        %v2355 = vunpack.c.h.b16 0
        %vm2356 = vcmp.ne.s32.totalorder %v2352, %v2354
        %vm2357 = vcmp.ne.s32.totalorder %v2353, %v2355
        %vm2358 = vmpackc.low %vm2357, %vm2356
        %v2359 = vunpack.c.l.b16 %v2301
        %v2360 = vunpack.c.h.b16 %v2301
        %v2361 = vunpack.c.l.b16 0
        %v2362 = vunpack.c.h.b16 0
        %vm2363 = vcmp.ne.s32.totalorder %v2359, %v2361
        %vm2364 = vcmp.ne.s32.totalorder %v2360, %v2362
        %vm2365 = vmpackc.low %vm2364, %vm2363
        %v2366 = vunpack.c.l.b16 %v2302
        %v2367 = vunpack.c.h.b16 %v2302
        %v2368 = vunpack.c.l.b16 0
        %v2369 = vunpack.c.h.b16 0
        %vm2370 = vcmp.ne.s32.totalorder %v2366, %v2368
        %vm2371 = vcmp.ne.s32.totalorder %v2367, %v2369
        %vm2372 = vmpackc.low %vm2371, %vm2370
        %v2373 = vunpack.c.l.b16 %v2303
        %v2374 = vunpack.c.h.b16 %v2303
        %v2375 = vunpack.c.l.b16 0
        %v2376 = vunpack.c.h.b16 0
        %vm2377 = vcmp.ne.s32.totalorder %v2373, %v2375
        %vm2378 = vcmp.ne.s32.totalorder %v2374, %v2376
        %vm2379 = vmpackc.low %vm2378, %vm2377
        %v2380 = vunpack.c.l.b16 %v2304
        %v2381 = vunpack.c.h.b16 %v2304
        %v2382 = vunpack.c.l.b16 0
        %v2383 = vunpack.c.h.b16 0
        %vm2384 = vcmp.ne.s32.totalorder %v2380, %v2382
        %vm2385 = vcmp.ne.s32.totalorder %v2381, %v2383
        %vm2386 = vmpackc.low %vm2385, %vm2384
        %v2387 = vunpack.c.l.b16 %v2305
        %v2388 = vunpack.c.h.b16 %v2305
        %v2389 = vunpack.c.l.b16 0
        %v2390 = vunpack.c.h.b16 0
        %vm2391 = vcmp.ne.s32.totalorder %v2387, %v2389
        %vm2392 = vcmp.ne.s32.totalorder %v2388, %v2390
        %vm2393 = vmpackc.low %vm2392, %vm2391
        %v2394 = vunpack.c.l.b16 %v2306
        %v2395 = vunpack.c.h.b16 %v2306
        %v2396 = vunpack.c.l.b16 0
        %v2397 = vunpack.c.h.b16 0
        %vm2398 = vcmp.ne.s32.totalorder %v2394, %v2396
        %vm2399 = vcmp.ne.s32.totalorder %v2395, %v2397
        %vm2400 = vmpackc.low %vm2399, %vm2398
        %v2401 = vunpack.c.l.b16 %v2307
        %v2402 = vunpack.c.h.b16 %v2307
        %v2403 = vunpack.c.l.b16 0
        %v2404 = vunpack.c.h.b16 0
        %vm2405 = vcmp.ne.s32.totalorder %v2401, %v2403
        %vm2406 = vcmp.ne.s32.totalorder %v2402, %v2404
        %vm2407 = vmpackc.low %vm2406, %vm2405
        %v2408 = vunpack.c.l.b16 %v2308
        %v2409 = vunpack.c.h.b16 %v2308
        %v2410 = vunpack.c.l.b16 0
        %v2411 = vunpack.c.h.b16 0
        %vm2412 = vcmp.ne.s32.totalorder %v2408, %v2410
        %vm2413 = vcmp.ne.s32.totalorder %v2409, %v2411
        %vm2414 = vmpackc.low %vm2413, %vm2412
        %v2415 = vunpack.c.l.b16 %v2309
        %v2416 = vunpack.c.h.b16 %v2309
        %v2417 = vunpack.c.l.b16 0
        %v2418 = vunpack.c.h.b16 0
        %vm2419 = vcmp.ne.s32.totalorder %v2415, %v2417
        %vm2420 = vcmp.ne.s32.totalorder %v2416, %v2418
        %vm2421 = vmpackc.low %vm2420, %vm2419
        %v2422 = vsel %vm2316, %v2007, 0
        %v2423 = vsel %vm2316, %v2011, 0
        %v2424 = vsel %vm2323, %v2014, 0
        %v2425 = vsel %vm2323, %v2017, 0
        %v2426 = vsel %vm2330, %v2020, 0
        %v2427 = vsel %vm2330, %v2023, 0
        %v2428 = vsel %vm2337, %v2026, 0
        %v2429 = vsel %vm2337, %v2029, 0
        %v2430 = vsel %vm2344, %v2032, 0
        %v2431 = vsel %vm2344, %v2035, 0
        %v2432 = vsel %vm2351, %v2038, 0
        %v2433 = vsel %vm2351, %v2041, 0
        %v2434 = vsel %vm2358, %v2044, 0
        %v2435 = vsel %vm2358, %v2047, 0
        %v2436 = vsel %vm2365, %v2050, 0
        %v2437 = vsel %vm2365, %v2053, 0
        %v2438 = vsel %vm2372, %v2056, 0
        %v2439 = vsel %vm2372, %v2059, 0
        %v2440 = vsel %vm2379, %v2062, 0
        %v2441 = vsel %vm2379, %v2065, 0
        %v2442 = vsel %vm2386, %v2068, 0
        %v2443 = vsel %vm2386, %v2071, 0
        %v2444 = vsel %vm2393, %v2074, 0
        %v2445 = vsel %vm2393, %v2077, 0
        %v2446 = vsel %vm2400, %v2080, 0
        %v2447 = vsel %vm2400, %v2083, 0
        %v2448 = vsel %vm2407, %v2086, 0
        %v2449 = vsel %vm2407, %v2089, 0
        %v2450 = vsel %vm2414, %v2092, 0
        %v2451 = vsel %vm2414, %v2095, 0
        %v2452 = vsel %vm2421, %v2132, 0
        %v2453 = vsel %vm2421, %v2133, 0
        %2455 = vrot.lane.b32.xlu0 0, 64
        %v2456 = vpop.permute.xlu0 %2455
        %2457 = vrot.lane.b32.xlu0 %v1360, 64
        %v2458 = vpop.permute.xlu0 %2457
        %2459 = vrot.lane.b32.xlu0 %v1361, 64
        %v2460 = vpop.permute.xlu0 %2459
        %2461 = vrot.lane.b32.xlu0 %v1362, 64
        %v2462 = vpop.permute.xlu0 %2461
        %2463 = vrot.lane.b32.xlu0 %v1363, 64
        %v2464 = vpop.permute.xlu0 %2463
        %2465 = vrot.lane.b32.xlu0 %v1364, 64
        %v2466 = vpop.permute.xlu0 %2465
        %2467 = vrot.lane.b32.xlu0 %v1365, 64
        %v2468 = vpop.permute.xlu0 %2467
        %2469 = vrot.lane.b32.xlu0 %v1366, 64
        %v2470 = vpop.permute.xlu0 %2469
        %2471 = vrot.lane.b32.xlu0 %v1367, 64
        %v2472 = vpop.permute.xlu0 %2471
        %2473 = vrot.lane.b32.xlu0 %v1368, 64
        %v2474 = vpop.permute.xlu0 %2473
        %2475 = vrot.lane.b32.xlu0 %v1369, 64
        %v2476 = vpop.permute.xlu0 %2475
        %2477 = vrot.lane.b32.xlu0 %v1370, 64
        %v2478 = vpop.permute.xlu0 %2477
        %2479 = vrot.lane.b32.xlu0 %v1371, 64
        %v2480 = vpop.permute.xlu0 %2479
        %2481 = vrot.lane.b32.xlu0 %v1372, 64
        %v2482 = vpop.permute.xlu0 %2481
        %2483 = vrot.lane.b32.xlu0 %v1373, 64
        %v2484 = vpop.permute.xlu0 %2483
        %2485 = vrot.lane.b32.xlu0 %v1374, 64
        %v2486 = vpop.permute.xlu0 %2485
        %2487 = vrot.lane.b32.xlu0 %v1375, 64
        %v2488 = vpop.permute.xlu0 %2487
        %2489 = vrot.lane.b32.xlu0 %v1376, 64
        %v2490 = vpop.permute.xlu0 %2489
        %2491 = vrot.lane.b32.xlu0 %v1377, 64
        %v2492 = vpop.permute.xlu0 %2491
        %2493 = vrot.lane.b32.xlu0 %v1378, 64
        %v2494 = vpop.permute.xlu0 %2493
        %2495 = vrot.lane.b32.xlu0 %v1379, 64
        %v2496 = vpop.permute.xlu0 %2495
        %2497 = vrot.lane.b32.xlu0 %v1380, 64
        %v2498 = vpop.permute.xlu0 %2497
        %2499 = vrot.lane.b32.xlu0 %v1381, 64
        %v2500 = vpop.permute.xlu0 %2499
        %2501 = vrot.lane.b32.xlu0 %v1382, 64
        %v2502 = vpop.permute.xlu0 %2501
        %2503 = vrot.lane.b32.xlu0 %v1383, 64
        %v2504 = vpop.permute.xlu0 %2503
        %2505 = vrot.lane.b32.xlu0 %v1384, 64
        %v2506 = vpop.permute.xlu0 %2505
        %2507 = vrot.lane.b32.xlu0 %v1385, 64
        %v2508 = vpop.permute.xlu0 %2507
        %2509 = vrot.lane.b32.xlu0 %v1386, 64
        %v2510 = vpop.permute.xlu0 %2509
        %2511 = vrot.lane.b32.xlu0 %v1387, 64
        %v2512 = vpop.permute.xlu0 %2511
        %2513 = vrot.lane.b32.xlu0 %v1388, 64
        %v2514 = vpop.permute.xlu0 %2513
        %2515 = vrot.lane.b32.xlu0 %v1389, 64
        %v2516 = vpop.permute.xlu0 %2515
        %vm2517 = vcmask 523264
        %v2518 = vsel %vm2517, %v2458, %v2460
        %v2519 = vsel %vm2517, %v2462, %v2464
        %v2520 = vsel %vm2517, %v2466, %v2468
        %v2521 = vsel %vm2517, %v2470, %v2472
        %v2522 = vsel %vm2517, %v2474, %v2476
        %v2523 = vsel %vm2517, %v2478, %v2480
        %v2524 = vsel %vm2517, %v2482, %v2484
        %v2525 = vsel %vm2517, %v2486, %v2488
        %v2526 = vsel %vm2517, %v2490, %v2492
        %v2527 = vsel %vm2517, %v2494, %v2496
        %v2528 = vsel %vm2517, %v2498, %v2500
        %v2529 = vsel %vm2517, %v2502, %v2504
        %v2530 = vsel %vm2517, %v2506, %v2508
        %v2531 = vsel %vm2517, %v2510, %v2512
        %v2532 = vsel %vm2517, %v2514, %v2516
        %2581 = vrot.lane.b32.xlu0 %v1971, 64
        %v2582 = vpop.permute.xlu0 %2581
        %2583 = vrot.lane.b32.xlu0 %v1972, 64
        %v2584 = vpop.permute.xlu0 %2583
        %2585 = vrot.lane.b32.xlu0 %v1973, 64
        %v2586 = vpop.permute.xlu0 %2585
        %2587 = vrot.lane.b32.xlu0 %v1974, 64
        %v2588 = vpop.permute.xlu0 %2587
        %2589 = vrot.lane.b32.xlu0 %v1975, 64
        %v2590 = vpop.permute.xlu0 %2589
        %2591 = vrot.lane.b32.xlu0 %v1976, 64
        %v2592 = vpop.permute.xlu0 %2591
        %2593 = vrot.lane.b32.xlu0 %v1977, 64
        %v2594 = vpop.permute.xlu0 %2593
        %2595 = vrot.lane.b32.xlu0 %v1978, 64
        %v2596 = vpop.permute.xlu0 %2595
        %2597 = vrot.lane.b32.xlu0 %v1979, 64
        %v2598 = vpop.permute.xlu0 %2597
        %2599 = vrot.lane.b32.xlu0 %v1980, 64
        %v2600 = vpop.permute.xlu0 %2599
        %2601 = vrot.lane.b32.xlu0 %v1981, 64
        %v2602 = vpop.permute.xlu0 %2601
        %2603 = vrot.lane.b32.xlu0 %v1982, 64
        %v2604 = vpop.permute.xlu0 %2603
        %2605 = vrot.lane.b32.xlu0 %v1983, 64
        %v2606 = vpop.permute.xlu0 %2605
        %2607 = vrot.lane.b32.xlu0 %v1984, 64
        %v2608 = vpop.permute.xlu0 %2607
        %2609 = vrot.lane.b32.xlu0 %v1985, 64
        %v2610 = vpop.permute.xlu0 %2609
        %2611 = vrot.lane.b32.xlu0 %v1986, 64
        %v2612 = vpop.permute.xlu0 %2611
        %2613 = vrot.lane.b32.xlu0 %v1987, 64
        %v2614 = vpop.permute.xlu0 %2613
        %2615 = vrot.lane.b32.xlu0 %v1988, 64
        %v2616 = vpop.permute.xlu0 %2615
        %2617 = vrot.lane.b32.xlu0 %v1989, 64
        %v2618 = vpop.permute.xlu0 %2617
        %2619 = vrot.lane.b32.xlu0 %v1990, 64
        %v2620 = vpop.permute.xlu0 %2619
        %2621 = vrot.lane.b32.xlu0 %v1991, 64
        %v2622 = vpop.permute.xlu0 %2621
        %2623 = vrot.lane.b32.xlu0 %v1992, 64
        %v2624 = vpop.permute.xlu0 %2623
        %2625 = vrot.lane.b32.xlu0 %v1993, 64
        %v2626 = vpop.permute.xlu0 %2625
        %2627 = vrot.lane.b32.xlu0 %v1994, 64
        %v2628 = vpop.permute.xlu0 %2627
        %2629 = vrot.lane.b32.xlu0 %v1995, 64
        %v2630 = vpop.permute.xlu0 %2629
        %2631 = vrot.lane.b32.xlu0 %v1996, 64
        %v2632 = vpop.permute.xlu0 %2631
        %2633 = vrot.lane.b32.xlu0 %v1997, 64
        %v2634 = vpop.permute.xlu0 %2633
        %2635 = vrot.lane.b32.xlu0 %v1998, 64
        %v2636 = vpop.permute.xlu0 %2635
        %2637 = vrot.lane.b32.xlu0 %v1999, 64
        %v2638 = vpop.permute.xlu0 %2637
        %2639 = vrot.lane.b32.xlu0 %v2000, 64
        %v2640 = vpop.permute.xlu0 %2639
        %2641 = vrot.lane.b32.xlu0 %v2001, 64
        %v2642 = vpop.permute.xlu0 %2641
        %2643 = vrot.lane.b32.xlu0 %v2002, 64
        %v2644 = vpop.permute.xlu0 %2643
        %v2645 = vsel %vm2517, %v2582, %v2584
        %v2646 = vsel %vm2517, %v2586, %v2588
        %v2647 = vsel %vm2517, %v2590, %v2592
        %v2648 = vsel %vm2517, %v2594, %v2596
        %v2649 = vsel %vm2517, %v2598, %v2600
        %v2650 = vsel %vm2517, %v2602, %v2604
        %v2651 = vsel %vm2517, %v2606, %v2608
        %v2652 = vsel %vm2517, %v2610, %v2612
        %v2653 = vsel %vm2517, %v2614, %v2616
        %v2654 = vsel %vm2517, %v2618, %v2620
        %v2655 = vsel %vm2517, %v2622, %v2624
        %v2656 = vsel %vm2517, %v2626, %v2628
        %v2657 = vsel %vm2517, %v2630, %v2632
        %v2658 = vsel %vm2517, %v2634, %v2636
        %v2659 = vsel %vm2517, %v2638, %v2640
        %v2660 = vsel %vm2517, %v2642, %v2644
        %2725 = vrot.lane.b32.xlu0 %v2422, 64
        %v2726 = vpop.permute.xlu0 %2725
        %2727 = vrot.lane.b32.xlu0 %v2423, 64
        %v2728 = vpop.permute.xlu0 %2727
        %2729 = vrot.lane.b32.xlu0 %v2424, 64
        %v2730 = vpop.permute.xlu0 %2729
        %2731 = vrot.lane.b32.xlu0 %v2425, 64
        %v2732 = vpop.permute.xlu0 %2731
        %2733 = vrot.lane.b32.xlu0 %v2426, 64
        %v2734 = vpop.permute.xlu0 %2733
        %2735 = vrot.lane.b32.xlu0 %v2427, 64
        %v2736 = vpop.permute.xlu0 %2735
        %2737 = vrot.lane.b32.xlu0 %v2428, 64
        %v2738 = vpop.permute.xlu0 %2737
        %2739 = vrot.lane.b32.xlu0 %v2429, 64
        %v2740 = vpop.permute.xlu0 %2739
        %2741 = vrot.lane.b32.xlu0 %v2430, 64
        %v2742 = vpop.permute.xlu0 %2741
        %2743 = vrot.lane.b32.xlu0 %v2431, 64
        %v2744 = vpop.permute.xlu0 %2743
        %2745 = vrot.lane.b32.xlu0 %v2432, 64
        %v2746 = vpop.permute.xlu0 %2745
        %2747 = vrot.lane.b32.xlu0 %v2433, 64
        %v2748 = vpop.permute.xlu0 %2747
        %2749 = vrot.lane.b32.xlu0 %v2434, 64
        %v2750 = vpop.permute.xlu0 %2749
        %2751 = vrot.lane.b32.xlu0 %v2435, 64
        %v2752 = vpop.permute.xlu0 %2751
        %2753 = vrot.lane.b32.xlu0 %v2436, 64
        %v2754 = vpop.permute.xlu0 %2753
        %2755 = vrot.lane.b32.xlu0 %v2437, 64
        %v2756 = vpop.permute.xlu0 %2755
        %2757 = vrot.lane.b32.xlu0 %v2438, 64
        %v2758 = vpop.permute.xlu0 %2757
        %2759 = vrot.lane.b32.xlu0 %v2439, 64
        %v2760 = vpop.permute.xlu0 %2759
        %2761 = vrot.lane.b32.xlu0 %v2440, 64
        %v2762 = vpop.permute.xlu0 %2761
        %2763 = vrot.lane.b32.xlu0 %v2441, 64
        %v2764 = vpop.permute.xlu0 %2763
        %2765 = vrot.lane.b32.xlu0 %v2442, 64
        %v2766 = vpop.permute.xlu0 %2765
        %2767 = vrot.lane.b32.xlu0 %v2443, 64
        %v2768 = vpop.permute.xlu0 %2767
        %2769 = vrot.lane.b32.xlu0 %v2444, 64
        %v2770 = vpop.permute.xlu0 %2769
        %2771 = vrot.lane.b32.xlu0 %v2445, 64
        %v2772 = vpop.permute.xlu0 %2771
        %2773 = vrot.lane.b32.xlu0 %v2446, 64
        %v2774 = vpop.permute.xlu0 %2773
        %2775 = vrot.lane.b32.xlu0 %v2447, 64
        %v2776 = vpop.permute.xlu0 %2775
        %2777 = vrot.lane.b32.xlu0 %v2448, 64
        %v2778 = vpop.permute.xlu0 %2777
        %2779 = vrot.lane.b32.xlu0 %v2449, 64
        %v2780 = vpop.permute.xlu0 %2779
        %2781 = vrot.lane.b32.xlu0 %v2450, 64
        %v2782 = vpop.permute.xlu0 %2781
        %2783 = vrot.lane.b32.xlu0 %v2451, 64
        %v2784 = vpop.permute.xlu0 %2783
        %2785 = vrot.lane.b32.xlu0 %v2452, 64
        %v2786 = vpop.permute.xlu0 %2785
        %2787 = vrot.lane.b32.xlu0 %v2453, 64
        %v2788 = vpop.permute.xlu0 %2787
        %v2789 = vsel %vm2517, %v2726, %v2728
        %v2790 = vsel %vm2517, %v2730, %v2732
        %v2791 = vsel %vm2517, %v2734, %v2736
        %v2792 = vsel %vm2517, %v2738, %v2740
        %v2793 = vsel %vm2517, %v2742, %v2744
        %v2794 = vsel %vm2517, %v2746, %v2748
        %v2795 = vsel %vm2517, %v2750, %v2752
        %v2796 = vsel %vm2517, %v2754, %v2756
        %v2797 = vsel %vm2517, %v2758, %v2760
        %v2798 = vsel %vm2517, %v2762, %v2764
        %v2799 = vsel %vm2517, %v2766, %v2768
        %v2800 = vsel %vm2517, %v2770, %v2772
        %v2801 = vsel %vm2517, %v2774, %v2776
        %v2802 = vsel %vm2517, %v2778, %v2780
        %v2803 = vsel %vm2517, %v2782, %v2784
        %v2804 = vsel %vm2517, %v2786, %v2788
        %2821 = vrot.lane.b32.xlu0 %v1390, 64
        %v2822 = vpop.permute.xlu0 %2821
        %2823 = vrot.lane.b32.xlu0 %v1391, 64
        %v2824 = vpop.permute.xlu0 %2823
        %v2825 = vsel %vm2517, %v2822, %v2824
        %vm2827 = vcmask 523264
        %v2830 = vsel %vm2827, 0, %v2456
        %v2834 = vsel %vm2827, %v1972, %v2458
        %v2838 = vsel %vm2827, %v1974, %v2462
        %v2842 = vsel %vm2827, %v1976, %v2466
        %v2846 = vsel %vm2827, %v1978, %v2470
        %v2850 = vsel %vm2827, %v1980, %v2474
        %v2854 = vsel %vm2827, %v1982, %v2478
        %v2858 = vsel %vm2827, %v1984, %v2482
        %v2862 = vsel %vm2827, %v1986, %v2486
        %v2866 = vsel %vm2827, %v1988, %v2490
        %v2870 = vsel %vm2827, %v1990, %v2494
        %v2874 = vsel %vm2827, %v1992, %v2498
        %v2878 = vsel %vm2827, %v1994, %v2502
        %v2882 = vsel %vm2827, %v1996, %v2506
        %v2886 = vsel %vm2827, %v1998, %v2510
        %v2890 = vsel %vm2827, %v2000, %v2514
        %v2893 = vsel %vm2827, 0, %v2582
        %v2897 = vsel %vm2827, %v2423, %v2586
        %v2901 = vsel %vm2827, %v2425, %v2590
        %v2905 = vsel %vm2827, %v2427, %v2594
        %v2909 = vsel %vm2827, %v2429, %v2598
        %v2913 = vsel %vm2827, %v2431, %v2602
        %v2917 = vsel %vm2827, %v2433, %v2606
        %v2921 = vsel %vm2827, %v2435, %v2610
        %v2925 = vsel %vm2827, %v2437, %v2614
        %v2929 = vsel %vm2827, %v2439, %v2618
        %v2933 = vsel %vm2827, %v2441, %v2622
        %v2937 = vsel %vm2827, %v2443, %v2626
        %v2941 = vsel %vm2827, %v2445, %v2630
        %v2945 = vsel %vm2827, %v2447, %v2634
        %v2949 = vsel %vm2827, %v2449, %v2638
        %v2953 = vsel %vm2827, %v2451, %v2642
        %v2956 = vsel %vm2827, %v1361, %v2726
        %v2959 = vsel %vm2827, %v1363, %v2730
        %v2962 = vsel %vm2827, %v1365, %v2734
        %v2965 = vsel %vm2827, %v1367, %v2738
        %v2968 = vsel %vm2827, %v1369, %v2742
        %v2971 = vsel %vm2827, %v1371, %v2746
        %v2974 = vsel %vm2827, %v1373, %v2750
        %v2977 = vsel %vm2827, %v1375, %v2754
        %v2980 = vsel %vm2827, %v1377, %v2758
        %v2983 = vsel %vm2827, %v1379, %v2762
        %v2986 = vsel %vm2827, %v1381, %v2766
        %v2989 = vsel %vm2827, %v1383, %v2770
        %v2992 = vsel %vm2827, %v1385, %v2774
        %v2995 = vsel %vm2827, %v1387, %v2778
        %v2998 = vsel %vm2827, %v1389, %v2782
        %v3001 = vsel %vm2827, %v1391, %v2786
        %v3005 = vsel %vm2827, %v2002, %v2822
        %v3007 = vld [vmem:[%s1] sm:$0xf]
        %v3008 = vld [vmem:[%s1 + $0x4] sm:$0xf]
        %v3009 = vld [vmem:[%s1 + $0x8] sm:$0xf]
        %v3010 = vld [vmem:[%s1 + $0xc] sm:$0xf]
        %v3011 = vld [vmem:[%s1 + $0x10] sm:$0xf]
        %v3012 = vld [vmem:[%s1 + $0x14] sm:$0xf]
        %v3013 = vld [vmem:[%s1 + $0x18] sm:$0xf]
        %v3014 = vld [vmem:[%s1 + $0x1c] sm:$0xf]
        %v3015 = vld [vmem:[%s1 + $0x20] sm:$0xf]
        %v3016 = vld [vmem:[%s1 + $0x24] sm:$0xf]
        %v3017 = vld [vmem:[%s1 + $0x28] sm:$0xf]
        %v3018 = vld [vmem:[%s1 + $0x2c] sm:$0xf]
        %v3019 = vld [vmem:[%s1 + $0x30] sm:$0xf]
        %v3020 = vld [vmem:[%s1 + $0x34] sm:$0xf]
        %v3021 = vld [vmem:[%s1 + $0x38] sm:$0xf]
        %v3022 = vld [vmem:[%s1 + $0x3c] sm:$0xf]
        %v3023 = vld [vmem:[%s1 + $0x40] sm:$0xf]
        %v3024 = vld [vmem:[%s1 + $0x44] sm:$0xf]
        %v3025 = vld [vmem:[%s1 + $0x48] sm:$0xf]
        %v3026 = vld [vmem:[%s1 + $0x4c] sm:$0xf]
        %v3027 = vld [vmem:[%s1 + $0x50] sm:$0xf]
        %v3028 = vld [vmem:[%s1 + $0x54] sm:$0xf]
        %v3029 = vld [vmem:[%s1 + $0x58] sm:$0xf]
        %v3030 = vld [vmem:[%s1 + $0x5c] sm:$0xf]
        %v3031 = vld [vmem:[%s1 + $0x60] sm:$0xf]
        %v3032 = vld [vmem:[%s1 + $0x64] sm:$0xf]
        %v3033 = vld [vmem:[%s1 + $0x68] sm:$0xf]
        %v3034 = vld [vmem:[%s1 + $0x6c] sm:$0xf]
        %v3035 = vld [vmem:[%s1 + $0x70] sm:$0xf]
        %v3036 = vld [vmem:[%s1 + $0x74] sm:$0xf]
        %v3037 = vld [vmem:[%s1 + $0x78] sm:$0xf]
        %v3038 = vld [vmem:[%s1 + $0x7c] sm:$0xf]
        %v3039 = vld [vmem:[%s1 + $0x80] sm:$0xf]
        %v3040 = vld [vmem:[%s1 + $0x84] sm:$0xf]
        %v3041 = vld [vmem:[%s1 + $0x88] sm:$0xf]
        %v3042 = vld [vmem:[%s1 + $0x8c] sm:$0xf]
        %v3043 = vld [vmem:[%s1 + $0x90] sm:$0xf]
        %v3044 = vld [vmem:[%s1 + $0x94] sm:$0xf]
        %v3045 = vld [vmem:[%s1 + $0x98] sm:$0xf]
        %v3046 = vld [vmem:[%s1 + $0x9c] sm:$0xf]
        %v3047 = vld [vmem:[%s1 + $0xa0] sm:$0xf]
        %v3048 = vld [vmem:[%s1 + $0xa4] sm:$0xf]
        %v3049 = vld [vmem:[%s1 + $0xa8] sm:$0xf]
        %v3050 = vld [vmem:[%s1 + $0xac] sm:$0xf]
        %v3051 = vld [vmem:[%s1 + $0xb0] sm:$0xf]
        %v3052 = vld [vmem:[%s1 + $0xb4] sm:$0xf]
        %v3053 = vld [vmem:[%s1 + $0xb8] sm:$0xf]
        %v3054 = vld [vmem:[%s1 + $0xbc] sm:$0xf]
        %v3055 = vld [vmem:[%s1 + $0xc0] sm:$0xf]
        %v3056 = vld [vmem:[%s1 + $0xc4] sm:$0xf]
        %v3057 = vld [vmem:[%s1 + $0xc8] sm:$0xf]
        %v3058 = vld [vmem:[%s1 + $0xcc] sm:$0xf]
        %v3059 = vld [vmem:[%s1 + $0xd0] sm:$0xf]
        %v3060 = vld [vmem:[%s1 + $0xd4] sm:$0xf]
        %v3061 = vld [vmem:[%s1 + $0xd8] sm:$0xf]
        %v3062 = vld [vmem:[%s1 + $0xdc] sm:$0xf]
        %v3063 = vld [vmem:[%s1 + $0xe0] sm:$0xf]
        %v3064 = vld [vmem:[%s1 + $0xe4] sm:$0xf]
        %v3065 = vld [vmem:[%s1 + $0xe8] sm:$0xf]
        %v3066 = vld [vmem:[%s1 + $0xec] sm:$0xf]
        %v3067 = vld [vmem:[%s1 + $0xf0] sm:$0xf]
        %v3068 = vld [vmem:[%s1 + $0xf4] sm:$0xf]
        %v3069 = vld [vmem:[%s1 + $0xf8] sm:$0xf]
        %v3070 = vld [vmem:[%s1 + $0xfc] sm:$0xf]
        %v3071 = vld [vmem:[%s1 + $0x100] sm:$0xf]
        %v3072 = vld [vmem:[%s1 + $0x104] sm:$0xf]
        %v3073 = vld [vmem:[%s1 + $0x108] sm:$0xf]
        %v3074 = vld [vmem:[%s1 + $0x10c] sm:$0xf]
        %v3075 = vld [vmem:[%s1 + $0x110] sm:$0xf]
        %v3076 = vld [vmem:[%s1 + $0x114] sm:$0xf]
        %v3077 = vld [vmem:[%s1 + $0x118] sm:$0xf]
        %v3078 = vld [vmem:[%s1 + $0x11c] sm:$0xf]
        %v3079 = vld [vmem:[%s1 + $0x120] sm:$0xf]
        %v3080 = vld [vmem:[%s1 + $0x124] sm:$0xf]
        %v3081 = vld [vmem:[%s1 + $0x128] sm:$0xf]
        %v3082 = vld [vmem:[%s1 + $0x12c] sm:$0xf]
        %v3083 = vld [vmem:[%s1 + $0x130] sm:$0xf]
        %v3084 = vld [vmem:[%s1 + $0x134] sm:$0xf]
        %v3085 = vld [vmem:[%s1 + $0x138] sm:$0xf]
        %v3086 = vld [vmem:[%s1 + $0x13c] sm:$0xf]
        %v3087 = vld [vmem:[%s1 + $0x140] sm:$0xf]
        %v3088 = vld [vmem:[%s1 + $0x144] sm:$0xf]
        %v3089 = vld [vmem:[%s1 + $0x148] sm:$0xf]
        %v3090 = vld [vmem:[%s1 + $0x14c] sm:$0xf]
        %v3091 = vld [vmem:[%s1 + $0x150] sm:$0xf]
        %v3092 = vld [vmem:[%s1 + $0x154] sm:$0xf]
        %v3093 = vld [vmem:[%s1 + $0x158] sm:$0xf]
        %v3094 = vld [vmem:[%s1 + $0x15c] sm:$0xf]
        %v3095 = vld [vmem:[%s1 + $0x160] sm:$0xf]
        %v3096 = vld [vmem:[%s1 + $0x164] sm:$0xf]
        %v3097 = vld [vmem:[%s1 + $0x168] sm:$0xf]
        %v3098 = vld [vmem:[%s1 + $0x16c] sm:$0xf]
        %v3099 = vld [vmem:[%s1 + $0x170] sm:$0xf]
        %v3100 = vld [vmem:[%s1 + $0x174] sm:$0xf]
        %v3101 = vld [vmem:[%s1 + $0x178] sm:$0xf]
        %v3102 = vld [vmem:[%s1 + $0x17c] sm:$0xf]
        %v3103 = vld [vmem:[%s1 + $0x180] sm:$0xf]
        %v3104 = vld [vmem:[%s1 + $0x184] sm:$0xf]
        %v3105 = vld [vmem:[%s1 + $0x188] sm:$0xf]
        %v3106 = vld [vmem:[%s1 + $0x18c] sm:$0xf]
        %v3107 = vld [vmem:[%s1 + $0x190] sm:$0xf]
        %v3108 = vld [vmem:[%s1 + $0x194] sm:$0xf]
        %v3109 = vld [vmem:[%s1 + $0x198] sm:$0xf]
        %v3110 = vld [vmem:[%s1 + $0x19c] sm:$0xf]
        %v3111 = vld [vmem:[%s1 + $0x1a0] sm:$0xf]
        %v3112 = vld [vmem:[%s1 + $0x1a4] sm:$0xf]
        %v3113 = vld [vmem:[%s1 + $0x1a8] sm:$0xf]
        %v3114 = vld [vmem:[%s1 + $0x1ac] sm:$0xf]
        %v3115 = vld [vmem:[%s1 + $0x1b0] sm:$0xf]
        %v3116 = vld [vmem:[%s1 + $0x1b4] sm:$0xf]
        %v3117 = vld [vmem:[%s1 + $0x1b8] sm:$0xf]
        %v3118 = vld [vmem:[%s1 + $0x1bc] sm:$0xf]
        %v3119 = vld [vmem:[%s1 + $0x1c0] sm:$0xf]
        %v3120 = vld [vmem:[%s1 + $0x1c4] sm:$0xf]
        %v3121 = vld [vmem:[%s1 + $0x1c8] sm:$0xf]
        %v3122 = vld [vmem:[%s1 + $0x1cc] sm:$0xf]
        %v3123 = vld [vmem:[%s1 + $0x1d0] sm:$0xf]
        %v3124 = vld [vmem:[%s1 + $0x1d4] sm:$0xf]
        %v3125 = vld [vmem:[%s1 + $0x1d8] sm:$0xf]
        %v3126 = vld [vmem:[%s1 + $0x1dc] sm:$0xf]
        %v3127 = vld [vmem:[%s1 + $0x1e0] sm:$0xf]
        %v3128 = vld [vmem:[%s1 + $0x1e4] sm:$0xf]
        %v3129 = vld [vmem:[%s1 + $0x1e8] sm:$0xf]
        %v3130 = vld [vmem:[%s1 + $0x1ec] sm:$0xf]
        %v3131 = vld [vmem:[%s1 + $0x1f0] sm:$0xf]
        %v3132 = vld [vmem:[%s1 + $0x1f4] sm:$0xf]
        %v3133 = vld [vmem:[%s1 + $0x1f8] sm:$0xf]
        %v3134 = vld [vmem:[%s1 + $0x1fc] sm:$0xf]
        %v3135 = vld [vmem:[%s1 + $0x200] sm:$0xf]
        %v3136 = vld [vmem:[%s1 + $0x204] sm:$0xf]
        %v3137 = vld [vmem:[%s1 + $0x208] sm:$0xf]
        %v3138 = vld [vmem:[%s1 + $0x20c] sm:$0xf]
        %v3139 = vld [vmem:[%s1 + $0x210] sm:$0xf]
        %v3140 = vld [vmem:[%s1 + $0x214] sm:$0xf]
        %v3141 = vld [vmem:[%s1 + $0x218] sm:$0xf]
        %v3142 = vld [vmem:[%s1 + $0x21c] sm:$0xf]
        %v3143 = vld [vmem:[%s1 + $0x220] sm:$0xf]
        %v3144 = vld [vmem:[%s1 + $0x224] sm:$0xf]
        %v3145 = vld [vmem:[%s1 + $0x228] sm:$0xf]
        %v3146 = vld [vmem:[%s1 + $0x22c] sm:$0xf]
        %v3147 = vld [vmem:[%s1 + $0x230] sm:$0xf]
        %v3148 = vld [vmem:[%s1 + $0x234] sm:$0xf]
        %v3149 = vld [vmem:[%s1 + $0x238] sm:$0xf]
        %v3150 = vld [vmem:[%s1 + $0x23c] sm:$0xf]
        %v3151 = vld [vmem:[%s1 + $0x240] sm:$0xf]
        %v3152 = vld [vmem:[%s1 + $0x244] sm:$0xf]
        %v3153 = vld [vmem:[%s1 + $0x248] sm:$0xf]
        %v3154 = vld [vmem:[%s1 + $0x24c] sm:$0xf]
        %v3155 = vld [vmem:[%s1 + $0x250] sm:$0xf]
        %v3156 = vld [vmem:[%s1 + $0x254] sm:$0xf]
        %v3157 = vld [vmem:[%s1 + $0x258] sm:$0xf]
        %v3158 = vld [vmem:[%s1 + $0x25c] sm:$0xf]
        %v3159 = vld [vmem:[%s1 + $0x260] sm:$0xf]
        %v3160 = vld [vmem:[%s1 + $0x264] sm:$0xf]
        %v3161 = vld [vmem:[%s1 + $0x268] sm:$0xf]
        %v3162 = vld [vmem:[%s1 + $0x26c] sm:$0xf]
        %v3163 = vld [vmem:[%s1 + $0x270] sm:$0xf]
        %v3164 = vld [vmem:[%s1 + $0x274] sm:$0xf]
        %v3165 = vld [vmem:[%s1 + $0x278] sm:$0xf]
        %v3166 = vld [vmem:[%s1 + $0x27c] sm:$0xf]
        %v3167 = vld [vmem:[%s1 + $0x280] sm:$0xf]
        %v3168 = vld [vmem:[%s1 + $0x284] sm:$0xf]
        %v3169 = vld [vmem:[%s1 + $0x288] sm:$0xf]
        %v3170 = vld [vmem:[%s1 + $0x28c] sm:$0xf]
        %v3171 = vld [vmem:[%s1 + $0x290] sm:$0xf]
        %v3172 = vld [vmem:[%s1 + $0x294] sm:$0xf]
        %v3173 = vld [vmem:[%s1 + $0x298] sm:$0xf]
        %v3174 = vld [vmem:[%s1 + $0x29c] sm:$0xf]
        %v3175 = vld [vmem:[%s1 + $0x2a0] sm:$0xf]
        %v3176 = vld [vmem:[%s1 + $0x2a4] sm:$0xf]
        %v3177 = vld [vmem:[%s1 + $0x2a8] sm:$0xf]
        %v3178 = vld [vmem:[%s1 + $0x2ac] sm:$0xf]
        %v3179 = vld [vmem:[%s1 + $0x2b0] sm:$0xf]
        %v3180 = vld [vmem:[%s1 + $0x2b4] sm:$0xf]
        %v3181 = vld [vmem:[%s1 + $0x2b8] sm:$0xf]
        %v3182 = vld [vmem:[%s1 + $0x2bc] sm:$0xf]
        %v3183 = vld [vmem:[%s1 + $0x2c0] sm:$0xf]
        %v3184 = vld [vmem:[%s1 + $0x2c4] sm:$0xf]
        %v3185 = vld [vmem:[%s1 + $0x2c8] sm:$0xf]
        %v3186 = vld [vmem:[%s1 + $0x2cc] sm:$0xf]
        %v3187 = vld [vmem:[%s1 + $0x2d0] sm:$0xf]
        %v3188 = vld [vmem:[%s1 + $0x2d4] sm:$0xf]
        %v3189 = vld [vmem:[%s1 + $0x2d8] sm:$0xf]
        %v3190 = vld [vmem:[%s1 + $0x2dc] sm:$0xf]
        %v3191 = vld [vmem:[%s1 + $0x2e0] sm:$0xf]
        %v3192 = vld [vmem:[%s1 + $0x2e4] sm:$0xf]
        %v3193 = vld [vmem:[%s1 + $0x2e8] sm:$0xf]
        %v3194 = vld [vmem:[%s1 + $0x2ec] sm:$0xf]
        %v3195 = vld [vmem:[%s1 + $0x2f0] sm:$0xf]
        %v3196 = vld [vmem:[%s1 + $0x2f4] sm:$0xf]
        %v3197 = vld [vmem:[%s1 + $0x2f8] sm:$0xf]
        %v3198 = vld [vmem:[%s1 + $0x2fc] sm:$0xf]
        %v3199 = vld [vmem:[%s1 + $0x300] sm:$0xf]
        %v3200 = vld [vmem:[%s1 + $0x304] sm:$0xf]
        %v3201 = vld [vmem:[%s1 + $0x308] sm:$0xf]
        %v3202 = vld [vmem:[%s1 + $0x30c] sm:$0xf]
        %v3203 = vld [vmem:[%s1 + $0x310] sm:$0xf]
        %v3204 = vld [vmem:[%s1 + $0x314] sm:$0xf]
        %v3205 = vld [vmem:[%s1 + $0x318] sm:$0xf]
        %v3206 = vld [vmem:[%s1 + $0x31c] sm:$0xf]
        %v3207 = vld [vmem:[%s1 + $0x320] sm:$0xf]
        %v3208 = vld [vmem:[%s1 + $0x324] sm:$0xf]
        %v3209 = vld [vmem:[%s1 + $0x328] sm:$0xf]
        %v3210 = vld [vmem:[%s1 + $0x32c] sm:$0xf]
        %v3211 = vld [vmem:[%s1 + $0x330] sm:$0xf]
        %v3212 = vld [vmem:[%s1 + $0x334] sm:$0xf]
        %v3213 = vld [vmem:[%s1 + $0x338] sm:$0xf]
        %v3214 = vld [vmem:[%s1 + $0x33c] sm:$0xf]
        %v3215 = vld [vmem:[%s1 + $0x340] sm:$0xf]
        %v3216 = vld [vmem:[%s1 + $0x344] sm:$0xf]
        %v3217 = vld [vmem:[%s1 + $0x348] sm:$0xf]
        %v3218 = vld [vmem:[%s1 + $0x34c] sm:$0xf]
        %v3219 = vld [vmem:[%s1 + $0x350] sm:$0xf]
        %v3220 = vld [vmem:[%s1 + $0x354] sm:$0xf]
        %v3221 = vld [vmem:[%s1 + $0x358] sm:$0xf]
        %v3222 = vld [vmem:[%s1 + $0x35c] sm:$0xf]
        %v3223 = vld [vmem:[%s2] sm:$0x1]
        %v3225 = vperm.slane %v3223, 0
        %v3443 = vunpack.c.l.b16 %v3007
        %v3444 = vunpack.c.l.b16 %v3008
        %v3445 = vunpack.c.l.b16 %v3009
        %v3446 = vunpack.c.l.b16 %v3010
        %v3447 = vunpack.c.l.b16 %v3011
        %v3448 = vunpack.c.l.b16 %v3012
        %v3449 = vunpack.c.l.b16 %v3013
        %v3450 = vunpack.c.l.b16 %v3014
        %v3451 = vunpack.c.l.b16 %v3015
        %v3452 = vunpack.c.l.b16 %v3016
        %v3453 = vunpack.c.l.b16 %v3017
        %v3454 = vunpack.c.l.b16 %v3018
        %v3455 = vunpack.c.l.b16 %v3019
        %v3456 = vunpack.c.l.b16 %v3020
        %v3457 = vunpack.c.l.b16 %v3021
        %v3458 = vunpack.c.l.b16 %v3022
        %v3459 = vunpack.c.l.b16 %v3023
        %v3460 = vunpack.c.l.b16 %v3024
        %v3461 = vunpack.c.l.b16 %v3025
        %v3462 = vunpack.c.l.b16 %v3026
        %v3463 = vunpack.c.l.b16 %v3027
        %v3464 = vunpack.c.l.b16 %v3028
        %v3465 = vunpack.c.l.b16 %v3029
        %v3466 = vunpack.c.l.b16 %v3030
        %v3467 = vunpack.c.l.b16 %v3031
        %v3468 = vunpack.c.l.b16 %v3032
        %v3469 = vunpack.c.l.b16 %v3033
        %v3470 = vunpack.c.l.b16 %v3034
        %v3471 = vunpack.c.l.b16 %v3035
        %v3472 = vunpack.c.l.b16 %v3036
        %v3473 = vunpack.c.l.b16 %v3037
        %v3474 = vunpack.c.l.b16 %v3038
        %v3475 = vunpack.c.l.b16 %v3039
        %v3476 = vunpack.c.l.b16 %v3040
        %v3477 = vunpack.c.l.b16 %v3041
        %v3478 = vunpack.c.l.b16 %v3042
        %v3479 = vunpack.c.l.b16 %v3043
        %v3480 = vunpack.c.l.b16 %v3044
        %v3481 = vunpack.c.l.b16 %v3045
        %v3482 = vunpack.c.l.b16 %v3046
        %v3483 = vunpack.c.l.b16 %v3047
        %v3484 = vunpack.c.l.b16 %v3048
        %v3485 = vunpack.c.l.b16 %v3049
        %v3486 = vunpack.c.l.b16 %v3050
        %v3487 = vunpack.c.l.b16 %v3051
        %v3488 = vunpack.c.l.b16 %v3052
        %v3489 = vunpack.c.l.b16 %v3053
        %v3490 = vunpack.c.l.b16 %v3054
        %v3491 = vunpack.c.l.b16 %v3055
        %v3492 = vunpack.c.l.b16 %v3056
        %v3493 = vunpack.c.l.b16 %v3057
        %v3494 = vunpack.c.l.b16 %v3058
        %v3495 = vunpack.c.l.b16 %v3059
        %v3496 = vunpack.c.l.b16 %v3060
        %v3497 = vunpack.c.l.b16 %v3061
        %v3498 = vunpack.c.l.b16 %v3062
        %v3499 = vunpack.c.l.b16 %v3063
        %v3500 = vunpack.c.l.b16 %v3064
        %v3501 = vunpack.c.l.b16 %v3065
        %v3502 = vunpack.c.l.b16 %v3066
        %v3503 = vunpack.c.l.b16 %v3067
        %v3504 = vunpack.c.l.b16 %v3068
        %v3505 = vunpack.c.l.b16 %v3069
        %v3506 = vunpack.c.l.b16 %v3070
        %v3507 = vunpack.c.l.b16 %v3071
        %v3508 = vunpack.c.l.b16 %v3072
        %v3509 = vunpack.c.l.b16 %v3073
        %v3510 = vunpack.c.l.b16 %v3074
        %v3511 = vunpack.c.l.b16 %v3075
        %v3512 = vunpack.c.l.b16 %v3076
        %v3513 = vunpack.c.l.b16 %v3077
        %v3514 = vunpack.c.l.b16 %v3078
        %v3515 = vunpack.c.l.b16 %v3079
        %v3516 = vunpack.c.l.b16 %v3080
        %v3517 = vunpack.c.l.b16 %v3081
        %v3518 = vunpack.c.l.b16 %v3082
        %v3519 = vunpack.c.l.b16 %v3083
        %v3520 = vunpack.c.l.b16 %v3084
        %v3521 = vunpack.c.l.b16 %v3085
        %v3522 = vunpack.c.l.b16 %v3086
        %v3523 = vunpack.c.l.b16 %v3087
        %v3524 = vunpack.c.l.b16 %v3088
        %v3525 = vunpack.c.l.b16 %v3089
        %v3526 = vunpack.c.l.b16 %v3090
        %v3527 = vunpack.c.l.b16 %v3091
        %v3528 = vunpack.c.l.b16 %v3092
        %v3529 = vunpack.c.l.b16 %v3093
        %v3530 = vunpack.c.l.b16 %v3094
        %v3531 = vunpack.c.l.b16 %v3095
        %v3532 = vunpack.c.l.b16 %v3096
        %v3533 = vunpack.c.l.b16 %v3097
        %v3534 = vunpack.c.l.b16 %v3098
        %v3535 = vunpack.c.l.b16 %v3099
        %v3536 = vunpack.c.l.b16 %v3100
        %v3537 = vunpack.c.l.b16 %v3101
        %v3538 = vunpack.c.l.b16 %v3102
        %v3539 = vunpack.c.l.b16 %v3103
        %v3540 = vunpack.c.l.b16 %v3104
        %v3541 = vunpack.c.l.b16 %v3105
        %v3542 = vunpack.c.l.b16 %v3106
        %v3543 = vunpack.c.l.b16 %v3107
        %v3544 = vunpack.c.l.b16 %v3108
        %v3545 = vunpack.c.l.b16 %v3109
        %v3546 = vunpack.c.l.b16 %v3110
        %v3547 = vunpack.c.l.b16 %v3111
        %v3548 = vunpack.c.l.b16 %v3112
        %v3549 = vunpack.c.l.b16 %v3113
        %v3550 = vunpack.c.l.b16 %v3114
        %v3551 = vunpack.c.l.b16 %v3115
        %v3552 = vunpack.c.l.b16 %v3116
        %v3553 = vunpack.c.l.b16 %v3117
        %v3554 = vunpack.c.l.b16 %v3118
        %v3555 = vunpack.c.l.b16 %v3119
        %v3556 = vunpack.c.l.b16 %v3120
        %v3557 = vunpack.c.l.b16 %v3121
        %v3558 = vunpack.c.l.b16 %v3122
        %v3559 = vunpack.c.l.b16 %v3123
        %v3560 = vunpack.c.l.b16 %v3124
        %v3561 = vunpack.c.l.b16 %v3125
        %v3562 = vunpack.c.l.b16 %v3126
        %v3563 = vunpack.c.l.b16 %v3127
        %v3564 = vunpack.c.l.b16 %v3128
        %v3565 = vunpack.c.l.b16 %v3129
        %v3566 = vunpack.c.l.b16 %v3130
        %v3567 = vunpack.c.l.b16 %v3131
        %v3568 = vunpack.c.l.b16 %v3132
        %v3569 = vunpack.c.l.b16 %v3133
        %v3570 = vunpack.c.l.b16 %v3134
        %v3571 = vunpack.c.l.b16 %v3135
        %v3572 = vunpack.c.l.b16 %v3136
        %v3573 = vunpack.c.l.b16 %v3137
        %v3574 = vunpack.c.l.b16 %v3138
        %v3575 = vunpack.c.l.b16 %v3139
        %v3576 = vunpack.c.l.b16 %v3140
        %v3577 = vunpack.c.l.b16 %v3141
        %v3578 = vunpack.c.l.b16 %v3142
        %v3579 = vunpack.c.l.b16 %v3143
        %v3580 = vunpack.c.l.b16 %v3144
        %v3581 = vunpack.c.l.b16 %v3145
        %v3582 = vunpack.c.l.b16 %v3146
        %v3583 = vunpack.c.l.b16 %v3147
        %v3584 = vunpack.c.l.b16 %v3148
        %v3585 = vunpack.c.l.b16 %v3149
        %v3586 = vunpack.c.l.b16 %v3150
        %v3587 = vunpack.c.l.b16 %v3151
        %v3588 = vunpack.c.l.b16 %v3152
        %v3589 = vunpack.c.l.b16 %v3153
        %v3590 = vunpack.c.l.b16 %v3154
        %v3591 = vunpack.c.l.b16 %v3155
        %v3592 = vunpack.c.l.b16 %v3156
        %v3593 = vunpack.c.l.b16 %v3157
        %v3594 = vunpack.c.l.b16 %v3158
        %v3595 = vunpack.c.l.b16 %v3159
        %v3596 = vunpack.c.l.b16 %v3160
        %v3597 = vunpack.c.l.b16 %v3161
        %v3598 = vunpack.c.l.b16 %v3162
        %v3599 = vunpack.c.l.b16 %v3163
        %v3600 = vunpack.c.l.b16 %v3164
        %v3601 = vunpack.c.l.b16 %v3165
        %v3602 = vunpack.c.l.b16 %v3166
        %v3603 = vunpack.c.l.b16 %v3167
        %v3604 = vunpack.c.l.b16 %v3168
        %v3605 = vunpack.c.l.b16 %v3169
        %v3606 = vunpack.c.l.b16 %v3170
        %v3607 = vunpack.c.l.b16 %v3171
        %v3608 = vunpack.c.l.b16 %v3172
        %v3609 = vunpack.c.l.b16 %v3173
        %v3610 = vunpack.c.l.b16 %v3174
        %v3611 = vunpack.c.l.b16 %v3175
        %v3612 = vunpack.c.l.b16 %v3176
        %v3613 = vunpack.c.l.b16 %v3177
        %v3614 = vunpack.c.l.b16 %v3178
        %v3615 = vunpack.c.l.b16 %v3179
        %v3616 = vunpack.c.l.b16 %v3180
        %v3617 = vunpack.c.l.b16 %v3181
        %v3618 = vunpack.c.l.b16 %v3182
        %v3619 = vunpack.c.l.b16 %v3183
        %v3620 = vunpack.c.l.b16 %v3184
        %v3621 = vunpack.c.l.b16 %v3185
        %v3622 = vunpack.c.l.b16 %v3186
        %v3623 = vunpack.c.l.b16 %v3187
        %v3624 = vunpack.c.l.b16 %v3188
        %v3625 = vunpack.c.l.b16 %v3189
        %v3626 = vunpack.c.l.b16 %v3190
        %v3627 = vunpack.c.l.b16 %v3191
        %v3628 = vunpack.c.l.b16 %v3192
        %v3629 = vunpack.c.l.b16 %v3193
        %v3630 = vunpack.c.l.b16 %v3194
        %v3631 = vunpack.c.l.b16 %v3195
        %v3632 = vunpack.c.l.b16 %v3196
        %v3633 = vunpack.c.l.b16 %v3197
        %v3634 = vunpack.c.l.b16 %v3198
        %v3635 = vunpack.c.l.b16 %v3199
        %v3636 = vunpack.c.l.b16 %v3200
        %v3637 = vunpack.c.l.b16 %v3201
        %v3638 = vunpack.c.l.b16 %v3202
        %v3639 = vunpack.c.l.b16 %v3203
        %v3640 = vunpack.c.l.b16 %v3204
        %v3641 = vunpack.c.l.b16 %v3205
        %v3642 = vunpack.c.l.b16 %v3206
        %v3643 = vunpack.c.l.b16 %v3207
        %v3644 = vunpack.c.l.b16 %v3208
        %v3645 = vunpack.c.l.b16 %v3209
        %v3646 = vunpack.c.l.b16 %v3210
        %v3647 = vunpack.c.l.b16 %v3211
        %v3648 = vunpack.c.l.b16 %v3212
        %v3649 = vunpack.c.l.b16 %v3213
        %v3650 = vunpack.c.l.b16 %v3214
        %v3651 = vunpack.c.l.b16 %v3215
        %v3652 = vunpack.c.l.b16 %v3216
        %v3653 = vunpack.c.l.b16 %v3217
        %v3654 = vunpack.c.l.b16 %v3218
        %v3655 = vunpack.c.l.b16 %v3219
        %v3656 = vunpack.c.l.b16 %v3220
        %v3657 = vunpack.c.l.b16 %v3221
        %v3658 = vunpack.c.l.b16 %v3222
        %v3659 = vpack.c.b16 %v3444, %v3443
        %v3660 = vpack.c.b16 %v3446, %v3445
        %v3661 = vpack.c.b16 %v3448, %v3447
        %v3662 = vpack.c.b16 %v3450, %v3449
        %v3663 = vpack.c.b16 %v3452, %v3451
        %v3664 = vpack.c.b16 %v3454, %v3453
        %v3665 = vpack.c.b16 %v3456, %v3455
        %v3666 = vpack.c.b16 %v3458, %v3457
        %v3667 = vpack.c.b16 %v3460, %v3459
        %v3668 = vpack.c.b16 %v3462, %v3461
        %v3669 = vpack.c.b16 %v3464, %v3463
        %v3670 = vpack.c.b16 %v3466, %v3465
        %v3671 = vpack.c.b16 %v3468, %v3467
        %v3672 = vpack.c.b16 %v3470, %v3469
        %v3673 = vpack.c.b16 %v3472, %v3471
        %v3674 = vpack.c.b16 %v3474, %v3473
        %v3675 = vpack.c.b16 %v3476, %v3475
        %v3676 = vpack.c.b16 %v3478, %v3477
        %v3677 = vpack.c.b16 %v3480, %v3479
        %v3678 = vpack.c.b16 %v3482, %v3481
        %v3679 = vpack.c.b16 %v3484, %v3483
        %v3680 = vpack.c.b16 %v3486, %v3485
        %v3681 = vpack.c.b16 %v3488, %v3487
        %v3682 = vpack.c.b16 %v3490, %v3489
        %v3683 = vpack.c.b16 %v3492, %v3491
        %v3684 = vpack.c.b16 %v3494, %v3493
        %v3685 = vpack.c.b16 %v3496, %v3495
        %v3686 = vpack.c.b16 %v3498, %v3497
        %v3687 = vpack.c.b16 %v3500, %v3499
        %v3688 = vpack.c.b16 %v3502, %v3501
        %v3689 = vpack.c.b16 %v3504, %v3503
        %v3690 = vpack.c.b16 %v3506, %v3505
        %v3691 = vpack.c.b16 %v3508, %v3507
        %v3692 = vpack.c.b16 %v3510, %v3509
        %v3693 = vpack.c.b16 %v3512, %v3511
        %v3694 = vpack.c.b16 %v3514, %v3513
        %v3695 = vpack.c.b16 %v3516, %v3515
        %v3696 = vpack.c.b16 %v3518, %v3517
        %v3697 = vpack.c.b16 %v3520, %v3519
        %v3698 = vpack.c.b16 %v3522, %v3521
        %v3699 = vpack.c.b16 %v3524, %v3523
        %v3700 = vpack.c.b16 %v3526, %v3525
        %v3701 = vpack.c.b16 %v3528, %v3527
        %v3702 = vpack.c.b16 %v3530, %v3529
        %v3703 = vpack.c.b16 %v3532, %v3531
        %v3704 = vpack.c.b16 %v3534, %v3533
        %v3705 = vpack.c.b16 %v3536, %v3535
        %v3706 = vpack.c.b16 %v3538, %v3537
        %v3707 = vpack.c.b16 %v3540, %v3539
        %v3708 = vpack.c.b16 %v3542, %v3541
        %v3709 = vpack.c.b16 %v3544, %v3543
        %v3710 = vpack.c.b16 %v3546, %v3545
        %v3711 = vpack.c.b16 %v3548, %v3547
        %v3712 = vpack.c.b16 %v3550, %v3549
        %v3713 = vpack.c.b16 %v3552, %v3551
        %v3714 = vpack.c.b16 %v3554, %v3553
        %v3715 = vpack.c.b16 %v3556, %v3555
        %v3716 = vpack.c.b16 %v3558, %v3557
        %v3717 = vpack.c.b16 %v3560, %v3559
        %v3718 = vpack.c.b16 %v3562, %v3561
        %v3719 = vpack.c.b16 %v3564, %v3563
        %v3720 = vpack.c.b16 %v3566, %v3565
        %v3721 = vpack.c.b16 %v3568, %v3567
        %v3722 = vpack.c.b16 %v3570, %v3569
        %v3723 = vpack.c.b16 %v3572, %v3571
        %v3724 = vpack.c.b16 %v3574, %v3573
        %v3725 = vpack.c.b16 %v3576, %v3575
        %v3726 = vpack.c.b16 %v3578, %v3577
        %v3727 = vpack.c.b16 %v3580, %v3579
        %v3728 = vpack.c.b16 %v3582, %v3581
        %v3729 = vpack.c.b16 %v3584, %v3583
        %v3730 = vpack.c.b16 %v3586, %v3585
        %v3731 = vpack.c.b16 %v3588, %v3587
        %v3732 = vpack.c.b16 %v3590, %v3589
        %v3733 = vpack.c.b16 %v3592, %v3591
        %v3734 = vpack.c.b16 %v3594, %v3593
        %v3735 = vpack.c.b16 %v3596, %v3595
        %v3736 = vpack.c.b16 %v3598, %v3597
        %v3737 = vpack.c.b16 %v3600, %v3599
        %v3738 = vpack.c.b16 %v3602, %v3601
        %v3739 = vpack.c.b16 %v3604, %v3603
        %v3740 = vpack.c.b16 %v3606, %v3605
        %v3741 = vpack.c.b16 %v3608, %v3607
        %v3742 = vpack.c.b16 %v3610, %v3609
        %v3743 = vpack.c.b16 %v3612, %v3611
        %v3744 = vpack.c.b16 %v3614, %v3613
        %v3745 = vpack.c.b16 %v3616, %v3615
        %v3746 = vpack.c.b16 %v3618, %v3617
        %v3747 = vpack.c.b16 %v3620, %v3619
        %v3748 = vpack.c.b16 %v3622, %v3621
        %v3749 = vpack.c.b16 %v3624, %v3623
        %v3750 = vpack.c.b16 %v3626, %v3625
        %v3751 = vpack.c.b16 %v3628, %v3627
        %v3752 = vpack.c.b16 %v3630, %v3629
        %v3753 = vpack.c.b16 %v3632, %v3631
        %v3754 = vpack.c.b16 %v3634, %v3633
        %v3755 = vpack.c.b16 %v3636, %v3635
        %v3756 = vpack.c.b16 %v3638, %v3637
        %v3757 = vpack.c.b16 %v3640, %v3639
        %v3758 = vpack.c.b16 %v3642, %v3641
        %v3759 = vpack.c.b16 %v3644, %v3643
        %v3760 = vpack.c.b16 %v3646, %v3645
        %v3761 = vpack.c.b16 %v3648, %v3647
        %v3762 = vpack.c.b16 %v3650, %v3649
        %v3763 = vpack.c.b16 %v3652, %v3651
        %v3764 = vpack.c.b16 %v3654, %v3653
        %v3765 = vpack.c.b16 %v3656, %v3655
        %v3766 = vpack.c.b16 %v3658, %v3657
        %v3875 = vsel %vm2827, %v2425, 0
        %v3877 = vsel %vm2827, %v2427, 0
        %v3879 = vsel %vm2827, %v2429, 0
        %v3881 = vsel %vm2827, %v2431, 0
        %v3883 = vsel %vm2827, %v2433, 0
        %v3885 = vsel %vm2827, %v2435, 0
        %v3887 = vsel %vm2827, %v2437, 0
        %v3889 = vsel %vm2827, %v2439, 0
        %v3891 = vsel %vm2827, %v2441, 0
        %v3893 = vsel %vm2827, %v2443, 0
        %v3895 = vsel %vm2827, %v2445, 0
        %v3897 = vsel %vm2827, %v2447, 0
        %v3899 = vsel %vm2827, %v2449, 0
        %v3901 = vsel %vm2827, %v2451, 0
        %v3904 = vsel %vm2827, %v2453, 0
        %v3906 = vsel %vm2827, 0, 0
        %3908 = vmatpush.bf16.msra.mxu0 %v3666
        %3909 = vmatpush.bf16.msra.mxu0 %v3665
        %3910 = vmatpush.bf16.msra.mxu0 %v3664
        %3911 = vmatpush.bf16.msra.mxu0 %v3663
        %3912 = vmatpush.bf16.msra.mxu0 %v3662
        %3913 = vmatpush.bf16.msra.mxu0 %v3661
        %3914 = vmatpush.bf16.msra.mxu0 %v3660
        %3915 = vmatpush.bf16.msra.mxu0 %v3659
        %3916 = vmatmul.bf16.gmra.mxu0 0
        %v3917 = vpop.f32.mrf.mxu0
        %v3918 = vadd.f32 %v3225, %v3917
        %v3919 = vpop.f32.mrf.mxu0
        %v3920 = vadd.f32 %v3225, %v3919
        %3921 = vmatmul.bf16.gmra.mxu0 %v1971
        %v3922 = vpop.f32.mrf.mxu0
        %v3923 = vadd.f32 %v3225, %v3922
        %v3924 = vpop.f32.mrf.mxu0
        %v3925 = vadd.f32 %v3225, %v3924
        %3926 = vmatmul.bf16.gmra.mxu0 %v1973
        %v3927 = vpop.f32.mrf.mxu0
        %v3928 = vadd.f32 %v3225, %v3927
        %v3929 = vpop.f32.mrf.mxu0
        %v3930 = vadd.f32 %v3225, %v3929
        %3931 = vmatmul.bf16.gmra.mxu0 %v1975
        %v3932 = vpop.f32.mrf.mxu0
        %v3933 = vadd.f32 %v3225, %v3932
        %v3934 = vpop.f32.mrf.mxu0
        %v3935 = vadd.f32 %v3225, %v3934
        %3936 = vmatmul.bf16.gmra.mxu0 %v1977
        %v3937 = vpop.f32.mrf.mxu0
        %v3938 = vadd.f32 %v3225, %v3937
        %v3939 = vpop.f32.mrf.mxu0
        %v3940 = vadd.f32 %v3225, %v3939
        %3941 = vmatmul.bf16.gmra.mxu0 %v1979
        %v3942 = vpop.f32.mrf.mxu0
        %v3943 = vadd.f32 %v3225, %v3942
        %v3944 = vpop.f32.mrf.mxu0
        %v3945 = vadd.f32 %v3225, %v3944
        %3946 = vmatmul.bf16.gmra.mxu0 %v1981
        %v3947 = vpop.f32.mrf.mxu0
        %v3948 = vadd.f32 %v3225, %v3947
        %v3949 = vpop.f32.mrf.mxu0
        %v3950 = vadd.f32 %v3225, %v3949
        %3951 = vmatmul.bf16.gmra.mxu0 %v1983
        %v3952 = vpop.f32.mrf.mxu0
        %v3953 = vadd.f32 %v3225, %v3952
        %v3954 = vpop.f32.mrf.mxu0
        %v3955 = vadd.f32 %v3225, %v3954
        %3956 = vmatmul.bf16.gmra.mxu0 %v1985
        %v3957 = vpop.f32.mrf.mxu0
        %v3958 = vadd.f32 %v3225, %v3957
        %v3959 = vpop.f32.mrf.mxu0
        %v3960 = vadd.f32 %v3225, %v3959
        %3961 = vmatmul.bf16.gmra.mxu0 %v1987
        %v3962 = vpop.f32.mrf.mxu0
        %v3963 = vadd.f32 %v3225, %v3962
        %v3964 = vpop.f32.mrf.mxu0
        %v3965 = vadd.f32 %v3225, %v3964
        %3966 = vmatmul.bf16.gmra.mxu0 %v1989
        %v3967 = vpop.f32.mrf.mxu0
        %v3968 = vadd.f32 %v3225, %v3967
        %v3969 = vpop.f32.mrf.mxu0
        %v3970 = vadd.f32 %v3225, %v3969
        %3971 = vmatmul.bf16.gmra.mxu0 %v1991
        %v3972 = vpop.f32.mrf.mxu0
        %v3973 = vadd.f32 %v3225, %v3972
        %v3974 = vpop.f32.mrf.mxu0
        %v3975 = vadd.f32 %v3225, %v3974
        %3976 = vmatmul.bf16.gmra.mxu0 %v1993
        %v3977 = vpop.f32.mrf.mxu0
        %v3978 = vadd.f32 %v3225, %v3977
        %v3979 = vpop.f32.mrf.mxu0
        %v3980 = vadd.f32 %v3225, %v3979
        %3981 = vmatmul.bf16.gmra.mxu0 %v1995
        %v3982 = vpop.f32.mrf.mxu0
        %v3983 = vadd.f32 %v3225, %v3982
        %v3984 = vpop.f32.mrf.mxu0
        %v3985 = vadd.f32 %v3225, %v3984
        %3986 = vmatmul.bf16.gmra.mxu0 %v1997
        %v3987 = vpop.f32.mrf.mxu0
        %v3988 = vadd.f32 %v3225, %v3987
        %v3989 = vpop.f32.mrf.mxu0
        %v3990 = vadd.f32 %v3225, %v3989
        %3991 = vmatmul.bf16.gmra.mxu0 %v1999
        %v3992 = vpop.f32.mrf.mxu0
        %v3993 = vadd.f32 %v3225, %v3992
        %v3994 = vpop.f32.mrf.mxu0
        %v3995 = vadd.f32 %v3225, %v3994
        %3996 = vdwg.mxu0
        %3997 = vmatpush.bf16.msra.mxu0 %v3674
        %3998 = vmatpush.bf16.msra.mxu0 %v3673
        %3999 = vmatpush.bf16.msra.mxu0 %v3672
        %4000 = vmatpush.bf16.msra.mxu0 %v3671
        %4001 = vmatpush.bf16.msra.mxu0 %v3670
        %4002 = vmatpush.bf16.msra.mxu0 %v3669
        %4003 = vmatpush.bf16.msra.mxu0 %v3668
        %4004 = vmatpush.bf16.msra.mxu0 %v3667
        %4005 = vmatmul.bf16.gmra.mxu0 %v2830
        %v4006 = vpop.f32.mrf.mxu0
        %v4007 = vadd.f32 %v3918, %v4006
        %v4008 = vpop.f32.mrf.mxu0
        %v4009 = vadd.f32 %v3920, %v4008
        %4010 = vmatmul.bf16.gmra.mxu0 %v2834
        %v4011 = vpop.f32.mrf.mxu0
        %v4012 = vadd.f32 %v3923, %v4011
        %v4013 = vpop.f32.mrf.mxu0
        %v4014 = vadd.f32 %v3925, %v4013
        %4015 = vmatmul.bf16.gmra.mxu0 %v2838
        %v4016 = vpop.f32.mrf.mxu0
        %v4017 = vadd.f32 %v3928, %v4016
        %v4018 = vpop.f32.mrf.mxu0
        %v4019 = vadd.f32 %v3930, %v4018
        %4020 = vmatmul.bf16.gmra.mxu0 %v2842
        %v4021 = vpop.f32.mrf.mxu0
        %v4022 = vadd.f32 %v3933, %v4021
        %v4023 = vpop.f32.mrf.mxu0
        %v4024 = vadd.f32 %v3935, %v4023
        %4025 = vmatmul.bf16.gmra.mxu0 %v2846
        %v4026 = vpop.f32.mrf.mxu0
        %v4027 = vadd.f32 %v3938, %v4026
        %v4028 = vpop.f32.mrf.mxu0
        %v4029 = vadd.f32 %v3940, %v4028
        %4030 = vmatmul.bf16.gmra.mxu0 %v2850
        %v4031 = vpop.f32.mrf.mxu0
        %v4032 = vadd.f32 %v3943, %v4031
        %v4033 = vpop.f32.mrf.mxu0
        %v4034 = vadd.f32 %v3945, %v4033
        %4035 = vmatmul.bf16.gmra.mxu0 %v2854
        %v4036 = vpop.f32.mrf.mxu0
        %v4037 = vadd.f32 %v3948, %v4036
        %v4038 = vpop.f32.mrf.mxu0
        %v4039 = vadd.f32 %v3950, %v4038
        %4040 = vmatmul.bf16.gmra.mxu0 %v2858
        %v4041 = vpop.f32.mrf.mxu0
        %v4042 = vadd.f32 %v3953, %v4041
        %v4043 = vpop.f32.mrf.mxu0
        %v4044 = vadd.f32 %v3955, %v4043
        %4045 = vmatmul.bf16.gmra.mxu0 %v2862
        %v4046 = vpop.f32.mrf.mxu0
        %v4047 = vadd.f32 %v3958, %v4046
        %v4048 = vpop.f32.mrf.mxu0
        %v4049 = vadd.f32 %v3960, %v4048
        %4050 = vmatmul.bf16.gmra.mxu0 %v2866
        %v4051 = vpop.f32.mrf.mxu0
        %v4052 = vadd.f32 %v3963, %v4051
        %v4053 = vpop.f32.mrf.mxu0
        %v4054 = vadd.f32 %v3965, %v4053
        %4055 = vmatmul.bf16.gmra.mxu0 %v2870
        %v4056 = vpop.f32.mrf.mxu0
        %v4057 = vadd.f32 %v3968, %v4056
        %v4058 = vpop.f32.mrf.mxu0
        %v4059 = vadd.f32 %v3970, %v4058
        %4060 = vmatmul.bf16.gmra.mxu0 %v2874
        %v4061 = vpop.f32.mrf.mxu0
        %v4062 = vadd.f32 %v3973, %v4061
        %v4063 = vpop.f32.mrf.mxu0
        %v4064 = vadd.f32 %v3975, %v4063
        %4065 = vmatmul.bf16.gmra.mxu0 %v2878
        %v4066 = vpop.f32.mrf.mxu0
        %v4067 = vadd.f32 %v3978, %v4066
        %v4068 = vpop.f32.mrf.mxu0
        %v4069 = vadd.f32 %v3980, %v4068
        %4070 = vmatmul.bf16.gmra.mxu0 %v2882
        %v4071 = vpop.f32.mrf.mxu0
        %v4072 = vadd.f32 %v3983, %v4071
        %v4073 = vpop.f32.mrf.mxu0
        %v4074 = vadd.f32 %v3985, %v4073
        %4075 = vmatmul.bf16.gmra.mxu0 %v2886
        %v4076 = vpop.f32.mrf.mxu0
        %v4077 = vadd.f32 %v3988, %v4076
        %v4078 = vpop.f32.mrf.mxu0
        %v4079 = vadd.f32 %v3990, %v4078
        %4080 = vmatmul.bf16.gmra.mxu0 %v2890
        %v4081 = vpop.f32.mrf.mxu0
        %v4082 = vadd.f32 %v3993, %v4081
        %v4083 = vpop.f32.mrf.mxu0
        %v4084 = vadd.f32 %v3995, %v4083
        %4085 = vdwg.mxu0
        %4086 = vmatpush.bf16.msra.mxu0 %v3682
        %4087 = vmatpush.bf16.msra.mxu0 %v3681
        %4088 = vmatpush.bf16.msra.mxu0 %v3680
        %4089 = vmatpush.bf16.msra.mxu0 %v3679
        %4090 = vmatpush.bf16.msra.mxu0 %v3678
        %4091 = vmatpush.bf16.msra.mxu0 %v3677
        %4092 = vmatpush.bf16.msra.mxu0 %v3676
        %4093 = vmatpush.bf16.msra.mxu0 %v3675
        %4094 = vmatmul.bf16.gmra.mxu0 %v2456
        %v4095 = vpop.f32.mrf.mxu0
        %v4096 = vadd.f32 %v4007, %v4095
        %v4097 = vpop.f32.mrf.mxu0
        %v4098 = vadd.f32 %v4009, %v4097
        %4099 = vmatmul.bf16.gmra.mxu0 %v2518
        %v4100 = vpop.f32.mrf.mxu0
        %v4101 = vadd.f32 %v4012, %v4100
        %v4102 = vpop.f32.mrf.mxu0
        %v4103 = vadd.f32 %v4014, %v4102
        %4104 = vmatmul.bf16.gmra.mxu0 %v2519
        %v4105 = vpop.f32.mrf.mxu0
        %v4106 = vadd.f32 %v4017, %v4105
        %v4107 = vpop.f32.mrf.mxu0
        %v4108 = vadd.f32 %v4019, %v4107
        %4109 = vmatmul.bf16.gmra.mxu0 %v2520
        %v4110 = vpop.f32.mrf.mxu0
        %v4111 = vadd.f32 %v4022, %v4110
        %v4112 = vpop.f32.mrf.mxu0
        %v4113 = vadd.f32 %v4024, %v4112
        %4114 = vmatmul.bf16.gmra.mxu0 %v2521
        %v4115 = vpop.f32.mrf.mxu0
        %v4116 = vadd.f32 %v4027, %v4115
        %v4117 = vpop.f32.mrf.mxu0
        %v4118 = vadd.f32 %v4029, %v4117
        %4119 = vmatmul.bf16.gmra.mxu0 %v2522
        %v4120 = vpop.f32.mrf.mxu0
        %v4121 = vadd.f32 %v4032, %v4120
        %v4122 = vpop.f32.mrf.mxu0
        %v4123 = vadd.f32 %v4034, %v4122
        %4124 = vmatmul.bf16.gmra.mxu0 %v2523
        %v4125 = vpop.f32.mrf.mxu0
        %v4126 = vadd.f32 %v4037, %v4125
        %v4127 = vpop.f32.mrf.mxu0
        %v4128 = vadd.f32 %v4039, %v4127
        %4129 = vmatmul.bf16.gmra.mxu0 %v2524
        %v4130 = vpop.f32.mrf.mxu0
        %v4131 = vadd.f32 %v4042, %v4130
        %v4132 = vpop.f32.mrf.mxu0
        %v4133 = vadd.f32 %v4044, %v4132
        %4134 = vmatmul.bf16.gmra.mxu0 %v2525
        %v4135 = vpop.f32.mrf.mxu0
        %v4136 = vadd.f32 %v4047, %v4135
        %v4137 = vpop.f32.mrf.mxu0
        %v4138 = vadd.f32 %v4049, %v4137
        %4139 = vmatmul.bf16.gmra.mxu0 %v2526
        %v4140 = vpop.f32.mrf.mxu0
        %v4141 = vadd.f32 %v4052, %v4140
        %v4142 = vpop.f32.mrf.mxu0
        %v4143 = vadd.f32 %v4054, %v4142
        %4144 = vmatmul.bf16.gmra.mxu0 %v2527
        %v4145 = vpop.f32.mrf.mxu0
        %v4146 = vadd.f32 %v4057, %v4145
        %v4147 = vpop.f32.mrf.mxu0
        %v4148 = vadd.f32 %v4059, %v4147
        %4149 = vmatmul.bf16.gmra.mxu0 %v2528
        %v4150 = vpop.f32.mrf.mxu0
        %v4151 = vadd.f32 %v4062, %v4150
        %v4152 = vpop.f32.mrf.mxu0
        %v4153 = vadd.f32 %v4064, %v4152
        %4154 = vmatmul.bf16.gmra.mxu0 %v2529
        %v4155 = vpop.f32.mrf.mxu0
        %v4156 = vadd.f32 %v4067, %v4155
        %v4157 = vpop.f32.mrf.mxu0
        %v4158 = vadd.f32 %v4069, %v4157
        %4159 = vmatmul.bf16.gmra.mxu0 %v2530
        %v4160 = vpop.f32.mrf.mxu0
        %v4161 = vadd.f32 %v4072, %v4160
        %v4162 = vpop.f32.mrf.mxu0
        %v4163 = vadd.f32 %v4074, %v4162
        %4164 = vmatmul.bf16.gmra.mxu0 %v2531
        %v4165 = vpop.f32.mrf.mxu0
        %v4166 = vadd.f32 %v4077, %v4165
        %v4167 = vpop.f32.mrf.mxu0
        %v4168 = vadd.f32 %v4079, %v4167
        %4169 = vmatmul.bf16.gmra.mxu0 %v2532
        %v4170 = vpop.f32.mrf.mxu0
        %v4171 = vadd.f32 %v4082, %v4170
        %v4172 = vpop.f32.mrf.mxu0
        %v4173 = vadd.f32 %v4084, %v4172
        %4174 = vdwg.mxu0
        %4175 = vmatpush.bf16.msra.mxu0 %v3690
        %4176 = vmatpush.bf16.msra.mxu0 %v3689
        %4177 = vmatpush.bf16.msra.mxu0 %v3688
        %4178 = vmatpush.bf16.msra.mxu0 %v3687
        %4179 = vmatpush.bf16.msra.mxu0 %v3686
        %4180 = vmatpush.bf16.msra.mxu0 %v3685
        %4181 = vmatpush.bf16.msra.mxu0 %v3684
        %4182 = vmatpush.bf16.msra.mxu0 %v3683
        %4183 = vmatmul.bf16.gmra.mxu0 0
        %v4184 = vpop.f32.mrf.mxu0
        %v4185 = vadd.f32 %v4096, %v4184
        %v4186 = vpop.f32.mrf.mxu0
        %v4187 = vadd.f32 %v4098, %v4186
        %4188 = vmatmul.bf16.gmra.mxu0 %v2422
        %v4189 = vpop.f32.mrf.mxu0
        %v4190 = vadd.f32 %v4101, %v4189
        %v4191 = vpop.f32.mrf.mxu0
        %v4192 = vadd.f32 %v4103, %v4191
        %4193 = vmatmul.bf16.gmra.mxu0 %v2424
        %v4194 = vpop.f32.mrf.mxu0
        %v4195 = vadd.f32 %v4106, %v4194
        %v4196 = vpop.f32.mrf.mxu0
        %v4197 = vadd.f32 %v4108, %v4196
        %4198 = vmatmul.bf16.gmra.mxu0 %v2426
        %v4199 = vpop.f32.mrf.mxu0
        %v4200 = vadd.f32 %v4111, %v4199
        %v4201 = vpop.f32.mrf.mxu0
        %v4202 = vadd.f32 %v4113, %v4201
        %4203 = vmatmul.bf16.gmra.mxu0 %v2428
        %v4204 = vpop.f32.mrf.mxu0
        %v4205 = vadd.f32 %v4116, %v4204
        %v4206 = vpop.f32.mrf.mxu0
        %v4207 = vadd.f32 %v4118, %v4206
        %4208 = vmatmul.bf16.gmra.mxu0 %v2430
        %v4209 = vpop.f32.mrf.mxu0
        %v4210 = vadd.f32 %v4121, %v4209
        %v4211 = vpop.f32.mrf.mxu0
        %v4212 = vadd.f32 %v4123, %v4211
        %4213 = vmatmul.bf16.gmra.mxu0 %v2432
        %v4214 = vpop.f32.mrf.mxu0
        %v4215 = vadd.f32 %v4126, %v4214
        %v4216 = vpop.f32.mrf.mxu0
        %v4217 = vadd.f32 %v4128, %v4216
        %4218 = vmatmul.bf16.gmra.mxu0 %v2434
        %v4219 = vpop.f32.mrf.mxu0
        %v4220 = vadd.f32 %v4131, %v4219
        %v4221 = vpop.f32.mrf.mxu0
        %v4222 = vadd.f32 %v4133, %v4221
        %4223 = vmatmul.bf16.gmra.mxu0 %v2436
        %v4224 = vpop.f32.mrf.mxu0
        %v4225 = vadd.f32 %v4136, %v4224
        %v4226 = vpop.f32.mrf.mxu0
        %v4227 = vadd.f32 %v4138, %v4226
        %4228 = vmatmul.bf16.gmra.mxu0 %v2438
        %v4229 = vpop.f32.mrf.mxu0
        %v4230 = vadd.f32 %v4141, %v4229
        %v4231 = vpop.f32.mrf.mxu0
        %v4232 = vadd.f32 %v4143, %v4231
        %4233 = vmatmul.bf16.gmra.mxu0 %v2440
        %v4234 = vpop.f32.mrf.mxu0
        %v4235 = vadd.f32 %v4146, %v4234
        %v4236 = vpop.f32.mrf.mxu0
        %v4237 = vadd.f32 %v4148, %v4236
        %4238 = vmatmul.bf16.gmra.mxu0 %v2442
        %v4239 = vpop.f32.mrf.mxu0
        %v4240 = vadd.f32 %v4151, %v4239
        %v4241 = vpop.f32.mrf.mxu0
        %v4242 = vadd.f32 %v4153, %v4241
        %4243 = vmatmul.bf16.gmra.mxu0 %v2444
        %v4244 = vpop.f32.mrf.mxu0
        %v4245 = vadd.f32 %v4156, %v4244
        %v4246 = vpop.f32.mrf.mxu0
        %v4247 = vadd.f32 %v4158, %v4246
        %4248 = vmatmul.bf16.gmra.mxu0 %v2446
        %v4249 = vpop.f32.mrf.mxu0
        %v4250 = vadd.f32 %v4161, %v4249
        %v4251 = vpop.f32.mrf.mxu0
        %v4252 = vadd.f32 %v4163, %v4251
        %4253 = vmatmul.bf16.gmra.mxu0 %v2448
        %v4254 = vpop.f32.mrf.mxu0
        %v4255 = vadd.f32 %v4166, %v4254
        %v4256 = vpop.f32.mrf.mxu0
        %v4257 = vadd.f32 %v4168, %v4256
        %4258 = vmatmul.bf16.gmra.mxu0 %v2450
        %v4259 = vpop.f32.mrf.mxu0
        %v4260 = vadd.f32 %v4171, %v4259
        %v4261 = vpop.f32.mrf.mxu0
        %v4262 = vadd.f32 %v4173, %v4261
        %4263 = vdwg.mxu0
        %4264 = vmatpush.bf16.msra.mxu0 %v3698
        %4265 = vmatpush.bf16.msra.mxu0 %v3697
        %4266 = vmatpush.bf16.msra.mxu0 %v3696
        %4267 = vmatpush.bf16.msra.mxu0 %v3695
        %4268 = vmatpush.bf16.msra.mxu0 %v3694
        %4269 = vmatpush.bf16.msra.mxu0 %v3693
        %4270 = vmatpush.bf16.msra.mxu0 %v3692
        %4271 = vmatpush.bf16.msra.mxu0 %v3691
        %4272 = vmatmul.bf16.gmra.mxu0 %v2893
        %v4273 = vpop.f32.mrf.mxu0
        %v4274 = vadd.f32 %v4185, %v4273
        %v4275 = vpop.f32.mrf.mxu0
        %v4276 = vadd.f32 %v4187, %v4275
        %4277 = vmatmul.bf16.gmra.mxu0 %v2897
        %v4278 = vpop.f32.mrf.mxu0
        %v4279 = vadd.f32 %v4190, %v4278
        %v4280 = vpop.f32.mrf.mxu0
        %v4281 = vadd.f32 %v4192, %v4280
        %4282 = vmatmul.bf16.gmra.mxu0 %v2901
        %v4283 = vpop.f32.mrf.mxu0
        %v4284 = vadd.f32 %v4195, %v4283
        %v4285 = vpop.f32.mrf.mxu0
        %v4286 = vadd.f32 %v4197, %v4285
        %4287 = vmatmul.bf16.gmra.mxu0 %v2905
        %v4288 = vpop.f32.mrf.mxu0
        %v4289 = vadd.f32 %v4200, %v4288
        %v4290 = vpop.f32.mrf.mxu0
        %v4291 = vadd.f32 %v4202, %v4290
        %4292 = vmatmul.bf16.gmra.mxu0 %v2909
        %v4293 = vpop.f32.mrf.mxu0
        %v4294 = vadd.f32 %v4205, %v4293
        %v4295 = vpop.f32.mrf.mxu0
        %v4296 = vadd.f32 %v4207, %v4295
        %4297 = vmatmul.bf16.gmra.mxu0 %v2913
        %v4298 = vpop.f32.mrf.mxu0
        %v4299 = vadd.f32 %v4210, %v4298
        %v4300 = vpop.f32.mrf.mxu0
        %v4301 = vadd.f32 %v4212, %v4300
        %4302 = vmatmul.bf16.gmra.mxu0 %v2917
        %v4303 = vpop.f32.mrf.mxu0
        %v4304 = vadd.f32 %v4215, %v4303
        %v4305 = vpop.f32.mrf.mxu0
        %v4306 = vadd.f32 %v4217, %v4305
        %4307 = vmatmul.bf16.gmra.mxu0 %v2921
        %v4308 = vpop.f32.mrf.mxu0
        %v4309 = vadd.f32 %v4220, %v4308
        %v4310 = vpop.f32.mrf.mxu0
        %v4311 = vadd.f32 %v4222, %v4310
        %4312 = vmatmul.bf16.gmra.mxu0 %v2925
        %v4313 = vpop.f32.mrf.mxu0
        %v4314 = vadd.f32 %v4225, %v4313
        %v4315 = vpop.f32.mrf.mxu0
        %v4316 = vadd.f32 %v4227, %v4315
        %4317 = vmatmul.bf16.gmra.mxu0 %v2929
        %v4318 = vpop.f32.mrf.mxu0
        %v4319 = vadd.f32 %v4230, %v4318
        %v4320 = vpop.f32.mrf.mxu0
        %v4321 = vadd.f32 %v4232, %v4320
        %4322 = vmatmul.bf16.gmra.mxu0 %v2933
        %v4323 = vpop.f32.mrf.mxu0
        %v4324 = vadd.f32 %v4235, %v4323
        %v4325 = vpop.f32.mrf.mxu0
        %v4326 = vadd.f32 %v4237, %v4325
        %4327 = vmatmul.bf16.gmra.mxu0 %v2937
        %v4328 = vpop.f32.mrf.mxu0
        %v4329 = vadd.f32 %v4240, %v4328
        %v4330 = vpop.f32.mrf.mxu0
        %v4331 = vadd.f32 %v4242, %v4330
        %4332 = vmatmul.bf16.gmra.mxu0 %v2941
        %v4333 = vpop.f32.mrf.mxu0
        %v4334 = vadd.f32 %v4245, %v4333
        %v4335 = vpop.f32.mrf.mxu0
        %v4336 = vadd.f32 %v4247, %v4335
        %4337 = vmatmul.bf16.gmra.mxu0 %v2945
        %v4338 = vpop.f32.mrf.mxu0
        %v4339 = vadd.f32 %v4250, %v4338
        %v4340 = vpop.f32.mrf.mxu0
        %v4341 = vadd.f32 %v4252, %v4340
        %4342 = vmatmul.bf16.gmra.mxu0 %v2949
        %v4343 = vpop.f32.mrf.mxu0
        %v4344 = vadd.f32 %v4255, %v4343
        %v4345 = vpop.f32.mrf.mxu0
        %v4346 = vadd.f32 %v4257, %v4345
        %4347 = vmatmul.bf16.gmra.mxu0 %v2953
        %v4348 = vpop.f32.mrf.mxu0
        %v4349 = vadd.f32 %v4260, %v4348
        %v4350 = vpop.f32.mrf.mxu0
        %v4351 = vadd.f32 %v4262, %v4350
        %4352 = vdwg.mxu0
        %4353 = vmatpush.bf16.msra.mxu0 %v3706
        %4354 = vmatpush.bf16.msra.mxu0 %v3705
        %4355 = vmatpush.bf16.msra.mxu0 %v3704
        %4356 = vmatpush.bf16.msra.mxu0 %v3703
        %4357 = vmatpush.bf16.msra.mxu0 %v3702
        %4358 = vmatpush.bf16.msra.mxu0 %v3701
        %4359 = vmatpush.bf16.msra.mxu0 %v3700
        %4360 = vmatpush.bf16.msra.mxu0 %v3699
        %4361 = vmatmul.bf16.gmra.mxu0 %v2645
        %v4362 = vpop.f32.mrf.mxu0
        %v4363 = vadd.f32 %v4274, %v4362
        %v4364 = vpop.f32.mrf.mxu0
        %v4365 = vadd.f32 %v4276, %v4364
        %4366 = vmatmul.bf16.gmra.mxu0 %v2646
        %v4367 = vpop.f32.mrf.mxu0
        %v4368 = vadd.f32 %v4279, %v4367
        %v4369 = vpop.f32.mrf.mxu0
        %v4370 = vadd.f32 %v4281, %v4369
        %4371 = vmatmul.bf16.gmra.mxu0 %v2647
        %v4372 = vpop.f32.mrf.mxu0
        %v4373 = vadd.f32 %v4284, %v4372
        %v4374 = vpop.f32.mrf.mxu0
        %v4375 = vadd.f32 %v4286, %v4374
        %4376 = vmatmul.bf16.gmra.mxu0 %v2648
        %v4377 = vpop.f32.mrf.mxu0
        %v4378 = vadd.f32 %v4289, %v4377
        %v4379 = vpop.f32.mrf.mxu0
        %v4380 = vadd.f32 %v4291, %v4379
        %4381 = vmatmul.bf16.gmra.mxu0 %v2649
        %v4382 = vpop.f32.mrf.mxu0
        %v4383 = vadd.f32 %v4294, %v4382
        %v4384 = vpop.f32.mrf.mxu0
        %v4385 = vadd.f32 %v4296, %v4384
        %4386 = vmatmul.bf16.gmra.mxu0 %v2650
        %v4387 = vpop.f32.mrf.mxu0
        %v4388 = vadd.f32 %v4299, %v4387
        %v4389 = vpop.f32.mrf.mxu0
        %v4390 = vadd.f32 %v4301, %v4389
        %4391 = vmatmul.bf16.gmra.mxu0 %v2651
        %v4392 = vpop.f32.mrf.mxu0
        %v4393 = vadd.f32 %v4304, %v4392
        %v4394 = vpop.f32.mrf.mxu0
        %v4395 = vadd.f32 %v4306, %v4394
        %4396 = vmatmul.bf16.gmra.mxu0 %v2652
        %v4397 = vpop.f32.mrf.mxu0
        %v4398 = vadd.f32 %v4309, %v4397
        %v4399 = vpop.f32.mrf.mxu0
        %v4400 = vadd.f32 %v4311, %v4399
        %4401 = vmatmul.bf16.gmra.mxu0 %v2653
        %v4402 = vpop.f32.mrf.mxu0
        %v4403 = vadd.f32 %v4314, %v4402
        %v4404 = vpop.f32.mrf.mxu0
        %v4405 = vadd.f32 %v4316, %v4404
        %4406 = vmatmul.bf16.gmra.mxu0 %v2654
        %v4407 = vpop.f32.mrf.mxu0
        %v4408 = vadd.f32 %v4319, %v4407
        %v4409 = vpop.f32.mrf.mxu0
        %v4410 = vadd.f32 %v4321, %v4409
        %4411 = vmatmul.bf16.gmra.mxu0 %v2655
        %v4412 = vpop.f32.mrf.mxu0
        %v4413 = vadd.f32 %v4324, %v4412
        %v4414 = vpop.f32.mrf.mxu0
        %v4415 = vadd.f32 %v4326, %v4414
        %4416 = vmatmul.bf16.gmra.mxu0 %v2656
        %v4417 = vpop.f32.mrf.mxu0
        %v4418 = vadd.f32 %v4329, %v4417
        %v4419 = vpop.f32.mrf.mxu0
        %v4420 = vadd.f32 %v4331, %v4419
        %4421 = vmatmul.bf16.gmra.mxu0 %v2657
        %v4422 = vpop.f32.mrf.mxu0
        %v4423 = vadd.f32 %v4334, %v4422
        %v4424 = vpop.f32.mrf.mxu0
        %v4425 = vadd.f32 %v4336, %v4424
        %4426 = vmatmul.bf16.gmra.mxu0 %v2658
        %v4427 = vpop.f32.mrf.mxu0
        %v4428 = vadd.f32 %v4339, %v4427
        %v4429 = vpop.f32.mrf.mxu0
        %v4430 = vadd.f32 %v4341, %v4429
        %4431 = vmatmul.bf16.gmra.mxu0 %v2659
        %v4432 = vpop.f32.mrf.mxu0
        %v4433 = vadd.f32 %v4344, %v4432
        %v4434 = vpop.f32.mrf.mxu0
        %v4435 = vadd.f32 %v4346, %v4434
        %4436 = vmatmul.bf16.gmra.mxu0 %v2660
        %v4437 = vpop.f32.mrf.mxu0
        %v4438 = vadd.f32 %v4349, %v4437
        %v4439 = vpop.f32.mrf.mxu0
        %v4440 = vadd.f32 %v4351, %v4439
        %4441 = vdwg.mxu0
        %4442 = vmatpush.bf16.msra.mxu0 %v3714
        %4443 = vmatpush.bf16.msra.mxu0 %v3713
        %4444 = vmatpush.bf16.msra.mxu0 %v3712
        %4445 = vmatpush.bf16.msra.mxu0 %v3711
        %4446 = vmatpush.bf16.msra.mxu0 %v3710
        %4447 = vmatpush.bf16.msra.mxu0 %v3709
        %4448 = vmatpush.bf16.msra.mxu0 %v3708
        %4449 = vmatpush.bf16.msra.mxu0 %v3707
        %4450 = vmatmul.bf16.gmra.mxu0 %v1360
        %v4451 = vpop.f32.mrf.mxu0
        %v4452 = vadd.f32 %v4363, %v4451
        %v4453 = vpop.f32.mrf.mxu0
        %v4454 = vadd.f32 %v4365, %v4453
        %4455 = vmatmul.bf16.gmra.mxu0 %v1362
        %v4456 = vpop.f32.mrf.mxu0
        %v4457 = vadd.f32 %v4368, %v4456
        %v4458 = vpop.f32.mrf.mxu0
        %v4459 = vadd.f32 %v4370, %v4458
        %4460 = vmatmul.bf16.gmra.mxu0 %v1364
        %v4461 = vpop.f32.mrf.mxu0
        %v4462 = vadd.f32 %v4373, %v4461
        %v4463 = vpop.f32.mrf.mxu0
        %v4464 = vadd.f32 %v4375, %v4463
        %4465 = vmatmul.bf16.gmra.mxu0 %v1366
        %v4466 = vpop.f32.mrf.mxu0
        %v4467 = vadd.f32 %v4378, %v4466
        %v4468 = vpop.f32.mrf.mxu0
        %v4469 = vadd.f32 %v4380, %v4468
        %4470 = vmatmul.bf16.gmra.mxu0 %v1368
        %v4471 = vpop.f32.mrf.mxu0
        %v4472 = vadd.f32 %v4383, %v4471
        %v4473 = vpop.f32.mrf.mxu0
        %v4474 = vadd.f32 %v4385, %v4473
        %4475 = vmatmul.bf16.gmra.mxu0 %v1370
        %v4476 = vpop.f32.mrf.mxu0
        %v4477 = vadd.f32 %v4388, %v4476
        %v4478 = vpop.f32.mrf.mxu0
        %v4479 = vadd.f32 %v4390, %v4478
        %4480 = vmatmul.bf16.gmra.mxu0 %v1372
        %v4481 = vpop.f32.mrf.mxu0
        %v4482 = vadd.f32 %v4393, %v4481
        %v4483 = vpop.f32.mrf.mxu0
        %v4484 = vadd.f32 %v4395, %v4483
        %4485 = vmatmul.bf16.gmra.mxu0 %v1374
        %v4486 = vpop.f32.mrf.mxu0
        %v4487 = vadd.f32 %v4398, %v4486
        %v4488 = vpop.f32.mrf.mxu0
        %v4489 = vadd.f32 %v4400, %v4488
        %4490 = vmatmul.bf16.gmra.mxu0 %v1376
        %v4491 = vpop.f32.mrf.mxu0
        %v4492 = vadd.f32 %v4403, %v4491
        %v4493 = vpop.f32.mrf.mxu0
        %v4494 = vadd.f32 %v4405, %v4493
        %4495 = vmatmul.bf16.gmra.mxu0 %v1378
        %v4496 = vpop.f32.mrf.mxu0
        %v4497 = vadd.f32 %v4408, %v4496
        %v4498 = vpop.f32.mrf.mxu0
        %v4499 = vadd.f32 %v4410, %v4498
        %4500 = vmatmul.bf16.gmra.mxu0 %v1380
        %v4501 = vpop.f32.mrf.mxu0
        %v4502 = vadd.f32 %v4413, %v4501
        %v4503 = vpop.f32.mrf.mxu0
        %v4504 = vadd.f32 %v4415, %v4503
        %4505 = vmatmul.bf16.gmra.mxu0 %v1382
        %v4506 = vpop.f32.mrf.mxu0
        %v4507 = vadd.f32 %v4418, %v4506
        %v4508 = vpop.f32.mrf.mxu0
        %v4509 = vadd.f32 %v4420, %v4508
        %4510 = vmatmul.bf16.gmra.mxu0 %v1384
        %v4511 = vpop.f32.mrf.mxu0
        %v4512 = vadd.f32 %v4423, %v4511
        %v4513 = vpop.f32.mrf.mxu0
        %v4514 = vadd.f32 %v4425, %v4513
        %4515 = vmatmul.bf16.gmra.mxu0 %v1386
        %v4516 = vpop.f32.mrf.mxu0
        %v4517 = vadd.f32 %v4428, %v4516
        %v4518 = vpop.f32.mrf.mxu0
        %v4519 = vadd.f32 %v4430, %v4518
        %4520 = vmatmul.bf16.gmra.mxu0 %v1388
        %v4521 = vpop.f32.mrf.mxu0
        %v4522 = vadd.f32 %v4433, %v4521
        %v4523 = vpop.f32.mrf.mxu0
        %v4524 = vadd.f32 %v4435, %v4523
        %4525 = vmatmul.bf16.gmra.mxu0 %v1390
        %v4526 = vpop.f32.mrf.mxu0
        %v4527 = vadd.f32 %v4438, %v4526
        %v4528 = vpop.f32.mrf.mxu0
        %v4529 = vadd.f32 %v4440, %v4528
        %4530 = vdwg.mxu0
        %4531 = vmatpush.bf16.msra.mxu0 %v3722
        %4532 = vmatpush.bf16.msra.mxu0 %v3721
        %4533 = vmatpush.bf16.msra.mxu0 %v3720
        %4534 = vmatpush.bf16.msra.mxu0 %v3719
        %4535 = vmatpush.bf16.msra.mxu0 %v3718
        %4536 = vmatpush.bf16.msra.mxu0 %v3717
        %4537 = vmatpush.bf16.msra.mxu0 %v3716
        %4538 = vmatpush.bf16.msra.mxu0 %v3715
        %4539 = vmatmul.bf16.gmra.mxu0 %v2956
        %v4540 = vpop.f32.mrf.mxu0
        %v4541 = vadd.f32 %v4452, %v4540
        %v4542 = vpop.f32.mrf.mxu0
        %v4543 = vadd.f32 %v4454, %v4542
        %4544 = vmatmul.bf16.gmra.mxu0 %v2959
        %v4545 = vpop.f32.mrf.mxu0
        %v4546 = vadd.f32 %v4457, %v4545
        %v4547 = vpop.f32.mrf.mxu0
        %v4548 = vadd.f32 %v4459, %v4547
        %4549 = vmatmul.bf16.gmra.mxu0 %v2962
        %v4550 = vpop.f32.mrf.mxu0
        %v4551 = vadd.f32 %v4462, %v4550
        %v4552 = vpop.f32.mrf.mxu0
        %v4553 = vadd.f32 %v4464, %v4552
        %4554 = vmatmul.bf16.gmra.mxu0 %v2965
        %v4555 = vpop.f32.mrf.mxu0
        %v4556 = vadd.f32 %v4467, %v4555
        %v4557 = vpop.f32.mrf.mxu0
        %v4558 = vadd.f32 %v4469, %v4557
        %4559 = vmatmul.bf16.gmra.mxu0 %v2968
        %v4560 = vpop.f32.mrf.mxu0
        %v4561 = vadd.f32 %v4472, %v4560
        %v4562 = vpop.f32.mrf.mxu0
        %v4563 = vadd.f32 %v4474, %v4562
        %4564 = vmatmul.bf16.gmra.mxu0 %v2971
        %v4565 = vpop.f32.mrf.mxu0
        %v4566 = vadd.f32 %v4477, %v4565
        %v4567 = vpop.f32.mrf.mxu0
        %v4568 = vadd.f32 %v4479, %v4567
        %4569 = vmatmul.bf16.gmra.mxu0 %v2974
        %v4570 = vpop.f32.mrf.mxu0
        %v4571 = vadd.f32 %v4482, %v4570
        %v4572 = vpop.f32.mrf.mxu0
        %v4573 = vadd.f32 %v4484, %v4572
        %4574 = vmatmul.bf16.gmra.mxu0 %v2977
        %v4575 = vpop.f32.mrf.mxu0
        %v4576 = vadd.f32 %v4487, %v4575
        %v4577 = vpop.f32.mrf.mxu0
        %v4578 = vadd.f32 %v4489, %v4577
        %4579 = vmatmul.bf16.gmra.mxu0 %v2980
        %v4580 = vpop.f32.mrf.mxu0
        %v4581 = vadd.f32 %v4492, %v4580
        %v4582 = vpop.f32.mrf.mxu0
        %v4583 = vadd.f32 %v4494, %v4582
        %4584 = vmatmul.bf16.gmra.mxu0 %v2983
        %v4585 = vpop.f32.mrf.mxu0
        %v4586 = vadd.f32 %v4497, %v4585
        %v4587 = vpop.f32.mrf.mxu0
        %v4588 = vadd.f32 %v4499, %v4587
        %4589 = vmatmul.bf16.gmra.mxu0 %v2986
        %v4590 = vpop.f32.mrf.mxu0
        %v4591 = vadd.f32 %v4502, %v4590
        %v4592 = vpop.f32.mrf.mxu0
        %v4593 = vadd.f32 %v4504, %v4592
        %4594 = vmatmul.bf16.gmra.mxu0 %v2989
        %v4595 = vpop.f32.mrf.mxu0
        %v4596 = vadd.f32 %v4507, %v4595
        %v4597 = vpop.f32.mrf.mxu0
        %v4598 = vadd.f32 %v4509, %v4597
        %4599 = vmatmul.bf16.gmra.mxu0 %v2992
        %v4600 = vpop.f32.mrf.mxu0
        %v4601 = vadd.f32 %v4512, %v4600
        %v4602 = vpop.f32.mrf.mxu0
        %v4603 = vadd.f32 %v4514, %v4602
        %4604 = vmatmul.bf16.gmra.mxu0 %v2995
        %v4605 = vpop.f32.mrf.mxu0
        %v4606 = vadd.f32 %v4517, %v4605
        %v4607 = vpop.f32.mrf.mxu0
        %v4608 = vadd.f32 %v4519, %v4607
        %4609 = vmatmul.bf16.gmra.mxu0 %v2998
        %v4610 = vpop.f32.mrf.mxu0
        %v4611 = vadd.f32 %v4522, %v4610
        %v4612 = vpop.f32.mrf.mxu0
        %v4613 = vadd.f32 %v4524, %v4612
        %4614 = vmatmul.bf16.gmra.mxu0 %v3001
        %v4615 = vpop.f32.mrf.mxu0
        %v4616 = vadd.f32 %v4527, %v4615
        %v4617 = vpop.f32.mrf.mxu0
        %v4618 = vadd.f32 %v4529, %v4617
        %4619 = vdwg.mxu0
        %4620 = vmatpush.bf16.msra.mxu0 %v3730
        %4621 = vmatpush.bf16.msra.mxu0 %v3729
        %4622 = vmatpush.bf16.msra.mxu0 %v3728
        %4623 = vmatpush.bf16.msra.mxu0 %v3727
        %4624 = vmatpush.bf16.msra.mxu0 %v3726
        %4625 = vmatpush.bf16.msra.mxu0 %v3725
        %4626 = vmatpush.bf16.msra.mxu0 %v3724
        %4627 = vmatpush.bf16.msra.mxu0 %v3723
        %4628 = vmatmul.bf16.gmra.mxu0 %v2789
        %v4629 = vpop.f32.mrf.mxu0
        %v4630 = vadd.f32 %v4541, %v4629
        %v4631 = vpop.f32.mrf.mxu0
        %v4632 = vadd.f32 %v4543, %v4631
        %4633 = vmatmul.bf16.gmra.mxu0 %v2790
        %v4634 = vpop.f32.mrf.mxu0
        %v4635 = vadd.f32 %v4546, %v4634
        %v4636 = vpop.f32.mrf.mxu0
        %v4637 = vadd.f32 %v4548, %v4636
        %4638 = vmatmul.bf16.gmra.mxu0 %v2791
        %v4639 = vpop.f32.mrf.mxu0
        %v4640 = vadd.f32 %v4551, %v4639
        %v4641 = vpop.f32.mrf.mxu0
        %v4642 = vadd.f32 %v4553, %v4641
        %4643 = vmatmul.bf16.gmra.mxu0 %v2792
        %v4644 = vpop.f32.mrf.mxu0
        %v4645 = vadd.f32 %v4556, %v4644
        %v4646 = vpop.f32.mrf.mxu0
        %v4647 = vadd.f32 %v4558, %v4646
        %4648 = vmatmul.bf16.gmra.mxu0 %v2793
        %v4649 = vpop.f32.mrf.mxu0
        %v4650 = vadd.f32 %v4561, %v4649
        %v4651 = vpop.f32.mrf.mxu0
        %v4652 = vadd.f32 %v4563, %v4651
        %4653 = vmatmul.bf16.gmra.mxu0 %v2794
        %v4654 = vpop.f32.mrf.mxu0
        %v4655 = vadd.f32 %v4566, %v4654
        %v4656 = vpop.f32.mrf.mxu0
        %v4657 = vadd.f32 %v4568, %v4656
        %4658 = vmatmul.bf16.gmra.mxu0 %v2795
        %v4659 = vpop.f32.mrf.mxu0
        %v4660 = vadd.f32 %v4571, %v4659
        %v4661 = vpop.f32.mrf.mxu0
        %v4662 = vadd.f32 %v4573, %v4661
        %4663 = vmatmul.bf16.gmra.mxu0 %v2796
        %v4664 = vpop.f32.mrf.mxu0
        %v4665 = vadd.f32 %v4576, %v4664
        %v4666 = vpop.f32.mrf.mxu0
        %v4667 = vadd.f32 %v4578, %v4666
        %4668 = vmatmul.bf16.gmra.mxu0 %v2797
        %v4669 = vpop.f32.mrf.mxu0
        %v4670 = vadd.f32 %v4581, %v4669
        %v4671 = vpop.f32.mrf.mxu0
        %v4672 = vadd.f32 %v4583, %v4671
        %4673 = vmatmul.bf16.gmra.mxu0 %v2798
        %v4674 = vpop.f32.mrf.mxu0
        %v4675 = vadd.f32 %v4586, %v4674
        %v4676 = vpop.f32.mrf.mxu0
        %v4677 = vadd.f32 %v4588, %v4676
        %4678 = vmatmul.bf16.gmra.mxu0 %v2799
        %v4679 = vpop.f32.mrf.mxu0
        %v4680 = vadd.f32 %v4591, %v4679
        %v4681 = vpop.f32.mrf.mxu0
        %v4682 = vadd.f32 %v4593, %v4681
        %4683 = vmatmul.bf16.gmra.mxu0 %v2800
        %v4684 = vpop.f32.mrf.mxu0
        %v4685 = vadd.f32 %v4596, %v4684
        %v4686 = vpop.f32.mrf.mxu0
        %v4687 = vadd.f32 %v4598, %v4686
        %4688 = vmatmul.bf16.gmra.mxu0 %v2801
        %v4689 = vpop.f32.mrf.mxu0
        %v4690 = vadd.f32 %v4601, %v4689
        %v4691 = vpop.f32.mrf.mxu0
        %v4692 = vadd.f32 %v4603, %v4691
        %4693 = vmatmul.bf16.gmra.mxu0 %v2802
        %v4694 = vpop.f32.mrf.mxu0
        %v4695 = vadd.f32 %v4606, %v4694
        %v4696 = vpop.f32.mrf.mxu0
        %v4697 = vadd.f32 %v4608, %v4696
        %4698 = vmatmul.bf16.gmra.mxu0 %v2803
        %v4699 = vpop.f32.mrf.mxu0
        %v4700 = vadd.f32 %v4611, %v4699
        %v4701 = vpop.f32.mrf.mxu0
        %v4702 = vadd.f32 %v4613, %v4701
        %4703 = vmatmul.bf16.gmra.mxu0 %v2804
        %v4704 = vpop.f32.mrf.mxu0
        %v4705 = vadd.f32 %v4616, %v4704
        %v4706 = vpop.f32.mrf.mxu0
        %v4707 = vadd.f32 %v4618, %v4706
        %4708 = vdwg.mxu0
        %4709 = vmatpush.bf16.msra.mxu0 %v3738
        %4710 = vmatpush.bf16.msra.mxu0 %v3737
        %4711 = vmatpush.bf16.msra.mxu0 %v3736
        %4712 = vmatpush.bf16.msra.mxu0 %v3735
        %4713 = vmatpush.bf16.msra.mxu0 %v3734
        %4714 = vmatpush.bf16.msra.mxu0 %v3733
        %4715 = vmatpush.bf16.msra.mxu0 %v3732
        %4716 = vmatpush.bf16.msra.mxu0 %v3731
        %4717 = vmatmul.bf16.gmra.mxu0 %v1973
        %v4718 = vpop.f32.mrf.mxu0
        %v4719 = vadd.f32 %v4630, %v4718
        %v4720 = vpop.f32.mrf.mxu0
        %v4721 = vadd.f32 %v4632, %v4720
        %4722 = vmatmul.bf16.gmra.mxu0 %v1975
        %v4723 = vpop.f32.mrf.mxu0
        %v4724 = vadd.f32 %v4635, %v4723
        %v4725 = vpop.f32.mrf.mxu0
        %v4726 = vadd.f32 %v4637, %v4725
        %4727 = vmatmul.bf16.gmra.mxu0 %v1977
        %v4728 = vpop.f32.mrf.mxu0
        %v4729 = vadd.f32 %v4640, %v4728
        %v4730 = vpop.f32.mrf.mxu0
        %v4731 = vadd.f32 %v4642, %v4730
        %4732 = vmatmul.bf16.gmra.mxu0 %v1979
        %v4733 = vpop.f32.mrf.mxu0
        %v4734 = vadd.f32 %v4645, %v4733
        %v4735 = vpop.f32.mrf.mxu0
        %v4736 = vadd.f32 %v4647, %v4735
        %4737 = vmatmul.bf16.gmra.mxu0 %v1981
        %v4738 = vpop.f32.mrf.mxu0
        %v4739 = vadd.f32 %v4650, %v4738
        %v4740 = vpop.f32.mrf.mxu0
        %v4741 = vadd.f32 %v4652, %v4740
        %4742 = vmatmul.bf16.gmra.mxu0 %v1983
        %v4743 = vpop.f32.mrf.mxu0
        %v4744 = vadd.f32 %v4655, %v4743
        %v4745 = vpop.f32.mrf.mxu0
        %v4746 = vadd.f32 %v4657, %v4745
        %4747 = vmatmul.bf16.gmra.mxu0 %v1985
        %v4748 = vpop.f32.mrf.mxu0
        %v4749 = vadd.f32 %v4660, %v4748
        %v4750 = vpop.f32.mrf.mxu0
        %v4751 = vadd.f32 %v4662, %v4750
        %4752 = vmatmul.bf16.gmra.mxu0 %v1987
        %v4753 = vpop.f32.mrf.mxu0
        %v4754 = vadd.f32 %v4665, %v4753
        %v4755 = vpop.f32.mrf.mxu0
        %v4756 = vadd.f32 %v4667, %v4755
        %4757 = vmatmul.bf16.gmra.mxu0 %v1989
        %v4758 = vpop.f32.mrf.mxu0
        %v4759 = vadd.f32 %v4670, %v4758
        %v4760 = vpop.f32.mrf.mxu0
        %v4761 = vadd.f32 %v4672, %v4760
        %4762 = vmatmul.bf16.gmra.mxu0 %v1991
        %v4763 = vpop.f32.mrf.mxu0
        %v4764 = vadd.f32 %v4675, %v4763
        %v4765 = vpop.f32.mrf.mxu0
        %v4766 = vadd.f32 %v4677, %v4765
        %4767 = vmatmul.bf16.gmra.mxu0 %v1993
        %v4768 = vpop.f32.mrf.mxu0
        %v4769 = vadd.f32 %v4680, %v4768
        %v4770 = vpop.f32.mrf.mxu0
        %v4771 = vadd.f32 %v4682, %v4770
        %4772 = vmatmul.bf16.gmra.mxu0 %v1995
        %v4773 = vpop.f32.mrf.mxu0
        %v4774 = vadd.f32 %v4685, %v4773
        %v4775 = vpop.f32.mrf.mxu0
        %v4776 = vadd.f32 %v4687, %v4775
        %4777 = vmatmul.bf16.gmra.mxu0 %v1997
        %v4778 = vpop.f32.mrf.mxu0
        %v4779 = vadd.f32 %v4690, %v4778
        %v4780 = vpop.f32.mrf.mxu0
        %v4781 = vadd.f32 %v4692, %v4780
        %4782 = vmatmul.bf16.gmra.mxu0 %v1999
        %v4783 = vpop.f32.mrf.mxu0
        %v4784 = vadd.f32 %v4695, %v4783
        %v4785 = vpop.f32.mrf.mxu0
        %v4786 = vadd.f32 %v4697, %v4785
        %4787 = vmatmul.bf16.gmra.mxu0 %v2001
        %v4788 = vpop.f32.mrf.mxu0
        %v4789 = vadd.f32 %v4700, %v4788
        %v4790 = vpop.f32.mrf.mxu0
        %v4791 = vadd.f32 %v4702, %v4790
        %4792 = vmatmul.bf16.gmra.mxu0 0
        %v4793 = vpop.f32.mrf.mxu0
        %v4794 = vadd.f32 %v4705, %v4793
        %v4795 = vpop.f32.mrf.mxu0
        %v4796 = vadd.f32 %v4707, %v4795
        %4797 = vdwg.mxu0
        %4798 = vmatpush.bf16.msra.mxu0 %v3746
        %4799 = vmatpush.bf16.msra.mxu0 %v3745
        %4800 = vmatpush.bf16.msra.mxu0 %v3744
        %4801 = vmatpush.bf16.msra.mxu0 %v3743
        %4802 = vmatpush.bf16.msra.mxu0 %v3742
        %4803 = vmatpush.bf16.msra.mxu0 %v3741
        %4804 = vmatpush.bf16.msra.mxu0 %v3740
        %4805 = vmatpush.bf16.msra.mxu0 %v3739
        %4806 = vmatmul.bf16.gmra.mxu0 %v2838
        %v4807 = vpop.f32.mrf.mxu0
        %v4808 = vadd.f32 %v4719, %v4807
        %v4809 = vpop.f32.mrf.mxu0
        %v4810 = vadd.f32 %v4721, %v4809
        %4811 = vmatmul.bf16.gmra.mxu0 %v2842
        %v4812 = vpop.f32.mrf.mxu0
        %v4813 = vadd.f32 %v4724, %v4812
        %v4814 = vpop.f32.mrf.mxu0
        %v4815 = vadd.f32 %v4726, %v4814
        %4816 = vmatmul.bf16.gmra.mxu0 %v2846
        %v4817 = vpop.f32.mrf.mxu0
        %v4818 = vadd.f32 %v4729, %v4817
        %v4819 = vpop.f32.mrf.mxu0
        %v4820 = vadd.f32 %v4731, %v4819
        %4821 = vmatmul.bf16.gmra.mxu0 %v2850
        %v4822 = vpop.f32.mrf.mxu0
        %v4823 = vadd.f32 %v4734, %v4822
        %v4824 = vpop.f32.mrf.mxu0
        %v4825 = vadd.f32 %v4736, %v4824
        %4826 = vmatmul.bf16.gmra.mxu0 %v2854
        %v4827 = vpop.f32.mrf.mxu0
        %v4828 = vadd.f32 %v4739, %v4827
        %v4829 = vpop.f32.mrf.mxu0
        %v4830 = vadd.f32 %v4741, %v4829
        %4831 = vmatmul.bf16.gmra.mxu0 %v2858
        %v4832 = vpop.f32.mrf.mxu0
        %v4833 = vadd.f32 %v4744, %v4832
        %v4834 = vpop.f32.mrf.mxu0
        %v4835 = vadd.f32 %v4746, %v4834
        %4836 = vmatmul.bf16.gmra.mxu0 %v2862
        %v4837 = vpop.f32.mrf.mxu0
        %v4838 = vadd.f32 %v4749, %v4837
        %v4839 = vpop.f32.mrf.mxu0
        %v4840 = vadd.f32 %v4751, %v4839
        %4841 = vmatmul.bf16.gmra.mxu0 %v2866
        %v4842 = vpop.f32.mrf.mxu0
        %v4843 = vadd.f32 %v4754, %v4842
        %v4844 = vpop.f32.mrf.mxu0
        %v4845 = vadd.f32 %v4756, %v4844
        %4846 = vmatmul.bf16.gmra.mxu0 %v2870
        %v4847 = vpop.f32.mrf.mxu0
        %v4848 = vadd.f32 %v4759, %v4847
        %v4849 = vpop.f32.mrf.mxu0
        %v4850 = vadd.f32 %v4761, %v4849
        %4851 = vmatmul.bf16.gmra.mxu0 %v2874
        %v4852 = vpop.f32.mrf.mxu0
        %v4853 = vadd.f32 %v4764, %v4852
        %v4854 = vpop.f32.mrf.mxu0
        %v4855 = vadd.f32 %v4766, %v4854
        %4856 = vmatmul.bf16.gmra.mxu0 %v2878
        %v4857 = vpop.f32.mrf.mxu0
        %v4858 = vadd.f32 %v4769, %v4857
        %v4859 = vpop.f32.mrf.mxu0
        %v4860 = vadd.f32 %v4771, %v4859
        %4861 = vmatmul.bf16.gmra.mxu0 %v2882
        %v4862 = vpop.f32.mrf.mxu0
        %v4863 = vadd.f32 %v4774, %v4862
        %v4864 = vpop.f32.mrf.mxu0
        %v4865 = vadd.f32 %v4776, %v4864
        %4866 = vmatmul.bf16.gmra.mxu0 %v2886
        %v4867 = vpop.f32.mrf.mxu0
        %v4868 = vadd.f32 %v4779, %v4867
        %v4869 = vpop.f32.mrf.mxu0
        %v4870 = vadd.f32 %v4781, %v4869
        %4871 = vmatmul.bf16.gmra.mxu0 %v2890
        %v4872 = vpop.f32.mrf.mxu0
        %v4873 = vadd.f32 %v4784, %v4872
        %v4874 = vpop.f32.mrf.mxu0
        %v4875 = vadd.f32 %v4786, %v4874
        %4876 = vmatmul.bf16.gmra.mxu0 %v3005
        %v4877 = vpop.f32.mrf.mxu0
        %v4878 = vadd.f32 %v4789, %v4877
        %v4879 = vpop.f32.mrf.mxu0
        %v4880 = vadd.f32 %v4791, %v4879
        %4881 = vmatmul.bf16.gmra.mxu0 %v2830
        %v4882 = vpop.f32.mrf.mxu0
        %v4883 = vadd.f32 %v4794, %v4882
        %v4884 = vpop.f32.mrf.mxu0
        %v4885 = vadd.f32 %v4796, %v4884
        %4886 = vdwg.mxu0
        %4887 = vmatpush.bf16.msra.mxu0 %v3754
        %4888 = vmatpush.bf16.msra.mxu0 %v3753
        %4889 = vmatpush.bf16.msra.mxu0 %v3752
        %4890 = vmatpush.bf16.msra.mxu0 %v3751
        %4891 = vmatpush.bf16.msra.mxu0 %v3750
        %4892 = vmatpush.bf16.msra.mxu0 %v3749
        %4893 = vmatpush.bf16.msra.mxu0 %v3748
        %4894 = vmatpush.bf16.msra.mxu0 %v3747
        %4895 = vmatmul.bf16.gmra.mxu0 %v2519
        %v4896 = vpop.f32.mrf.mxu0
        %v4897 = vadd.f32 %v4808, %v4896
        %v4898 = vpop.f32.mrf.mxu0
        %v4899 = vadd.f32 %v4810, %v4898
        %4900 = vmatmul.bf16.gmra.mxu0 %v2520
        %v4901 = vpop.f32.mrf.mxu0
        %v4902 = vadd.f32 %v4813, %v4901
        %v4903 = vpop.f32.mrf.mxu0
        %v4904 = vadd.f32 %v4815, %v4903
        %4905 = vmatmul.bf16.gmra.mxu0 %v2521
        %v4906 = vpop.f32.mrf.mxu0
        %v4907 = vadd.f32 %v4818, %v4906
        %v4908 = vpop.f32.mrf.mxu0
        %v4909 = vadd.f32 %v4820, %v4908
        %4910 = vmatmul.bf16.gmra.mxu0 %v2522
        %v4911 = vpop.f32.mrf.mxu0
        %v4912 = vadd.f32 %v4823, %v4911
        %v4913 = vpop.f32.mrf.mxu0
        %v4914 = vadd.f32 %v4825, %v4913
        %4915 = vmatmul.bf16.gmra.mxu0 %v2523
        %v4916 = vpop.f32.mrf.mxu0
        %v4917 = vadd.f32 %v4828, %v4916
        %v4918 = vpop.f32.mrf.mxu0
        %v4919 = vadd.f32 %v4830, %v4918
        %4920 = vmatmul.bf16.gmra.mxu0 %v2524
        %v4921 = vpop.f32.mrf.mxu0
        %v4922 = vadd.f32 %v4833, %v4921
        %v4923 = vpop.f32.mrf.mxu0
        %v4924 = vadd.f32 %v4835, %v4923
        %4925 = vmatmul.bf16.gmra.mxu0 %v2525
        %v4926 = vpop.f32.mrf.mxu0
        %v4927 = vadd.f32 %v4838, %v4926
        %v4928 = vpop.f32.mrf.mxu0
        %v4929 = vadd.f32 %v4840, %v4928
        %4930 = vmatmul.bf16.gmra.mxu0 %v2526
        %v4931 = vpop.f32.mrf.mxu0
        %v4932 = vadd.f32 %v4843, %v4931
        %v4933 = vpop.f32.mrf.mxu0
        %v4934 = vadd.f32 %v4845, %v4933
        %4935 = vmatmul.bf16.gmra.mxu0 %v2527
        %v4936 = vpop.f32.mrf.mxu0
        %v4937 = vadd.f32 %v4848, %v4936
        %v4938 = vpop.f32.mrf.mxu0
        %v4939 = vadd.f32 %v4850, %v4938
        %4940 = vmatmul.bf16.gmra.mxu0 %v2528
        %v4941 = vpop.f32.mrf.mxu0
        %v4942 = vadd.f32 %v4853, %v4941
        %v4943 = vpop.f32.mrf.mxu0
        %v4944 = vadd.f32 %v4855, %v4943
        %4945 = vmatmul.bf16.gmra.mxu0 %v2529
        %v4946 = vpop.f32.mrf.mxu0
        %v4947 = vadd.f32 %v4858, %v4946
        %v4948 = vpop.f32.mrf.mxu0
        %v4949 = vadd.f32 %v4860, %v4948
        %4950 = vmatmul.bf16.gmra.mxu0 %v2530
        %v4951 = vpop.f32.mrf.mxu0
        %v4952 = vadd.f32 %v4863, %v4951
        %v4953 = vpop.f32.mrf.mxu0
        %v4954 = vadd.f32 %v4865, %v4953
        %4955 = vmatmul.bf16.gmra.mxu0 %v2531
        %v4956 = vpop.f32.mrf.mxu0
        %v4957 = vadd.f32 %v4868, %v4956
        %v4958 = vpop.f32.mrf.mxu0
        %v4959 = vadd.f32 %v4870, %v4958
        %4960 = vmatmul.bf16.gmra.mxu0 %v2532
        %v4961 = vpop.f32.mrf.mxu0
        %v4962 = vadd.f32 %v4873, %v4961
        %v4963 = vpop.f32.mrf.mxu0
        %v4964 = vadd.f32 %v4875, %v4963
        %4965 = vmatmul.bf16.gmra.mxu0 %v2825
        %v4966 = vpop.f32.mrf.mxu0
        %v4967 = vadd.f32 %v4878, %v4966
        %v4968 = vpop.f32.mrf.mxu0
        %v4969 = vadd.f32 %v4880, %v4968
        %4970 = vmatmul.bf16.gmra.mxu0 %v2456
        %v4971 = vpop.f32.mrf.mxu0
        %v4972 = vadd.f32 %v4883, %v4971
        %v4973 = vpop.f32.mrf.mxu0
        %v4974 = vadd.f32 %v4885, %v4973
        %4975 = vdwg.mxu0
        %4976 = vmatpush.bf16.msra.mxu0 %v3762
        %4977 = vmatpush.bf16.msra.mxu0 %v3761
        %4978 = vmatpush.bf16.msra.mxu0 %v3760
        %4979 = vmatpush.bf16.msra.mxu0 %v3759
        %4980 = vmatpush.bf16.msra.mxu0 %v3758
        %4981 = vmatpush.bf16.msra.mxu0 %v3757
        %4982 = vmatpush.bf16.msra.mxu0 %v3756
        %4983 = vmatpush.bf16.msra.mxu0 %v3755
        %4984 = vmatmul.bf16.gmra.mxu0 %v2424
        %v4985 = vpop.f32.mrf.mxu0
        %v4986 = vadd.f32 %v4897, %v4985
        %v4987 = vpop.f32.mrf.mxu0
        %v4988 = vadd.f32 %v4899, %v4987
        %4989 = vmatmul.bf16.gmra.mxu0 %v2426
        %v4990 = vpop.f32.mrf.mxu0
        %v4991 = vadd.f32 %v4902, %v4990
        %v4992 = vpop.f32.mrf.mxu0
        %v4993 = vadd.f32 %v4904, %v4992
        %4994 = vmatmul.bf16.gmra.mxu0 %v2428
        %v4995 = vpop.f32.mrf.mxu0
        %v4996 = vadd.f32 %v4907, %v4995
        %v4997 = vpop.f32.mrf.mxu0
        %v4998 = vadd.f32 %v4909, %v4997
        %4999 = vmatmul.bf16.gmra.mxu0 %v2430
        %v5000 = vpop.f32.mrf.mxu0
        %v5001 = vadd.f32 %v4912, %v5000
        %v5002 = vpop.f32.mrf.mxu0
        %v5003 = vadd.f32 %v4914, %v5002
        %5004 = vmatmul.bf16.gmra.mxu0 %v2432
        %v5005 = vpop.f32.mrf.mxu0
        %v5006 = vadd.f32 %v4917, %v5005
        %v5007 = vpop.f32.mrf.mxu0
        %v5008 = vadd.f32 %v4919, %v5007
        %5009 = vmatmul.bf16.gmra.mxu0 %v2434
        %v5010 = vpop.f32.mrf.mxu0
        %v5011 = vadd.f32 %v4922, %v5010
        %v5012 = vpop.f32.mrf.mxu0
        %v5013 = vadd.f32 %v4924, %v5012
        %5014 = vmatmul.bf16.gmra.mxu0 %v2436
        %v5015 = vpop.f32.mrf.mxu0
        %v5016 = vadd.f32 %v4927, %v5015
        %v5017 = vpop.f32.mrf.mxu0
        %v5018 = vadd.f32 %v4929, %v5017
        %5019 = vmatmul.bf16.gmra.mxu0 %v2438
        %v5020 = vpop.f32.mrf.mxu0
        %v5021 = vadd.f32 %v4932, %v5020
        %v5022 = vpop.f32.mrf.mxu0
        %v5023 = vadd.f32 %v4934, %v5022
        %5024 = vmatmul.bf16.gmra.mxu0 %v2440
        %v5025 = vpop.f32.mrf.mxu0
        %v5026 = vadd.f32 %v4937, %v5025
        %v5027 = vpop.f32.mrf.mxu0
        %v5028 = vadd.f32 %v4939, %v5027
        %5029 = vmatmul.bf16.gmra.mxu0 %v2442
        %v5030 = vpop.f32.mrf.mxu0
        %v5031 = vadd.f32 %v4942, %v5030
        %v5032 = vpop.f32.mrf.mxu0
        %v5033 = vadd.f32 %v4944, %v5032
        %5034 = vmatmul.bf16.gmra.mxu0 %v2444
        %v5035 = vpop.f32.mrf.mxu0
        %v5036 = vadd.f32 %v4947, %v5035
        %v5037 = vpop.f32.mrf.mxu0
        %v5038 = vadd.f32 %v4949, %v5037
        %5039 = vmatmul.bf16.gmra.mxu0 %v2446
        %v5040 = vpop.f32.mrf.mxu0
        %v5041 = vadd.f32 %v4952, %v5040
        %v5042 = vpop.f32.mrf.mxu0
        %v5043 = vadd.f32 %v4954, %v5042
        %5044 = vmatmul.bf16.gmra.mxu0 %v2448
        %v5045 = vpop.f32.mrf.mxu0
        %v5046 = vadd.f32 %v4957, %v5045
        %v5047 = vpop.f32.mrf.mxu0
        %v5048 = vadd.f32 %v4959, %v5047
        %5049 = vmatmul.bf16.gmra.mxu0 %v2450
        %v5050 = vpop.f32.mrf.mxu0
        %v5051 = vadd.f32 %v4962, %v5050
        %v5052 = vpop.f32.mrf.mxu0
        %v5053 = vadd.f32 %v4964, %v5052
        %5054 = vmatmul.bf16.gmra.mxu0 %v2452
        %v5055 = vpop.f32.mrf.mxu0
        %v5056 = vadd.f32 %v4967, %v5055
        %v5057 = vpop.f32.mrf.mxu0
        %v5058 = vadd.f32 %v4969, %v5057
        %5059 = vmatmul.bf16.gmra.mxu0 0
        %v5060 = vpop.f32.mrf.mxu0
        %v5061 = vadd.f32 %v4972, %v5060
        %v5062 = vpop.f32.mrf.mxu0
        %v5063 = vadd.f32 %v4974, %v5062
        %5064 = vdwg.mxu0
        %5065 = vmatpush.bf16.msra.mxu0 0
        %5066 = vmatpush.bf16.msra.mxu0 0
        %5067 = vmatpush.bf16.msra.mxu0 0
        %5068 = vmatpush.bf16.msra.mxu0 0
        %5069 = vmatpush.bf16.msra.mxu0 %v3766
        %5070 = vmatpush.bf16.msra.mxu0 %v3765
        %5071 = vmatpush.bf16.msra.mxu0 %v3764
        %5072 = vmatpush.bf16.msra.mxu0 %v3763
        %5073 = vmatmul.bf16.gmra.mxu0 %v3875
        %v5074 = vpop.f32.mrf.mxu0
        %v5075 = vadd.f32 %v4986, %v5074
        %v5076 = vpop.f32.mrf.mxu0
        %v5077 = vadd.f32 %v4988, %v5076
        %5078 = vmatmul.bf16.gmra.mxu0 %v3877
        %v5079 = vpop.f32.mrf.mxu0
        %v5080 = vadd.f32 %v4991, %v5079
        %v5081 = vpop.f32.mrf.mxu0
        %v5082 = vadd.f32 %v4993, %v5081
        %5083 = vmatmul.bf16.gmra.mxu0 %v3879
        %v5084 = vpop.f32.mrf.mxu0
        %v5085 = vadd.f32 %v4996, %v5084
        %v5086 = vpop.f32.mrf.mxu0
        %v5087 = vadd.f32 %v4998, %v5086
        %5088 = vmatmul.bf16.gmra.mxu0 %v3881
        %v5089 = vpop.f32.mrf.mxu0
        %v5090 = vadd.f32 %v5001, %v5089
        %v5091 = vpop.f32.mrf.mxu0
        %v5092 = vadd.f32 %v5003, %v5091
        %5093 = vmatmul.bf16.gmra.mxu0 %v3883
        %v5094 = vpop.f32.mrf.mxu0
        %v5095 = vadd.f32 %v5006, %v5094
        %v5096 = vpop.f32.mrf.mxu0
        %v5097 = vadd.f32 %v5008, %v5096
        %5098 = vmatmul.bf16.gmra.mxu0 %v3885
        %v5099 = vpop.f32.mrf.mxu0
        %v5100 = vadd.f32 %v5011, %v5099
        %v5101 = vpop.f32.mrf.mxu0
        %v5102 = vadd.f32 %v5013, %v5101
        %5103 = vmatmul.bf16.gmra.mxu0 %v3887
        %v5104 = vpop.f32.mrf.mxu0
        %v5105 = vadd.f32 %v5016, %v5104
        %v5106 = vpop.f32.mrf.mxu0
        %v5107 = vadd.f32 %v5018, %v5106
        %5108 = vmatmul.bf16.gmra.mxu0 %v3889
        %v5109 = vpop.f32.mrf.mxu0
        %v5110 = vadd.f32 %v5021, %v5109
        %v5111 = vpop.f32.mrf.mxu0
        %v5112 = vadd.f32 %v5023, %v5111
        %5113 = vmatmul.bf16.gmra.mxu0 %v3891
        %v5114 = vpop.f32.mrf.mxu0
        %v5115 = vadd.f32 %v5026, %v5114
        %v5116 = vpop.f32.mrf.mxu0
        %v5117 = vadd.f32 %v5028, %v5116
        %5118 = vmatmul.bf16.gmra.mxu0 %v3893
        %v5119 = vpop.f32.mrf.mxu0
        %v5120 = vadd.f32 %v5031, %v5119
        %v5121 = vpop.f32.mrf.mxu0
        %v5122 = vadd.f32 %v5033, %v5121
        %5123 = vmatmul.bf16.gmra.mxu0 %v3895
        %v5124 = vpop.f32.mrf.mxu0
        %v5125 = vadd.f32 %v5036, %v5124
        %v5126 = vpop.f32.mrf.mxu0
        %v5127 = vadd.f32 %v5038, %v5126
        %5128 = vmatmul.bf16.gmra.mxu0 %v3897
        %v5129 = vpop.f32.mrf.mxu0
        %v5130 = vadd.f32 %v5041, %v5129
        %v5131 = vpop.f32.mrf.mxu0
        %v5132 = vadd.f32 %v5043, %v5131
        %5133 = vmatmul.bf16.gmra.mxu0 %v3899
        %v5134 = vpop.f32.mrf.mxu0
        %v5135 = vadd.f32 %v5046, %v5134
        %v5136 = vpop.f32.mrf.mxu0
        %v5137 = vadd.f32 %v5048, %v5136
        %5138 = vmatmul.bf16.gmra.mxu0 %v3901
        %v5139 = vpop.f32.mrf.mxu0
        %v5140 = vadd.f32 %v5051, %v5139
        %v5141 = vpop.f32.mrf.mxu0
        %v5142 = vadd.f32 %v5053, %v5141
        %5143 = vmatmul.bf16.gmra.mxu0 %v3904
        %v5144 = vpop.f32.mrf.mxu0
        %v5145 = vadd.f32 %v5056, %v5144
        %v5146 = vpop.f32.mrf.mxu0
        %v5147 = vadd.f32 %v5058, %v5146
        %5148 = vmatmul.bf16.gmra.mxu0 %v3906
        %v5149 = vpop.f32.mrf.mxu0
        %v5150 = vadd.f32 %v5061, %v5149
        %v5151 = vpop.f32.mrf.mxu0
        %v5152 = vadd.f32 %v5063, %v5151
        %5153 = vdwg.mxu0
        %v5154 = vmax.f32 %v5075, 0.0
        %v5155 = vmax.f32 %v5077, 0.0
        %v5156 = vmax.f32 %v5080, 0.0
        %v5157 = vmax.f32 %v5082, 0.0
        %v5158 = vmax.f32 %v5085, 0.0
        %v5159 = vmax.f32 %v5087, 0.0
        %v5160 = vmax.f32 %v5090, 0.0
        %v5161 = vmax.f32 %v5092, 0.0
        %v5162 = vmax.f32 %v5095, 0.0
        %v5163 = vmax.f32 %v5097, 0.0
        %v5164 = vmax.f32 %v5100, 0.0
        %v5165 = vmax.f32 %v5102, 0.0
        %v5166 = vmax.f32 %v5105, 0.0
        %v5167 = vmax.f32 %v5107, 0.0
        %v5168 = vmax.f32 %v5110, 0.0
        %v5169 = vmax.f32 %v5112, 0.0
        %v5170 = vmax.f32 %v5115, 0.0
        %v5171 = vmax.f32 %v5117, 0.0
        %v5172 = vmax.f32 %v5120, 0.0
        %v5173 = vmax.f32 %v5122, 0.0
        %v5174 = vmax.f32 %v5125, 0.0
        %v5175 = vmax.f32 %v5127, 0.0
        %v5176 = vmax.f32 %v5130, 0.0
        %v5177 = vmax.f32 %v5132, 0.0
        %v5178 = vmax.f32 %v5135, 0.0
        %v5179 = vmax.f32 %v5137, 0.0
        %v5180 = vmax.f32 %v5140, 0.0
        %v5181 = vmax.f32 %v5142, 0.0
        %v5182 = vmax.f32 %v5145, 0.0
        %v5183 = vmax.f32 %v5147, 0.0
        %v5184 = vmax.f32 %v5150, 0.0
        %v5185 = vmax.f32 %v5152, 0.0
        %v5186 = vpack.c.bf16 %v5154, %v5154
        %v5187 = vpack.c.bf16 %v5155, %v5155
        %v5188 = vpack.c.bf16 %v5156, %v5156
        %v5189 = vpack.c.bf16 %v5157, %v5157
        %v5190 = vpack.c.bf16 %v5158, %v5158
        %v5191 = vpack.c.bf16 %v5159, %v5159
        %v5192 = vpack.c.bf16 %v5160, %v5160
        %v5193 = vpack.c.bf16 %v5161, %v5161
        %v5194 = vpack.c.bf16 %v5162, %v5162
        %v5195 = vpack.c.bf16 %v5163, %v5163
        %v5196 = vpack.c.bf16 %v5164, %v5164
        %v5197 = vpack.c.bf16 %v5165, %v5165
        %v5198 = vpack.c.bf16 %v5166, %v5166
        %v5199 = vpack.c.bf16 %v5167, %v5167
        %v5200 = vpack.c.bf16 %v5168, %v5168
        %v5201 = vpack.c.bf16 %v5169, %v5169
        %v5202 = vpack.c.bf16 %v5170, %v5170
        %v5203 = vpack.c.bf16 %v5171, %v5171
        %v5204 = vpack.c.bf16 %v5172, %v5172
        %v5205 = vpack.c.bf16 %v5173, %v5173
        %v5206 = vpack.c.bf16 %v5174, %v5174
        %v5207 = vpack.c.bf16 %v5175, %v5175
        %v5208 = vpack.c.bf16 %v5176, %v5176
        %v5209 = vpack.c.bf16 %v5177, %v5177
        %v5210 = vpack.c.bf16 %v5178, %v5178
        %v5211 = vpack.c.bf16 %v5179, %v5179
        %v5212 = vpack.c.bf16 %v5180, %v5180
        %v5213 = vpack.c.bf16 %v5181, %v5181
        %v5214 = vpack.c.bf16 %v5182, %v5182
        %v5215 = vpack.c.bf16 %v5183, %v5183
        %v5216 = vpack.c.bf16 %v5184, %v5184
        %v5217 = vpack.c.bf16 %v5185, %v5185
        %v5250 = vunpack.c.l.b16 %v5186
        %v5251 = vunpack.c.l.b16 %v5187
        %v5252 = vunpack.c.l.b16 %v5188
        %v5253 = vunpack.c.l.b16 %v5189
        %v5254 = vunpack.c.l.b16 %v5190
        %v5255 = vunpack.c.l.b16 %v5191
        %v5256 = vunpack.c.l.b16 %v5192
        %v5257 = vunpack.c.l.b16 %v5193
        %v5258 = vunpack.c.l.b16 %v5194
        %v5259 = vunpack.c.l.b16 %v5195
        %v5260 = vunpack.c.l.b16 %v5196
        %v5261 = vunpack.c.l.b16 %v5197
        %v5262 = vunpack.c.l.b16 %v5198
        %v5263 = vunpack.c.l.b16 %v5199
        %v5264 = vunpack.c.l.b16 %v5200
        %v5265 = vunpack.c.l.b16 %v5201
        %v5266 = vunpack.c.l.b16 %v5202
        %v5267 = vunpack.c.l.b16 %v5203
        %v5268 = vunpack.c.l.b16 %v5204
        %v5269 = vunpack.c.l.b16 %v5205
        %v5270 = vunpack.c.l.b16 %v5206
        %v5271 = vunpack.c.l.b16 %v5207
        %v5272 = vunpack.c.l.b16 %v5208
        %v5273 = vunpack.c.l.b16 %v5209
        %v5274 = vunpack.c.l.b16 %v5210
        %v5275 = vunpack.c.l.b16 %v5211
        %v5276 = vunpack.c.l.b16 %v5212
        %v5277 = vunpack.c.l.b16 %v5213
        %v5278 = vunpack.c.l.b16 %v5214
        %v5279 = vunpack.c.l.b16 %v5215
        %v5280 = vunpack.c.l.b16 %v5216
        %v5281 = vunpack.c.l.b16 %v5217
        %v5282 = vpack.c.b16 %v5251, %v5250
        %v5283 = vpack.c.b16 %v5253, %v5252
        %v5284 = vpack.c.b16 %v5255, %v5254
        %v5285 = vpack.c.b16 %v5257, %v5256
        %v5286 = vpack.c.b16 %v5259, %v5258
        %v5287 = vpack.c.b16 %v5261, %v5260
        %v5288 = vpack.c.b16 %v5263, %v5262
        %v5289 = vpack.c.b16 %v5265, %v5264
        %v5290 = vpack.c.b16 %v5267, %v5266
        %v5291 = vpack.c.b16 %v5269, %v5268
        %v5292 = vpack.c.b16 %v5271, %v5270
        %v5293 = vpack.c.b16 %v5273, %v5272
        %v5294 = vpack.c.b16 %v5275, %v5274
        %v5295 = vpack.c.b16 %v5277, %v5276
        %v5296 = vpack.c.b16 %v5279, %v5278
        %v5297 = vpack.c.b16 %v5281, %v5280
        %v5299 = vshrl.u32 %v5282, 16
        %v5301 = vrot.slane %v5299, 7
        %v5302 = vshll.u32 %v5282, 16
        %v5304 = vor.u32 %v5301, %v5302
        %v5306 = vshrl.u32 %v5283, 16
        %v5308 = vrot.slane %v5306, 7
        %v5309 = vshll.u32 %v5283, 16
        %v5311 = vor.u32 %v5308, %v5309
        %v5312 = vsel %vm1392, %v5301, %v5311
        %v5314 = vshrl.u32 %v5284, 16
        %v5316 = vrot.slane %v5314, 7
        %v5317 = vshll.u32 %v5284, 16
        %v5319 = vor.u32 %v5316, %v5317
        %v5320 = vsel %vm1392, %v5308, %v5319
        %v5322 = vshrl.u32 %v5285, 16
        %v5324 = vrot.slane %v5322, 7
        %v5325 = vshll.u32 %v5285, 16
        %v5327 = vor.u32 %v5324, %v5325
        %v5328 = vsel %vm1392, %v5316, %v5327
        %v5330 = vshrl.u32 %v5286, 16
        %v5332 = vrot.slane %v5330, 7
        %v5333 = vshll.u32 %v5286, 16
        %v5335 = vor.u32 %v5332, %v5333
        %v5336 = vsel %vm1392, %v5324, %v5335
        %v5338 = vshrl.u32 %v5287, 16
        %v5340 = vrot.slane %v5338, 7
        %v5341 = vshll.u32 %v5287, 16
        %v5343 = vor.u32 %v5340, %v5341
        %v5344 = vsel %vm1392, %v5332, %v5343
        %v5346 = vshrl.u32 %v5288, 16
        %v5348 = vrot.slane %v5346, 7
        %v5349 = vshll.u32 %v5288, 16
        %v5351 = vor.u32 %v5348, %v5349
        %v5352 = vsel %vm1392, %v5340, %v5351
        %v5354 = vshrl.u32 %v5289, 16
        %v5356 = vrot.slane %v5354, 7
        %v5357 = vshll.u32 %v5289, 16
        %v5359 = vor.u32 %v5356, %v5357
        %v5360 = vsel %vm1392, %v5348, %v5359
        %v5362 = vshrl.u32 %v5290, 16
        %v5364 = vrot.slane %v5362, 7
        %v5365 = vshll.u32 %v5290, 16
        %v5367 = vor.u32 %v5364, %v5365
        %v5368 = vsel %vm1392, %v5356, %v5367
        %v5370 = vshrl.u32 %v5291, 16
        %v5372 = vrot.slane %v5370, 7
        %v5373 = vshll.u32 %v5291, 16
        %v5375 = vor.u32 %v5372, %v5373
        %v5376 = vsel %vm1392, %v5364, %v5375
        %v5378 = vshrl.u32 %v5292, 16
        %v5380 = vrot.slane %v5378, 7
        %v5381 = vshll.u32 %v5292, 16
        %v5383 = vor.u32 %v5380, %v5381
        %v5384 = vsel %vm1392, %v5372, %v5383
        %v5386 = vshrl.u32 %v5293, 16
        %v5388 = vrot.slane %v5386, 7
        %v5389 = vshll.u32 %v5293, 16
        %v5391 = vor.u32 %v5388, %v5389
        %v5392 = vsel %vm1392, %v5380, %v5391
        %v5394 = vshrl.u32 %v5294, 16
        %v5396 = vrot.slane %v5394, 7
        %v5397 = vshll.u32 %v5294, 16
        %v5399 = vor.u32 %v5396, %v5397
        %v5400 = vsel %vm1392, %v5388, %v5399
        %v5402 = vshrl.u32 %v5295, 16
        %v5404 = vrot.slane %v5402, 7
        %v5405 = vshll.u32 %v5295, 16
        %v5407 = vor.u32 %v5404, %v5405
        %v5408 = vsel %vm1392, %v5396, %v5407
        %v5410 = vshrl.u32 %v5296, 16
        %v5412 = vrot.slane %v5410, 7
        %v5413 = vshll.u32 %v5296, 16
        %v5415 = vor.u32 %v5412, %v5413
        %v5416 = vsel %vm1392, %v5404, %v5415
        %v5418 = vshrl.u32 %v5297, 16
        %v5420 = vrot.slane %v5418, 7
        %v5421 = vshll.u32 %v5297, 16
        %v5423 = vor.u32 %v5420, %v5421
        %v5424 = vsel %vm1392, %v5412, %v5423
        %v5441 = vsel %vm1680, 0, %v5304
        %v5442 = vsel %vm1865, %v5441, 0
        %v5443 = vsel %vm1872, %v5312, 0
        %v5444 = vsel %vm1879, %v5320, 0
        %v5445 = vsel %vm1886, %v5328, 0
        %v5446 = vsel %vm1893, %v5336, 0
        %v5447 = vsel %vm1900, %v5344, 0
        %v5448 = vsel %vm1907, %v5352, 0
        %v5449 = vsel %vm1914, %v5360, 0
        %v5450 = vsel %vm1921, %v5368, 0
        %v5451 = vsel %vm1928, %v5376, 0
        %v5452 = vsel %vm1935, %v5384, 0
        %v5453 = vsel %vm1942, %v5392, 0
        %v5454 = vsel %vm1949, %v5400, 0
        %v5455 = vsel %vm1956, %v5408, 0
        %v5456 = vsel %vm1963, %v5416, 0
        %v5457 = vsel %vm1970, %v5424, 0
        %v5458 = vrot.slane %v5302, 1
        %v5459 = vor.u32 %v5299, %v5458
        %v5460 = vrot.slane %v5309, 1
        %v5461 = vsel %vm2003, %v5459, %v5460
        %v5462 = vor.u32 %v5306, %v5460
        %v5463 = vrot.slane %v5317, 1
        %v5464 = vsel %vm2003, %v5462, %v5463
        %v5465 = vor.u32 %v5314, %v5463
        %v5466 = vrot.slane %v5325, 1
        %v5467 = vsel %vm2003, %v5465, %v5466
        %v5468 = vor.u32 %v5322, %v5466
        %v5469 = vrot.slane %v5333, 1
        %v5470 = vsel %vm2003, %v5468, %v5469
        %v5471 = vor.u32 %v5330, %v5469
        %v5472 = vrot.slane %v5341, 1
        %v5473 = vsel %vm2003, %v5471, %v5472
        %v5474 = vor.u32 %v5338, %v5472
        %v5475 = vrot.slane %v5349, 1
        %v5476 = vsel %vm2003, %v5474, %v5475
        %v5477 = vor.u32 %v5346, %v5475
        %v5478 = vrot.slane %v5357, 1
        %v5479 = vsel %vm2003, %v5477, %v5478
        %v5480 = vor.u32 %v5354, %v5478
        %v5481 = vrot.slane %v5365, 1
        %v5482 = vsel %vm2003, %v5480, %v5481
        %v5483 = vor.u32 %v5362, %v5481
        %v5484 = vrot.slane %v5373, 1
        %v5485 = vsel %vm2003, %v5483, %v5484
        %v5486 = vor.u32 %v5370, %v5484
        %v5487 = vrot.slane %v5381, 1
        %v5488 = vsel %vm2003, %v5486, %v5487
        %v5489 = vor.u32 %v5378, %v5487
        %v5490 = vrot.slane %v5389, 1
        %v5491 = vsel %vm2003, %v5489, %v5490
        %v5492 = vor.u32 %v5386, %v5490
        %v5493 = vrot.slane %v5397, 1
        %v5494 = vsel %vm2003, %v5492, %v5493
        %v5495 = vor.u32 %v5394, %v5493
        %v5496 = vrot.slane %v5405, 1
        %v5497 = vsel %vm2003, %v5495, %v5496
        %v5498 = vor.u32 %v5402, %v5496
        %v5499 = vrot.slane %v5413, 1
        %v5500 = vsel %vm2003, %v5498, %v5499
        %v5501 = vor.u32 %v5410, %v5499
        %v5502 = vrot.slane %v5421, 1
        %v5503 = vsel %vm2003, %v5501, %v5502
        %v5504 = vor.u32 %v5418, %v5502
        %v5521 = vsel %vm2131, %v5504, 0
        %v5522 = vsel %vm2316, %v5461, 0
        %v5523 = vsel %vm2323, %v5464, 0
        %v5524 = vsel %vm2330, %v5467, 0
        %v5525 = vsel %vm2337, %v5470, 0
        %v5526 = vsel %vm2344, %v5473, 0
        %v5527 = vsel %vm2351, %v5476, 0
        %v5528 = vsel %vm2358, %v5479, 0
        %v5529 = vsel %vm2365, %v5482, 0
        %v5530 = vsel %vm2372, %v5485, 0
        %v5531 = vsel %vm2379, %v5488, 0
        %v5532 = vsel %vm2386, %v5491, 0
        %v5533 = vsel %vm2393, %v5494, 0
        %v5534 = vsel %vm2400, %v5497, 0
        %v5535 = vsel %vm2407, %v5500, 0
        %v5536 = vsel %vm2414, %v5503, 0
        %v5537 = vsel %vm2421, %v5521, 0
        %5538 = vrot.lane.b32.xlu0 %v5282, 64
        %v5539 = vpop.permute.xlu0 %5538
        %5540 = vrot.lane.b32.xlu0 %v5283, 64
        %v5541 = vpop.permute.xlu0 %5540
        %5542 = vrot.lane.b32.xlu0 %v5284, 64
        %v5543 = vpop.permute.xlu0 %5542
        %5544 = vrot.lane.b32.xlu0 %v5285, 64
        %v5545 = vpop.permute.xlu0 %5544
        %5546 = vrot.lane.b32.xlu0 %v5286, 64
        %v5547 = vpop.permute.xlu0 %5546
        %5548 = vrot.lane.b32.xlu0 %v5287, 64
        %v5549 = vpop.permute.xlu0 %5548
        %5550 = vrot.lane.b32.xlu0 %v5288, 64
        %v5551 = vpop.permute.xlu0 %5550
        %5552 = vrot.lane.b32.xlu0 %v5289, 64
        %v5553 = vpop.permute.xlu0 %5552
        %5554 = vrot.lane.b32.xlu0 %v5290, 64
        %v5555 = vpop.permute.xlu0 %5554
        %5556 = vrot.lane.b32.xlu0 %v5291, 64
        %v5557 = vpop.permute.xlu0 %5556
        %5558 = vrot.lane.b32.xlu0 %v5292, 64
        %v5559 = vpop.permute.xlu0 %5558
        %5560 = vrot.lane.b32.xlu0 %v5293, 64
        %v5561 = vpop.permute.xlu0 %5560
        %5562 = vrot.lane.b32.xlu0 %v5294, 64
        %v5563 = vpop.permute.xlu0 %5562
        %5564 = vrot.lane.b32.xlu0 %v5295, 64
        %v5565 = vpop.permute.xlu0 %5564
        %5566 = vrot.lane.b32.xlu0 %v5296, 64
        %v5567 = vpop.permute.xlu0 %5566
        %5584 = vrot.lane.b32.xlu0 %v5442, 64
        %v5585 = vpop.permute.xlu0 %5584
        %5586 = vrot.lane.b32.xlu0 %v5443, 64
        %v5587 = vpop.permute.xlu0 %5586
        %5588 = vrot.lane.b32.xlu0 %v5444, 64
        %v5589 = vpop.permute.xlu0 %5588
        %5590 = vrot.lane.b32.xlu0 %v5445, 64
        %v5591 = vpop.permute.xlu0 %5590
        %5592 = vrot.lane.b32.xlu0 %v5446, 64
        %v5593 = vpop.permute.xlu0 %5592
        %5594 = vrot.lane.b32.xlu0 %v5447, 64
        %v5595 = vpop.permute.xlu0 %5594
        %5596 = vrot.lane.b32.xlu0 %v5448, 64
        %v5597 = vpop.permute.xlu0 %5596
        %5598 = vrot.lane.b32.xlu0 %v5449, 64
        %v5599 = vpop.permute.xlu0 %5598
        %5600 = vrot.lane.b32.xlu0 %v5450, 64
        %v5601 = vpop.permute.xlu0 %5600
        %5602 = vrot.lane.b32.xlu0 %v5451, 64
        %v5603 = vpop.permute.xlu0 %5602
        %5604 = vrot.lane.b32.xlu0 %v5452, 64
        %v5605 = vpop.permute.xlu0 %5604
        %5606 = vrot.lane.b32.xlu0 %v5453, 64
        %v5607 = vpop.permute.xlu0 %5606
        %5608 = vrot.lane.b32.xlu0 %v5454, 64
        %v5609 = vpop.permute.xlu0 %5608
        %5610 = vrot.lane.b32.xlu0 %v5455, 64
        %v5611 = vpop.permute.xlu0 %5610
        %5612 = vrot.lane.b32.xlu0 %v5456, 64
        %v5613 = vpop.permute.xlu0 %5612
        %5614 = vrot.lane.b32.xlu0 %v5457, 64
        %v5615 = vpop.permute.xlu0 %5614
        %5632 = vrot.lane.b32.xlu0 %v5522, 64
        %v5633 = vpop.permute.xlu0 %5632
        %5634 = vrot.lane.b32.xlu0 %v5523, 64
        %v5635 = vpop.permute.xlu0 %5634
        %5636 = vrot.lane.b32.xlu0 %v5524, 64
        %v5637 = vpop.permute.xlu0 %5636
        %5638 = vrot.lane.b32.xlu0 %v5525, 64
        %v5639 = vpop.permute.xlu0 %5638
        %5640 = vrot.lane.b32.xlu0 %v5526, 64
        %v5641 = vpop.permute.xlu0 %5640
        %5642 = vrot.lane.b32.xlu0 %v5527, 64
        %v5643 = vpop.permute.xlu0 %5642
        %5644 = vrot.lane.b32.xlu0 %v5528, 64
        %v5645 = vpop.permute.xlu0 %5644
        %5646 = vrot.lane.b32.xlu0 %v5529, 64
        %v5647 = vpop.permute.xlu0 %5646
        %5648 = vrot.lane.b32.xlu0 %v5530, 64
        %v5649 = vpop.permute.xlu0 %5648
        %5650 = vrot.lane.b32.xlu0 %v5531, 64
        %v5651 = vpop.permute.xlu0 %5650
        %5652 = vrot.lane.b32.xlu0 %v5532, 64
        %v5653 = vpop.permute.xlu0 %5652
        %5654 = vrot.lane.b32.xlu0 %v5533, 64
        %v5655 = vpop.permute.xlu0 %5654
        %5656 = vrot.lane.b32.xlu0 %v5534, 64
        %v5657 = vpop.permute.xlu0 %5656
        %5658 = vrot.lane.b32.xlu0 %v5535, 64
        %v5659 = vpop.permute.xlu0 %5658
        %5660 = vrot.lane.b32.xlu0 %v5536, 64
        %v5661 = vpop.permute.xlu0 %5660
        %5662 = vrot.lane.b32.xlu0 %v5537, 64
        %v5663 = vpop.permute.xlu0 %5662
        %5664 = vrot.lane.b32.xlu0 %v5297, 64
        %v5665 = vpop.permute.xlu0 %5664
        %v5668 = vsel %vm2827, %v5442, %v5539
        %v5672 = vsel %vm2827, %v5443, %v5541
        %v5676 = vsel %vm2827, %v5444, %v5543
        %v5680 = vsel %vm2827, %v5445, %v5545
        %v5684 = vsel %vm2827, %v5446, %v5547
        %v5688 = vsel %vm2827, %v5447, %v5549
        %v5692 = vsel %vm2827, %v5448, %v5551
        %v5696 = vsel %vm2827, %v5449, %v5553
        %v5700 = vsel %vm2827, %v5450, %v5555
        %v5704 = vsel %vm2827, %v5451, %v5557
        %v5708 = vsel %vm2827, %v5452, %v5559
        %v5712 = vsel %vm2827, %v5453, %v5561
        %v5716 = vsel %vm2827, %v5454, %v5563
        %v5720 = vsel %vm2827, %v5455, %v5565
        %v5724 = vsel %vm2827, %v5456, %v5567
        %v5727 = vsel %vm2827, 0, %v5585
        %v5731 = vsel %vm2827, %v5522, %v5587
        %v5735 = vsel %vm2827, %v5523, %v5589
        %v5739 = vsel %vm2827, %v5524, %v5591
        %v5743 = vsel %vm2827, %v5525, %v5593
        %v5747 = vsel %vm2827, %v5526, %v5595
        %v5751 = vsel %vm2827, %v5527, %v5597
        %v5755 = vsel %vm2827, %v5528, %v5599
        %v5759 = vsel %vm2827, %v5529, %v5601
        %v5763 = vsel %vm2827, %v5530, %v5603
        %v5767 = vsel %vm2827, %v5531, %v5605
        %v5771 = vsel %vm2827, %v5532, %v5607
        %v5775 = vsel %vm2827, %v5533, %v5609
        %v5779 = vsel %vm2827, %v5534, %v5611
        %v5783 = vsel %vm2827, %v5535, %v5613
        %v5787 = vsel %vm2827, %v5536, %v5615
        %v5790 = vsel %vm2827, %v5282, %v5633
        %v5793 = vsel %vm2827, %v5283, %v5635
        %v5796 = vsel %vm2827, %v5284, %v5637
        %v5799 = vsel %vm2827, %v5285, %v5639
        %v5802 = vsel %vm2827, %v5286, %v5641
        %v5805 = vsel %vm2827, %v5287, %v5643
        %v5808 = vsel %vm2827, %v5288, %v5645
        %v5811 = vsel %vm2827, %v5289, %v5647
        %v5814 = vsel %vm2827, %v5290, %v5649
        %v5817 = vsel %vm2827, %v5291, %v5651
        %v5820 = vsel %vm2827, %v5292, %v5653
        %v5823 = vsel %vm2827, %v5293, %v5655
        %v5826 = vsel %vm2827, %v5294, %v5657
        %v5829 = vsel %vm2827, %v5295, %v5659
        %v5832 = vsel %vm2827, %v5296, %v5661
        %v5835 = vsel %vm2827, %v5297, %v5663
        %v5839 = vsel %vm2827, %v5457, %v5665
        %v5841 = vld [vmem:[%s3] sm:$0xf]
        %v5842 = vld [vmem:[%s3 + $0x4] sm:$0xf]
        %v5843 = vld [vmem:[%s3 + $0x8] sm:$0xf]
        %v5844 = vld [vmem:[%s3 + $0xc] sm:$0xf]
        %v5845 = vld [vmem:[%s3 + $0x10] sm:$0xf]
        %v5846 = vld [vmem:[%s3 + $0x14] sm:$0xf]
        %v5847 = vld [vmem:[%s3 + $0x18] sm:$0xf]
        %v5848 = vld [vmem:[%s3 + $0x1c] sm:$0xf]
        %v5849 = vld [vmem:[%s3 + $0x20] sm:$0xf]
        %v5850 = vld [vmem:[%s3 + $0x24] sm:$0xf]
        %v5851 = vld [vmem:[%s3 + $0x28] sm:$0xf]
        %v5852 = vld [vmem:[%s3 + $0x2c] sm:$0xf]
        %v5853 = vld [vmem:[%s3 + $0x30] sm:$0xf]
        %v5854 = vld [vmem:[%s3 + $0x34] sm:$0xf]
        %v5855 = vld [vmem:[%s3 + $0x38] sm:$0xf]
        %v5856 = vld [vmem:[%s3 + $0x3c] sm:$0xf]
        %v5857 = vld [vmem:[%s3 + $0x40] sm:$0xf]
        %v5858 = vld [vmem:[%s3 + $0x44] sm:$0xf]
        %v5859 = vld [vmem:[%s3 + $0x48] sm:$0xf]
        %v5860 = vld [vmem:[%s3 + $0x4c] sm:$0xf]
        %v5861 = vld [vmem:[%s3 + $0x50] sm:$0xf]
        %v5862 = vld [vmem:[%s3 + $0x54] sm:$0xf]
        %v5863 = vld [vmem:[%s3 + $0x58] sm:$0xf]
        %v5864 = vld [vmem:[%s3 + $0x5c] sm:$0xf]
        %v5865 = vld [vmem:[%s3 + $0x60] sm:$0xf]
        %v5866 = vld [vmem:[%s3 + $0x64] sm:$0xf]
        %v5867 = vld [vmem:[%s3 + $0x68] sm:$0xf]
        %v5868 = vld [vmem:[%s3 + $0x6c] sm:$0xf]
        %v5869 = vld [vmem:[%s3 + $0x70] sm:$0xf]
        %v5870 = vld [vmem:[%s3 + $0x74] sm:$0xf]
        %v5871 = vld [vmem:[%s3 + $0x78] sm:$0xf]
        %v5872 = vld [vmem:[%s3 + $0x7c] sm:$0xf]
        %v5873 = vld [vmem:[%s3 + $0x80] sm:$0xf]
        %v5874 = vld [vmem:[%s3 + $0x84] sm:$0xf]
        %v5875 = vld [vmem:[%s3 + $0x88] sm:$0xf]
        %v5876 = vld [vmem:[%s3 + $0x8c] sm:$0xf]
        %v5877 = vld [vmem:[%s3 + $0x90] sm:$0xf]
        %v5878 = vld [vmem:[%s3 + $0x94] sm:$0xf]
        %v5879 = vld [vmem:[%s3 + $0x98] sm:$0xf]
        %v5880 = vld [vmem:[%s3 + $0x9c] sm:$0xf]
        %v5881 = vld [vmem:[%s3 + $0xa0] sm:$0xf]
        %v5882 = vld [vmem:[%s3 + $0xa4] sm:$0xf]
        %v5883 = vld [vmem:[%s3 + $0xa8] sm:$0xf]
        %v5884 = vld [vmem:[%s3 + $0xac] sm:$0xf]
        %v5885 = vld [vmem:[%s3 + $0xb0] sm:$0xf]
        %v5886 = vld [vmem:[%s3 + $0xb4] sm:$0xf]
        %v5887 = vld [vmem:[%s3 + $0xb8] sm:$0xf]
        %v5888 = vld [vmem:[%s3 + $0xbc] sm:$0xf]
        %v5889 = vld [vmem:[%s3 + $0xc0] sm:$0xf]
        %v5890 = vld [vmem:[%s3 + $0xc4] sm:$0xf]
        %v5891 = vld [vmem:[%s3 + $0xc8] sm:$0xf]
        %v5892 = vld [vmem:[%s3 + $0xcc] sm:$0xf]
        %v5893 = vld [vmem:[%s3 + $0xd0] sm:$0xf]
        %v5894 = vld [vmem:[%s3 + $0xd4] sm:$0xf]
        %v5895 = vld [vmem:[%s3 + $0xd8] sm:$0xf]
        %v5896 = vld [vmem:[%s3 + $0xdc] sm:$0xf]
        %v5897 = vld [vmem:[%s3 + $0xe0] sm:$0xf]
        %v5898 = vld [vmem:[%s3 + $0xe4] sm:$0xf]
        %v5899 = vld [vmem:[%s3 + $0xe8] sm:$0xf]
        %v5900 = vld [vmem:[%s3 + $0xec] sm:$0xf]
        %v5901 = vld [vmem:[%s3 + $0xf0] sm:$0xf]
        %v5902 = vld [vmem:[%s3 + $0xf4] sm:$0xf]
        %v5903 = vld [vmem:[%s3 + $0xf8] sm:$0xf]
        %v5904 = vld [vmem:[%s3 + $0xfc] sm:$0xf]
        %v5905 = vld [vmem:[%s3 + $0x100] sm:$0xf]
        %v5906 = vld [vmem:[%s3 + $0x104] sm:$0xf]
        %v5907 = vld [vmem:[%s3 + $0x108] sm:$0xf]
        %v5908 = vld [vmem:[%s3 + $0x10c] sm:$0xf]
        %v5909 = vld [vmem:[%s3 + $0x110] sm:$0xf]
        %v5910 = vld [vmem:[%s3 + $0x114] sm:$0xf]
        %v5911 = vld [vmem:[%s3 + $0x118] sm:$0xf]
        %v5912 = vld [vmem:[%s3 + $0x11c] sm:$0xf]
        %v5913 = vld [vmem:[%s4] sm:$0x1]
        %v5915 = vperm.slane %v5913, 0
        %v5989 = vunpack.c.l.b16 %v5841
        %v5990 = vunpack.c.l.b16 %v5842
        %v5991 = vunpack.c.l.b16 %v5843
        %v5992 = vunpack.c.l.b16 %v5844
        %v5993 = vunpack.c.l.b16 %v5845
        %v5994 = vunpack.c.l.b16 %v5846
        %v5995 = vunpack.c.l.b16 %v5847
        %v5996 = vunpack.c.l.b16 %v5848
        %v5997 = vunpack.c.l.b16 %v5849
        %v5998 = vunpack.c.l.b16 %v5850
        %v5999 = vunpack.c.l.b16 %v5851
        %v6000 = vunpack.c.l.b16 %v5852
        %v6001 = vunpack.c.l.b16 %v5853
        %v6002 = vunpack.c.l.b16 %v5854
        %v6003 = vunpack.c.l.b16 %v5855
        %v6004 = vunpack.c.l.b16 %v5856
        %v6005 = vunpack.c.l.b16 %v5857
        %v6006 = vunpack.c.l.b16 %v5858
        %v6007 = vunpack.c.l.b16 %v5859
        %v6008 = vunpack.c.l.b16 %v5860
        %v6009 = vunpack.c.l.b16 %v5861
        %v6010 = vunpack.c.l.b16 %v5862
        %v6011 = vunpack.c.l.b16 %v5863
        %v6012 = vunpack.c.l.b16 %v5864
        %v6013 = vunpack.c.l.b16 %v5865
        %v6014 = vunpack.c.l.b16 %v5866
        %v6015 = vunpack.c.l.b16 %v5867
        %v6016 = vunpack.c.l.b16 %v5868
        %v6017 = vunpack.c.l.b16 %v5869
        %v6018 = vunpack.c.l.b16 %v5870
        %v6019 = vunpack.c.l.b16 %v5871
        %v6020 = vunpack.c.l.b16 %v5872
        %v6021 = vunpack.c.l.b16 %v5873
        %v6022 = vunpack.c.l.b16 %v5874
        %v6023 = vunpack.c.l.b16 %v5875
        %v6024 = vunpack.c.l.b16 %v5876
        %v6025 = vunpack.c.l.b16 %v5877
        %v6026 = vunpack.c.l.b16 %v5878
        %v6027 = vunpack.c.l.b16 %v5879
        %v6028 = vunpack.c.l.b16 %v5880
        %v6029 = vunpack.c.l.b16 %v5881
        %v6030 = vunpack.c.l.b16 %v5882
        %v6031 = vunpack.c.l.b16 %v5883
        %v6032 = vunpack.c.l.b16 %v5884
        %v6033 = vunpack.c.l.b16 %v5885
        %v6034 = vunpack.c.l.b16 %v5886
        %v6035 = vunpack.c.l.b16 %v5887
        %v6036 = vunpack.c.l.b16 %v5888
        %v6037 = vunpack.c.l.b16 %v5889
        %v6038 = vunpack.c.l.b16 %v5890
        %v6039 = vunpack.c.l.b16 %v5891
        %v6040 = vunpack.c.l.b16 %v5892
        %v6041 = vunpack.c.l.b16 %v5893
        %v6042 = vunpack.c.l.b16 %v5894
        %v6043 = vunpack.c.l.b16 %v5895
        %v6044 = vunpack.c.l.b16 %v5896
        %v6045 = vunpack.c.l.b16 %v5897
        %v6046 = vunpack.c.l.b16 %v5898
        %v6047 = vunpack.c.l.b16 %v5899
        %v6048 = vunpack.c.l.b16 %v5900
        %v6049 = vunpack.c.l.b16 %v5901
        %v6050 = vunpack.c.l.b16 %v5902
        %v6051 = vunpack.c.l.b16 %v5903
        %v6052 = vunpack.c.l.b16 %v5904
        %v6053 = vunpack.c.l.b16 %v5905
        %v6054 = vunpack.c.l.b16 %v5906
        %v6055 = vunpack.c.l.b16 %v5907
        %v6056 = vunpack.c.l.b16 %v5908
        %v6057 = vunpack.c.l.b16 %v5909
        %v6058 = vunpack.c.l.b16 %v5910
        %v6059 = vunpack.c.l.b16 %v5911
        %v6060 = vunpack.c.l.b16 %v5912
        %v6061 = vpack.c.b16 %v5990, %v5989
        %v6062 = vpack.c.b16 %v5992, %v5991
        %v6063 = vpack.c.b16 %v5994, %v5993
        %v6064 = vpack.c.b16 %v5996, %v5995
        %v6065 = vpack.c.b16 %v5998, %v5997
        %v6066 = vpack.c.b16 %v6000, %v5999
        %v6067 = vpack.c.b16 %v6002, %v6001
        %v6068 = vpack.c.b16 %v6004, %v6003
        %v6069 = vpack.c.b16 %v6006, %v6005
        %v6070 = vpack.c.b16 %v6008, %v6007
        %v6071 = vpack.c.b16 %v6010, %v6009
        %v6072 = vpack.c.b16 %v6012, %v6011
        %v6073 = vpack.c.b16 %v6014, %v6013
        %v6074 = vpack.c.b16 %v6016, %v6015
        %v6075 = vpack.c.b16 %v6018, %v6017
        %v6076 = vpack.c.b16 %v6020, %v6019
        %v6077 = vpack.c.b16 %v6022, %v6021
        %v6078 = vpack.c.b16 %v6024, %v6023
        %v6079 = vpack.c.b16 %v6026, %v6025
        %v6080 = vpack.c.b16 %v6028, %v6027
        %v6081 = vpack.c.b16 %v6030, %v6029
        %v6082 = vpack.c.b16 %v6032, %v6031
        %v6083 = vpack.c.b16 %v6034, %v6033
        %v6084 = vpack.c.b16 %v6036, %v6035
        %v6085 = vpack.c.b16 %v6038, %v6037
        %v6086 = vpack.c.b16 %v6040, %v6039
        %v6087 = vpack.c.b16 %v6042, %v6041
        %v6088 = vpack.c.b16 %v6044, %v6043
        %v6089 = vpack.c.b16 %v6046, %v6045
        %v6090 = vpack.c.b16 %v6048, %v6047
        %v6091 = vpack.c.b16 %v6050, %v6049
        %v6092 = vpack.c.b16 %v6052, %v6051
        %v6093 = vpack.c.b16 %v6054, %v6053
        %v6094 = vpack.c.b16 %v6056, %v6055
        %v6095 = vpack.c.b16 %v6058, %v6057
        %v6096 = vpack.c.b16 %v6060, %v6059
        %v6133 = vsel %vm2827, %v5523, 0
        %v6135 = vsel %vm2827, %v5524, 0
        %v6137 = vsel %vm2827, %v5525, 0
        %v6139 = vsel %vm2827, %v5526, 0
        %v6141 = vsel %vm2827, %v5527, 0
        %v6143 = vsel %vm2827, %v5528, 0
        %v6145 = vsel %vm2827, %v5529, 0
        %v6147 = vsel %vm2827, %v5530, 0
        %v6149 = vsel %vm2827, %v5531, 0
        %v6151 = vsel %vm2827, %v5532, 0
        %v6153 = vsel %vm2827, %v5533, 0
        %v6155 = vsel %vm2827, %v5534, 0
        %v6157 = vsel %vm2827, %v5535, 0
        %v6159 = vsel %vm2827, %v5536, 0
        %v6162 = vsel %vm2827, %v5537, 0
        %6164 = vmatpush.bf16.msra.mxu0 %v6068
        %6165 = vmatpush.bf16.msra.mxu0 %v6067
        %6166 = vmatpush.bf16.msra.mxu0 %v6066
        %6167 = vmatpush.bf16.msra.mxu0 %v6065
        %6168 = vmatpush.bf16.msra.mxu0 %v6064
        %6169 = vmatpush.bf16.msra.mxu0 %v6063
        %6170 = vmatpush.bf16.msra.mxu0 %v6062
        %6171 = vmatpush.bf16.msra.mxu0 %v6061
        %6172 = vmatmul.bf16.gmra.mxu0 %v2830
        %v6173 = vpop.f32.mrf.mxu0
        %v6174 = vadd.f32 %v5915, %v6173
        %v6175 = vpop.f32.mrf.mxu0
        %v6176 = vadd.f32 %v5915, %v6175
        %6177 = vmatmul.bf16.gmra.mxu0 %v5668
        %v6178 = vpop.f32.mrf.mxu0
        %v6179 = vadd.f32 %v5915, %v6178
        %v6180 = vpop.f32.mrf.mxu0
        %v6181 = vadd.f32 %v5915, %v6180
        %6182 = vmatmul.bf16.gmra.mxu0 %v5672
        %v6183 = vpop.f32.mrf.mxu0
        %v6184 = vadd.f32 %v5915, %v6183
        %v6185 = vpop.f32.mrf.mxu0
        %v6186 = vadd.f32 %v5915, %v6185
        %6187 = vmatmul.bf16.gmra.mxu0 %v5676
        %v6188 = vpop.f32.mrf.mxu0
        %v6189 = vadd.f32 %v5915, %v6188
        %v6190 = vpop.f32.mrf.mxu0
        %v6191 = vadd.f32 %v5915, %v6190
        %6192 = vmatmul.bf16.gmra.mxu0 %v5680
        %v6193 = vpop.f32.mrf.mxu0
        %v6194 = vadd.f32 %v5915, %v6193
        %v6195 = vpop.f32.mrf.mxu0
        %v6196 = vadd.f32 %v5915, %v6195
        %6197 = vmatmul.bf16.gmra.mxu0 %v5684
        %v6198 = vpop.f32.mrf.mxu0
        %v6199 = vadd.f32 %v5915, %v6198
        %v6200 = vpop.f32.mrf.mxu0
        %v6201 = vadd.f32 %v5915, %v6200
        %6202 = vmatmul.bf16.gmra.mxu0 %v5688
        %v6203 = vpop.f32.mrf.mxu0
        %v6204 = vadd.f32 %v5915, %v6203
        %v6205 = vpop.f32.mrf.mxu0
        %v6206 = vadd.f32 %v5915, %v6205
        %6207 = vmatmul.bf16.gmra.mxu0 %v5692
        %v6208 = vpop.f32.mrf.mxu0
        %v6209 = vadd.f32 %v5915, %v6208
        %v6210 = vpop.f32.mrf.mxu0
        %v6211 = vadd.f32 %v5915, %v6210
        %6212 = vmatmul.bf16.gmra.mxu0 %v5696
        %v6213 = vpop.f32.mrf.mxu0
        %v6214 = vadd.f32 %v5915, %v6213
        %v6215 = vpop.f32.mrf.mxu0
        %v6216 = vadd.f32 %v5915, %v6215
        %6217 = vmatmul.bf16.gmra.mxu0 %v5700
        %v6218 = vpop.f32.mrf.mxu0
        %v6219 = vadd.f32 %v5915, %v6218
        %v6220 = vpop.f32.mrf.mxu0
        %v6221 = vadd.f32 %v5915, %v6220
        %6222 = vmatmul.bf16.gmra.mxu0 %v5704
        %v6223 = vpop.f32.mrf.mxu0
        %v6224 = vadd.f32 %v5915, %v6223
        %v6225 = vpop.f32.mrf.mxu0
        %v6226 = vadd.f32 %v5915, %v6225
        %6227 = vmatmul.bf16.gmra.mxu0 %v5708
        %v6228 = vpop.f32.mrf.mxu0
        %v6229 = vadd.f32 %v5915, %v6228
        %v6230 = vpop.f32.mrf.mxu0
        %v6231 = vadd.f32 %v5915, %v6230
        %6232 = vmatmul.bf16.gmra.mxu0 %v5712
        %v6233 = vpop.f32.mrf.mxu0
        %v6234 = vadd.f32 %v5915, %v6233
        %v6235 = vpop.f32.mrf.mxu0
        %v6236 = vadd.f32 %v5915, %v6235
        %6237 = vmatmul.bf16.gmra.mxu0 %v5716
        %v6238 = vpop.f32.mrf.mxu0
        %v6239 = vadd.f32 %v5915, %v6238
        %v6240 = vpop.f32.mrf.mxu0
        %v6241 = vadd.f32 %v5915, %v6240
        %6242 = vmatmul.bf16.gmra.mxu0 %v5720
        %v6243 = vpop.f32.mrf.mxu0
        %v6244 = vadd.f32 %v5915, %v6243
        %v6245 = vpop.f32.mrf.mxu0
        %v6246 = vadd.f32 %v5915, %v6245
        %6247 = vmatmul.bf16.gmra.mxu0 %v5724
        %v6248 = vpop.f32.mrf.mxu0
        %v6249 = vadd.f32 %v5915, %v6248
        %v6250 = vpop.f32.mrf.mxu0
        %v6251 = vadd.f32 %v5915, %v6250
        %6252 = vdwg.mxu0
        %6253 = vmatpush.bf16.msra.mxu0 %v6076
        %6254 = vmatpush.bf16.msra.mxu0 %v6075
        %6255 = vmatpush.bf16.msra.mxu0 %v6074
        %6256 = vmatpush.bf16.msra.mxu0 %v6073
        %6257 = vmatpush.bf16.msra.mxu0 %v6072
        %6258 = vmatpush.bf16.msra.mxu0 %v6071
        %6259 = vmatpush.bf16.msra.mxu0 %v6070
        %6260 = vmatpush.bf16.msra.mxu0 %v6069
        %6261 = vmatmul.bf16.gmra.mxu0 %v5727
        %v6262 = vpop.f32.mrf.mxu0
        %v6263 = vadd.f32 %v6174, %v6262
        %v6264 = vpop.f32.mrf.mxu0
        %v6265 = vadd.f32 %v6176, %v6264
        %6266 = vmatmul.bf16.gmra.mxu0 %v5731
        %v6267 = vpop.f32.mrf.mxu0
        %v6268 = vadd.f32 %v6179, %v6267
        %v6269 = vpop.f32.mrf.mxu0
        %v6270 = vadd.f32 %v6181, %v6269
        %6271 = vmatmul.bf16.gmra.mxu0 %v5735
        %v6272 = vpop.f32.mrf.mxu0
        %v6273 = vadd.f32 %v6184, %v6272
        %v6274 = vpop.f32.mrf.mxu0
        %v6275 = vadd.f32 %v6186, %v6274
        %6276 = vmatmul.bf16.gmra.mxu0 %v5739
        %v6277 = vpop.f32.mrf.mxu0
        %v6278 = vadd.f32 %v6189, %v6277
        %v6279 = vpop.f32.mrf.mxu0
        %v6280 = vadd.f32 %v6191, %v6279
        %6281 = vmatmul.bf16.gmra.mxu0 %v5743
        %v6282 = vpop.f32.mrf.mxu0
        %v6283 = vadd.f32 %v6194, %v6282
        %v6284 = vpop.f32.mrf.mxu0
        %v6285 = vadd.f32 %v6196, %v6284
        %6286 = vmatmul.bf16.gmra.mxu0 %v5747
        %v6287 = vpop.f32.mrf.mxu0
        %v6288 = vadd.f32 %v6199, %v6287
        %v6289 = vpop.f32.mrf.mxu0
        %v6290 = vadd.f32 %v6201, %v6289
        %6291 = vmatmul.bf16.gmra.mxu0 %v5751
        %v6292 = vpop.f32.mrf.mxu0
        %v6293 = vadd.f32 %v6204, %v6292
        %v6294 = vpop.f32.mrf.mxu0
        %v6295 = vadd.f32 %v6206, %v6294
        %6296 = vmatmul.bf16.gmra.mxu0 %v5755
        %v6297 = vpop.f32.mrf.mxu0
        %v6298 = vadd.f32 %v6209, %v6297
        %v6299 = vpop.f32.mrf.mxu0
        %v6300 = vadd.f32 %v6211, %v6299
        %6301 = vmatmul.bf16.gmra.mxu0 %v5759
        %v6302 = vpop.f32.mrf.mxu0
        %v6303 = vadd.f32 %v6214, %v6302
        %v6304 = vpop.f32.mrf.mxu0
        %v6305 = vadd.f32 %v6216, %v6304
        %6306 = vmatmul.bf16.gmra.mxu0 %v5763
        %v6307 = vpop.f32.mrf.mxu0
        %v6308 = vadd.f32 %v6219, %v6307
        %v6309 = vpop.f32.mrf.mxu0
        %v6310 = vadd.f32 %v6221, %v6309
        %6311 = vmatmul.bf16.gmra.mxu0 %v5767
        %v6312 = vpop.f32.mrf.mxu0
        %v6313 = vadd.f32 %v6224, %v6312
        %v6314 = vpop.f32.mrf.mxu0
        %v6315 = vadd.f32 %v6226, %v6314
        %6316 = vmatmul.bf16.gmra.mxu0 %v5771
        %v6317 = vpop.f32.mrf.mxu0
        %v6318 = vadd.f32 %v6229, %v6317
        %v6319 = vpop.f32.mrf.mxu0
        %v6320 = vadd.f32 %v6231, %v6319
        %6321 = vmatmul.bf16.gmra.mxu0 %v5775
        %v6322 = vpop.f32.mrf.mxu0
        %v6323 = vadd.f32 %v6234, %v6322
        %v6324 = vpop.f32.mrf.mxu0
        %v6325 = vadd.f32 %v6236, %v6324
        %6326 = vmatmul.bf16.gmra.mxu0 %v5779
        %v6327 = vpop.f32.mrf.mxu0
        %v6328 = vadd.f32 %v6239, %v6327
        %v6329 = vpop.f32.mrf.mxu0
        %v6330 = vadd.f32 %v6241, %v6329
        %6331 = vmatmul.bf16.gmra.mxu0 %v5783
        %v6332 = vpop.f32.mrf.mxu0
        %v6333 = vadd.f32 %v6244, %v6332
        %v6334 = vpop.f32.mrf.mxu0
        %v6335 = vadd.f32 %v6246, %v6334
        %6336 = vmatmul.bf16.gmra.mxu0 %v5787
        %v6337 = vpop.f32.mrf.mxu0
        %v6338 = vadd.f32 %v6249, %v6337
        %v6339 = vpop.f32.mrf.mxu0
        %v6340 = vadd.f32 %v6251, %v6339
        %6341 = vdwg.mxu0
        %6342 = vmatpush.bf16.msra.mxu0 %v6084
        %6343 = vmatpush.bf16.msra.mxu0 %v6083
        %6344 = vmatpush.bf16.msra.mxu0 %v6082
        %6345 = vmatpush.bf16.msra.mxu0 %v6081
        %6346 = vmatpush.bf16.msra.mxu0 %v6080
        %6347 = vmatpush.bf16.msra.mxu0 %v6079
        %6348 = vmatpush.bf16.msra.mxu0 %v6078
        %6349 = vmatpush.bf16.msra.mxu0 %v6077
        %6350 = vmatmul.bf16.gmra.mxu0 %v5790
        %v6351 = vpop.f32.mrf.mxu0
        %v6352 = vadd.f32 %v6263, %v6351
        %v6353 = vpop.f32.mrf.mxu0
        %v6354 = vadd.f32 %v6265, %v6353
        %6355 = vmatmul.bf16.gmra.mxu0 %v5793
        %v6356 = vpop.f32.mrf.mxu0
        %v6357 = vadd.f32 %v6268, %v6356
        %v6358 = vpop.f32.mrf.mxu0
        %v6359 = vadd.f32 %v6270, %v6358
        %6360 = vmatmul.bf16.gmra.mxu0 %v5796
        %v6361 = vpop.f32.mrf.mxu0
        %v6362 = vadd.f32 %v6273, %v6361
        %v6363 = vpop.f32.mrf.mxu0
        %v6364 = vadd.f32 %v6275, %v6363
        %6365 = vmatmul.bf16.gmra.mxu0 %v5799
        %v6366 = vpop.f32.mrf.mxu0
        %v6367 = vadd.f32 %v6278, %v6366
        %v6368 = vpop.f32.mrf.mxu0
        %v6369 = vadd.f32 %v6280, %v6368
        %6370 = vmatmul.bf16.gmra.mxu0 %v5802
        %v6371 = vpop.f32.mrf.mxu0
        %v6372 = vadd.f32 %v6283, %v6371
        %v6373 = vpop.f32.mrf.mxu0
        %v6374 = vadd.f32 %v6285, %v6373
        %6375 = vmatmul.bf16.gmra.mxu0 %v5805
        %v6376 = vpop.f32.mrf.mxu0
        %v6377 = vadd.f32 %v6288, %v6376
        %v6378 = vpop.f32.mrf.mxu0
        %v6379 = vadd.f32 %v6290, %v6378
        %6380 = vmatmul.bf16.gmra.mxu0 %v5808
        %v6381 = vpop.f32.mrf.mxu0
        %v6382 = vadd.f32 %v6293, %v6381
        %v6383 = vpop.f32.mrf.mxu0
        %v6384 = vadd.f32 %v6295, %v6383
        %6385 = vmatmul.bf16.gmra.mxu0 %v5811
        %v6386 = vpop.f32.mrf.mxu0
        %v6387 = vadd.f32 %v6298, %v6386
        %v6388 = vpop.f32.mrf.mxu0
        %v6389 = vadd.f32 %v6300, %v6388
        %6390 = vmatmul.bf16.gmra.mxu0 %v5814
        %v6391 = vpop.f32.mrf.mxu0
        %v6392 = vadd.f32 %v6303, %v6391
        %v6393 = vpop.f32.mrf.mxu0
        %v6394 = vadd.f32 %v6305, %v6393
        %6395 = vmatmul.bf16.gmra.mxu0 %v5817
        %v6396 = vpop.f32.mrf.mxu0
        %v6397 = vadd.f32 %v6308, %v6396
        %v6398 = vpop.f32.mrf.mxu0
        %v6399 = vadd.f32 %v6310, %v6398
        %6400 = vmatmul.bf16.gmra.mxu0 %v5820
        %v6401 = vpop.f32.mrf.mxu0
        %v6402 = vadd.f32 %v6313, %v6401
        %v6403 = vpop.f32.mrf.mxu0
        %v6404 = vadd.f32 %v6315, %v6403
        %6405 = vmatmul.bf16.gmra.mxu0 %v5823
        %v6406 = vpop.f32.mrf.mxu0
        %v6407 = vadd.f32 %v6318, %v6406
        %v6408 = vpop.f32.mrf.mxu0
        %v6409 = vadd.f32 %v6320, %v6408
        %6410 = vmatmul.bf16.gmra.mxu0 %v5826
        %v6411 = vpop.f32.mrf.mxu0
        %v6412 = vadd.f32 %v6323, %v6411
        %v6413 = vpop.f32.mrf.mxu0
        %v6414 = vadd.f32 %v6325, %v6413
        %6415 = vmatmul.bf16.gmra.mxu0 %v5829
        %v6416 = vpop.f32.mrf.mxu0
        %v6417 = vadd.f32 %v6328, %v6416
        %v6418 = vpop.f32.mrf.mxu0
        %v6419 = vadd.f32 %v6330, %v6418
        %6420 = vmatmul.bf16.gmra.mxu0 %v5832
        %v6421 = vpop.f32.mrf.mxu0
        %v6422 = vadd.f32 %v6333, %v6421
        %v6423 = vpop.f32.mrf.mxu0
        %v6424 = vadd.f32 %v6335, %v6423
        %6425 = vmatmul.bf16.gmra.mxu0 %v5835
        %v6426 = vpop.f32.mrf.mxu0
        %v6427 = vadd.f32 %v6338, %v6426
        %v6428 = vpop.f32.mrf.mxu0
        %v6429 = vadd.f32 %v6340, %v6428
        %6430 = vdwg.mxu0
        %6431 = vmatpush.bf16.msra.mxu0 %v6092
        %6432 = vmatpush.bf16.msra.mxu0 %v6091
        %6433 = vmatpush.bf16.msra.mxu0 %v6090
        %6434 = vmatpush.bf16.msra.mxu0 %v6089
        %6435 = vmatpush.bf16.msra.mxu0 %v6088
        %6436 = vmatpush.bf16.msra.mxu0 %v6087
        %6437 = vmatpush.bf16.msra.mxu0 %v6086
        %6438 = vmatpush.bf16.msra.mxu0 %v6085
        %6439 = vmatmul.bf16.gmra.mxu0 %v5672
        %v6440 = vpop.f32.mrf.mxu0
        %v6441 = vadd.f32 %v6352, %v6440
        %v6442 = vpop.f32.mrf.mxu0
        %v6443 = vadd.f32 %v6354, %v6442
        %6444 = vmatmul.bf16.gmra.mxu0 %v5676
        %v6445 = vpop.f32.mrf.mxu0
        %v6446 = vadd.f32 %v6357, %v6445
        %v6447 = vpop.f32.mrf.mxu0
        %v6448 = vadd.f32 %v6359, %v6447
        %6449 = vmatmul.bf16.gmra.mxu0 %v5680
        %v6450 = vpop.f32.mrf.mxu0
        %v6451 = vadd.f32 %v6362, %v6450
        %v6452 = vpop.f32.mrf.mxu0
        %v6453 = vadd.f32 %v6364, %v6452
        %6454 = vmatmul.bf16.gmra.mxu0 %v5684
        %v6455 = vpop.f32.mrf.mxu0
        %v6456 = vadd.f32 %v6367, %v6455
        %v6457 = vpop.f32.mrf.mxu0
        %v6458 = vadd.f32 %v6369, %v6457
        %6459 = vmatmul.bf16.gmra.mxu0 %v5688
        %v6460 = vpop.f32.mrf.mxu0
        %v6461 = vadd.f32 %v6372, %v6460
        %v6462 = vpop.f32.mrf.mxu0
        %v6463 = vadd.f32 %v6374, %v6462
        %6464 = vmatmul.bf16.gmra.mxu0 %v5692
        %v6465 = vpop.f32.mrf.mxu0
        %v6466 = vadd.f32 %v6377, %v6465
        %v6467 = vpop.f32.mrf.mxu0
        %v6468 = vadd.f32 %v6379, %v6467
        %6469 = vmatmul.bf16.gmra.mxu0 %v5696
        %v6470 = vpop.f32.mrf.mxu0
        %v6471 = vadd.f32 %v6382, %v6470
        %v6472 = vpop.f32.mrf.mxu0
        %v6473 = vadd.f32 %v6384, %v6472
        %6474 = vmatmul.bf16.gmra.mxu0 %v5700
        %v6475 = vpop.f32.mrf.mxu0
        %v6476 = vadd.f32 %v6387, %v6475
        %v6477 = vpop.f32.mrf.mxu0
        %v6478 = vadd.f32 %v6389, %v6477
        %6479 = vmatmul.bf16.gmra.mxu0 %v5704
        %v6480 = vpop.f32.mrf.mxu0
        %v6481 = vadd.f32 %v6392, %v6480
        %v6482 = vpop.f32.mrf.mxu0
        %v6483 = vadd.f32 %v6394, %v6482
        %6484 = vmatmul.bf16.gmra.mxu0 %v5708
        %v6485 = vpop.f32.mrf.mxu0
        %v6486 = vadd.f32 %v6397, %v6485
        %v6487 = vpop.f32.mrf.mxu0
        %v6488 = vadd.f32 %v6399, %v6487
        %6489 = vmatmul.bf16.gmra.mxu0 %v5712
        %v6490 = vpop.f32.mrf.mxu0
        %v6491 = vadd.f32 %v6402, %v6490
        %v6492 = vpop.f32.mrf.mxu0
        %v6493 = vadd.f32 %v6404, %v6492
        %6494 = vmatmul.bf16.gmra.mxu0 %v5716
        %v6495 = vpop.f32.mrf.mxu0
        %v6496 = vadd.f32 %v6407, %v6495
        %v6497 = vpop.f32.mrf.mxu0
        %v6498 = vadd.f32 %v6409, %v6497
        %6499 = vmatmul.bf16.gmra.mxu0 %v5720
        %v6500 = vpop.f32.mrf.mxu0
        %v6501 = vadd.f32 %v6412, %v6500
        %v6502 = vpop.f32.mrf.mxu0
        %v6503 = vadd.f32 %v6414, %v6502
        %6504 = vmatmul.bf16.gmra.mxu0 %v5724
        %v6505 = vpop.f32.mrf.mxu0
        %v6506 = vadd.f32 %v6417, %v6505
        %v6507 = vpop.f32.mrf.mxu0
        %v6508 = vadd.f32 %v6419, %v6507
        %6509 = vmatmul.bf16.gmra.mxu0 %v5839
        %v6510 = vpop.f32.mrf.mxu0
        %v6511 = vadd.f32 %v6422, %v6510
        %v6512 = vpop.f32.mrf.mxu0
        %v6513 = vadd.f32 %v6424, %v6512
        %6514 = vmatmul.bf16.gmra.mxu0 %v2830
        %v6515 = vpop.f32.mrf.mxu0
        %v6516 = vadd.f32 %v6427, %v6515
        %v6517 = vpop.f32.mrf.mxu0
        %v6518 = vadd.f32 %v6429, %v6517
        %6519 = vdwg.mxu0
        %6520 = vmatpush.bf16.msra.mxu0 0
        %6521 = vmatpush.bf16.msra.mxu0 0
        %6522 = vmatpush.bf16.msra.mxu0 0
        %6523 = vmatpush.bf16.msra.mxu0 0
        %6524 = vmatpush.bf16.msra.mxu0 %v6096
        %6525 = vmatpush.bf16.msra.mxu0 %v6095
        %6526 = vmatpush.bf16.msra.mxu0 %v6094
        %6527 = vmatpush.bf16.msra.mxu0 %v6093
        %6528 = vmatmul.bf16.gmra.mxu0 %v6133
        %v6529 = vpop.f32.mrf.mxu0
        %v6530 = vadd.f32 %v6441, %v6529
        %v6531 = vpop.f32.mrf.mxu0
        %v6532 = vadd.f32 %v6443, %v6531
        %6533 = vmatmul.bf16.gmra.mxu0 %v6135
        %v6534 = vpop.f32.mrf.mxu0
        %v6535 = vadd.f32 %v6446, %v6534
        %v6536 = vpop.f32.mrf.mxu0
        %v6537 = vadd.f32 %v6448, %v6536
        %6538 = vmatmul.bf16.gmra.mxu0 %v6137
        %v6539 = vpop.f32.mrf.mxu0
        %v6540 = vadd.f32 %v6451, %v6539
        %v6541 = vpop.f32.mrf.mxu0
        %v6542 = vadd.f32 %v6453, %v6541
        %6543 = vmatmul.bf16.gmra.mxu0 %v6139
        %v6544 = vpop.f32.mrf.mxu0
        %v6545 = vadd.f32 %v6456, %v6544
        %v6546 = vpop.f32.mrf.mxu0
        %v6547 = vadd.f32 %v6458, %v6546
        %6548 = vmatmul.bf16.gmra.mxu0 %v6141
        %v6549 = vpop.f32.mrf.mxu0
        %v6550 = vadd.f32 %v6461, %v6549
        %v6551 = vpop.f32.mrf.mxu0
        %v6552 = vadd.f32 %v6463, %v6551
        %6553 = vmatmul.bf16.gmra.mxu0 %v6143
        %v6554 = vpop.f32.mrf.mxu0
        %v6555 = vadd.f32 %v6466, %v6554
        %v6556 = vpop.f32.mrf.mxu0
        %v6557 = vadd.f32 %v6468, %v6556
        %6558 = vmatmul.bf16.gmra.mxu0 %v6145
        %v6559 = vpop.f32.mrf.mxu0
        %v6560 = vadd.f32 %v6471, %v6559
        %v6561 = vpop.f32.mrf.mxu0
        %v6562 = vadd.f32 %v6473, %v6561
        %6563 = vmatmul.bf16.gmra.mxu0 %v6147
        %v6564 = vpop.f32.mrf.mxu0
        %v6565 = vadd.f32 %v6476, %v6564
        %v6566 = vpop.f32.mrf.mxu0
        %v6567 = vadd.f32 %v6478, %v6566
        %6568 = vmatmul.bf16.gmra.mxu0 %v6149
        %v6569 = vpop.f32.mrf.mxu0
        %v6570 = vadd.f32 %v6481, %v6569
        %v6571 = vpop.f32.mrf.mxu0
        %v6572 = vadd.f32 %v6483, %v6571
        %6573 = vmatmul.bf16.gmra.mxu0 %v6151
        %v6574 = vpop.f32.mrf.mxu0
        %v6575 = vadd.f32 %v6486, %v6574
        %v6576 = vpop.f32.mrf.mxu0
        %v6577 = vadd.f32 %v6488, %v6576
        %6578 = vmatmul.bf16.gmra.mxu0 %v6153
        %v6579 = vpop.f32.mrf.mxu0
        %v6580 = vadd.f32 %v6491, %v6579
        %v6581 = vpop.f32.mrf.mxu0
        %v6582 = vadd.f32 %v6493, %v6581
        %6583 = vmatmul.bf16.gmra.mxu0 %v6155
        %v6584 = vpop.f32.mrf.mxu0
        %v6585 = vadd.f32 %v6496, %v6584
        %v6586 = vpop.f32.mrf.mxu0
        %v6587 = vadd.f32 %v6498, %v6586
        %6588 = vmatmul.bf16.gmra.mxu0 %v6157
        %v6589 = vpop.f32.mrf.mxu0
        %v6590 = vadd.f32 %v6501, %v6589
        %v6591 = vpop.f32.mrf.mxu0
        %v6592 = vadd.f32 %v6503, %v6591
        %6593 = vmatmul.bf16.gmra.mxu0 %v6159
        %v6594 = vpop.f32.mrf.mxu0
        %v6595 = vadd.f32 %v6506, %v6594
        %v6596 = vpop.f32.mrf.mxu0
        %v6597 = vadd.f32 %v6508, %v6596
        %6598 = vmatmul.bf16.gmra.mxu0 %v6162
        %v6599 = vpop.f32.mrf.mxu0
        %v6600 = vadd.f32 %v6511, %v6599
        %v6601 = vpop.f32.mrf.mxu0
        %v6602 = vadd.f32 %v6513, %v6601
        %6603 = vmatmul.bf16.gmra.mxu0 %v3906
        %v6604 = vpop.f32.mrf.mxu0
        %v6605 = vadd.f32 %v6516, %v6604
        %v6606 = vpop.f32.mrf.mxu0
        %v6607 = vadd.f32 %v6518, %v6606
        %6608 = vdwg.mxu0
        %v6609 = vmax.f32 %v6530, 0.0
        %v6610 = vmax.f32 %v6532, 0.0
        %v6611 = vmax.f32 %v6535, 0.0
        %v6612 = vmax.f32 %v6537, 0.0
        %v6613 = vmax.f32 %v6540, 0.0
        %v6614 = vmax.f32 %v6542, 0.0
        %v6615 = vmax.f32 %v6545, 0.0
        %v6616 = vmax.f32 %v6547, 0.0
        %v6617 = vmax.f32 %v6550, 0.0
        %v6618 = vmax.f32 %v6552, 0.0
        %v6619 = vmax.f32 %v6555, 0.0
        %v6620 = vmax.f32 %v6557, 0.0
        %v6621 = vmax.f32 %v6560, 0.0
        %v6622 = vmax.f32 %v6562, 0.0
        %v6623 = vmax.f32 %v6565, 0.0
        %v6624 = vmax.f32 %v6567, 0.0
        %v6625 = vmax.f32 %v6570, 0.0
        %v6626 = vmax.f32 %v6572, 0.0
        %v6627 = vmax.f32 %v6575, 0.0
        %v6628 = vmax.f32 %v6577, 0.0
        %v6629 = vmax.f32 %v6580, 0.0
        %v6630 = vmax.f32 %v6582, 0.0
        %v6631 = vmax.f32 %v6585, 0.0
        %v6632 = vmax.f32 %v6587, 0.0
        %v6633 = vmax.f32 %v6590, 0.0
        %v6634 = vmax.f32 %v6592, 0.0
        %v6635 = vmax.f32 %v6595, 0.0
        %v6636 = vmax.f32 %v6597, 0.0
        %v6637 = vmax.f32 %v6600, 0.0
        %v6638 = vmax.f32 %v6602, 0.0
        %v6639 = vmax.f32 %v6605, 0.0
        %v6640 = vmax.f32 %v6607, 0.0
        %6641 = vst [vmem:[%s733] sm:$0xff] %v6609
        %6642 = vst [vmem:[%s733 + $0x8] sm:$0xff] %v6610
        %6643 = vst [vmem:[%s733 + $0x10] sm:$0xff] %v6611
        %6644 = vst [vmem:[%s733 + $0x18] sm:$0xff] %v6612
        %6645 = vst [vmem:[%s733 + $0x20] sm:$0xff] %v6613
        %6646 = vst [vmem:[%s733 + $0x28] sm:$0xff] %v6614
        %6647 = vst [vmem:[%s733 + $0x30] sm:$0xff] %v6615
        %6648 = vst [vmem:[%s733 + $0x38] sm:$0xff] %v6616
        %6649 = vst [vmem:[%s733 + $0x40] sm:$0xff] %v6617
        %6650 = vst [vmem:[%s733 + $0x48] sm:$0xff] %v6618
        %6651 = vst [vmem:[%s733 + $0x50] sm:$0xff] %v6619
        %6652 = vst [vmem:[%s733 + $0x58] sm:$0xff] %v6620
        %6653 = vst [vmem:[%s733 + $0x60] sm:$0xff] %v6621
        %6654 = vst [vmem:[%s733 + $0x68] sm:$0xff] %v6622
        %6655 = vst [vmem:[%s733 + $0x70] sm:$0xff] %v6623
        %6656 = vst [vmem:[%s733 + $0x78] sm:$0xff] %v6624
        %6657 = vst [vmem:[%s733 + $0x80] sm:$0xff] %v6625
        %6658 = vst [vmem:[%s733 + $0x88] sm:$0xff] %v6626
        %6659 = vst [vmem:[%s733 + $0x90] sm:$0xff] %v6627
        %6660 = vst [vmem:[%s733 + $0x98] sm:$0xff] %v6628
        %6661 = vst [vmem:[%s733 + $0xa0] sm:$0xff] %v6629
        %6662 = vst [vmem:[%s733 + $0xa8] sm:$0xff] %v6630
        %6663 = vst [vmem:[%s733 + $0xb0] sm:$0xff] %v6631
        %6664 = vst [vmem:[%s733 + $0xb8] sm:$0xff] %v6632
        %6665 = vst [vmem:[%s733 + $0xc0] sm:$0xff] %v6633
        %6666 = vst [vmem:[%s733 + $0xc8] sm:$0xff] %v6634
        %6667 = vst [vmem:[%s733 + $0xd0] sm:$0xff] %v6635
        %6668 = vst [vmem:[%s733 + $0xd8] sm:$0xff] %v6636
        %6669 = vst [vmem:[%s733 + $0xe0] sm:$0xff] %v6637
        %6670 = vst [vmem:[%s733 + $0xe8] sm:$0xff] %v6638
        %6671 = vst [vmem:[%s733 + $0xf0] sm:$0xff] %v6639
        %6672 = vst [vmem:[%s733 + $0xf8] sm:$0xff] %v6640
        %v6705 = vrot.slane %v5154, 2
        %v6706 = vrot.slane %v5154, 4
        %v6707 = vrot.slane %v5154, 6
        %v6708 = vrot.slane %v5155, 2
        %v6709 = vrot.slane %v5155, 4
        %v6710 = vrot.slane %v5155, 6
        %v6711 = vrot.slane %v5156, 2
        %v6712 = vrot.slane %v5156, 4
        %v6713 = vrot.slane %v5156, 6
        %v6714 = vrot.slane %v5157, 2
        %v6715 = vrot.slane %v5157, 4
        %v6716 = vrot.slane %v5157, 6
        %v6717 = vrot.slane %v5158, 2
        %v6718 = vrot.slane %v5158, 4
        %v6719 = vrot.slane %v5158, 6
        %v6720 = vrot.slane %v5159, 2
        %v6721 = vrot.slane %v5159, 4
        %v6722 = vrot.slane %v5159, 6
        %v6723 = vrot.slane %v5160, 2
        %v6724 = vrot.slane %v5160, 4
        %v6725 = vrot.slane %v5160, 6
        %v6726 = vrot.slane %v5161, 2
        %v6727 = vrot.slane %v5161, 4
        %v6728 = vrot.slane %v5161, 6
        %v6729 = vrot.slane %v5162, 2
        %v6730 = vrot.slane %v5162, 4
        %v6731 = vrot.slane %v5162, 6
        %v6732 = vrot.slane %v5163, 2
        %v6733 = vrot.slane %v5163, 4
        %v6734 = vrot.slane %v5163, 6
        %v6735 = vrot.slane %v5164, 2
        %v6736 = vrot.slane %v5164, 4
        %v6737 = vrot.slane %v5164, 6
        %v6738 = vrot.slane %v5165, 2
        %v6739 = vrot.slane %v5165, 4
        %v6740 = vrot.slane %v5165, 6
        %v6741 = vrot.slane %v5166, 2
        %v6742 = vrot.slane %v5166, 4
        %v6743 = vrot.slane %v5166, 6
        %v6744 = vrot.slane %v5167, 2
        %v6745 = vrot.slane %v5167, 4
        %v6746 = vrot.slane %v5167, 6
        %v6747 = vrot.slane %v5168, 2
        %v6748 = vrot.slane %v5168, 4
        %v6749 = vrot.slane %v5168, 6
        %v6750 = vrot.slane %v5169, 2
        %v6751 = vrot.slane %v5169, 4
        %v6752 = vrot.slane %v5169, 6
        %v6753 = vrot.slane %v5170, 2
        %v6754 = vrot.slane %v5170, 4
        %v6755 = vrot.slane %v5170, 6
        %v6756 = vrot.slane %v5171, 2
        %v6757 = vrot.slane %v5171, 4
        %v6758 = vrot.slane %v5171, 6
        %v6759 = vrot.slane %v5172, 2
        %v6760 = vrot.slane %v5172, 4
        %v6761 = vrot.slane %v5172, 6
        %v6762 = vrot.slane %v5173, 2
        %v6763 = vrot.slane %v5173, 4
        %v6764 = vrot.slane %v5173, 6
        %v6765 = vrot.slane %v5174, 2
        %v6766 = vrot.slane %v5174, 4
        %v6767 = vrot.slane %v5174, 6
        %v6768 = vrot.slane %v5175, 2
        %v6769 = vrot.slane %v5175, 4
        %v6770 = vrot.slane %v5175, 6
        %v6771 = vrot.slane %v5176, 2
        %v6772 = vrot.slane %v5176, 4
        %v6773 = vrot.slane %v5176, 6
        %v6774 = vrot.slane %v5177, 2
        %v6775 = vrot.slane %v5177, 4
        %v6776 = vrot.slane %v5177, 6
        %v6777 = vrot.slane %v5178, 2
        %v6778 = vrot.slane %v5178, 4
        %v6779 = vrot.slane %v5178, 6
        %v6780 = vrot.slane %v5179, 2
        %v6781 = vrot.slane %v5179, 4
        %v6782 = vrot.slane %v5179, 6
        %v6783 = vrot.slane %v5180, 2
        %v6784 = vrot.slane %v5180, 4
        %v6785 = vrot.slane %v5180, 6
        %v6786 = vrot.slane %v5181, 2
        %v6787 = vrot.slane %v5181, 4
        %v6788 = vrot.slane %v5181, 6
        %v6789 = vrot.slane %v5182, 2
        %v6790 = vrot.slane %v5182, 4
        %v6791 = vrot.slane %v5182, 6
        %v6792 = vrot.slane %v5183, 2
        %v6793 = vrot.slane %v5183, 4
        %v6794 = vrot.slane %v5183, 6
        %v6795 = vrot.slane %v5184, 2
        %v6796 = vrot.slane %v5184, 4
        %v6797 = vrot.slane %v5184, 6
        %v6798 = vrot.slane %v5185, 2
        %v6799 = vrot.slane %v5185, 4
        %v6800 = vrot.slane %v5185, 6
        %v6897 = vrot.slane %v5154, 7
        %v6898 = vrot.slane %v6897, 2
        %v6899 = vrot.slane %v6705, 7
        %v6900 = vrot.slane %v6899, 2
        %v6901 = vrot.slane %v6706, 7
        %v6902 = vrot.slane %v6901, 2
        %v6903 = vrot.slane %v6707, 7
        %v6904 = vrot.slane %v6903, 2
        %v6905 = vrot.slane %v5155, 7
        %v6906 = vrot.slane %v6905, 2
        %v6907 = vrot.slane %v6708, 7
        %v6908 = vrot.slane %v6907, 2
        %v6909 = vrot.slane %v6709, 7
        %v6910 = vrot.slane %v6909, 2
        %v6911 = vrot.slane %v6710, 7
        %v6912 = vrot.slane %v6911, 2
        %v6913 = vrot.slane %v5158, 7
        %v6914 = vrot.slane %v6913, 2
        %v6915 = vrot.slane %v6717, 7
        %v6916 = vrot.slane %v6915, 2
        %v6917 = vrot.slane %v6718, 7
        %v6918 = vrot.slane %v6917, 2
        %v6919 = vrot.slane %v6719, 7
        %v6920 = vrot.slane %v6919, 2
        %v6921 = vrot.slane %v5159, 7
        %v6922 = vrot.slane %v6921, 2
        %v6923 = vrot.slane %v6720, 7
        %v6924 = vrot.slane %v6923, 2
        %v6925 = vrot.slane %v6721, 7
        %v6926 = vrot.slane %v6925, 2
        %v6927 = vrot.slane %v6722, 7
        %v6928 = vrot.slane %v6927, 2
        %v6929 = vrot.slane %v5162, 7
        %v6930 = vrot.slane %v6929, 2
        %v6931 = vrot.slane %v6729, 7
        %v6932 = vrot.slane %v6931, 2
        %v6933 = vrot.slane %v6730, 7
        %v6934 = vrot.slane %v6933, 2
        %v6935 = vrot.slane %v6731, 7
        %v6936 = vrot.slane %v6935, 2
        %v6937 = vrot.slane %v5163, 7
        %v6938 = vrot.slane %v6937, 2
        %v6939 = vrot.slane %v6732, 7
        %v6940 = vrot.slane %v6939, 2
        %v6941 = vrot.slane %v6733, 7
        %v6942 = vrot.slane %v6941, 2
        %v6943 = vrot.slane %v6734, 7
        %v6944 = vrot.slane %v6943, 2
        %v6945 = vrot.slane %v5166, 7
        %v6946 = vrot.slane %v6945, 2
        %v6947 = vrot.slane %v6741, 7
        %v6948 = vrot.slane %v6947, 2
        %v6949 = vrot.slane %v6742, 7
        %v6950 = vrot.slane %v6949, 2
        %v6951 = vrot.slane %v6743, 7
        %v6952 = vrot.slane %v6951, 2
        %v6953 = vrot.slane %v5167, 7
        %v6954 = vrot.slane %v6953, 2
        %v6955 = vrot.slane %v6744, 7
        %v6956 = vrot.slane %v6955, 2
        %v6957 = vrot.slane %v6745, 7
        %v6958 = vrot.slane %v6957, 2
        %v6959 = vrot.slane %v6746, 7
        %v6960 = vrot.slane %v6959, 2
        %v6961 = vrot.slane %v5170, 7
        %v6962 = vrot.slane %v6961, 2
        %v6963 = vrot.slane %v6753, 7
        %v6964 = vrot.slane %v6963, 2
        %v6965 = vrot.slane %v6754, 7
        %v6966 = vrot.slane %v6965, 2
        %v6967 = vrot.slane %v6755, 7
        %v6968 = vrot.slane %v6967, 2
        %v6969 = vrot.slane %v5171, 7
        %v6970 = vrot.slane %v6969, 2
        %v6971 = vrot.slane %v6756, 7
        %v6972 = vrot.slane %v6971, 2
        %v6973 = vrot.slane %v6757, 7
        %v6974 = vrot.slane %v6973, 2
        %v6975 = vrot.slane %v6758, 7
        %v6976 = vrot.slane %v6975, 2
        %v6977 = vrot.slane %v5174, 7
        %v6978 = vrot.slane %v6977, 2
        %v6979 = vrot.slane %v6765, 7
        %v6980 = vrot.slane %v6979, 2
        %v6981 = vrot.slane %v6766, 7
        %v6982 = vrot.slane %v6981, 2
        %v6983 = vrot.slane %v6767, 7
        %v6984 = vrot.slane %v6983, 2
        %v6985 = vrot.slane %v5175, 7
        %v6986 = vrot.slane %v6985, 2
        %v6987 = vrot.slane %v6768, 7
        %v6988 = vrot.slane %v6987, 2
        %v6989 = vrot.slane %v6769, 7
        %v6990 = vrot.slane %v6989, 2
        %v6991 = vrot.slane %v6770, 7
        %v6992 = vrot.slane %v6991, 2
        %v6993 = vrot.slane %v5178, 7
        %v6994 = vrot.slane %v6993, 2
        %v6995 = vrot.slane %v6777, 7
        %v6996 = vrot.slane %v6995, 2
        %v6997 = vrot.slane %v6778, 7
        %v6998 = vrot.slane %v6997, 2
        %v6999 = vrot.slane %v6779, 7
        %v7000 = vrot.slane %v6999, 2
        %v7001 = vrot.slane %v5179, 7
        %v7002 = vrot.slane %v7001, 2
        %v7003 = vrot.slane %v6780, 7
        %v7004 = vrot.slane %v7003, 2
        %v7005 = vrot.slane %v6781, 7
        %v7006 = vrot.slane %v7005, 2
        %v7007 = vrot.slane %v6782, 7
        %v7008 = vrot.slane %v7007, 2
        %v7009 = vrot.slane %v5182, 7
        %v7010 = vrot.slane %v7009, 2
        %v7011 = vrot.slane %v6789, 7
        %v7012 = vrot.slane %v7011, 2
        %v7013 = vrot.slane %v6790, 7
        %v7014 = vrot.slane %v7013, 2
        %v7015 = vrot.slane %v6791, 7
        %v7016 = vrot.slane %v7015, 2
        %v7017 = vrot.slane %v5183, 7
        %v7018 = vrot.slane %v7017, 2
        %v7019 = vrot.slane %v6792, 7
        %v7020 = vrot.slane %v7019, 2
        %v7021 = vrot.slane %v6793, 7
        %v7022 = vrot.slane %v7021, 2
        %v7023 = vrot.slane %v6794, 7
        %v7024 = vrot.slane %v7023, 2
        %v7089 = vmax.f32 %v5154, %v6898
        %v7090 = vmax.f32 %v6705, %v6900
        %v7091 = vmax.f32 %v6706, %v6902
        %v7092 = vmax.f32 %v6707, %v6904
        %v7093 = vmax.f32 %v5155, %v6906
        %v7094 = vmax.f32 %v6708, %v6908
        %v7095 = vmax.f32 %v6709, %v6910
        %v7096 = vmax.f32 %v6710, %v6912
        %v7097 = vmax.f32 %v5158, %v6914
        %v7098 = vmax.f32 %v6717, %v6916
        %v7099 = vmax.f32 %v6718, %v6918
        %v7100 = vmax.f32 %v6719, %v6920
        %v7101 = vmax.f32 %v5159, %v6922
        %v7102 = vmax.f32 %v6720, %v6924
        %v7103 = vmax.f32 %v6721, %v6926
        %v7104 = vmax.f32 %v6722, %v6928
        %v7105 = vmax.f32 %v5162, %v6930
        %v7106 = vmax.f32 %v6729, %v6932
        %v7107 = vmax.f32 %v6730, %v6934
        %v7108 = vmax.f32 %v6731, %v6936
        %v7109 = vmax.f32 %v5163, %v6938
        %v7110 = vmax.f32 %v6732, %v6940
        %v7111 = vmax.f32 %v6733, %v6942
        %v7112 = vmax.f32 %v6734, %v6944
        %v7113 = vmax.f32 %v5166, %v6946
        %v7114 = vmax.f32 %v6741, %v6948
        %v7115 = vmax.f32 %v6742, %v6950
        %v7116 = vmax.f32 %v6743, %v6952
        %v7117 = vmax.f32 %v5167, %v6954
        %v7118 = vmax.f32 %v6744, %v6956
        %v7119 = vmax.f32 %v6745, %v6958
        %v7120 = vmax.f32 %v6746, %v6960
        %v7121 = vmax.f32 %v5170, %v6962
        %v7122 = vmax.f32 %v6753, %v6964
        %v7123 = vmax.f32 %v6754, %v6966
        %v7124 = vmax.f32 %v6755, %v6968
        %v7125 = vmax.f32 %v5171, %v6970
        %v7126 = vmax.f32 %v6756, %v6972
        %v7127 = vmax.f32 %v6757, %v6974
        %v7128 = vmax.f32 %v6758, %v6976
        %v7129 = vmax.f32 %v5174, %v6978
        %v7130 = vmax.f32 %v6765, %v6980
        %v7131 = vmax.f32 %v6766, %v6982
        %v7132 = vmax.f32 %v6767, %v6984
        %v7133 = vmax.f32 %v5175, %v6986
        %v7134 = vmax.f32 %v6768, %v6988
        %v7135 = vmax.f32 %v6769, %v6990
        %v7136 = vmax.f32 %v6770, %v6992
        %v7137 = vmax.f32 %v5178, %v6994
        %v7138 = vmax.f32 %v6777, %v6996
        %v7139 = vmax.f32 %v6778, %v6998
        %v7140 = vmax.f32 %v6779, %v7000
        %v7141 = vmax.f32 %v5179, %v7002
        %v7142 = vmax.f32 %v6780, %v7004
        %v7143 = vmax.f32 %v6781, %v7006
        %v7144 = vmax.f32 %v6782, %v7008
        %v7145 = vmax.f32 %v5182, %v7010
        %v7146 = vmax.f32 %v6789, %v7012
        %v7147 = vmax.f32 %v6790, %v7014
        %v7148 = vmax.f32 %v6791, %v7016
        %v7149 = vmax.f32 %v5183, %v7018
        %v7150 = vmax.f32 %v6792, %v7020
        %v7151 = vmax.f32 %v6793, %v7022
        %v7152 = vmax.f32 %v6794, %v7024
        %v7153 = vrot.slane %v5156, 7
        %v7154 = vrot.slane %v7153, 2
        %v7155 = vrot.slane %v6711, 7
        %v7156 = vrot.slane %v7155, 2
        %v7157 = vrot.slane %v6712, 7
        %v7158 = vrot.slane %v7157, 2
        %v7159 = vrot.slane %v6713, 7
        %v7160 = vrot.slane %v7159, 2
        %v7161 = vrot.slane %v5157, 7
        %v7162 = vrot.slane %v7161, 2
        %v7163 = vrot.slane %v6714, 7
        %v7164 = vrot.slane %v7163, 2
        %v7165 = vrot.slane %v6715, 7
        %v7166 = vrot.slane %v7165, 2
        %v7167 = vrot.slane %v6716, 7
        %v7168 = vrot.slane %v7167, 2
        %v7169 = vrot.slane %v5160, 7
        %v7170 = vrot.slane %v7169, 2
        %v7171 = vrot.slane %v6723, 7
        %v7172 = vrot.slane %v7171, 2
        %v7173 = vrot.slane %v6724, 7
        %v7174 = vrot.slane %v7173, 2
        %v7175 = vrot.slane %v6725, 7
        %v7176 = vrot.slane %v7175, 2
        %v7177 = vrot.slane %v5161, 7
        %v7178 = vrot.slane %v7177, 2
        %v7179 = vrot.slane %v6726, 7
        %v7180 = vrot.slane %v7179, 2
        %v7181 = vrot.slane %v6727, 7
        %v7182 = vrot.slane %v7181, 2
        %v7183 = vrot.slane %v6728, 7
        %v7184 = vrot.slane %v7183, 2
        %v7185 = vrot.slane %v5164, 7
        %v7186 = vrot.slane %v7185, 2
        %v7187 = vrot.slane %v6735, 7
        %v7188 = vrot.slane %v7187, 2
        %v7189 = vrot.slane %v6736, 7
        %v7190 = vrot.slane %v7189, 2
        %v7191 = vrot.slane %v6737, 7
        %v7192 = vrot.slane %v7191, 2
        %v7193 = vrot.slane %v5165, 7
        %v7194 = vrot.slane %v7193, 2
        %v7195 = vrot.slane %v6738, 7
        %v7196 = vrot.slane %v7195, 2
        %v7197 = vrot.slane %v6739, 7
        %v7198 = vrot.slane %v7197, 2
        %v7199 = vrot.slane %v6740, 7
        %v7200 = vrot.slane %v7199, 2
        %v7201 = vrot.slane %v5168, 7
        %v7202 = vrot.slane %v7201, 2
        %v7203 = vrot.slane %v6747, 7
        %v7204 = vrot.slane %v7203, 2
        %v7205 = vrot.slane %v6748, 7
        %v7206 = vrot.slane %v7205, 2
        %v7207 = vrot.slane %v6749, 7
        %v7208 = vrot.slane %v7207, 2
        %v7209 = vrot.slane %v5169, 7
        %v7210 = vrot.slane %v7209, 2
        %v7211 = vrot.slane %v6750, 7
        %v7212 = vrot.slane %v7211, 2
        %v7213 = vrot.slane %v6751, 7
        %v7214 = vrot.slane %v7213, 2
        %v7215 = vrot.slane %v6752, 7
        %v7216 = vrot.slane %v7215, 2
        %v7217 = vrot.slane %v5172, 7
        %v7218 = vrot.slane %v7217, 2
        %v7219 = vrot.slane %v6759, 7
        %v7220 = vrot.slane %v7219, 2
        %v7221 = vrot.slane %v6760, 7
        %v7222 = vrot.slane %v7221, 2
        %v7223 = vrot.slane %v6761, 7
        %v7224 = vrot.slane %v7223, 2
        %v7225 = vrot.slane %v5173, 7
        %v7226 = vrot.slane %v7225, 2
        %v7227 = vrot.slane %v6762, 7
        %v7228 = vrot.slane %v7227, 2
        %v7229 = vrot.slane %v6763, 7
        %v7230 = vrot.slane %v7229, 2
        %v7231 = vrot.slane %v6764, 7
        %v7232 = vrot.slane %v7231, 2
        %v7233 = vrot.slane %v5176, 7
        %v7234 = vrot.slane %v7233, 2
        %v7235 = vrot.slane %v6771, 7
        %v7236 = vrot.slane %v7235, 2
        %v7237 = vrot.slane %v6772, 7
        %v7238 = vrot.slane %v7237, 2
        %v7239 = vrot.slane %v6773, 7
        %v7240 = vrot.slane %v7239, 2
        %v7241 = vrot.slane %v5177, 7
        %v7242 = vrot.slane %v7241, 2
        %v7243 = vrot.slane %v6774, 7
        %v7244 = vrot.slane %v7243, 2
        %v7245 = vrot.slane %v6775, 7
        %v7246 = vrot.slane %v7245, 2
        %v7247 = vrot.slane %v6776, 7
        %v7248 = vrot.slane %v7247, 2
        %v7249 = vrot.slane %v5180, 7
        %v7250 = vrot.slane %v7249, 2
        %v7251 = vrot.slane %v6783, 7
        %v7252 = vrot.slane %v7251, 2
        %v7253 = vrot.slane %v6784, 7
        %v7254 = vrot.slane %v7253, 2
        %v7255 = vrot.slane %v6785, 7
        %v7256 = vrot.slane %v7255, 2
        %v7257 = vrot.slane %v5181, 7
        %v7258 = vrot.slane %v7257, 2
        %v7259 = vrot.slane %v6786, 7
        %v7260 = vrot.slane %v7259, 2
        %v7261 = vrot.slane %v6787, 7
        %v7262 = vrot.slane %v7261, 2
        %v7263 = vrot.slane %v6788, 7
        %v7264 = vrot.slane %v7263, 2
        %v7265 = vrot.slane %v5184, 7
        %v7266 = vrot.slane %v7265, 2
        %v7267 = vrot.slane %v6795, 7
        %v7268 = vrot.slane %v7267, 2
        %v7269 = vrot.slane %v6796, 7
        %v7270 = vrot.slane %v7269, 2
        %v7271 = vrot.slane %v6797, 7
        %v7272 = vrot.slane %v7271, 2
        %v7273 = vrot.slane %v5185, 7
        %v7274 = vrot.slane %v7273, 2
        %v7275 = vrot.slane %v6798, 7
        %v7276 = vrot.slane %v7275, 2
        %v7277 = vrot.slane %v6799, 7
        %v7278 = vrot.slane %v7277, 2
        %v7279 = vrot.slane %v6800, 7
        %v7280 = vrot.slane %v7279, 2
        %v7345 = vmax.f32 %v5156, %v7154
        %v7346 = vmax.f32 %v6711, %v7156
        %v7347 = vmax.f32 %v6712, %v7158
        %v7348 = vmax.f32 %v6713, %v7160
        %v7349 = vmax.f32 %v5157, %v7162
        %v7350 = vmax.f32 %v6714, %v7164
        %v7351 = vmax.f32 %v6715, %v7166
        %v7352 = vmax.f32 %v6716, %v7168
        %v7353 = vmax.f32 %v5160, %v7170
        %v7354 = vmax.f32 %v6723, %v7172
        %v7355 = vmax.f32 %v6724, %v7174
        %v7356 = vmax.f32 %v6725, %v7176
        %v7357 = vmax.f32 %v5161, %v7178
        %v7358 = vmax.f32 %v6726, %v7180
        %v7359 = vmax.f32 %v6727, %v7182
        %v7360 = vmax.f32 %v6728, %v7184
        %v7361 = vmax.f32 %v5164, %v7186
        %v7362 = vmax.f32 %v6735, %v7188
        %v7363 = vmax.f32 %v6736, %v7190
        %v7364 = vmax.f32 %v6737, %v7192
        %v7365 = vmax.f32 %v5165, %v7194
        %v7366 = vmax.f32 %v6738, %v7196
        %v7367 = vmax.f32 %v6739, %v7198
        %v7368 = vmax.f32 %v6740, %v7200
        %v7369 = vmax.f32 %v5168, %v7202
        %v7370 = vmax.f32 %v6747, %v7204
        %v7371 = vmax.f32 %v6748, %v7206
        %v7372 = vmax.f32 %v6749, %v7208
        %v7373 = vmax.f32 %v5169, %v7210
        %v7374 = vmax.f32 %v6750, %v7212
        %v7375 = vmax.f32 %v6751, %v7214
        %v7376 = vmax.f32 %v6752, %v7216
        %v7377 = vmax.f32 %v5172, %v7218
        %v7378 = vmax.f32 %v6759, %v7220
        %v7379 = vmax.f32 %v6760, %v7222
        %v7380 = vmax.f32 %v6761, %v7224
        %v7381 = vmax.f32 %v5173, %v7226
        %v7382 = vmax.f32 %v6762, %v7228
        %v7383 = vmax.f32 %v6763, %v7230
        %v7384 = vmax.f32 %v6764, %v7232
        %v7385 = vmax.f32 %v5176, %v7234
        %v7386 = vmax.f32 %v6771, %v7236
        %v7387 = vmax.f32 %v6772, %v7238
        %v7388 = vmax.f32 %v6773, %v7240
        %v7389 = vmax.f32 %v5177, %v7242
        %v7390 = vmax.f32 %v6774, %v7244
        %v7391 = vmax.f32 %v6775, %v7246
        %v7392 = vmax.f32 %v6776, %v7248
        %v7393 = vmax.f32 %v5180, %v7250
        %v7394 = vmax.f32 %v6783, %v7252
        %v7395 = vmax.f32 %v6784, %v7254
        %v7396 = vmax.f32 %v6785, %v7256
        %v7397 = vmax.f32 %v5181, %v7258
        %v7398 = vmax.f32 %v6786, %v7260
        %v7399 = vmax.f32 %v6787, %v7262
        %v7400 = vmax.f32 %v6788, %v7264
        %v7401 = vmax.f32 %v5184, %v7266
        %v7402 = vmax.f32 %v6795, %v7268
        %v7403 = vmax.f32 %v6796, %v7270
        %v7404 = vmax.f32 %v6797, %v7272
        %v7405 = vmax.f32 %v5185, %v7274
        %v7406 = vmax.f32 %v6798, %v7276
        %v7407 = vmax.f32 %v6799, %v7278
        %v7408 = vmax.f32 %v6800, %v7280
        %v7409 = vmax.f32 %v7089, %v7345
        %v7410 = vmax.f32 %v7090, %v7346
        %v7411 = vmax.f32 %v7091, %v7347
        %v7412 = vmax.f32 %v7092, %v7348
        %v7413 = vmax.f32 %v7093, %v7349
        %v7414 = vmax.f32 %v7094, %v7350
        %v7415 = vmax.f32 %v7095, %v7351
        %v7416 = vmax.f32 %v7096, %v7352
        %v7417 = vmax.f32 %v7097, %v7353
        %v7418 = vmax.f32 %v7098, %v7354
        %v7419 = vmax.f32 %v7099, %v7355
        %v7420 = vmax.f32 %v7100, %v7356
        %v7421 = vmax.f32 %v7101, %v7357
        %v7422 = vmax.f32 %v7102, %v7358
        %v7423 = vmax.f32 %v7103, %v7359
        %v7424 = vmax.f32 %v7104, %v7360
        %v7425 = vmax.f32 %v7105, %v7361
        %v7426 = vmax.f32 %v7106, %v7362
        %v7427 = vmax.f32 %v7107, %v7363
        %v7428 = vmax.f32 %v7108, %v7364
        %v7429 = vmax.f32 %v7109, %v7365
        %v7430 = vmax.f32 %v7110, %v7366
        %v7431 = vmax.f32 %v7111, %v7367
        %v7432 = vmax.f32 %v7112, %v7368
        %v7433 = vmax.f32 %v7113, %v7369
        %v7434 = vmax.f32 %v7114, %v7370
        %v7435 = vmax.f32 %v7115, %v7371
        %v7436 = vmax.f32 %v7116, %v7372
        %v7437 = vmax.f32 %v7117, %v7373
        %v7438 = vmax.f32 %v7118, %v7374
        %v7439 = vmax.f32 %v7119, %v7375
        %v7440 = vmax.f32 %v7120, %v7376
        %v7441 = vmax.f32 %v7121, %v7377
        %v7442 = vmax.f32 %v7122, %v7378
        %v7443 = vmax.f32 %v7123, %v7379
        %v7444 = vmax.f32 %v7124, %v7380
        %v7445 = vmax.f32 %v7125, %v7381
        %v7446 = vmax.f32 %v7126, %v7382
        %v7447 = vmax.f32 %v7127, %v7383
        %v7448 = vmax.f32 %v7128, %v7384
        %v7449 = vmax.f32 %v7129, %v7385
        %v7450 = vmax.f32 %v7130, %v7386
        %v7451 = vmax.f32 %v7131, %v7387
        %v7452 = vmax.f32 %v7132, %v7388
        %v7453 = vmax.f32 %v7133, %v7389
        %v7454 = vmax.f32 %v7134, %v7390
        %v7455 = vmax.f32 %v7135, %v7391
        %v7456 = vmax.f32 %v7136, %v7392
        %v7457 = vmax.f32 %v7137, %v7393
        %v7458 = vmax.f32 %v7138, %v7394
        %v7459 = vmax.f32 %v7139, %v7395
        %v7460 = vmax.f32 %v7140, %v7396
        %v7461 = vmax.f32 %v7141, %v7397
        %v7462 = vmax.f32 %v7142, %v7398
        %v7463 = vmax.f32 %v7143, %v7399
        %v7464 = vmax.f32 %v7144, %v7400
        %v7465 = vmax.f32 %v7145, %v7401
        %v7466 = vmax.f32 %v7146, %v7402
        %v7467 = vmax.f32 %v7147, %v7403
        %v7468 = vmax.f32 %v7148, %v7404
        %v7469 = vmax.f32 %v7149, %v7405
        %v7470 = vmax.f32 %v7150, %v7406
        %v7471 = vmax.f32 %v7151, %v7407
        %v7472 = vmax.f32 %v7152, %v7408
        %v7473 = vpack.c.bf16 %v7409, %v7409
        %v7474 = vpack.c.bf16 %v7410, %v7410
        %v7475 = vpack.c.bf16 %v7411, %v7411
        %v7476 = vpack.c.bf16 %v7412, %v7412
        %v7477 = vpack.c.bf16 %v7413, %v7413
        %v7478 = vpack.c.bf16 %v7414, %v7414
        %v7479 = vpack.c.bf16 %v7415, %v7415
        %v7480 = vpack.c.bf16 %v7416, %v7416
        %v7481 = vpack.c.bf16 %v7417, %v7417
        %v7482 = vpack.c.bf16 %v7418, %v7418
        %v7483 = vpack.c.bf16 %v7419, %v7419
        %v7484 = vpack.c.bf16 %v7420, %v7420
        %v7485 = vpack.c.bf16 %v7421, %v7421
        %v7486 = vpack.c.bf16 %v7422, %v7422
        %v7487 = vpack.c.bf16 %v7423, %v7423
        %v7488 = vpack.c.bf16 %v7424, %v7424
        %v7489 = vpack.c.bf16 %v7425, %v7425
        %v7490 = vpack.c.bf16 %v7426, %v7426
        %v7491 = vpack.c.bf16 %v7427, %v7427
        %v7492 = vpack.c.bf16 %v7428, %v7428
        %v7493 = vpack.c.bf16 %v7429, %v7429
        %v7494 = vpack.c.bf16 %v7430, %v7430
        %v7495 = vpack.c.bf16 %v7431, %v7431
        %v7496 = vpack.c.bf16 %v7432, %v7432
        %v7497 = vpack.c.bf16 %v7433, %v7433
        %v7498 = vpack.c.bf16 %v7434, %v7434
        %v7499 = vpack.c.bf16 %v7435, %v7435
        %v7500 = vpack.c.bf16 %v7436, %v7436
        %v7501 = vpack.c.bf16 %v7437, %v7437
        %v7502 = vpack.c.bf16 %v7438, %v7438
        %v7503 = vpack.c.bf16 %v7439, %v7439
        %v7504 = vpack.c.bf16 %v7440, %v7440
        %v7505 = vpack.c.bf16 %v7441, %v7441
        %v7506 = vpack.c.bf16 %v7442, %v7442
        %v7507 = vpack.c.bf16 %v7443, %v7443
        %v7508 = vpack.c.bf16 %v7444, %v7444
        %v7509 = vpack.c.bf16 %v7445, %v7445
        %v7510 = vpack.c.bf16 %v7446, %v7446
        %v7511 = vpack.c.bf16 %v7447, %v7447
        %v7512 = vpack.c.bf16 %v7448, %v7448
        %v7513 = vpack.c.bf16 %v7449, %v7449
        %v7514 = vpack.c.bf16 %v7450, %v7450
        %v7515 = vpack.c.bf16 %v7451, %v7451
        %v7516 = vpack.c.bf16 %v7452, %v7452
        %v7517 = vpack.c.bf16 %v7453, %v7453
        %v7518 = vpack.c.bf16 %v7454, %v7454
        %v7519 = vpack.c.bf16 %v7455, %v7455
        %v7520 = vpack.c.bf16 %v7456, %v7456
        %v7521 = vpack.c.bf16 %v7457, %v7457
        %v7522 = vpack.c.bf16 %v7458, %v7458
        %v7523 = vpack.c.bf16 %v7459, %v7459
        %v7524 = vpack.c.bf16 %v7460, %v7460
        %v7525 = vpack.c.bf16 %v7461, %v7461
        %v7526 = vpack.c.bf16 %v7462, %v7462
        %v7527 = vpack.c.bf16 %v7463, %v7463
        %v7528 = vpack.c.bf16 %v7464, %v7464
        %v7529 = vpack.c.bf16 %v7465, %v7465
        %v7530 = vpack.c.bf16 %v7466, %v7466
        %v7531 = vpack.c.bf16 %v7467, %v7467
        %v7532 = vpack.c.bf16 %v7468, %v7468
        %v7533 = vpack.c.bf16 %v7469, %v7469
        %v7534 = vpack.c.bf16 %v7470, %v7470
        %v7535 = vpack.c.bf16 %v7471, %v7471
        %v7536 = vpack.c.bf16 %v7472, %v7472
        %vm7537 = vcmp.lt.s32.totalorder %v784, 0
        %v7538 = vsub.s32 0, %v784
        %v7539 = vsel %vm7537, %v7538, %v784
        %v7540 = vshrl.u32 %v7539, 3
        %v7541 = vand.u32 %v7539, 7
        %v7542 = vsub.s32 0, %v7541
        %v7543 = vsel %vm7537, %v7542, %v7541
        %vm7544 = vcmp.lt.s32.totalorder %v785, 0
        %v7545 = vsub.s32 0, %v785
        %v7546 = vsel %vm7544, %v7545, %v785
        %v7547 = vshrl.u32 %v7546, 3
        %v7548 = vand.u32 %v7546, 7
        %v7549 = vsub.s32 0, %v7548
        %v7550 = vsel %vm7544, %v7549, %v7548
        %vm7551 = vcmp.lt.s32.totalorder %v786, 0
        %v7552 = vsub.s32 0, %v786
        %v7553 = vsel %vm7551, %v7552, %v786
        %v7554 = vshrl.u32 %v7553, 3
        %v7555 = vand.u32 %v7553, 7
        %v7556 = vsub.s32 0, %v7555
        %v7557 = vsel %vm7551, %v7556, %v7555
        %vm7558 = vcmp.lt.s32.totalorder %v787, 0
        %v7559 = vsub.s32 0, %v787
        %v7560 = vsel %vm7558, %v7559, %v787
        %v7561 = vshrl.u32 %v7560, 3
        %v7562 = vand.u32 %v7560, 7
        %v7563 = vsub.s32 0, %v7562
        %v7564 = vsel %vm7558, %v7563, %v7562
        %vm7565 = vcmp.lt.s32.totalorder %v788, 0
        %v7566 = vsub.s32 0, %v788
        %v7567 = vsel %vm7565, %v7566, %v788
        %v7568 = vshrl.u32 %v7567, 3
        %v7569 = vand.u32 %v7567, 7
        %v7570 = vsub.s32 0, %v7569
        %v7571 = vsel %vm7565, %v7570, %v7569
        %vm7572 = vcmp.lt.s32.totalorder %v789, 0
        %v7573 = vsub.s32 0, %v789
        %v7574 = vsel %vm7572, %v7573, %v789
        %v7575 = vshrl.u32 %v7574, 3
        %v7576 = vand.u32 %v7574, 7
        %v7577 = vsub.s32 0, %v7576
        %v7578 = vsel %vm7572, %v7577, %v7576
        %vm7579 = vcmp.lt.s32.totalorder %v790, 0
        %v7580 = vsub.s32 0, %v790
        %v7581 = vsel %vm7579, %v7580, %v790
        %v7582 = vshrl.u32 %v7581, 3
        %v7583 = vand.u32 %v7581, 7
        %v7584 = vsub.s32 0, %v7583
        %v7585 = vsel %vm7579, %v7584, %v7583
        %vm7586 = vcmp.lt.s32.totalorder %v791, 0
        %v7587 = vsub.s32 0, %v791
        %v7588 = vsel %vm7586, %v7587, %v791
        %v7589 = vshrl.u32 %v7588, 3
        %v7590 = vand.u32 %v7588, 7
        %v7591 = vsub.s32 0, %v7590
        %v7592 = vsel %vm7586, %v7591, %v7590
        %vm7593 = vcmp.ne.s32.totalorder %v7543, 0
        %vm7594 = vcmp.ne.s32.totalorder %v7550, 0
        %vm7595 = vcmp.ne.s32.totalorder %v7557, 0
        %vm7596 = vcmp.ne.s32.totalorder %v7564, 0
        %vm7597 = vcmp.ne.s32.totalorder %v7571, 0
        %vm7598 = vcmp.ne.s32.totalorder %v7578, 0
        %vm7599 = vcmp.ne.s32.totalorder %v7585, 0
        %vm7600 = vcmp.ne.s32.totalorder %v7592, 0
        %vm7601 = vcmp.lt.s32.totalorder %v7543, 0
        %vm7602 = vcmp.lt.s32.totalorder %v7550, 0
        %vm7603 = vcmp.lt.s32.totalorder %v7557, 0
        %vm7604 = vcmp.lt.s32.totalorder %v7564, 0
        %vm7605 = vcmp.lt.s32.totalorder %v7571, 0
        %vm7606 = vcmp.lt.s32.totalorder %v7578, 0
        %vm7607 = vcmp.lt.s32.totalorder %v7585, 0
        %vm7608 = vcmp.lt.s32.totalorder %v7592, 0
        %vm7609 = vmand %vm7601, %vm7593
        %vm7610 = vmand %vm7602, %vm7594
        %vm7611 = vmand %vm7603, %vm7595
        %vm7612 = vmand %vm7604, %vm7596
        %vm7613 = vmand %vm7605, %vm7597
        %vm7614 = vmand %vm7606, %vm7598
        %vm7615 = vmand %vm7607, %vm7599
        %vm7616 = vmand %vm7608, %vm7600
        %v7617 = vadd.s32 %v7543, 8
        %v7618 = vadd.s32 %v7550, 8
        %v7619 = vadd.s32 %v7557, 8
        %v7620 = vadd.s32 %v7564, 8
        %v7621 = vadd.s32 %v7571, 8
        %v7622 = vadd.s32 %v7578, 8
        %v7623 = vadd.s32 %v7585, 8
        %v7624 = vadd.s32 %v7592, 8
        %v7625 = vsel %vm7609, %v7617, %v7543
        %v7626 = vsel %vm7610, %v7618, %v7550
        %v7627 = vsel %vm7611, %v7619, %v7557
        %v7628 = vsel %vm7612, %v7620, %v7564
        %v7629 = vsel %vm7613, %v7621, %v7571
        %v7630 = vsel %vm7614, %v7622, %v7578
        %v7631 = vsel %vm7615, %v7623, %v7585
        %v7632 = vsel %vm7616, %v7624, %v7592
        %vm7633 = vcmp.ne.s32.totalorder %v7625, 0
        %vm7634 = vcmp.ne.s32.totalorder %v7626, 0
        %vm7635 = vcmp.ne.s32.totalorder %v7627, 0
        %vm7636 = vcmp.ne.s32.totalorder %v7628, 0
        %vm7637 = vcmp.ne.s32.totalorder %v7629, 0
        %vm7638 = vcmp.ne.s32.totalorder %v7630, 0
        %vm7639 = vcmp.ne.s32.totalorder %v7631, 0
        %vm7640 = vcmp.ne.s32.totalorder %v7632, 0
        %vm7641 = vcmp.ne.s32.totalorder %v7625, 7
        %vm7642 = vcmp.ne.s32.totalorder %v7626, 7
        %vm7643 = vcmp.ne.s32.totalorder %v7627, 7
        %vm7644 = vcmp.ne.s32.totalorder %v7628, 7
        %vm7645 = vcmp.ne.s32.totalorder %v7629, 7
        %vm7646 = vcmp.ne.s32.totalorder %v7630, 7
        %vm7647 = vcmp.ne.s32.totalorder %v7631, 7
        %vm7648 = vcmp.ne.s32.totalorder %v7632, 7
        %v7712 = vunpack.c.l.b16 %v7473
        %v7713 = vunpack.c.l.b16 %v7474
        %v7714 = vunpack.c.l.b16 %v7475
        %v7715 = vunpack.c.l.b16 %v7476
        %v7716 = vunpack.c.l.b16 %v7477
        %v7717 = vunpack.c.l.b16 %v7478
        %v7718 = vunpack.c.l.b16 %v7479
        %v7719 = vunpack.c.l.b16 %v7480
        %v7720 = vunpack.c.l.b16 %v7481
        %v7721 = vunpack.c.l.b16 %v7482
        %v7722 = vunpack.c.l.b16 %v7483
        %v7723 = vunpack.c.l.b16 %v7484
        %v7724 = vunpack.c.l.b16 %v7485
        %v7725 = vunpack.c.l.b16 %v7486
        %v7726 = vunpack.c.l.b16 %v7487
        %v7727 = vunpack.c.l.b16 %v7488
        %v7728 = vunpack.c.l.b16 %v7489
        %v7729 = vunpack.c.l.b16 %v7490
        %v7730 = vunpack.c.l.b16 %v7491
        %v7731 = vunpack.c.l.b16 %v7492
        %v7732 = vunpack.c.l.b16 %v7493
        %v7733 = vunpack.c.l.b16 %v7494
        %v7734 = vunpack.c.l.b16 %v7495
        %v7735 = vunpack.c.l.b16 %v7496
        %v7736 = vunpack.c.l.b16 %v7497
        %v7737 = vunpack.c.l.b16 %v7498
        %v7738 = vunpack.c.l.b16 %v7499
        %v7739 = vunpack.c.l.b16 %v7500
        %v7740 = vunpack.c.l.b16 %v7501
        %v7741 = vunpack.c.l.b16 %v7502
        %v7742 = vunpack.c.l.b16 %v7503
        %v7743 = vunpack.c.l.b16 %v7504
        %v7744 = vunpack.c.l.b16 %v7505
        %v7745 = vunpack.c.l.b16 %v7506
        %v7746 = vunpack.c.l.b16 %v7507
        %v7747 = vunpack.c.l.b16 %v7508
        %v7748 = vunpack.c.l.b16 %v7509
        %v7749 = vunpack.c.l.b16 %v7510
        %v7750 = vunpack.c.l.b16 %v7511
        %v7751 = vunpack.c.l.b16 %v7512
        %v7752 = vunpack.c.l.b16 %v7513
        %v7753 = vunpack.c.l.b16 %v7514
        %v7754 = vunpack.c.l.b16 %v7515
        %v7755 = vunpack.c.l.b16 %v7516
        %v7756 = vunpack.c.l.b16 %v7517
        %v7757 = vunpack.c.l.b16 %v7518
        %v7758 = vunpack.c.l.b16 %v7519
        %v7759 = vunpack.c.l.b16 %v7520
        %v7760 = vunpack.c.l.b16 %v7521
        %v7761 = vunpack.c.l.b16 %v7522
        %v7762 = vunpack.c.l.b16 %v7523
        %v7763 = vunpack.c.l.b16 %v7524
        %v7764 = vunpack.c.l.b16 %v7525
        %v7765 = vunpack.c.l.b16 %v7526
        %v7766 = vunpack.c.l.b16 %v7527
        %v7767 = vunpack.c.l.b16 %v7528
        %v7768 = vunpack.c.l.b16 %v7529
        %v7769 = vunpack.c.l.b16 %v7530
        %v7770 = vunpack.c.l.b16 %v7531
        %v7771 = vunpack.c.l.b16 %v7532
        %v7772 = vunpack.c.l.b16 %v7533
        %v7773 = vunpack.c.l.b16 %v7534
        %v7774 = vunpack.c.l.b16 %v7535
        %v7775 = vpack.c.b16 %v7712, %v7712
        %v7776 = vpack.c.b16 %v7713, %v7713
        %v7777 = vpack.c.b16 %v7714, %v7714
        %v7778 = vpack.c.b16 %v7715, %v7715
        %v7779 = vpack.c.b16 %v7716, %v7716
        %v7780 = vpack.c.b16 %v7717, %v7717
        %v7781 = vpack.c.b16 %v7718, %v7718
        %v7782 = vpack.c.b16 %v7719, %v7719
        %v7783 = vpack.c.b16 %v7720, %v7720
        %v7784 = vpack.c.b16 %v7721, %v7721
        %v7785 = vpack.c.b16 %v7722, %v7722
        %v7786 = vpack.c.b16 %v7723, %v7723
        %v7787 = vpack.c.b16 %v7724, %v7724
        %v7788 = vpack.c.b16 %v7725, %v7725
        %v7789 = vpack.c.b16 %v7726, %v7726
        %v7790 = vpack.c.b16 %v7727, %v7727
        %v7791 = vpack.c.b16 %v7728, %v7728
        %v7792 = vpack.c.b16 %v7729, %v7729
        %v7793 = vpack.c.b16 %v7730, %v7730
        %v7794 = vpack.c.b16 %v7731, %v7731
        %v7795 = vpack.c.b16 %v7732, %v7732
        %v7796 = vpack.c.b16 %v7733, %v7733
        %v7797 = vpack.c.b16 %v7734, %v7734
        %v7798 = vpack.c.b16 %v7735, %v7735
        %v7799 = vpack.c.b16 %v7736, %v7736
        %v7800 = vpack.c.b16 %v7737, %v7737
        %v7801 = vpack.c.b16 %v7738, %v7738
        %v7802 = vpack.c.b16 %v7739, %v7739
        %v7803 = vpack.c.b16 %v7740, %v7740
        %v7804 = vpack.c.b16 %v7741, %v7741
        %v7805 = vpack.c.b16 %v7742, %v7742
        %v7806 = vpack.c.b16 %v7743, %v7743
        %v7807 = vpack.c.b16 %v7744, %v7744
        %v7808 = vpack.c.b16 %v7745, %v7745
        %v7809 = vpack.c.b16 %v7746, %v7746
        %v7810 = vpack.c.b16 %v7747, %v7747
        %v7811 = vpack.c.b16 %v7748, %v7748
        %v7812 = vpack.c.b16 %v7749, %v7749
        %v7813 = vpack.c.b16 %v7750, %v7750
        %v7814 = vpack.c.b16 %v7751, %v7751
        %v7815 = vpack.c.b16 %v7752, %v7752
        %v7816 = vpack.c.b16 %v7753, %v7753
        %v7817 = vpack.c.b16 %v7754, %v7754
        %v7818 = vpack.c.b16 %v7755, %v7755
        %v7819 = vpack.c.b16 %v7756, %v7756
        %v7820 = vpack.c.b16 %v7757, %v7757
        %v7821 = vpack.c.b16 %v7758, %v7758
        %v7822 = vpack.c.b16 %v7759, %v7759
        %v7823 = vpack.c.b16 %v7760, %v7760
        %v7824 = vpack.c.b16 %v7761, %v7761
        %v7825 = vpack.c.b16 %v7762, %v7762
        %v7826 = vpack.c.b16 %v7763, %v7763
        %v7827 = vpack.c.b16 %v7764, %v7764
        %v7828 = vpack.c.b16 %v7765, %v7765
        %v7829 = vpack.c.b16 %v7766, %v7766
        %v7830 = vpack.c.b16 %v7767, %v7767
        %v7831 = vpack.c.b16 %v7768, %v7768
        %v7832 = vpack.c.b16 %v7769, %v7769
        %v7833 = vpack.c.b16 %v7770, %v7770
        %v7834 = vpack.c.b16 %v7771, %v7771
        %v7835 = vpack.c.b16 %v7772, %v7772
        %v7836 = vpack.c.b16 %v7773, %v7773
        %v7837 = vpack.c.b16 %v7774, %v7774
        %v7838 = vunpack.c.l.b16 %v7775
        %v7839 = vunpack.c.l.b16 %v7776
        %v7840 = vunpack.c.l.b16 %v7777
        %v7841 = vunpack.c.l.b16 %v7778
        %v7842 = vunpack.c.l.b16 %v7779
        %v7843 = vunpack.c.l.b16 %v7780
        %v7844 = vunpack.c.l.b16 %v7781
        %v7845 = vunpack.c.l.b16 %v7782
        %v7846 = vunpack.c.l.b16 %v7783
        %v7847 = vunpack.c.l.b16 %v7784
        %v7848 = vunpack.c.l.b16 %v7785
        %v7849 = vunpack.c.l.b16 %v7786
        %v7850 = vunpack.c.l.b16 %v7787
        %v7851 = vunpack.c.l.b16 %v7788
        %v7852 = vunpack.c.l.b16 %v7789
        %v7853 = vunpack.c.l.b16 %v7790
        %v7854 = vunpack.c.l.b16 %v7791
        %v7855 = vunpack.c.l.b16 %v7792
        %v7856 = vunpack.c.l.b16 %v7793
        %v7857 = vunpack.c.l.b16 %v7794
        %v7858 = vunpack.c.l.b16 %v7795
        %v7859 = vunpack.c.l.b16 %v7796
        %v7860 = vunpack.c.l.b16 %v7797
        %v7861 = vunpack.c.l.b16 %v7798
        %v7862 = vunpack.c.l.b16 %v7799
        %v7863 = vunpack.c.l.b16 %v7800
        %v7864 = vunpack.c.l.b16 %v7801
        %v7865 = vunpack.c.l.b16 %v7802
        %v7866 = vunpack.c.l.b16 %v7803
        %v7867 = vunpack.c.l.b16 %v7804
        %v7868 = vunpack.c.l.b16 %v7805
        %v7869 = vunpack.c.l.b16 %v7806
        %v7870 = vunpack.c.l.b16 %v7807
        %v7871 = vunpack.c.l.b16 %v7808
        %v7872 = vunpack.c.l.b16 %v7809
        %v7873 = vunpack.c.l.b16 %v7810
        %v7874 = vunpack.c.l.b16 %v7811
        %v7875 = vunpack.c.l.b16 %v7812
        %v7876 = vunpack.c.l.b16 %v7813
        %v7877 = vunpack.c.l.b16 %v7814
        %v7878 = vunpack.c.l.b16 %v7815
        %v7879 = vunpack.c.l.b16 %v7816
        %v7880 = vunpack.c.l.b16 %v7817
        %v7881 = vunpack.c.l.b16 %v7818
        %v7882 = vunpack.c.l.b16 %v7819
        %v7883 = vunpack.c.l.b16 %v7820
        %v7884 = vunpack.c.l.b16 %v7821
        %v7885 = vunpack.c.l.b16 %v7822
        %v7886 = vunpack.c.l.b16 %v7823
        %v7887 = vunpack.c.l.b16 %v7824
        %v7888 = vunpack.c.l.b16 %v7825
        %v7889 = vunpack.c.l.b16 %v7826
        %v7890 = vunpack.c.l.b16 %v7827
        %v7891 = vunpack.c.l.b16 %v7828
        %v7892 = vunpack.c.l.b16 %v7829
        %v7893 = vunpack.c.l.b16 %v7830
        %v7894 = vunpack.c.l.b16 %v7831
        %v7895 = vunpack.c.l.b16 %v7832
        %v7896 = vunpack.c.l.b16 %v7833
        %v7897 = vunpack.c.l.b16 %v7834
        %v7898 = vunpack.c.l.b16 %v7835
        %v7899 = vunpack.c.l.b16 %v7836
        %v7900 = vunpack.c.l.b16 %v7837
        %v7901 = vrot.slane %v7838, 7
        %v7902 = vrot.slane %v7839, 6
        %vm7903 = vcmask 1042434
        %v7904 = vsel %vm7903, %v7902, %v7901
        %v7905 = vrot.slane %v7840, 5
        %vm7906 = vcmask 1043459
        %v7907 = vsel %vm7906, %v7905, %v7904
        %v7908 = vrot.slane %v7841, 4
        %vm7909 = vcmask 1044484
        %v7910 = vsel %vm7909, %v7908, %v7907
        %v7911 = vrot.slane %v7842, 3
        %vm7912 = vcmask 1045509
        %v7913 = vsel %vm7912, %v7911, %v7910
        %v7914 = vrot.slane %v7843, 2
        %vm7915 = vcmask 1046534
        %v7916 = vsel %vm7915, %v7914, %v7913
        %v7917 = vrot.slane %v7844, 1
        %vm7918 = vcmask 1047559
        %v7919 = vsel %vm7918, %v7917, %v7916
        %v7920 = vrot.slane %v7846, 7
        %vm7921 = vcmask 1041409
        %v7922 = vsel %vm7921, %v7920, %v7845
        %v7923 = vrot.slane %v7847, 6
        %v7924 = vsel %vm7903, %v7923, %v7922
        %v7925 = vrot.slane %v7848, 5
        %v7926 = vsel %vm7906, %v7925, %v7924
        %v7927 = vrot.slane %v7849, 4
        %v7928 = vsel %vm7909, %v7927, %v7926
        %v7929 = vrot.slane %v7850, 3
        %v7930 = vsel %vm7912, %v7929, %v7928
        %v7931 = vrot.slane %v7851, 2
        %v7932 = vsel %vm7915, %v7931, %v7930
        %v7933 = vrot.slane %v7852, 1
        %v7934 = vsel %vm7918, %v7933, %v7932
        %v7935 = vrot.slane %v7854, 7
        %v7936 = vsel %vm7921, %v7935, %v7853
        %v7937 = vrot.slane %v7855, 6
        %v7938 = vsel %vm7903, %v7937, %v7936
        %v7939 = vrot.slane %v7856, 5
        %v7940 = vsel %vm7906, %v7939, %v7938
        %v7941 = vrot.slane %v7857, 4
        %v7942 = vsel %vm7909, %v7941, %v7940
        %v7943 = vrot.slane %v7858, 3
        %v7944 = vsel %vm7912, %v7943, %v7942
        %v7945 = vrot.slane %v7859, 2
        %v7946 = vsel %vm7915, %v7945, %v7944
        %v7947 = vrot.slane %v7860, 1
        %v7948 = vsel %vm7918, %v7947, %v7946
        %v7949 = vrot.slane %v7862, 7
        %v7950 = vsel %vm7921, %v7949, %v7861
        %v7951 = vrot.slane %v7863, 6
        %v7952 = vsel %vm7903, %v7951, %v7950
        %v7953 = vrot.slane %v7864, 5
        %v7954 = vsel %vm7906, %v7953, %v7952
        %v7955 = vrot.slane %v7865, 4
        %v7956 = vsel %vm7909, %v7955, %v7954
        %v7957 = vrot.slane %v7866, 3
        %v7958 = vsel %vm7912, %v7957, %v7956
        %v7959 = vrot.slane %v7867, 2
        %v7960 = vsel %vm7915, %v7959, %v7958
        %v7961 = vrot.slane %v7868, 1
        %v7962 = vsel %vm7918, %v7961, %v7960
        %v7963 = vrot.slane %v7870, 7
        %v7964 = vsel %vm7921, %v7963, %v7869
        %v7965 = vrot.slane %v7871, 6
        %v7966 = vsel %vm7903, %v7965, %v7964
        %v7967 = vrot.slane %v7872, 5
        %v7968 = vsel %vm7906, %v7967, %v7966
        %v7969 = vrot.slane %v7873, 4
        %v7970 = vsel %vm7909, %v7969, %v7968
        %v7971 = vrot.slane %v7874, 3
        %v7972 = vsel %vm7912, %v7971, %v7970
        %v7973 = vrot.slane %v7875, 2
        %v7974 = vsel %vm7915, %v7973, %v7972
        %v7975 = vrot.slane %v7876, 1
        %v7976 = vsel %vm7918, %v7975, %v7974
        %v7977 = vrot.slane %v7878, 7
        %v7978 = vsel %vm7921, %v7977, %v7877
        %v7979 = vrot.slane %v7879, 6
        %v7980 = vsel %vm7903, %v7979, %v7978
        %v7981 = vrot.slane %v7880, 5
        %v7982 = vsel %vm7906, %v7981, %v7980
        %v7983 = vrot.slane %v7881, 4
        %v7984 = vsel %vm7909, %v7983, %v7982
        %v7985 = vrot.slane %v7882, 3
        %v7986 = vsel %vm7912, %v7985, %v7984
        %v7987 = vrot.slane %v7883, 2
        %v7988 = vsel %vm7915, %v7987, %v7986
        %v7989 = vrot.slane %v7884, 1
        %v7990 = vsel %vm7918, %v7989, %v7988
        %v7991 = vrot.slane %v7886, 7
        %v7992 = vsel %vm7921, %v7991, %v7885
        %v7993 = vrot.slane %v7887, 6
        %v7994 = vsel %vm7903, %v7993, %v7992
        %v7995 = vrot.slane %v7888, 5
        %v7996 = vsel %vm7906, %v7995, %v7994
        %v7997 = vrot.slane %v7889, 4
        %v7998 = vsel %vm7909, %v7997, %v7996
        %v7999 = vrot.slane %v7890, 3
        %v8000 = vsel %vm7912, %v7999, %v7998
        %v8001 = vrot.slane %v7891, 2
        %v8002 = vsel %vm7915, %v8001, %v8000
        %v8003 = vrot.slane %v7892, 1
        %v8004 = vsel %vm7918, %v8003, %v8002
        %v8005 = vrot.slane %v7894, 7
        %v8006 = vsel %vm7921, %v8005, %v7893
        %v8007 = vrot.slane %v7895, 6
        %v8008 = vsel %vm7903, %v8007, %v8006
        %v8009 = vrot.slane %v7896, 5
        %v8010 = vsel %vm7906, %v8009, %v8008
        %v8011 = vrot.slane %v7897, 4
        %v8012 = vsel %vm7909, %v8011, %v8010
        %v8013 = vrot.slane %v7898, 3
        %v8014 = vsel %vm7912, %v8013, %v8012
        %v8015 = vrot.slane %v7899, 2
        %v8016 = vsel %vm7915, %v8015, %v8014
        %v8017 = vrot.slane %v7900, 1
        %v8018 = vsel %vm7918, %v8017, %v8016
        %v8019 = vpack.c.b16 %v7934, %v7919
        %v8020 = vpack.c.b16 %v7962, %v7948
        %v8021 = vpack.c.b16 %v7990, %v7976
        %v8022 = vpack.c.b16 %v8018, %v8004
        %v8027 = vsel %vm1680, 0, %v8019
        %v8028 = vsel %vm7633, 1, 0
        %v8029 = vsel %vm7634, 1, 0
        %v8030 = vsel %vm7635, 1, 0
        %v8031 = vsel %vm7636, 1, 0
        %v8032 = vsel %vm7637, 1, 0
        %v8033 = vsel %vm7638, 1, 0
        %v8034 = vsel %vm7639, 1, 0
        %v8035 = vsel %vm7640, 1, 0
        %vm8036 = vcmp.eq.s32.totalorder %v8028, 1
        %vm8037 = vcmp.eq.s32.totalorder %v8029, 1
        %vm8038 = vcmp.eq.s32.totalorder %v8030, 1
        %vm8039 = vcmp.eq.s32.totalorder %v8031, 1
        %vm8040 = vcmp.eq.s32.totalorder %v8032, 1
        %vm8041 = vcmp.eq.s32.totalorder %v8033, 1
        %vm8042 = vcmp.eq.s32.totalorder %v8034, 1
        %vm8043 = vcmp.eq.s32.totalorder %v8035, 1
        %vm8044 = vmpackc.low %vm8036, %vm8036
        %vm8045 = vmpackc.low %vm8037, %vm8037
        %vm8046 = vmpackc.low %vm8038, %vm8038
        %vm8047 = vmpackc.low %vm8039, %vm8039
        %vm8048 = vmpackc.low %vm8040, %vm8040
        %vm8049 = vmpackc.low %vm8041, %vm8041
        %vm8050 = vmpackc.low %vm8042, %vm8042
        %vm8051 = vmpackc.low %vm8043, %vm8043
        %v8052 = vsel %vm8044, 65537, 0
        %v8053 = vsel %vm8045, 65537, 0
        %v8054 = vsel %vm8046, 65537, 0
        %v8055 = vsel %vm8047, 65537, 0
        %v8056 = vsel %vm8048, 65537, 0
        %v8057 = vsel %vm8049, 65537, 0
        %v8058 = vsel %vm8050, 65537, 0
        %v8059 = vsel %vm8051, 65537, 0
        %v8060 = vunpack.c.l.b16 %v8052
        %v8061 = vunpack.c.l.b16 %v8053
        %v8062 = vunpack.c.l.b16 %v8054
        %v8063 = vunpack.c.l.b16 %v8055
        %v8064 = vunpack.c.l.b16 %v8056
        %v8065 = vunpack.c.l.b16 %v8057
        %v8066 = vunpack.c.l.b16 %v8058
        %v8067 = vunpack.c.l.b16 %v8059
        %v8068 = vpack.c.b16 %v8061, %v8060
        %v8069 = vpack.c.b16 %v8063, %v8062
        %v8070 = vpack.c.b16 %v8065, %v8064
        %v8071 = vpack.c.b16 %v8067, %v8066
        %v8072 = vunpack.c.l.b16 %v8068
        %v8073 = vunpack.c.h.b16 %v8068
        %v8074 = vunpack.c.l.b16 0
        %v8075 = vunpack.c.h.b16 0
        %vm8076 = vcmp.ne.s32.totalorder %v8072, %v8074
        %vm8077 = vcmp.ne.s32.totalorder %v8073, %v8075
        %vm8078 = vmpackc.low %vm8077, %vm8076
        %v8079 = vunpack.c.l.b16 %v8069
        %v8080 = vunpack.c.h.b16 %v8069
        %v8081 = vunpack.c.l.b16 0
        %v8082 = vunpack.c.h.b16 0
        %vm8083 = vcmp.ne.s32.totalorder %v8079, %v8081
        %vm8084 = vcmp.ne.s32.totalorder %v8080, %v8082
        %vm8085 = vmpackc.low %vm8084, %vm8083
        %v8086 = vunpack.c.l.b16 %v8070
        %v8087 = vunpack.c.h.b16 %v8070
        %v8088 = vunpack.c.l.b16 0
        %v8089 = vunpack.c.h.b16 0
        %vm8090 = vcmp.ne.s32.totalorder %v8086, %v8088
        %vm8091 = vcmp.ne.s32.totalorder %v8087, %v8089
        %vm8092 = vmpackc.low %vm8091, %vm8090
        %v8093 = vunpack.c.l.b16 %v8071
        %v8094 = vunpack.c.h.b16 %v8071
        %v8095 = vunpack.c.l.b16 0
        %v8096 = vunpack.c.h.b16 0
        %vm8097 = vcmp.ne.s32.totalorder %v8093, %v8095
        %vm8098 = vcmp.ne.s32.totalorder %v8094, %v8096
        %vm8099 = vmpackc.low %vm8098, %vm8097
        %v8100 = vsel %vm8078, %v8027, 0
        %v8101 = vsel %vm8085, %v8020, 0
        %v8102 = vsel %vm8092, %v8021, 0
        %v8103 = vsel %vm8099, %v8022, 0
        %v8105 = vunpack.c.l.b16 %v7536
        %v8106 = vpack.c.b16 %v8105, %v8105
        %v8107 = vunpack.c.l.b16 %v8106
        %v8108 = vrot.slane %v7840, 7
        %v8109 = vsel %vm7921, %v8108, %v7839
        %v8110 = vrot.slane %v7841, 6
        %v8111 = vsel %vm7903, %v8110, %v8109
        %v8112 = vrot.slane %v7842, 5
        %v8113 = vsel %vm7906, %v8112, %v8111
        %v8114 = vrot.slane %v7843, 4
        %v8115 = vsel %vm7909, %v8114, %v8113
        %v8116 = vrot.slane %v7844, 3
        %v8117 = vsel %vm7912, %v8116, %v8115
        %v8118 = vrot.slane %v7845, 2
        %v8119 = vsel %vm7915, %v8118, %v8117
        %v8120 = vrot.slane %v7846, 1
        %v8121 = vsel %vm7918, %v8120, %v8119
        %v8122 = vrot.slane %v7848, 7
        %v8123 = vsel %vm7921, %v8122, %v7847
        %v8124 = vrot.slane %v7849, 6
        %v8125 = vsel %vm7903, %v8124, %v8123
        %v8126 = vrot.slane %v7850, 5
        %v8127 = vsel %vm7906, %v8126, %v8125
        %v8128 = vrot.slane %v7851, 4
        %v8129 = vsel %vm7909, %v8128, %v8127
        %v8130 = vrot.slane %v7852, 3
        %v8131 = vsel %vm7912, %v8130, %v8129
        %v8132 = vrot.slane %v7853, 2
        %v8133 = vsel %vm7915, %v8132, %v8131
        %v8134 = vrot.slane %v7854, 1
        %v8135 = vsel %vm7918, %v8134, %v8133
        %v8136 = vrot.slane %v7856, 7
        %v8137 = vsel %vm7921, %v8136, %v7855
        %v8138 = vrot.slane %v7857, 6
        %v8139 = vsel %vm7903, %v8138, %v8137
        %v8140 = vrot.slane %v7858, 5
        %v8141 = vsel %vm7906, %v8140, %v8139
        %v8142 = vrot.slane %v7859, 4
        %v8143 = vsel %vm7909, %v8142, %v8141
        %v8144 = vrot.slane %v7860, 3
        %v8145 = vsel %vm7912, %v8144, %v8143
        %v8146 = vrot.slane %v7861, 2
        %v8147 = vsel %vm7915, %v8146, %v8145
        %v8148 = vrot.slane %v7862, 1
        %v8149 = vsel %vm7918, %v8148, %v8147
        %v8150 = vrot.slane %v7864, 7
        %v8151 = vsel %vm7921, %v8150, %v7863
        %v8152 = vrot.slane %v7865, 6
        %v8153 = vsel %vm7903, %v8152, %v8151
        %v8154 = vrot.slane %v7866, 5
        %v8155 = vsel %vm7906, %v8154, %v8153
        %v8156 = vrot.slane %v7867, 4
        %v8157 = vsel %vm7909, %v8156, %v8155
        %v8158 = vrot.slane %v7868, 3
        %v8159 = vsel %vm7912, %v8158, %v8157
        %v8160 = vrot.slane %v7869, 2
        %v8161 = vsel %vm7915, %v8160, %v8159
        %v8162 = vrot.slane %v7870, 1
        %v8163 = vsel %vm7918, %v8162, %v8161
        %v8164 = vrot.slane %v7872, 7
        %v8165 = vsel %vm7921, %v8164, %v7871
        %v8166 = vrot.slane %v7873, 6
        %v8167 = vsel %vm7903, %v8166, %v8165
        %v8168 = vrot.slane %v7874, 5
        %v8169 = vsel %vm7906, %v8168, %v8167
        %v8170 = vrot.slane %v7875, 4
        %v8171 = vsel %vm7909, %v8170, %v8169
        %v8172 = vrot.slane %v7876, 3
        %v8173 = vsel %vm7912, %v8172, %v8171
        %v8174 = vrot.slane %v7877, 2
        %v8175 = vsel %vm7915, %v8174, %v8173
        %v8176 = vrot.slane %v7878, 1
        %v8177 = vsel %vm7918, %v8176, %v8175
        %v8178 = vrot.slane %v7880, 7
        %v8179 = vsel %vm7921, %v8178, %v7879
        %v8180 = vrot.slane %v7881, 6
        %v8181 = vsel %vm7903, %v8180, %v8179
        %v8182 = vrot.slane %v7882, 5
        %v8183 = vsel %vm7906, %v8182, %v8181
        %v8184 = vrot.slane %v7883, 4
        %v8185 = vsel %vm7909, %v8184, %v8183
        %v8186 = vrot.slane %v7884, 3
        %v8187 = vsel %vm7912, %v8186, %v8185
        %v8188 = vrot.slane %v7885, 2
        %v8189 = vsel %vm7915, %v8188, %v8187
        %v8190 = vrot.slane %v7886, 1
        %v8191 = vsel %vm7918, %v8190, %v8189
        %v8192 = vrot.slane %v7888, 7
        %v8193 = vsel %vm7921, %v8192, %v7887
        %v8194 = vrot.slane %v7889, 6
        %v8195 = vsel %vm7903, %v8194, %v8193
        %v8196 = vrot.slane %v7890, 5
        %v8197 = vsel %vm7906, %v8196, %v8195
        %v8198 = vrot.slane %v7891, 4
        %v8199 = vsel %vm7909, %v8198, %v8197
        %v8200 = vrot.slane %v7892, 3
        %v8201 = vsel %vm7912, %v8200, %v8199
        %v8202 = vrot.slane %v7893, 2
        %v8203 = vsel %vm7915, %v8202, %v8201
        %v8204 = vrot.slane %v7894, 1
        %v8205 = vsel %vm7918, %v8204, %v8203
        %v8206 = vrot.slane %v7896, 7
        %v8207 = vsel %vm7921, %v8206, %v7895
        %v8208 = vrot.slane %v7897, 6
        %v8209 = vsel %vm7903, %v8208, %v8207
        %v8210 = vrot.slane %v7898, 5
        %v8211 = vsel %vm7906, %v8210, %v8209
        %v8212 = vrot.slane %v7899, 4
        %v8213 = vsel %vm7909, %v8212, %v8211
        %v8214 = vrot.slane %v7900, 3
        %v8215 = vsel %vm7912, %v8214, %v8213
        %v8216 = vrot.slane %v8107, 2
        %v8217 = vsel %vm7915, %v8216, %v8215
        %v8218 = vpack.c.b16 %v8135, %v8121
        %v8219 = vpack.c.b16 %v8163, %v8149
        %v8220 = vpack.c.b16 %v8191, %v8177
        %v8221 = vpack.c.b16 %v8217, %v8205
        %v8226 = vsel %vm2131, %v8221, 0
        %v8227 = vsel %vm7641, 1, 0
        %v8228 = vsel %vm7642, 1, 0
        %v8229 = vsel %vm7643, 1, 0
        %v8230 = vsel %vm7644, 1, 0
        %v8231 = vsel %vm7645, 1, 0
        %v8232 = vsel %vm7646, 1, 0
        %v8233 = vsel %vm7647, 1, 0
        %v8234 = vsel %vm7648, 1, 0
        %vm8235 = vcmp.eq.s32.totalorder %v8227, 1
        %vm8236 = vcmp.eq.s32.totalorder %v8228, 1
        %vm8237 = vcmp.eq.s32.totalorder %v8229, 1
        %vm8238 = vcmp.eq.s32.totalorder %v8230, 1
        %vm8239 = vcmp.eq.s32.totalorder %v8231, 1
        %vm8240 = vcmp.eq.s32.totalorder %v8232, 1
        %vm8241 = vcmp.eq.s32.totalorder %v8233, 1
        %vm8242 = vcmp.eq.s32.totalorder %v8234, 1
        %vm8243 = vmpackc.low %vm8235, %vm8235
        %vm8244 = vmpackc.low %vm8236, %vm8236
        %vm8245 = vmpackc.low %vm8237, %vm8237
        %vm8246 = vmpackc.low %vm8238, %vm8238
        %vm8247 = vmpackc.low %vm8239, %vm8239
        %vm8248 = vmpackc.low %vm8240, %vm8240
        %vm8249 = vmpackc.low %vm8241, %vm8241
        %vm8250 = vmpackc.low %vm8242, %vm8242
        %v8251 = vsel %vm8243, 65537, 0
        %v8252 = vsel %vm8244, 65537, 0
        %v8253 = vsel %vm8245, 65537, 0
        %v8254 = vsel %vm8246, 65537, 0
        %v8255 = vsel %vm8247, 65537, 0
        %v8256 = vsel %vm8248, 65537, 0
        %v8257 = vsel %vm8249, 65537, 0
        %v8258 = vsel %vm8250, 65537, 0
        %v8259 = vunpack.c.l.b16 %v8251
        %v8260 = vunpack.c.l.b16 %v8252
        %v8261 = vunpack.c.l.b16 %v8253
        %v8262 = vunpack.c.l.b16 %v8254
        %v8263 = vunpack.c.l.b16 %v8255
        %v8264 = vunpack.c.l.b16 %v8256
        %v8265 = vunpack.c.l.b16 %v8257
        %v8266 = vunpack.c.l.b16 %v8258
        %v8267 = vpack.c.b16 %v8260, %v8259
        %v8268 = vpack.c.b16 %v8262, %v8261
        %v8269 = vpack.c.b16 %v8264, %v8263
        %v8270 = vpack.c.b16 %v8266, %v8265
        %v8271 = vunpack.c.l.b16 %v8267
        %v8272 = vunpack.c.h.b16 %v8267
        %v8273 = vunpack.c.l.b16 0
        %v8274 = vunpack.c.h.b16 0
        %vm8275 = vcmp.ne.s32.totalorder %v8271, %v8273
        %vm8276 = vcmp.ne.s32.totalorder %v8272, %v8274
        %vm8277 = vmpackc.low %vm8276, %vm8275
        %v8278 = vunpack.c.l.b16 %v8268
        %v8279 = vunpack.c.h.b16 %v8268
        %v8280 = vunpack.c.l.b16 0
        %v8281 = vunpack.c.h.b16 0
        %vm8282 = vcmp.ne.s32.totalorder %v8278, %v8280
        %vm8283 = vcmp.ne.s32.totalorder %v8279, %v8281
        %vm8284 = vmpackc.low %vm8283, %vm8282
        %v8285 = vunpack.c.l.b16 %v8269
        %v8286 = vunpack.c.h.b16 %v8269
        %v8287 = vunpack.c.l.b16 0
        %v8288 = vunpack.c.h.b16 0
        %vm8289 = vcmp.ne.s32.totalorder %v8285, %v8287
        %vm8290 = vcmp.ne.s32.totalorder %v8286, %v8288
        %vm8291 = vmpackc.low %vm8290, %vm8289
        %v8292 = vunpack.c.l.b16 %v8270
        %v8293 = vunpack.c.h.b16 %v8270
        %v8294 = vunpack.c.l.b16 0
        %v8295 = vunpack.c.h.b16 0
        %vm8296 = vcmp.ne.s32.totalorder %v8292, %v8294
        %vm8297 = vcmp.ne.s32.totalorder %v8293, %v8295
        %vm8298 = vmpackc.low %vm8297, %vm8296
        %v8299 = vsel %vm8277, %v8218, 0
        %v8300 = vsel %vm8284, %v8219, 0
        %v8301 = vsel %vm8291, %v8220, 0
        %v8302 = vsel %vm8298, %v8226, 0
        %vm8307 = vcmask 1043456
        %v8308 = vrot.slane %v8100, 4
        %v8309 = vrot.slane %v8101, 4
        %v8310 = vsel %vm8307, %v8308, %v8309
        %v8311 = vrot.slane %v8102, 4
        %v8312 = vsel %vm8307, %v8309, %v8311
        %v8313 = vrot.slane %v8103, 4
        %v8314 = vsel %vm8307, %v8311, %v8313
        %vm8315 = vcmask 1043456
        %v8317 = vsel %vm8315, 0, %v8308
        %v8318 = vunpack.c.h.b16 %v7775
        %v8319 = vunpack.c.h.b16 %v7776
        %v8320 = vunpack.c.h.b16 %v7777
        %v8321 = vunpack.c.h.b16 %v7778
        %v8322 = vunpack.c.h.b16 %v7779
        %v8323 = vunpack.c.h.b16 %v7780
        %v8324 = vunpack.c.h.b16 %v7781
        %v8325 = vunpack.c.h.b16 %v7782
        %v8326 = vunpack.c.h.b16 %v7783
        %v8327 = vunpack.c.h.b16 %v7784
        %v8328 = vunpack.c.h.b16 %v7785
        %v8329 = vunpack.c.h.b16 %v7786
        %v8330 = vunpack.c.h.b16 %v7787
        %v8331 = vunpack.c.h.b16 %v7788
        %v8332 = vunpack.c.h.b16 %v7789
        %v8333 = vunpack.c.h.b16 %v7790
        %v8334 = vunpack.c.h.b16 %v7791
        %v8335 = vunpack.c.h.b16 %v7792
        %v8336 = vunpack.c.h.b16 %v7793
        %v8337 = vunpack.c.h.b16 %v7794
        %v8338 = vunpack.c.h.b16 %v7795
        %v8339 = vunpack.c.h.b16 %v7796
        %v8340 = vunpack.c.h.b16 %v7797
        %v8341 = vunpack.c.h.b16 %v7798
        %v8342 = vunpack.c.h.b16 %v7799
        %v8343 = vunpack.c.h.b16 %v7800
        %v8344 = vunpack.c.h.b16 %v7801
        %v8345 = vunpack.c.h.b16 %v7802
        %v8346 = vunpack.c.h.b16 %v7803
        %v8347 = vunpack.c.h.b16 %v7804
        %v8348 = vunpack.c.h.b16 %v7805
        %v8349 = vunpack.c.h.b16 %v7806
        %v8350 = vunpack.c.h.b16 %v7807
        %v8351 = vunpack.c.h.b16 %v7808
        %v8352 = vunpack.c.h.b16 %v7809
        %v8353 = vunpack.c.h.b16 %v7810
        %v8354 = vunpack.c.h.b16 %v7811
        %v8355 = vunpack.c.h.b16 %v7812
        %v8356 = vunpack.c.h.b16 %v7813
        %v8357 = vunpack.c.h.b16 %v7814
        %v8358 = vunpack.c.h.b16 %v7815
        %v8359 = vunpack.c.h.b16 %v7816
        %v8360 = vunpack.c.h.b16 %v7817
        %v8361 = vunpack.c.h.b16 %v7818
        %v8362 = vunpack.c.h.b16 %v7819
        %v8363 = vunpack.c.h.b16 %v7820
        %v8364 = vunpack.c.h.b16 %v7821
        %v8365 = vunpack.c.h.b16 %v7822
        %v8366 = vunpack.c.h.b16 %v7823
        %v8367 = vunpack.c.h.b16 %v7824
        %v8368 = vunpack.c.h.b16 %v7825
        %v8369 = vunpack.c.h.b16 %v7826
        %v8370 = vunpack.c.h.b16 %v7827
        %v8371 = vunpack.c.h.b16 %v7828
        %v8372 = vunpack.c.h.b16 %v7829
        %v8373 = vunpack.c.h.b16 %v7830
        %v8374 = vrot.slane %v8319, 7
        %v8375 = vsel %vm7921, %v8374, %v8318
        %v8376 = vrot.slane %v8320, 6
        %v8377 = vsel %vm7903, %v8376, %v8375
        %v8378 = vrot.slane %v8321, 5
        %v8379 = vsel %vm7906, %v8378, %v8377
        %v8380 = vrot.slane %v8322, 4
        %v8381 = vsel %vm7909, %v8380, %v8379
        %v8382 = vrot.slane %v8323, 3
        %v8383 = vsel %vm7912, %v8382, %v8381
        %v8384 = vrot.slane %v8324, 2
        %v8385 = vsel %vm7915, %v8384, %v8383
        %v8386 = vrot.slane %v8325, 1
        %v8387 = vsel %vm7918, %v8386, %v8385
        %v8388 = vrot.slane %v8327, 7
        %v8389 = vsel %vm7921, %v8388, %v8326
        %v8390 = vrot.slane %v8328, 6
        %v8391 = vsel %vm7903, %v8390, %v8389
        %v8392 = vrot.slane %v8329, 5
        %v8393 = vsel %vm7906, %v8392, %v8391
        %v8394 = vrot.slane %v8330, 4
        %v8395 = vsel %vm7909, %v8394, %v8393
        %v8396 = vrot.slane %v8331, 3
        %v8397 = vsel %vm7912, %v8396, %v8395
        %v8398 = vrot.slane %v8332, 2
        %v8399 = vsel %vm7915, %v8398, %v8397
        %v8400 = vrot.slane %v8333, 1
        %v8401 = vsel %vm7918, %v8400, %v8399
        %v8402 = vrot.slane %v8335, 7
        %v8403 = vsel %vm7921, %v8402, %v8334
        %v8404 = vrot.slane %v8336, 6
        %v8405 = vsel %vm7903, %v8404, %v8403
        %v8406 = vrot.slane %v8337, 5
        %v8407 = vsel %vm7906, %v8406, %v8405
        %v8408 = vrot.slane %v8338, 4
        %v8409 = vsel %vm7909, %v8408, %v8407
        %v8410 = vrot.slane %v8339, 3
        %v8411 = vsel %vm7912, %v8410, %v8409
        %v8412 = vrot.slane %v8340, 2
        %v8413 = vsel %vm7915, %v8412, %v8411
        %v8414 = vrot.slane %v8341, 1
        %v8415 = vsel %vm7918, %v8414, %v8413
        %v8416 = vrot.slane %v8343, 7
        %v8417 = vsel %vm7921, %v8416, %v8342
        %v8418 = vrot.slane %v8344, 6
        %v8419 = vsel %vm7903, %v8418, %v8417
        %v8420 = vrot.slane %v8345, 5
        %v8421 = vsel %vm7906, %v8420, %v8419
        %v8422 = vrot.slane %v8346, 4
        %v8423 = vsel %vm7909, %v8422, %v8421
        %v8424 = vrot.slane %v8347, 3
        %v8425 = vsel %vm7912, %v8424, %v8423
        %v8426 = vrot.slane %v8348, 2
        %v8427 = vsel %vm7915, %v8426, %v8425
        %v8428 = vrot.slane %v8349, 1
        %v8429 = vsel %vm7918, %v8428, %v8427
        %v8430 = vrot.slane %v8351, 7
        %v8431 = vsel %vm7921, %v8430, %v8350
        %v8432 = vrot.slane %v8352, 6
        %v8433 = vsel %vm7903, %v8432, %v8431
        %v8434 = vrot.slane %v8353, 5
        %v8435 = vsel %vm7906, %v8434, %v8433
        %v8436 = vrot.slane %v8354, 4
        %v8437 = vsel %vm7909, %v8436, %v8435
        %v8438 = vrot.slane %v8355, 3
        %v8439 = vsel %vm7912, %v8438, %v8437
        %v8440 = vrot.slane %v8356, 2
        %v8441 = vsel %vm7915, %v8440, %v8439
        %v8442 = vrot.slane %v8357, 1
        %v8443 = vsel %vm7918, %v8442, %v8441
        %v8444 = vrot.slane %v8359, 7
        %v8445 = vsel %vm7921, %v8444, %v8358
        %v8446 = vrot.slane %v8360, 6
        %v8447 = vsel %vm7903, %v8446, %v8445
        %v8448 = vrot.slane %v8361, 5
        %v8449 = vsel %vm7906, %v8448, %v8447
        %v8450 = vrot.slane %v8362, 4
        %v8451 = vsel %vm7909, %v8450, %v8449
        %v8452 = vrot.slane %v8363, 3
        %v8453 = vsel %vm7912, %v8452, %v8451
        %v8454 = vrot.slane %v8364, 2
        %v8455 = vsel %vm7915, %v8454, %v8453
        %v8456 = vrot.slane %v8365, 1
        %v8457 = vsel %vm7918, %v8456, %v8455
        %v8458 = vrot.slane %v8367, 7
        %v8459 = vsel %vm7921, %v8458, %v8366
        %v8460 = vrot.slane %v8368, 6
        %v8461 = vsel %vm7903, %v8460, %v8459
        %v8462 = vrot.slane %v8369, 5
        %v8463 = vsel %vm7906, %v8462, %v8461
        %v8464 = vrot.slane %v8370, 4
        %v8465 = vsel %vm7909, %v8464, %v8463
        %v8466 = vrot.slane %v8371, 3
        %v8467 = vsel %vm7912, %v8466, %v8465
        %v8468 = vrot.slane %v8372, 2
        %v8469 = vsel %vm7915, %v8468, %v8467
        %v8470 = vrot.slane %v8373, 1
        %v8471 = vsel %vm7918, %v8470, %v8469
        %v8472 = vpack.c.b16 %v8387, %v8387
        %v8473 = vpack.c.b16 %v8415, %v8401
        %v8474 = vpack.c.b16 %v8443, %v8429
        %v8475 = vpack.c.b16 %v8471, %v8457
        %v8477 = vsel %vm8315, 0, %v8472
        %v8482 = vrot.slane %v8299, 4
        %v8483 = vrot.slane %v8300, 4
        %v8484 = vsel %vm8307, %v8482, %v8483
        %v8485 = vrot.slane %v8301, 4
        %v8486 = vsel %vm8307, %v8483, %v8485
        %v8487 = vrot.slane %v8302, 4
        %v8488 = vsel %vm8307, %v8485, %v8487
        %v8490 = vsel %vm8315, 0, %v8482
        %v8492 = vsel %vm8315, %v8313, 0
        %v8493 = vrot.slane %v7847, 7
        %v8494 = vsel %vm7921, %v8493, %v7846
        %v8495 = vrot.slane %v7848, 6
        %v8496 = vsel %vm7903, %v8495, %v8494
        %v8497 = vrot.slane %v7849, 5
        %v8498 = vsel %vm7906, %v8497, %v8496
        %v8499 = vrot.slane %v7850, 4
        %v8500 = vsel %vm7909, %v8499, %v8498
        %v8501 = vrot.slane %v7851, 3
        %v8502 = vsel %vm7912, %v8501, %v8500
        %v8503 = vrot.slane %v7852, 2
        %v8504 = vsel %vm7915, %v8503, %v8502
        %v8505 = vrot.slane %v7853, 1
        %v8506 = vsel %vm7918, %v8505, %v8504
        %v8507 = vrot.slane %v7855, 7
        %v8508 = vsel %vm7921, %v8507, %v7854
        %v8509 = vrot.slane %v7856, 6
        %v8510 = vsel %vm7903, %v8509, %v8508
        %v8511 = vrot.slane %v7857, 5
        %v8512 = vsel %vm7906, %v8511, %v8510
        %v8513 = vrot.slane %v7858, 4
        %v8514 = vsel %vm7909, %v8513, %v8512
        %v8515 = vrot.slane %v7859, 3
        %v8516 = vsel %vm7912, %v8515, %v8514
        %v8517 = vrot.slane %v7860, 2
        %v8518 = vsel %vm7915, %v8517, %v8516
        %v8519 = vrot.slane %v7861, 1
        %v8520 = vsel %vm7918, %v8519, %v8518
        %v8521 = vrot.slane %v7863, 7
        %v8522 = vsel %vm7921, %v8521, %v7862
        %v8523 = vrot.slane %v7864, 6
        %v8524 = vsel %vm7903, %v8523, %v8522
        %v8525 = vrot.slane %v7865, 5
        %v8526 = vsel %vm7906, %v8525, %v8524
        %v8527 = vrot.slane %v7866, 4
        %v8528 = vsel %vm7909, %v8527, %v8526
        %v8529 = vrot.slane %v7867, 3
        %v8530 = vsel %vm7912, %v8529, %v8528
        %v8531 = vrot.slane %v7868, 2
        %v8532 = vsel %vm7915, %v8531, %v8530
        %v8533 = vrot.slane %v7869, 1
        %v8534 = vsel %vm7918, %v8533, %v8532
        %v8535 = vrot.slane %v7871, 7
        %v8536 = vsel %vm7921, %v8535, %v7870
        %v8537 = vrot.slane %v7872, 6
        %v8538 = vsel %vm7903, %v8537, %v8536
        %v8539 = vrot.slane %v7873, 5
        %v8540 = vsel %vm7906, %v8539, %v8538
        %v8541 = vrot.slane %v7874, 4
        %v8542 = vsel %vm7909, %v8541, %v8540
        %v8543 = vrot.slane %v7875, 3
        %v8544 = vsel %vm7912, %v8543, %v8542
        %v8545 = vrot.slane %v7876, 2
        %v8546 = vsel %vm7915, %v8545, %v8544
        %v8547 = vrot.slane %v7877, 1
        %v8548 = vsel %vm7918, %v8547, %v8546
        %v8549 = vrot.slane %v7879, 7
        %v8550 = vsel %vm7921, %v8549, %v7878
        %v8551 = vrot.slane %v7880, 6
        %v8552 = vsel %vm7903, %v8551, %v8550
        %v8553 = vrot.slane %v7881, 5
        %v8554 = vsel %vm7906, %v8553, %v8552
        %v8555 = vrot.slane %v7882, 4
        %v8556 = vsel %vm7909, %v8555, %v8554
        %v8557 = vrot.slane %v7883, 3
        %v8558 = vsel %vm7912, %v8557, %v8556
        %v8559 = vrot.slane %v7884, 2
        %v8560 = vsel %vm7915, %v8559, %v8558
        %v8561 = vrot.slane %v7885, 1
        %v8562 = vsel %vm7918, %v8561, %v8560
        %v8563 = vrot.slane %v7887, 7
        %v8564 = vsel %vm7921, %v8563, %v7886
        %v8565 = vrot.slane %v7888, 6
        %v8566 = vsel %vm7903, %v8565, %v8564
        %v8567 = vrot.slane %v7889, 5
        %v8568 = vsel %vm7906, %v8567, %v8566
        %v8569 = vrot.slane %v7890, 4
        %v8570 = vsel %vm7909, %v8569, %v8568
        %v8571 = vrot.slane %v7891, 3
        %v8572 = vsel %vm7912, %v8571, %v8570
        %v8573 = vrot.slane %v7892, 2
        %v8574 = vsel %vm7915, %v8573, %v8572
        %v8575 = vrot.slane %v7893, 1
        %v8576 = vsel %vm7918, %v8575, %v8574
        %v8577 = vrot.slane %v7895, 7
        %v8578 = vsel %vm7921, %v8577, %v7894
        %v8579 = vrot.slane %v7896, 6
        %v8580 = vsel %vm7903, %v8579, %v8578
        %v8581 = vrot.slane %v7897, 5
        %v8582 = vsel %vm7906, %v8581, %v8580
        %v8583 = vrot.slane %v7898, 4
        %v8584 = vsel %vm7909, %v8583, %v8582
        %v8585 = vrot.slane %v7899, 3
        %v8586 = vsel %vm7912, %v8585, %v8584
        %v8587 = vrot.slane %v7900, 2
        %v8588 = vsel %vm7915, %v8587, %v8586
        %v8589 = vrot.slane %v8107, 1
        %v8590 = vsel %vm7918, %v8589, %v8588
        %v8591 = vpack.c.b16 %v8520, %v8506
        %v8592 = vpack.c.b16 %v8548, %v8534
        %v8593 = vpack.c.b16 %v8576, %v8562
        %v8594 = vpack.c.b16 %v8590, %v8590
        %v8596 = vsel %vm8315, %v8594, 0
        %v8598 = vsel %vm8315, %v8487, 0
        %8600 = vrot.lane.b32.xlu0 %v8477, 64
        %v8601 = vpop.permute.xlu0 %8600
        %8602 = vrot.lane.b32.xlu0 %v8473, 64
        %v8603 = vpop.permute.xlu0 %8602
        %8604 = vrot.lane.b32.xlu0 %v8474, 64
        %v8605 = vpop.permute.xlu0 %8604
        %8606 = vrot.lane.b32.xlu0 %v8475, 64
        %v8607 = vpop.permute.xlu0 %8606
        %8608 = vrot.lane.b32.xlu0 %v8100, 64
        %v8609 = vpop.permute.xlu0 %8608
        %8610 = vrot.lane.b32.xlu0 %v8101, 64
        %v8611 = vpop.permute.xlu0 %8610
        %8612 = vrot.lane.b32.xlu0 %v8102, 64
        %v8613 = vpop.permute.xlu0 %8612
        %8614 = vrot.lane.b32.xlu0 %v8103, 64
        %v8615 = vpop.permute.xlu0 %8614
        %v8616 = vrot.slane %v7839, 7
        %v8617 = vsel %vm7921, %v8616, %v7838
        %v8618 = vrot.slane %v7840, 6
        %v8619 = vsel %vm7903, %v8618, %v8617
        %v8620 = vrot.slane %v7841, 5
        %v8621 = vsel %vm7906, %v8620, %v8619
        %v8622 = vrot.slane %v7842, 4
        %v8623 = vsel %vm7909, %v8622, %v8621
        %v8624 = vrot.slane %v7843, 3
        %v8625 = vsel %vm7912, %v8624, %v8623
        %v8626 = vrot.slane %v7844, 2
        %v8627 = vsel %vm7915, %v8626, %v8625
        %v8628 = vrot.slane %v7845, 1
        %v8629 = vsel %vm7918, %v8628, %v8627
        %v8630 = vpack.c.b16 %v8506, %v8629
        %v8631 = vpack.c.b16 %v8534, %v8520
        %v8632 = vpack.c.b16 %v8562, %v8548
        %v8633 = vpack.c.b16 %v8590, %v8576
        %8634 = vrot.lane.b32.xlu0 %v8299, 64
        %v8635 = vpop.permute.xlu0 %8634
        %8636 = vrot.lane.b32.xlu0 %v8300, 64
        %v8637 = vpop.permute.xlu0 %8636
        %8638 = vrot.lane.b32.xlu0 %v8301, 64
        %v8639 = vpop.permute.xlu0 %8638
        %8640 = vrot.lane.b32.xlu0 %v8302, 64
        %v8641 = vpop.permute.xlu0 %8640
        %8643 = vrot.lane.b32.xlu0 %v8591, 64
        %v8644 = vpop.permute.xlu0 %8643
        %8645 = vrot.lane.b32.xlu0 %v8592, 64
        %v8646 = vpop.permute.xlu0 %8645
        %8647 = vrot.lane.b32.xlu0 %v8593, 64
        %v8648 = vpop.permute.xlu0 %8647
        %8649 = vrot.lane.b32.xlu0 %v8596, 64
        %v8650 = vpop.permute.xlu0 %8649
        %v8652 = vsel %vm2827, %v8317, %v8601
        %v8656 = vsel %vm2827, %v8310, %v8603
        %v8660 = vsel %vm2827, %v8312, %v8605
        %v8664 = vsel %vm2827, %v8314, %v8607
        %v8667 = vsel %vm2827, %v8490, %v8609
        %v8671 = vsel %vm2827, %v8484, %v8611
        %v8675 = vsel %vm2827, %v8486, %v8613
        %v8679 = vsel %vm2827, %v8488, %v8615
        %v8683 = vsel %vm2827, %v8630, %v8635
        %v8687 = vsel %vm2827, %v8631, %v8637
        %v8691 = vsel %vm2827, %v8632, %v8639
        %v8695 = vsel %vm2827, %v8633, %v8641
        %v8698 = vsel %vm2827, %v8310, %v8644
        %v8701 = vsel %vm2827, %v8312, %v8646
        %v8704 = vsel %vm2827, %v8314, %v8648
        %v8707 = vsel %vm2827, %v8492, %v8650
        %v8709 = vld [vmem:[%s5] sm:$0xf]
        %v8710 = vld [vmem:[%s5 + $0x4] sm:$0xf]
        %v8711 = vld [vmem:[%s5 + $0x8] sm:$0xf]
        %v8712 = vld [vmem:[%s5 + $0xc] sm:$0xf]
        %v8713 = vld [vmem:[%s5 + $0x10] sm:$0xf]
        %v8714 = vld [vmem:[%s5 + $0x14] sm:$0xf]
        %v8715 = vld [vmem:[%s5 + $0x18] sm:$0xf]
        %v8716 = vld [vmem:[%s5 + $0x1c] sm:$0xf]
        %v8717 = vld [vmem:[%s5 + $0x20] sm:$0xf]
        %v8718 = vld [vmem:[%s5 + $0x24] sm:$0xf]
        %v8719 = vld [vmem:[%s5 + $0x28] sm:$0xf]
        %v8720 = vld [vmem:[%s5 + $0x2c] sm:$0xf]
        %v8721 = vld [vmem:[%s5 + $0x30] sm:$0xf]
        %v8722 = vld [vmem:[%s5 + $0x34] sm:$0xf]
        %v8723 = vld [vmem:[%s5 + $0x38] sm:$0xf]
        %v8724 = vld [vmem:[%s5 + $0x3c] sm:$0xf]
        %v8725 = vld [vmem:[%s5 + $0x40] sm:$0xf]
        %v8726 = vld [vmem:[%s5 + $0x44] sm:$0xf]
        %v8727 = vld [vmem:[%s5 + $0x48] sm:$0xf]
        %v8728 = vld [vmem:[%s5 + $0x4c] sm:$0xf]
        %v8729 = vld [vmem:[%s5 + $0x50] sm:$0xf]
        %v8730 = vld [vmem:[%s5 + $0x54] sm:$0xf]
        %v8731 = vld [vmem:[%s5 + $0x58] sm:$0xf]
        %v8732 = vld [vmem:[%s5 + $0x5c] sm:$0xf]
        %v8733 = vld [vmem:[%s5 + $0x60] sm:$0xf]
        %v8734 = vld [vmem:[%s5 + $0x64] sm:$0xf]
        %v8735 = vld [vmem:[%s5 + $0x68] sm:$0xf]
        %v8736 = vld [vmem:[%s5 + $0x6c] sm:$0xf]
        %v8737 = vld [vmem:[%s5 + $0x70] sm:$0xf]
        %v8738 = vld [vmem:[%s5 + $0x74] sm:$0xf]
        %v8739 = vld [vmem:[%s5 + $0x78] sm:$0xf]
        %v8740 = vld [vmem:[%s5 + $0x7c] sm:$0xf]
        %v8741 = vld [vmem:[%s5 + $0x80] sm:$0xf]
        %v8742 = vld [vmem:[%s5 + $0x84] sm:$0xf]
        %v8743 = vld [vmem:[%s5 + $0x88] sm:$0xf]
        %v8744 = vld [vmem:[%s5 + $0x8c] sm:$0xf]
        %v8745 = vld [vmem:[%s5 + $0x90] sm:$0xf]
        %v8746 = vld [vmem:[%s5 + $0x94] sm:$0xf]
        %v8747 = vld [vmem:[%s5 + $0x98] sm:$0xf]
        %v8748 = vld [vmem:[%s5 + $0x9c] sm:$0xf]
        %v8749 = vld [vmem:[%s5 + $0xa0] sm:$0xf]
        %v8750 = vld [vmem:[%s5 + $0xa4] sm:$0xf]
        %v8751 = vld [vmem:[%s5 + $0xa8] sm:$0xf]
        %v8752 = vld [vmem:[%s5 + $0xac] sm:$0xf]
        %v8753 = vld [vmem:[%s5 + $0xb0] sm:$0xf]
        %v8754 = vld [vmem:[%s5 + $0xb4] sm:$0xf]
        %v8755 = vld [vmem:[%s5 + $0xb8] sm:$0xf]
        %v8756 = vld [vmem:[%s5 + $0xbc] sm:$0xf]
        %v8757 = vld [vmem:[%s5 + $0xc0] sm:$0xf]
        %v8758 = vld [vmem:[%s5 + $0xc4] sm:$0xf]
        %v8759 = vld [vmem:[%s5 + $0xc8] sm:$0xf]
        %v8760 = vld [vmem:[%s5 + $0xcc] sm:$0xf]
        %v8761 = vld [vmem:[%s5 + $0xd0] sm:$0xf]
        %v8762 = vld [vmem:[%s5 + $0xd4] sm:$0xf]
        %v8763 = vld [vmem:[%s5 + $0xd8] sm:$0xf]
        %v8764 = vld [vmem:[%s5 + $0xdc] sm:$0xf]
        %v8765 = vld [vmem:[%s5 + $0xe0] sm:$0xf]
        %v8766 = vld [vmem:[%s5 + $0xe4] sm:$0xf]
        %v8767 = vld [vmem:[%s5 + $0xe8] sm:$0xf]
        %v8768 = vld [vmem:[%s5 + $0xec] sm:$0xf]
        %v8769 = vld [vmem:[%s5 + $0xf0] sm:$0xf]
        %v8770 = vld [vmem:[%s5 + $0xf4] sm:$0xf]
        %v8771 = vld [vmem:[%s5 + $0xf8] sm:$0xf]
        %v8772 = vld [vmem:[%s5 + $0xfc] sm:$0xf]
        %v8773 = vld [vmem:[%s5 + $0x100] sm:$0xf]
        %v8774 = vld [vmem:[%s5 + $0x104] sm:$0xf]
        %v8775 = vld [vmem:[%s5 + $0x108] sm:$0xf]
        %v8776 = vld [vmem:[%s5 + $0x10c] sm:$0xf]
        %v8777 = vld [vmem:[%s5 + $0x110] sm:$0xf]
        %v8778 = vld [vmem:[%s5 + $0x114] sm:$0xf]
        %v8779 = vld [vmem:[%s5 + $0x118] sm:$0xf]
        %v8780 = vld [vmem:[%s5 + $0x11c] sm:$0xf]
        %v8781 = vld [vmem:[%s6] sm:$0x1]
        %v8783 = vperm.slane %v8781, 0
        %v8857 = vunpack.c.l.b16 %v8709
        %v8858 = vunpack.c.l.b16 %v8710
        %v8859 = vunpack.c.l.b16 %v8711
        %v8860 = vunpack.c.l.b16 %v8712
        %v8861 = vunpack.c.l.b16 %v8713
        %v8862 = vunpack.c.l.b16 %v8714
        %v8863 = vunpack.c.l.b16 %v8715
        %v8864 = vunpack.c.l.b16 %v8716
        %v8865 = vunpack.c.l.b16 %v8717
        %v8866 = vunpack.c.l.b16 %v8718
        %v8867 = vunpack.c.l.b16 %v8719
        %v8868 = vunpack.c.l.b16 %v8720
        %v8869 = vunpack.c.l.b16 %v8721
        %v8870 = vunpack.c.l.b16 %v8722
        %v8871 = vunpack.c.l.b16 %v8723
        %v8872 = vunpack.c.l.b16 %v8724
        %v8873 = vunpack.c.l.b16 %v8725
        %v8874 = vunpack.c.l.b16 %v8726
        %v8875 = vunpack.c.l.b16 %v8727
        %v8876 = vunpack.c.l.b16 %v8728
        %v8877 = vunpack.c.l.b16 %v8729
        %v8878 = vunpack.c.l.b16 %v8730
        %v8879 = vunpack.c.l.b16 %v8731
        %v8880 = vunpack.c.l.b16 %v8732
        %v8881 = vunpack.c.l.b16 %v8733
        %v8882 = vunpack.c.l.b16 %v8734
        %v8883 = vunpack.c.l.b16 %v8735
        %v8884 = vunpack.c.l.b16 %v8736
        %v8885 = vunpack.c.l.b16 %v8737
        %v8886 = vunpack.c.l.b16 %v8738
        %v8887 = vunpack.c.l.b16 %v8739
        %v8888 = vunpack.c.l.b16 %v8740
        %v8889 = vunpack.c.l.b16 %v8741
        %v8890 = vunpack.c.l.b16 %v8742
        %v8891 = vunpack.c.l.b16 %v8743
        %v8892 = vunpack.c.l.b16 %v8744
        %v8893 = vunpack.c.l.b16 %v8745
        %v8894 = vunpack.c.l.b16 %v8746
        %v8895 = vunpack.c.l.b16 %v8747
        %v8896 = vunpack.c.l.b16 %v8748
        %v8897 = vunpack.c.l.b16 %v8749
        %v8898 = vunpack.c.l.b16 %v8750
        %v8899 = vunpack.c.l.b16 %v8751
        %v8900 = vunpack.c.l.b16 %v8752
        %v8901 = vunpack.c.l.b16 %v8753
        %v8902 = vunpack.c.l.b16 %v8754
        %v8903 = vunpack.c.l.b16 %v8755
        %v8904 = vunpack.c.l.b16 %v8756
        %v8905 = vunpack.c.l.b16 %v8757
        %v8906 = vunpack.c.l.b16 %v8758
        %v8907 = vunpack.c.l.b16 %v8759
        %v8908 = vunpack.c.l.b16 %v8760
        %v8909 = vunpack.c.l.b16 %v8761
        %v8910 = vunpack.c.l.b16 %v8762
        %v8911 = vunpack.c.l.b16 %v8763
        %v8912 = vunpack.c.l.b16 %v8764
        %v8913 = vunpack.c.l.b16 %v8765
        %v8914 = vunpack.c.l.b16 %v8766
        %v8915 = vunpack.c.l.b16 %v8767
        %v8916 = vunpack.c.l.b16 %v8768
        %v8917 = vunpack.c.l.b16 %v8769
        %v8918 = vunpack.c.l.b16 %v8770
        %v8919 = vunpack.c.l.b16 %v8771
        %v8920 = vunpack.c.l.b16 %v8772
        %v8921 = vunpack.c.l.b16 %v8773
        %v8922 = vunpack.c.l.b16 %v8774
        %v8923 = vunpack.c.l.b16 %v8775
        %v8924 = vunpack.c.l.b16 %v8776
        %v8925 = vunpack.c.l.b16 %v8777
        %v8926 = vunpack.c.l.b16 %v8778
        %v8927 = vunpack.c.l.b16 %v8779
        %v8928 = vunpack.c.l.b16 %v8780
        %v8929 = vpack.c.b16 %v8858, %v8857
        %v8930 = vpack.c.b16 %v8860, %v8859
        %v8931 = vpack.c.b16 %v8862, %v8861
        %v8932 = vpack.c.b16 %v8864, %v8863
        %v8933 = vpack.c.b16 %v8866, %v8865
        %v8934 = vpack.c.b16 %v8868, %v8867
        %v8935 = vpack.c.b16 %v8870, %v8869
        %v8936 = vpack.c.b16 %v8872, %v8871
        %v8937 = vpack.c.b16 %v8874, %v8873
        %v8938 = vpack.c.b16 %v8876, %v8875
        %v8939 = vpack.c.b16 %v8878, %v8877
        %v8940 = vpack.c.b16 %v8880, %v8879
        %v8941 = vpack.c.b16 %v8882, %v8881
        %v8942 = vpack.c.b16 %v8884, %v8883
        %v8943 = vpack.c.b16 %v8886, %v8885
        %v8944 = vpack.c.b16 %v8888, %v8887
        %v8945 = vpack.c.b16 %v8890, %v8889
        %v8946 = vpack.c.b16 %v8892, %v8891
        %v8947 = vpack.c.b16 %v8894, %v8893
        %v8948 = vpack.c.b16 %v8896, %v8895
        %v8949 = vpack.c.b16 %v8898, %v8897
        %v8950 = vpack.c.b16 %v8900, %v8899
        %v8951 = vpack.c.b16 %v8902, %v8901
        %v8952 = vpack.c.b16 %v8904, %v8903
        %v8953 = vpack.c.b16 %v8906, %v8905
        %v8954 = vpack.c.b16 %v8908, %v8907
        %v8955 = vpack.c.b16 %v8910, %v8909
        %v8956 = vpack.c.b16 %v8912, %v8911
        %v8957 = vpack.c.b16 %v8914, %v8913
        %v8958 = vpack.c.b16 %v8916, %v8915
        %v8959 = vpack.c.b16 %v8918, %v8917
        %v8960 = vpack.c.b16 %v8920, %v8919
        %v8961 = vpack.c.b16 %v8922, %v8921
        %v8962 = vpack.c.b16 %v8924, %v8923
        %v8963 = vpack.c.b16 %v8926, %v8925
        %v8964 = vpack.c.b16 %v8928, %v8927
        %v9001 = vsel %vm2827, %v8484, 0
        %v9003 = vsel %vm2827, %v8486, 0
        %v9005 = vsel %vm2827, %v8488, 0
        %v9007 = vsel %vm2827, %v8598, 0
        %9009 = vmatpush.bf16.msra.mxu0 %v8936
        %9010 = vmatpush.bf16.msra.mxu0 %v8935
        %9011 = vmatpush.bf16.msra.mxu0 %v8934
        %9012 = vmatpush.bf16.msra.mxu0 %v8933
        %9013 = vmatpush.bf16.msra.mxu0 %v8932
        %9014 = vmatpush.bf16.msra.mxu0 %v8931
        %9015 = vmatpush.bf16.msra.mxu0 %v8930
        %9016 = vmatpush.bf16.msra.mxu0 %v8929
        %9017 = vmatmul.bf16.gmra.mxu0 %v8652
        %v9018 = vpop.f32.mrf.mxu0
        %v9019 = vadd.f32 %v8783, %v9018
        %v9020 = vpop.f32.mrf.mxu0
        %v9021 = vadd.f32 %v8783, %v9020
        %9022 = vmatmul.bf16.gmra.mxu0 %v8656
        %v9023 = vpop.f32.mrf.mxu0
        %v9024 = vadd.f32 %v8783, %v9023
        %v9025 = vpop.f32.mrf.mxu0
        %v9026 = vadd.f32 %v8783, %v9025
        %9027 = vmatmul.bf16.gmra.mxu0 %v8660
        %v9028 = vpop.f32.mrf.mxu0
        %v9029 = vadd.f32 %v8783, %v9028
        %v9030 = vpop.f32.mrf.mxu0
        %v9031 = vadd.f32 %v8783, %v9030
        %9032 = vmatmul.bf16.gmra.mxu0 %v8664
        %v9033 = vpop.f32.mrf.mxu0
        %v9034 = vadd.f32 %v8783, %v9033
        %v9035 = vpop.f32.mrf.mxu0
        %v9036 = vadd.f32 %v8783, %v9035
        %9037 = vdwg.mxu0
        %9038 = vmatpush.bf16.msra.mxu0 %v8944
        %9039 = vmatpush.bf16.msra.mxu0 %v8943
        %9040 = vmatpush.bf16.msra.mxu0 %v8942
        %9041 = vmatpush.bf16.msra.mxu0 %v8941
        %9042 = vmatpush.bf16.msra.mxu0 %v8940
        %9043 = vmatpush.bf16.msra.mxu0 %v8939
        %9044 = vmatpush.bf16.msra.mxu0 %v8938
        %9045 = vmatpush.bf16.msra.mxu0 %v8937
        %9046 = vmatmul.bf16.gmra.mxu0 %v8667
        %v9047 = vpop.f32.mrf.mxu0
        %v9048 = vadd.f32 %v9019, %v9047
        %v9049 = vpop.f32.mrf.mxu0
        %v9050 = vadd.f32 %v9021, %v9049
        %9051 = vmatmul.bf16.gmra.mxu0 %v8671
        %v9052 = vpop.f32.mrf.mxu0
        %v9053 = vadd.f32 %v9024, %v9052
        %v9054 = vpop.f32.mrf.mxu0
        %v9055 = vadd.f32 %v9026, %v9054
        %9056 = vmatmul.bf16.gmra.mxu0 %v8675
        %v9057 = vpop.f32.mrf.mxu0
        %v9058 = vadd.f32 %v9029, %v9057
        %v9059 = vpop.f32.mrf.mxu0
        %v9060 = vadd.f32 %v9031, %v9059
        %9061 = vmatmul.bf16.gmra.mxu0 %v8679
        %v9062 = vpop.f32.mrf.mxu0
        %v9063 = vadd.f32 %v9034, %v9062
        %v9064 = vpop.f32.mrf.mxu0
        %v9065 = vadd.f32 %v9036, %v9064
        %9066 = vdwg.mxu0
        %9067 = vmatpush.bf16.msra.mxu0 %v8952
        %9068 = vmatpush.bf16.msra.mxu0 %v8951
        %9069 = vmatpush.bf16.msra.mxu0 %v8950
        %9070 = vmatpush.bf16.msra.mxu0 %v8949
        %9071 = vmatpush.bf16.msra.mxu0 %v8948
        %9072 = vmatpush.bf16.msra.mxu0 %v8947
        %9073 = vmatpush.bf16.msra.mxu0 %v8946
        %9074 = vmatpush.bf16.msra.mxu0 %v8945
        %9075 = vmatmul.bf16.gmra.mxu0 %v8683
        %v9076 = vpop.f32.mrf.mxu0
        %v9077 = vadd.f32 %v9048, %v9076
        %v9078 = vpop.f32.mrf.mxu0
        %v9079 = vadd.f32 %v9050, %v9078
        %9080 = vmatmul.bf16.gmra.mxu0 %v8687
        %v9081 = vpop.f32.mrf.mxu0
        %v9082 = vadd.f32 %v9053, %v9081
        %v9083 = vpop.f32.mrf.mxu0
        %v9084 = vadd.f32 %v9055, %v9083
        %9085 = vmatmul.bf16.gmra.mxu0 %v8691
        %v9086 = vpop.f32.mrf.mxu0
        %v9087 = vadd.f32 %v9058, %v9086
        %v9088 = vpop.f32.mrf.mxu0
        %v9089 = vadd.f32 %v9060, %v9088
        %9090 = vmatmul.bf16.gmra.mxu0 %v8695
        %v9091 = vpop.f32.mrf.mxu0
        %v9092 = vadd.f32 %v9063, %v9091
        %v9093 = vpop.f32.mrf.mxu0
        %v9094 = vadd.f32 %v9065, %v9093
        %9095 = vdwg.mxu0
        %9096 = vmatpush.bf16.msra.mxu0 %v8960
        %9097 = vmatpush.bf16.msra.mxu0 %v8959
        %9098 = vmatpush.bf16.msra.mxu0 %v8958
        %9099 = vmatpush.bf16.msra.mxu0 %v8957
        %9100 = vmatpush.bf16.msra.mxu0 %v8956
        %9101 = vmatpush.bf16.msra.mxu0 %v8955
        %9102 = vmatpush.bf16.msra.mxu0 %v8954
        %9103 = vmatpush.bf16.msra.mxu0 %v8953
        %9104 = vmatmul.bf16.gmra.mxu0 %v8698
        %v9105 = vpop.f32.mrf.mxu0
        %v9106 = vadd.f32 %v9077, %v9105
        %v9107 = vpop.f32.mrf.mxu0
        %v9108 = vadd.f32 %v9079, %v9107
        %9109 = vmatmul.bf16.gmra.mxu0 %v8701
        %v9110 = vpop.f32.mrf.mxu0
        %v9111 = vadd.f32 %v9082, %v9110
        %v9112 = vpop.f32.mrf.mxu0
        %v9113 = vadd.f32 %v9084, %v9112
        %9114 = vmatmul.bf16.gmra.mxu0 %v8704
        %v9115 = vpop.f32.mrf.mxu0
        %v9116 = vadd.f32 %v9087, %v9115
        %v9117 = vpop.f32.mrf.mxu0
        %v9118 = vadd.f32 %v9089, %v9117
        %9119 = vmatmul.bf16.gmra.mxu0 %v8707
        %v9120 = vpop.f32.mrf.mxu0
        %v9121 = vadd.f32 %v9092, %v9120
        %v9122 = vpop.f32.mrf.mxu0
        %v9123 = vadd.f32 %v9094, %v9122
        %9124 = vdwg.mxu0
        %9125 = vmatpush.bf16.msra.mxu0 0
        %9126 = vmatpush.bf16.msra.mxu0 0
        %9127 = vmatpush.bf16.msra.mxu0 0
        %9128 = vmatpush.bf16.msra.mxu0 0
        %9129 = vmatpush.bf16.msra.mxu0 %v8964
        %9130 = vmatpush.bf16.msra.mxu0 %v8963
        %9131 = vmatpush.bf16.msra.mxu0 %v8962
        %9132 = vmatpush.bf16.msra.mxu0 %v8961
        %9133 = vmatmul.bf16.gmra.mxu0 %v9001
        %v9134 = vpop.f32.mrf.mxu0
        %v9135 = vadd.f32 %v9106, %v9134
        %v9136 = vpop.f32.mrf.mxu0
        %v9137 = vadd.f32 %v9108, %v9136
        %9138 = vmatmul.bf16.gmra.mxu0 %v9003
        %v9139 = vpop.f32.mrf.mxu0
        %v9140 = vadd.f32 %v9111, %v9139
        %v9141 = vpop.f32.mrf.mxu0
        %v9142 = vadd.f32 %v9113, %v9141
        %9143 = vmatmul.bf16.gmra.mxu0 %v9005
        %v9144 = vpop.f32.mrf.mxu0
        %v9145 = vadd.f32 %v9116, %v9144
        %v9146 = vpop.f32.mrf.mxu0
        %v9147 = vadd.f32 %v9118, %v9146
        %9148 = vmatmul.bf16.gmra.mxu0 %v9007
        %v9149 = vpop.f32.mrf.mxu0
        %v9150 = vadd.f32 %v9121, %v9149
        %v9151 = vpop.f32.mrf.mxu0
        %v9152 = vadd.f32 %v9123, %v9151
        %9153 = vdwg.mxu0
        %v9154 = vmax.f32 %v9135, 0.0
        %v9155 = vmax.f32 %v9137, 0.0
        %v9156 = vmax.f32 %v9140, 0.0
        %v9157 = vmax.f32 %v9142, 0.0
        %v9158 = vmax.f32 %v9145, 0.0
        %v9159 = vmax.f32 %v9147, 0.0
        %v9160 = vmax.f32 %v9150, 0.0
        %v9161 = vmax.f32 %v9152, 0.0
        %v9162 = vpack.c.bf16 %v9154, %v9154
        %v9163 = vpack.c.bf16 %v9155, %v9155
        %v9164 = vpack.c.bf16 %v9156, %v9156
        %v9165 = vpack.c.bf16 %v9157, %v9157
        %v9166 = vpack.c.bf16 %v9158, %v9158
        %v9167 = vpack.c.bf16 %v9159, %v9159
        %v9168 = vpack.c.bf16 %v9160, %v9160
        %v9169 = vpack.c.bf16 %v9161, %v9161
        %v9178 = vunpack.c.l.b16 %v9162
        %v9179 = vunpack.c.l.b16 %v9163
        %v9180 = vunpack.c.l.b16 %v9164
        %v9181 = vunpack.c.l.b16 %v9165
        %v9182 = vunpack.c.l.b16 %v9166
        %v9183 = vunpack.c.l.b16 %v9167
        %v9184 = vunpack.c.l.b16 %v9168
        %v9185 = vunpack.c.l.b16 %v9169
        %v9186 = vpack.c.b16 %v9179, %v9178
        %v9187 = vpack.c.b16 %v9181, %v9180
        %v9188 = vpack.c.b16 %v9183, %v9182
        %v9189 = vpack.c.b16 %v9185, %v9184
        %v9191 = vshrl.u32 %v9186, 16
        %v9193 = vrot.slane %v9191, 7
        %v9194 = vshll.u32 %v9186, 16
        %v9196 = vor.u32 %v9193, %v9194
        %v9198 = vshrl.u32 %v9187, 16
        %v9200 = vrot.slane %v9198, 7
        %v9201 = vshll.u32 %v9187, 16
        %v9203 = vor.u32 %v9200, %v9201
        %v9204 = vsel %vm1392, %v9193, %v9203
        %v9206 = vshrl.u32 %v9188, 16
        %v9208 = vrot.slane %v9206, 7
        %v9209 = vshll.u32 %v9188, 16
        %v9211 = vor.u32 %v9208, %v9209
        %v9212 = vsel %vm1392, %v9200, %v9211
        %v9214 = vshrl.u32 %v9189, 16
        %v9216 = vrot.slane %v9214, 7
        %v9217 = vshll.u32 %v9189, 16
        %v9219 = vor.u32 %v9216, %v9217
        %v9220 = vsel %vm1392, %v9208, %v9219
        %v9225 = vsel %vm1680, 0, %v9196
        %v9226 = vsel %vm8078, %v9225, 0
        %v9227 = vsel %vm8085, %v9204, 0
        %v9228 = vsel %vm8092, %v9212, 0
        %v9229 = vsel %vm8099, %v9220, 0
        %v9230 = vrot.slane %v9194, 1
        %v9231 = vor.u32 %v9191, %v9230
        %v9232 = vrot.slane %v9201, 1
        %v9233 = vsel %vm2003, %v9231, %v9232
        %v9234 = vor.u32 %v9198, %v9232
        %v9235 = vrot.slane %v9209, 1
        %v9236 = vsel %vm2003, %v9234, %v9235
        %v9237 = vor.u32 %v9206, %v9235
        %v9238 = vrot.slane %v9217, 1
        %v9239 = vsel %vm2003, %v9237, %v9238
        %v9240 = vor.u32 %v9214, %v9238
        %v9245 = vsel %vm2131, %v9240, 0
        %v9246 = vsel %vm8277, %v9233, 0
        %v9247 = vsel %vm8284, %v9236, 0
        %v9248 = vsel %vm8291, %v9239, 0
        %v9249 = vsel %vm8298, %v9245, 0
        %v9254 = vrot.slane %v9226, 4
        %v9255 = vrot.slane %v9227, 4
        %v9256 = vsel %vm8307, %v9254, %v9255
        %v9257 = vrot.slane %v9228, 4
        %v9258 = vsel %vm8307, %v9255, %v9257
        %v9259 = vrot.slane %v9229, 4
        %v9260 = vsel %vm8307, %v9257, %v9259
        %v9262 = vsel %vm8315, 0, %v9254
        %v9263 = vpack.c.b16 %v9178, %v9178
        %v9264 = vpack.c.b16 %v9180, %v9179
        %v9265 = vpack.c.b16 %v9182, %v9181
        %v9266 = vpack.c.b16 %v9184, %v9183
        %v9268 = vsel %vm8315, 0, %v9263
        %v9273 = vrot.slane %v9246, 4
        %v9274 = vrot.slane %v9247, 4
        %v9275 = vsel %vm8307, %v9273, %v9274
        %v9276 = vrot.slane %v9248, 4
        %v9277 = vsel %vm8307, %v9274, %v9276
        %v9278 = vrot.slane %v9249, 4
        %v9279 = vsel %vm8307, %v9276, %v9278
        %v9281 = vsel %vm8315, 0, %v9273
        %v9283 = vsel %vm8315, %v9259, 0
        %v9284 = vpack.c.b16 %v9185, %v9185
        %v9286 = vsel %vm8315, %v9284, 0
        %v9288 = vsel %vm8315, %v9278, 0
        %9290 = vrot.lane.b32.xlu0 %v9268, 64
        %v9291 = vpop.permute.xlu0 %9290
        %9292 = vrot.lane.b32.xlu0 %v9264, 64
        %v9293 = vpop.permute.xlu0 %9292
        %9294 = vrot.lane.b32.xlu0 %v9265, 64
        %v9295 = vpop.permute.xlu0 %9294
        %9296 = vrot.lane.b32.xlu0 %v9266, 64
        %v9297 = vpop.permute.xlu0 %9296
        %9298 = vrot.lane.b32.xlu0 %v9226, 64
        %v9299 = vpop.permute.xlu0 %9298
        %9300 = vrot.lane.b32.xlu0 %v9227, 64
        %v9301 = vpop.permute.xlu0 %9300
        %9302 = vrot.lane.b32.xlu0 %v9228, 64
        %v9303 = vpop.permute.xlu0 %9302
        %9304 = vrot.lane.b32.xlu0 %v9229, 64
        %v9305 = vpop.permute.xlu0 %9304
        %9306 = vrot.lane.b32.xlu0 %v9246, 64
        %v9307 = vpop.permute.xlu0 %9306
        %9308 = vrot.lane.b32.xlu0 %v9247, 64
        %v9309 = vpop.permute.xlu0 %9308
        %9310 = vrot.lane.b32.xlu0 %v9248, 64
        %v9311 = vpop.permute.xlu0 %9310
        %9312 = vrot.lane.b32.xlu0 %v9249, 64
        %v9313 = vpop.permute.xlu0 %9312
        %9315 = vrot.lane.b32.xlu0 %v9286, 64
        %v9316 = vpop.permute.xlu0 %9315
        %v9318 = vsel %vm2827, %v9262, %v9291
        %v9322 = vsel %vm2827, %v9256, %v9293
        %v9326 = vsel %vm2827, %v9258, %v9295
        %v9330 = vsel %vm2827, %v9260, %v9297
        %v9333 = vsel %vm2827, %v9281, %v9299
        %v9337 = vsel %vm2827, %v9275, %v9301
        %v9341 = vsel %vm2827, %v9277, %v9303
        %v9345 = vsel %vm2827, %v9279, %v9305
        %v9348 = vsel %vm2827, %v9186, %v9307
        %v9351 = vsel %vm2827, %v9187, %v9309
        %v9354 = vsel %vm2827, %v9188, %v9311
        %v9357 = vsel %vm2827, %v9189, %v9313
        %v9360 = vsel %vm2827, %v9283, %v9316
        %v9362 = vld [vmem:[#allocation2] sm:$0xf]
        %v9363 = vld [vmem:[#allocation2 + $0x4] sm:$0xf]
        %v9364 = vld [vmem:[#allocation2 + $0x8] sm:$0xf]
        %v9365 = vld [vmem:[#allocation2 + $0xc] sm:$0xf]
        %v9366 = vld [vmem:[#allocation2 + $0x10] sm:$0xf]
        %v9367 = vld [vmem:[#allocation2 + $0x14] sm:$0xf]
        %v9368 = vld [vmem:[#allocation2 + $0x18] sm:$0xf]
        %v9369 = vld [vmem:[#allocation2 + $0x1c] sm:$0xf]
        %v9370 = vld [vmem:[#allocation2 + $0x20] sm:$0xf]
        %v9371 = vld [vmem:[#allocation2 + $0x24] sm:$0xf]
        %v9372 = vld [vmem:[#allocation2 + $0x28] sm:$0xf]
        %v9373 = vld [vmem:[#allocation2 + $0x2c] sm:$0xf]
        %v9374 = vld [vmem:[#allocation2 + $0x30] sm:$0xf]
        %v9375 = vld [vmem:[#allocation2 + $0x34] sm:$0xf]
        %v9376 = vld [vmem:[#allocation2 + $0x38] sm:$0xf]
        %v9377 = vld [vmem:[#allocation2 + $0x3c] sm:$0xf]
        %v9378 = vld [vmem:[#allocation2 + $0x40] sm:$0xf]
        %v9379 = vld [vmem:[#allocation2 + $0x44] sm:$0xf]
        %v9380 = vld [vmem:[#allocation2 + $0x48] sm:$0xf]
        %v9381 = vld [vmem:[#allocation2 + $0x4c] sm:$0xf]
        %v9382 = vld [vmem:[#allocation2 + $0x50] sm:$0xf]
        %v9383 = vld [vmem:[#allocation2 + $0x54] sm:$0xf]
        %v9384 = vld [vmem:[#allocation2 + $0x58] sm:$0xf]
        %v9385 = vld [vmem:[#allocation2 + $0x5c] sm:$0xf]
        %v9386 = vld [vmem:[#allocation2 + $0x60] sm:$0xf]
        %v9387 = vld [vmem:[#allocation2 + $0x64] sm:$0xf]
        %v9388 = vld [vmem:[#allocation2 + $0x68] sm:$0xf]
        %v9389 = vld [vmem:[#allocation2 + $0x6c] sm:$0xf]
        %v9390 = vld [vmem:[#allocation2 + $0x70] sm:$0xf]
        %v9391 = vld [vmem:[#allocation2 + $0x74] sm:$0xf]
        %v9392 = vld [vmem:[#allocation2 + $0x78] sm:$0xf]
        %v9393 = vld [vmem:[#allocation2 + $0x7c] sm:$0xf]
        %v9394 = vld [vmem:[#allocation2 + $0x80] sm:$0xf]
        %v9395 = vld [vmem:[#allocation2 + $0x84] sm:$0xf]
        %v9396 = vld [vmem:[#allocation2 + $0x88] sm:$0xf]
        %v9397 = vld [vmem:[#allocation2 + $0x8c] sm:$0xf]
        %v9398 = vld [vmem:[#allocation2 + $0x90] sm:$0xf]
        %v9399 = vld [vmem:[#allocation2 + $0x94] sm:$0xf]
        %v9400 = vld [vmem:[#allocation2 + $0x98] sm:$0xf]
        %v9401 = vld [vmem:[#allocation2 + $0x9c] sm:$0xf]
        %v9402 = vld [vmem:[#allocation2 + $0xa0] sm:$0xf]
        %v9403 = vld [vmem:[#allocation2 + $0xa4] sm:$0xf]
        %v9404 = vld [vmem:[#allocation2 + $0xa8] sm:$0xf]
        %v9405 = vld [vmem:[#allocation2 + $0xac] sm:$0xf]
        %v9406 = vld [vmem:[#allocation2 + $0xb0] sm:$0xf]
        %v9407 = vld [vmem:[#allocation2 + $0xb4] sm:$0xf]
        %v9408 = vld [vmem:[#allocation2 + $0xb8] sm:$0xf]
        %v9409 = vld [vmem:[#allocation2 + $0xbc] sm:$0xf]
        %v9410 = vld [vmem:[#allocation2 + $0xc0] sm:$0xf]
        %v9411 = vld [vmem:[#allocation2 + $0xc4] sm:$0xf]
        %v9412 = vld [vmem:[#allocation2 + $0xc8] sm:$0xf]
        %v9413 = vld [vmem:[#allocation2 + $0xcc] sm:$0xf]
        %v9414 = vld [vmem:[#allocation2 + $0xd0] sm:$0xf]
        %v9415 = vld [vmem:[#allocation2 + $0xd4] sm:$0xf]
        %v9416 = vld [vmem:[#allocation2 + $0xd8] sm:$0xf]
        %v9417 = vld [vmem:[#allocation2 + $0xdc] sm:$0xf]
        %v9418 = vld [vmem:[#allocation2 + $0xe0] sm:$0xf]
        %v9419 = vld [vmem:[#allocation2 + $0xe4] sm:$0xf]
        %v9420 = vld [vmem:[#allocation2 + $0xe8] sm:$0xf]
        %v9421 = vld [vmem:[#allocation2 + $0xec] sm:$0xf]
        %v9422 = vld [vmem:[#allocation2 + $0xf0] sm:$0xf]
        %v9423 = vld [vmem:[#allocation2 + $0xf4] sm:$0xf]
        %v9424 = vld [vmem:[#allocation2 + $0xf8] sm:$0xf]
        %v9425 = vld [vmem:[#allocation2 + $0xfc] sm:$0xf]
        %v9426 = vld [vmem:[#allocation2 + $0x100] sm:$0xf]
        %v9427 = vld [vmem:[#allocation2 + $0x104] sm:$0xf]
        %v9428 = vld [vmem:[#allocation2 + $0x108] sm:$0xf]
        %v9429 = vld [vmem:[#allocation2 + $0x10c] sm:$0xf]
        %v9430 = vld [vmem:[#allocation2 + $0x110] sm:$0xf]
        %v9431 = vld [vmem:[#allocation2 + $0x114] sm:$0xf]
        %v9432 = vld [vmem:[#allocation2 + $0x118] sm:$0xf]
        %v9433 = vld [vmem:[#allocation2 + $0x11c] sm:$0xf]
        %v9434 = vld [vmem:[%s8] sm:$0x1]
        %v9436 = vperm.slane %v9434, 0
        %v9510 = vunpack.c.l.b16 %v9362
        %v9511 = vunpack.c.l.b16 %v9363
        %v9512 = vunpack.c.l.b16 %v9364
        %v9513 = vunpack.c.l.b16 %v9365
        %v9514 = vunpack.c.l.b16 %v9366
        %v9515 = vunpack.c.l.b16 %v9367
        %v9516 = vunpack.c.l.b16 %v9368
        %v9517 = vunpack.c.l.b16 %v9369
        %v9518 = vunpack.c.l.b16 %v9370
        %v9519 = vunpack.c.l.b16 %v9371
        %v9520 = vunpack.c.l.b16 %v9372
        %v9521 = vunpack.c.l.b16 %v9373
        %v9522 = vunpack.c.l.b16 %v9374
        %v9523 = vunpack.c.l.b16 %v9375
        %v9524 = vunpack.c.l.b16 %v9376
        %v9525 = vunpack.c.l.b16 %v9377
        %v9526 = vunpack.c.l.b16 %v9378
        %v9527 = vunpack.c.l.b16 %v9379
        %v9528 = vunpack.c.l.b16 %v9380
        %v9529 = vunpack.c.l.b16 %v9381
        %v9530 = vunpack.c.l.b16 %v9382
        %v9531 = vunpack.c.l.b16 %v9383
        %v9532 = vunpack.c.l.b16 %v9384
        %v9533 = vunpack.c.l.b16 %v9385
        %v9534 = vunpack.c.l.b16 %v9386
        %v9535 = vunpack.c.l.b16 %v9387
        %v9536 = vunpack.c.l.b16 %v9388
        %v9537 = vunpack.c.l.b16 %v9389
        %v9538 = vunpack.c.l.b16 %v9390
        %v9539 = vunpack.c.l.b16 %v9391
        %v9540 = vunpack.c.l.b16 %v9392
        %v9541 = vunpack.c.l.b16 %v9393
        %v9542 = vunpack.c.l.b16 %v9394
        %v9543 = vunpack.c.l.b16 %v9395
        %v9544 = vunpack.c.l.b16 %v9396
        %v9545 = vunpack.c.l.b16 %v9397
        %v9546 = vunpack.c.l.b16 %v9398
        %v9547 = vunpack.c.l.b16 %v9399
        %v9548 = vunpack.c.l.b16 %v9400
        %v9549 = vunpack.c.l.b16 %v9401
        %v9550 = vunpack.c.l.b16 %v9402
        %v9551 = vunpack.c.l.b16 %v9403
        %v9552 = vunpack.c.l.b16 %v9404
        %v9553 = vunpack.c.l.b16 %v9405
        %v9554 = vunpack.c.l.b16 %v9406
        %v9555 = vunpack.c.l.b16 %v9407
        %v9556 = vunpack.c.l.b16 %v9408
        %v9557 = vunpack.c.l.b16 %v9409
        %v9558 = vunpack.c.l.b16 %v9410
        %v9559 = vunpack.c.l.b16 %v9411
        %v9560 = vunpack.c.l.b16 %v9412
        %v9561 = vunpack.c.l.b16 %v9413
        %v9562 = vunpack.c.l.b16 %v9414
        %v9563 = vunpack.c.l.b16 %v9415
        %v9564 = vunpack.c.l.b16 %v9416
        %v9565 = vunpack.c.l.b16 %v9417
        %v9566 = vunpack.c.l.b16 %v9418
        %v9567 = vunpack.c.l.b16 %v9419
        %v9568 = vunpack.c.l.b16 %v9420
        %v9569 = vunpack.c.l.b16 %v9421
        %v9570 = vunpack.c.l.b16 %v9422
        %v9571 = vunpack.c.l.b16 %v9423
        %v9572 = vunpack.c.l.b16 %v9424
        %v9573 = vunpack.c.l.b16 %v9425
        %v9574 = vunpack.c.l.b16 %v9426
        %v9575 = vunpack.c.l.b16 %v9427
        %v9576 = vunpack.c.l.b16 %v9428
        %v9577 = vunpack.c.l.b16 %v9429
        %v9578 = vunpack.c.l.b16 %v9430
        %v9579 = vunpack.c.l.b16 %v9431
        %v9580 = vunpack.c.l.b16 %v9432
        %v9581 = vunpack.c.l.b16 %v9433
        %v9582 = vpack.c.b16 %v9511, %v9510
        %v9583 = vpack.c.b16 %v9513, %v9512
        %v9584 = vpack.c.b16 %v9515, %v9514
        %v9585 = vpack.c.b16 %v9517, %v9516
        %v9586 = vpack.c.b16 %v9519, %v9518
        %v9587 = vpack.c.b16 %v9521, %v9520
        %v9588 = vpack.c.b16 %v9523, %v9522
        %v9589 = vpack.c.b16 %v9525, %v9524
        %v9590 = vpack.c.b16 %v9527, %v9526
        %v9591 = vpack.c.b16 %v9529, %v9528
        %v9592 = vpack.c.b16 %v9531, %v9530
        %v9593 = vpack.c.b16 %v9533, %v9532
        %v9594 = vpack.c.b16 %v9535, %v9534
        %v9595 = vpack.c.b16 %v9537, %v9536
        %v9596 = vpack.c.b16 %v9539, %v9538
        %v9597 = vpack.c.b16 %v9541, %v9540
        %v9598 = vpack.c.b16 %v9543, %v9542
        %v9599 = vpack.c.b16 %v9545, %v9544
        %v9600 = vpack.c.b16 %v9547, %v9546
        %v9601 = vpack.c.b16 %v9549, %v9548
        %v9602 = vpack.c.b16 %v9551, %v9550
        %v9603 = vpack.c.b16 %v9553, %v9552
        %v9604 = vpack.c.b16 %v9555, %v9554
        %v9605 = vpack.c.b16 %v9557, %v9556
        %v9606 = vpack.c.b16 %v9559, %v9558
        %v9607 = vpack.c.b16 %v9561, %v9560
        %v9608 = vpack.c.b16 %v9563, %v9562
        %v9609 = vpack.c.b16 %v9565, %v9564
        %v9610 = vpack.c.b16 %v9567, %v9566
        %v9611 = vpack.c.b16 %v9569, %v9568
        %v9612 = vpack.c.b16 %v9571, %v9570
        %v9613 = vpack.c.b16 %v9573, %v9572
        %v9614 = vpack.c.b16 %v9575, %v9574
        %v9615 = vpack.c.b16 %v9577, %v9576
        %v9616 = vpack.c.b16 %v9579, %v9578
        %v9617 = vpack.c.b16 %v9581, %v9580
        %v9654 = vsel %vm2827, %v9275, 0
        %v9656 = vsel %vm2827, %v9277, 0
        %v9658 = vsel %vm2827, %v9279, 0
        %v9660 = vsel %vm2827, %v9288, 0
        %9662 = vmatpush.bf16.msra.mxu0 %v9589
        %9663 = vmatpush.bf16.msra.mxu0 %v9588
        %9664 = vmatpush.bf16.msra.mxu0 %v9587
        %9665 = vmatpush.bf16.msra.mxu0 %v9586
        %9666 = vmatpush.bf16.msra.mxu0 %v9585
        %9667 = vmatpush.bf16.msra.mxu0 %v9584
        %9668 = vmatpush.bf16.msra.mxu0 %v9583
        %9669 = vmatpush.bf16.msra.mxu0 %v9582
        %9670 = vmatmul.bf16.gmra.mxu0 %v9318
        %v9671 = vpop.f32.mrf.mxu0
        %v9672 = vadd.f32 %v9436, %v9671
        %v9673 = vpop.f32.mrf.mxu0
        %v9674 = vadd.f32 %v9436, %v9673
        %9675 = vmatmul.bf16.gmra.mxu0 %v9322
        %v9676 = vpop.f32.mrf.mxu0
        %v9677 = vadd.f32 %v9436, %v9676
        %v9678 = vpop.f32.mrf.mxu0
        %v9679 = vadd.f32 %v9436, %v9678
        %9680 = vmatmul.bf16.gmra.mxu0 %v9326
        %v9681 = vpop.f32.mrf.mxu0
        %v9682 = vadd.f32 %v9436, %v9681
        %v9683 = vpop.f32.mrf.mxu0
        %v9684 = vadd.f32 %v9436, %v9683
        %9685 = vmatmul.bf16.gmra.mxu0 %v9330
        %v9686 = vpop.f32.mrf.mxu0
        %v9687 = vadd.f32 %v9436, %v9686
        %v9688 = vpop.f32.mrf.mxu0
        %v9689 = vadd.f32 %v9436, %v9688
        %9690 = vdwg.mxu0
        %9691 = vmatpush.bf16.msra.mxu0 %v9597
        %9692 = vmatpush.bf16.msra.mxu0 %v9596
        %9693 = vmatpush.bf16.msra.mxu0 %v9595
        %9694 = vmatpush.bf16.msra.mxu0 %v9594
        %9695 = vmatpush.bf16.msra.mxu0 %v9593
        %9696 = vmatpush.bf16.msra.mxu0 %v9592
        %9697 = vmatpush.bf16.msra.mxu0 %v9591
        %9698 = vmatpush.bf16.msra.mxu0 %v9590
        %9699 = vmatmul.bf16.gmra.mxu0 %v9333
        %v9700 = vpop.f32.mrf.mxu0
        %v9701 = vadd.f32 %v9672, %v9700
        %v9702 = vpop.f32.mrf.mxu0
        %v9703 = vadd.f32 %v9674, %v9702
        %9704 = vmatmul.bf16.gmra.mxu0 %v9337
        %v9705 = vpop.f32.mrf.mxu0
        %v9706 = vadd.f32 %v9677, %v9705
        %v9707 = vpop.f32.mrf.mxu0
        %v9708 = vadd.f32 %v9679, %v9707
        %9709 = vmatmul.bf16.gmra.mxu0 %v9341
        %v9710 = vpop.f32.mrf.mxu0
        %v9711 = vadd.f32 %v9682, %v9710
        %v9712 = vpop.f32.mrf.mxu0
        %v9713 = vadd.f32 %v9684, %v9712
        %9714 = vmatmul.bf16.gmra.mxu0 %v9345
        %v9715 = vpop.f32.mrf.mxu0
        %v9716 = vadd.f32 %v9687, %v9715
        %v9717 = vpop.f32.mrf.mxu0
        %v9718 = vadd.f32 %v9689, %v9717
        %9719 = vdwg.mxu0
        %9720 = vmatpush.bf16.msra.mxu0 %v9605
        %9721 = vmatpush.bf16.msra.mxu0 %v9604
        %9722 = vmatpush.bf16.msra.mxu0 %v9603
        %9723 = vmatpush.bf16.msra.mxu0 %v9602
        %9724 = vmatpush.bf16.msra.mxu0 %v9601
        %9725 = vmatpush.bf16.msra.mxu0 %v9600
        %9726 = vmatpush.bf16.msra.mxu0 %v9599
        %9727 = vmatpush.bf16.msra.mxu0 %v9598
        %9728 = vmatmul.bf16.gmra.mxu0 %v9348
        %v9729 = vpop.f32.mrf.mxu0
        %v9730 = vadd.f32 %v9701, %v9729
        %v9731 = vpop.f32.mrf.mxu0
        %v9732 = vadd.f32 %v9703, %v9731
        %9733 = vmatmul.bf16.gmra.mxu0 %v9351
        %v9734 = vpop.f32.mrf.mxu0
        %v9735 = vadd.f32 %v9706, %v9734
        %v9736 = vpop.f32.mrf.mxu0
        %v9737 = vadd.f32 %v9708, %v9736
        %9738 = vmatmul.bf16.gmra.mxu0 %v9354
        %v9739 = vpop.f32.mrf.mxu0
        %v9740 = vadd.f32 %v9711, %v9739
        %v9741 = vpop.f32.mrf.mxu0
        %v9742 = vadd.f32 %v9713, %v9741
        %9743 = vmatmul.bf16.gmra.mxu0 %v9357
        %v9744 = vpop.f32.mrf.mxu0
        %v9745 = vadd.f32 %v9716, %v9744
        %v9746 = vpop.f32.mrf.mxu0
        %v9747 = vadd.f32 %v9718, %v9746
        %9748 = vdwg.mxu0
        %9749 = vmatpush.bf16.msra.mxu0 %v9613
        %9750 = vmatpush.bf16.msra.mxu0 %v9612
        %9751 = vmatpush.bf16.msra.mxu0 %v9611
        %9752 = vmatpush.bf16.msra.mxu0 %v9610
        %9753 = vmatpush.bf16.msra.mxu0 %v9609
        %9754 = vmatpush.bf16.msra.mxu0 %v9608
        %9755 = vmatpush.bf16.msra.mxu0 %v9607
        %9756 = vmatpush.bf16.msra.mxu0 %v9606
        %9757 = vmatmul.bf16.gmra.mxu0 %v9322
        %v9758 = vpop.f32.mrf.mxu0
        %v9759 = vadd.f32 %v9730, %v9758
        %v9760 = vpop.f32.mrf.mxu0
        %v9761 = vadd.f32 %v9732, %v9760
        %9762 = vmatmul.bf16.gmra.mxu0 %v9326
        %v9763 = vpop.f32.mrf.mxu0
        %v9764 = vadd.f32 %v9735, %v9763
        %v9765 = vpop.f32.mrf.mxu0
        %v9766 = vadd.f32 %v9737, %v9765
        %9767 = vmatmul.bf16.gmra.mxu0 %v9330
        %v9768 = vpop.f32.mrf.mxu0
        %v9769 = vadd.f32 %v9740, %v9768
        %v9770 = vpop.f32.mrf.mxu0
        %v9771 = vadd.f32 %v9742, %v9770
        %9772 = vmatmul.bf16.gmra.mxu0 %v9360
        %v9773 = vpop.f32.mrf.mxu0
        %v9774 = vadd.f32 %v9745, %v9773
        %v9775 = vpop.f32.mrf.mxu0
        %v9776 = vadd.f32 %v9747, %v9775
        %9777 = vdwg.mxu0
        %9778 = vmatpush.bf16.msra.mxu0 0
        %9779 = vmatpush.bf16.msra.mxu0 0
        %9780 = vmatpush.bf16.msra.mxu0 0
        %9781 = vmatpush.bf16.msra.mxu0 0
        %9782 = vmatpush.bf16.msra.mxu0 %v9617
        %9783 = vmatpush.bf16.msra.mxu0 %v9616
        %9784 = vmatpush.bf16.msra.mxu0 %v9615
        %9785 = vmatpush.bf16.msra.mxu0 %v9614
        %9786 = vmatmul.bf16.gmra.mxu0 %v9654
        %v9787 = vpop.f32.mrf.mxu0
        %v9788 = vadd.f32 %v9759, %v9787
        %v9789 = vpop.f32.mrf.mxu0
        %v9790 = vadd.f32 %v9761, %v9789
        %9791 = vmatmul.bf16.gmra.mxu0 %v9656
        %v9792 = vpop.f32.mrf.mxu0
        %v9793 = vadd.f32 %v9764, %v9792
        %v9794 = vpop.f32.mrf.mxu0
        %v9795 = vadd.f32 %v9766, %v9794
        %9796 = vmatmul.bf16.gmra.mxu0 %v9658
        %v9797 = vpop.f32.mrf.mxu0
        %v9798 = vadd.f32 %v9769, %v9797
        %v9799 = vpop.f32.mrf.mxu0
        %v9800 = vadd.f32 %v9771, %v9799
        %9801 = vmatmul.bf16.gmra.mxu0 %v9660
        %v9802 = vpop.f32.mrf.mxu0
        %v9803 = vadd.f32 %v9774, %v9802
        %v9804 = vpop.f32.mrf.mxu0
        %v9805 = vadd.f32 %v9776, %v9804
        %9806 = vdwg.mxu0
        %v9807 = vmax.f32 %v9788, 0.0
        %v9808 = vmax.f32 %v9790, 0.0
        %v9809 = vmax.f32 %v9793, 0.0
        %v9810 = vmax.f32 %v9795, 0.0
        %v9811 = vmax.f32 %v9798, 0.0
        %v9812 = vmax.f32 %v9800, 0.0
        %v9813 = vmax.f32 %v9803, 0.0
        %v9814 = vmax.f32 %v9805, 0.0
        %9815 = vst [vmem:[%s738] sm:$0xff] %v9807
        %9816 = vst [vmem:[%s738 + $0x8] sm:$0xff] %v9808
        %9817 = vst [vmem:[%s738 + $0x10] sm:$0xff] %v9809
        %9818 = vst [vmem:[%s738 + $0x18] sm:$0xff] %v9810
        %9819 = vst [vmem:[%s738 + $0x20] sm:$0xff] %v9811
        %9820 = vst [vmem:[%s738 + $0x28] sm:$0xff] %v9812
        %9821 = vst [vmem:[%s738 + $0x30] sm:$0xff] %v9813
        %9822 = vst [vmem:[%s738 + $0x38] sm:$0xff] %v9814
        %v9831 = vrot.slane %v9154, 2
        %v9832 = vrot.slane %v9154, 4
        %v9833 = vrot.slane %v9154, 6
        %v9834 = vrot.slane %v9155, 2
        %v9835 = vrot.slane %v9155, 4
        %v9836 = vrot.slane %v9155, 6
        %v9837 = vrot.slane %v9156, 2
        %v9838 = vrot.slane %v9156, 4
        %v9839 = vrot.slane %v9156, 6
        %v9840 = vrot.slane %v9157, 2
        %v9841 = vrot.slane %v9157, 4
        %v9842 = vrot.slane %v9157, 6
        %v9843 = vrot.slane %v9158, 2
        %v9844 = vrot.slane %v9158, 4
        %v9845 = vrot.slane %v9158, 6
        %v9846 = vrot.slane %v9159, 2
        %v9847 = vrot.slane %v9159, 4
        %v9848 = vrot.slane %v9159, 6
        %v9849 = vrot.slane %v9160, 2
        %v9850 = vrot.slane %v9160, 4
        %v9851 = vrot.slane %v9160, 6
        %v9852 = vrot.slane %v9161, 2
        %v9853 = vrot.slane %v9161, 4
        %v9854 = vrot.slane %v9161, 6
        %v9879 = vrot.slane %v9154, 7
        %v9880 = vrot.slane %v9879, 2
        %v9881 = vrot.slane %v9831, 7
        %v9882 = vrot.slane %v9881, 2
        %v9883 = vrot.slane %v9832, 7
        %v9884 = vrot.slane %v9883, 2
        %v9885 = vrot.slane %v9833, 7
        %v9886 = vrot.slane %v9885, 2
        %v9887 = vrot.slane %v9156, 7
        %v9888 = vrot.slane %v9887, 2
        %v9889 = vrot.slane %v9837, 7
        %v9890 = vrot.slane %v9889, 2
        %v9891 = vrot.slane %v9838, 7
        %v9892 = vrot.slane %v9891, 2
        %v9893 = vrot.slane %v9839, 7
        %v9894 = vrot.slane %v9893, 2
        %v9895 = vrot.slane %v9158, 7
        %v9896 = vrot.slane %v9895, 2
        %v9897 = vrot.slane %v9843, 7
        %v9898 = vrot.slane %v9897, 2
        %v9899 = vrot.slane %v9844, 7
        %v9900 = vrot.slane %v9899, 2
        %v9901 = vrot.slane %v9845, 7
        %v9902 = vrot.slane %v9901, 2
        %v9903 = vrot.slane %v9160, 7
        %v9904 = vrot.slane %v9903, 2
        %v9905 = vrot.slane %v9849, 7
        %v9906 = vrot.slane %v9905, 2
        %v9907 = vrot.slane %v9850, 7
        %v9908 = vrot.slane %v9907, 2
        %v9909 = vrot.slane %v9851, 7
        %v9910 = vrot.slane %v9909, 2
        %v9927 = vmax.f32 %v9154, %v9880
        %v9928 = vmax.f32 %v9831, %v9882
        %v9929 = vmax.f32 %v9832, %v9884
        %v9930 = vmax.f32 %v9833, %v9886
        %v9931 = vmax.f32 %v9156, %v9888
        %v9932 = vmax.f32 %v9837, %v9890
        %v9933 = vmax.f32 %v9838, %v9892
        %v9934 = vmax.f32 %v9839, %v9894
        %v9935 = vmax.f32 %v9158, %v9896
        %v9936 = vmax.f32 %v9843, %v9898
        %v9937 = vmax.f32 %v9844, %v9900
        %v9938 = vmax.f32 %v9845, %v9902
        %v9939 = vmax.f32 %v9160, %v9904
        %v9940 = vmax.f32 %v9849, %v9906
        %v9941 = vmax.f32 %v9850, %v9908
        %v9942 = vmax.f32 %v9851, %v9910
        %v9943 = vrot.slane %v9155, 7
        %v9944 = vrot.slane %v9943, 2
        %v9945 = vrot.slane %v9834, 7
        %v9946 = vrot.slane %v9945, 2
        %v9947 = vrot.slane %v9835, 7
        %v9948 = vrot.slane %v9947, 2
        %v9949 = vrot.slane %v9836, 7
        %v9950 = vrot.slane %v9949, 2
        %v9951 = vrot.slane %v9157, 7
        %v9952 = vrot.slane %v9951, 2
        %v9953 = vrot.slane %v9840, 7
        %v9954 = vrot.slane %v9953, 2
        %v9955 = vrot.slane %v9841, 7
        %v9956 = vrot.slane %v9955, 2
        %v9957 = vrot.slane %v9842, 7
        %v9958 = vrot.slane %v9957, 2
        %v9959 = vrot.slane %v9159, 7
        %v9960 = vrot.slane %v9959, 2
        %v9961 = vrot.slane %v9846, 7
        %v9962 = vrot.slane %v9961, 2
        %v9963 = vrot.slane %v9847, 7
        %v9964 = vrot.slane %v9963, 2
        %v9965 = vrot.slane %v9848, 7
        %v9966 = vrot.slane %v9965, 2
        %v9967 = vrot.slane %v9161, 7
        %v9968 = vrot.slane %v9967, 2
        %v9969 = vrot.slane %v9852, 7
        %v9970 = vrot.slane %v9969, 2
        %v9971 = vrot.slane %v9853, 7
        %v9972 = vrot.slane %v9971, 2
        %v9973 = vrot.slane %v9854, 7
        %v9974 = vrot.slane %v9973, 2
        %v9991 = vmax.f32 %v9155, %v9944
        %v9992 = vmax.f32 %v9834, %v9946
        %v9993 = vmax.f32 %v9835, %v9948
        %v9994 = vmax.f32 %v9836, %v9950
        %v9995 = vmax.f32 %v9157, %v9952
        %v9996 = vmax.f32 %v9840, %v9954
        %v9997 = vmax.f32 %v9841, %v9956
        %v9998 = vmax.f32 %v9842, %v9958
        %v9999 = vmax.f32 %v9159, %v9960
        %v10000 = vmax.f32 %v9846, %v9962
        %v10001 = vmax.f32 %v9847, %v9964
        %v10002 = vmax.f32 %v9848, %v9966
        %v10003 = vmax.f32 %v9161, %v9968
        %v10004 = vmax.f32 %v9852, %v9970
        %v10005 = vmax.f32 %v9853, %v9972
        %v10006 = vmax.f32 %v9854, %v9974
        %v10007 = vmax.f32 %v9927, %v9991
        %v10008 = vmax.f32 %v9928, %v9992
        %v10009 = vmax.f32 %v9929, %v9993
        %v10010 = vmax.f32 %v9930, %v9994
        %v10011 = vmax.f32 %v9931, %v9995
        %v10012 = vmax.f32 %v9932, %v9996
        %v10013 = vmax.f32 %v9933, %v9997
        %v10014 = vmax.f32 %v9934, %v9998
        %v10015 = vmax.f32 %v9935, %v9999
        %v10016 = vmax.f32 %v9936, %v10000
        %v10017 = vmax.f32 %v9937, %v10001
        %v10018 = vmax.f32 %v9938, %v10002
        %v10019 = vmax.f32 %v9939, %v10003
        %v10020 = vmax.f32 %v9940, %v10004
        %v10021 = vmax.f32 %v9941, %v10005
        %v10022 = vmax.f32 %v9942, %v10006
        %v10023 = vpack.c.bf16 %v10007, %v10007
        %v10024 = vpack.c.bf16 %v10008, %v10008
        %v10025 = vpack.c.bf16 %v10009, %v10009
        %v10026 = vpack.c.bf16 %v10010, %v10010
        %v10027 = vpack.c.bf16 %v10011, %v10011
        %v10028 = vpack.c.bf16 %v10012, %v10012
        %v10029 = vpack.c.bf16 %v10013, %v10013
        %v10030 = vpack.c.bf16 %v10014, %v10014
        %v10031 = vpack.c.bf16 %v10015, %v10015
        %v10032 = vpack.c.bf16 %v10016, %v10016
        %v10033 = vpack.c.bf16 %v10017, %v10017
        %v10034 = vpack.c.bf16 %v10018, %v10018
        %v10035 = vpack.c.bf16 %v10019, %v10019
        %v10036 = vpack.c.bf16 %v10020, %v10020
        %v10037 = vpack.c.bf16 %v10021, %v10021
        %v10038 = vpack.c.bf16 %v10022, %v10022
        %vm10039 = vcmp.lt.s32.totalorder %v784, 0
        %v10040 = vsub.s32 0, %v784
        %v10041 = vsel %vm10039, %v10040, %v784
        %v10042 = vshrl.u32 %v10041, 2
        %v10043 = vand.u32 %v10041, 3
        %v10044 = vsub.s32 0, %v10043
        %v10045 = vsel %vm10039, %v10044, %v10043
        %vm10046 = vcmp.lt.s32.totalorder %v785, 0
        %v10047 = vsub.s32 0, %v785
        %v10048 = vsel %vm10046, %v10047, %v785
        %v10049 = vshrl.u32 %v10048, 2
        %v10050 = vand.u32 %v10048, 3
        %v10051 = vsub.s32 0, %v10050
        %v10052 = vsel %vm10046, %v10051, %v10050
        %vm10053 = vcmp.ne.s32.totalorder %v10045, 0
        %vm10054 = vcmp.ne.s32.totalorder %v10052, 0
        %vm10055 = vcmp.lt.s32.totalorder %v10045, 0
        %vm10056 = vcmp.lt.s32.totalorder %v10052, 0
        %vm10057 = vmand %vm10055, %vm10053
        %vm10058 = vmand %vm10056, %vm10054
        %v10059 = vadd.s32 %v10045, 4
        %v10060 = vadd.s32 %v10052, 4
        %v10061 = vsel %vm10057, %v10059, %v10045
        %v10062 = vsel %vm10058, %v10060, %v10052
        %vm10063 = vcmp.ne.s32.totalorder %v10061, 0
        %vm10064 = vcmp.ne.s32.totalorder %v10062, 0
        %vm10065 = vcmp.ne.s32.totalorder %v10061, 3
        %vm10066 = vcmp.ne.s32.totalorder %v10062, 3
        %v10082 = vunpack.c.l.b16 %v10023
        %v10083 = vunpack.c.l.b16 %v10024
        %v10084 = vunpack.c.l.b16 %v10025
        %v10085 = vunpack.c.l.b16 %v10026
        %v10086 = vunpack.c.l.b16 %v10027
        %v10087 = vunpack.c.l.b16 %v10028
        %v10088 = vunpack.c.l.b16 %v10029
        %v10089 = vunpack.c.l.b16 %v10030
        %v10090 = vunpack.c.l.b16 %v10031
        %v10091 = vunpack.c.l.b16 %v10032
        %v10092 = vunpack.c.l.b16 %v10033
        %v10093 = vunpack.c.l.b16 %v10034
        %v10094 = vunpack.c.l.b16 %v10035
        %v10095 = vunpack.c.l.b16 %v10036
        %v10096 = vunpack.c.l.b16 %v10037
        %v10097 = vpack.c.b16 %v10082, %v10082
        %v10098 = vpack.c.b16 %v10083, %v10083
        %v10099 = vpack.c.b16 %v10084, %v10084
        %v10100 = vpack.c.b16 %v10085, %v10085
        %v10101 = vpack.c.b16 %v10086, %v10086
        %v10102 = vpack.c.b16 %v10087, %v10087
        %v10103 = vpack.c.b16 %v10088, %v10088
        %v10104 = vpack.c.b16 %v10089, %v10089
        %v10105 = vpack.c.b16 %v10090, %v10090
        %v10106 = vpack.c.b16 %v10091, %v10091
        %v10107 = vpack.c.b16 %v10092, %v10092
        %v10108 = vpack.c.b16 %v10093, %v10093
        %v10109 = vpack.c.b16 %v10094, %v10094
        %v10110 = vpack.c.b16 %v10095, %v10095
        %v10111 = vpack.c.b16 %v10096, %v10096
        %v10112 = vunpack.c.l.b16 %v10097
        %v10113 = vunpack.c.l.b16 %v10098
        %v10114 = vunpack.c.l.b16 %v10099
        %v10115 = vunpack.c.l.b16 %v10100
        %v10116 = vunpack.c.l.b16 %v10101
        %v10117 = vunpack.c.l.b16 %v10102
        %v10118 = vunpack.c.l.b16 %v10103
        %v10119 = vunpack.c.l.b16 %v10104
        %v10120 = vunpack.c.l.b16 %v10105
        %v10121 = vunpack.c.l.b16 %v10106
        %v10122 = vunpack.c.l.b16 %v10107
        %v10123 = vunpack.c.l.b16 %v10108
        %v10124 = vunpack.c.l.b16 %v10109
        %v10125 = vunpack.c.l.b16 %v10110
        %v10126 = vunpack.c.l.b16 %v10111
        %v10127 = vrot.slane %v10112, 7
        %v10128 = vrot.slane %v10113, 6
        %v10129 = vsel %vm7903, %v10128, %v10127
        %v10130 = vrot.slane %v10114, 5
        %v10131 = vsel %vm7906, %v10130, %v10129
        %v10132 = vrot.slane %v10115, 4
        %v10133 = vsel %vm7909, %v10132, %v10131
        %v10134 = vrot.slane %v10116, 3
        %v10135 = vsel %vm7912, %v10134, %v10133
        %v10136 = vrot.slane %v10117, 2
        %v10137 = vsel %vm7915, %v10136, %v10135
        %v10138 = vrot.slane %v10118, 1
        %v10139 = vsel %vm7918, %v10138, %v10137
        %v10140 = vrot.slane %v10120, 7
        %v10141 = vsel %vm7921, %v10140, %v10119
        %v10142 = vrot.slane %v10121, 6
        %v10143 = vsel %vm7903, %v10142, %v10141
        %v10144 = vrot.slane %v10122, 5
        %v10145 = vsel %vm7906, %v10144, %v10143
        %v10146 = vrot.slane %v10123, 4
        %v10147 = vsel %vm7909, %v10146, %v10145
        %v10148 = vrot.slane %v10124, 3
        %v10149 = vsel %vm7912, %v10148, %v10147
        %v10150 = vrot.slane %v10125, 2
        %v10151 = vsel %vm7915, %v10150, %v10149
        %v10152 = vrot.slane %v10126, 1
        %v10153 = vsel %vm7918, %v10152, %v10151
        %v10154 = vpack.c.b16 %v10153, %v10139
        %v10156 = vsel %vm1680, 0, %v10154
        %v10157 = vsel %vm10063, 1, 0
        %v10158 = vsel %vm10064, 1, 0
        %vm10159 = vcmp.eq.s32.totalorder %v10157, 1
        %vm10160 = vcmp.eq.s32.totalorder %v10158, 1
        %vm10161 = vmpackc.low %vm10159, %vm10159
        %vm10162 = vmpackc.low %vm10160, %vm10160
        %v10163 = vsel %vm10161, 65537, 0
        %v10164 = vsel %vm10162, 65537, 0
        %v10165 = vunpack.c.l.b16 %v10163
        %v10166 = vunpack.c.l.b16 %v10164
        %v10167 = vpack.c.b16 %v10166, %v10165
        %v10168 = vunpack.c.l.b16 %v10167
        %v10169 = vunpack.c.h.b16 %v10167
        %v10170 = vunpack.c.l.b16 0
        %v10171 = vunpack.c.h.b16 0
        %vm10172 = vcmp.ne.s32.totalorder %v10168, %v10170
        %vm10173 = vcmp.ne.s32.totalorder %v10169, %v10171
        %vm10174 = vmpackc.low %vm10173, %vm10172
        %v10175 = vsel %vm10174, %v10156, 0
        %v10177 = vunpack.c.l.b16 %v10038
        %v10178 = vpack.c.b16 %v10177, %v10177
        %v10179 = vunpack.c.l.b16 %v10178
        %v10180 = vrot.slane %v10114, 7
        %v10181 = vsel %vm7921, %v10180, %v10113
        %v10182 = vrot.slane %v10115, 6
        %v10183 = vsel %vm7903, %v10182, %v10181
        %v10184 = vrot.slane %v10116, 5
        %v10185 = vsel %vm7906, %v10184, %v10183
        %v10186 = vrot.slane %v10117, 4
        %v10187 = vsel %vm7909, %v10186, %v10185
        %v10188 = vrot.slane %v10118, 3
        %v10189 = vsel %vm7912, %v10188, %v10187
        %v10190 = vrot.slane %v10119, 2
        %v10191 = vsel %vm7915, %v10190, %v10189
        %v10192 = vrot.slane %v10120, 1
        %v10193 = vsel %vm7918, %v10192, %v10191
        %v10194 = vrot.slane %v10122, 7
        %v10195 = vsel %vm7921, %v10194, %v10121
        %v10196 = vrot.slane %v10123, 6
        %v10197 = vsel %vm7903, %v10196, %v10195
        %v10198 = vrot.slane %v10124, 5
        %v10199 = vsel %vm7906, %v10198, %v10197
        %v10200 = vrot.slane %v10125, 4
        %v10201 = vsel %vm7909, %v10200, %v10199
        %v10202 = vrot.slane %v10126, 3
        %v10203 = vsel %vm7912, %v10202, %v10201
        %v10204 = vrot.slane %v10179, 2
        %v10205 = vsel %vm7915, %v10204, %v10203
        %v10206 = vpack.c.b16 %v10205, %v10193
        %v10208 = vsel %vm2131, %v10206, 0
        %v10209 = vsel %vm10065, 1, 0
        %v10210 = vsel %vm10066, 1, 0
        %vm10211 = vcmp.eq.s32.totalorder %v10209, 1
        %vm10212 = vcmp.eq.s32.totalorder %v10210, 1
        %vm10213 = vmpackc.low %vm10211, %vm10211
        %vm10214 = vmpackc.low %vm10212, %vm10212
        %v10215 = vsel %vm10213, 65537, 0
        %v10216 = vsel %vm10214, 65537, 0
        %v10217 = vunpack.c.l.b16 %v10215
        %v10218 = vunpack.c.l.b16 %v10216
        %v10219 = vpack.c.b16 %v10218, %v10217
        %v10220 = vunpack.c.l.b16 %v10219
        %v10221 = vunpack.c.h.b16 %v10219
        %v10222 = vunpack.c.l.b16 0
        %v10223 = vunpack.c.h.b16 0
        %vm10224 = vcmp.ne.s32.totalorder %v10220, %v10222
        %vm10225 = vcmp.ne.s32.totalorder %v10221, %v10223
        %vm10226 = vmpackc.low %vm10225, %vm10224
        %v10227 = vsel %vm10226, %v10208, 0
        %v10229 = vrot.slane %v10175, 6
        %vm10230 = vcmask 1041408
        %v10232 = vsel %vm10230, 0, %v10229
        %v10233 = vrot.slane %v10112, 4
        %v10234 = vrot.slane %v10113, 3
        %v10235 = vsel %vm7912, %v10234, %v10233
        %v10236 = vrot.slane %v10114, 2
        %v10237 = vsel %vm7915, %v10236, %v10235
        %v10238 = vrot.slane %v10115, 1
        %v10239 = vsel %vm7918, %v10238, %v10237
        %v10240 = vrot.slane %v10117, 7
        %v10241 = vsel %vm7921, %v10240, %v10116
        %v10242 = vrot.slane %v10118, 6
        %v10243 = vsel %vm7903, %v10242, %v10241
        %v10244 = vrot.slane %v10119, 5
        %v10245 = vsel %vm7906, %v10244, %v10243
        %v10246 = vrot.slane %v10120, 4
        %v10247 = vsel %vm7909, %v10246, %v10245
        %v10248 = vrot.slane %v10121, 3
        %v10249 = vsel %vm7912, %v10248, %v10247
        %v10250 = vrot.slane %v10122, 2
        %v10251 = vsel %vm7915, %v10250, %v10249
        %v10252 = vrot.slane %v10123, 1
        %v10253 = vsel %vm7918, %v10252, %v10251
        %v10254 = vpack.c.b16 %v10253, %v10239
        %v10256 = vsel %vm10230, 0, %v10254
        %v10258 = vrot.slane %v10227, 6
        %v10260 = vsel %vm10230, 0, %v10258
        %v10261 = vrot.slane %v10175, 2
        %vm10262 = vcmask 1045504
        %v10264 = vsel %vm10262, %v10261, 0
        %v10265 = vrot.slane %v10125, 7
        %v10266 = vsel %vm7921, %v10265, %v10124
        %v10267 = vrot.slane %v10126, 6
        %v10268 = vsel %vm7903, %v10267, %v10266
        %v10269 = vrot.slane %v10179, 5
        %v10270 = vsel %vm7906, %v10269, %v10268
        %v10271 = vpack.c.b16 %v10270, %v10253
        %v10273 = vsel %vm10262, %v10271, 0
        %v10274 = vrot.slane %v10227, 2
        %v10276 = vsel %vm10262, %v10274, 0
        %10278 = vrot.lane.b32.xlu0 %v10256, 64
        %v10279 = vpop.permute.xlu0 %10278
        %10280 = vrot.lane.b32.xlu0 %v10175, 64
        %v10281 = vpop.permute.xlu0 %10280
        %v10282 = vrot.slane %v10113, 7
        %v10283 = vsel %vm7921, %v10282, %v10112
        %v10284 = vrot.slane %v10114, 6
        %v10285 = vsel %vm7903, %v10284, %v10283
        %v10286 = vrot.slane %v10115, 5
        %v10287 = vsel %vm7906, %v10286, %v10285
        %v10288 = vrot.slane %v10116, 4
        %v10289 = vsel %vm7909, %v10288, %v10287
        %v10290 = vrot.slane %v10117, 3
        %v10291 = vsel %vm7912, %v10290, %v10289
        %v10292 = vrot.slane %v10118, 2
        %v10293 = vsel %vm7915, %v10292, %v10291
        %v10294 = vrot.slane %v10119, 1
        %v10295 = vsel %vm7918, %v10294, %v10293
        %v10296 = vrot.slane %v10121, 7
        %v10297 = vsel %vm7921, %v10296, %v10120
        %v10298 = vrot.slane %v10122, 6
        %v10299 = vsel %vm7903, %v10298, %v10297
        %v10300 = vrot.slane %v10123, 5
        %v10301 = vsel %vm7906, %v10300, %v10299
        %v10302 = vrot.slane %v10124, 4
        %v10303 = vsel %vm7909, %v10302, %v10301
        %v10304 = vrot.slane %v10125, 3
        %v10305 = vsel %vm7912, %v10304, %v10303
        %v10306 = vrot.slane %v10126, 2
        %v10307 = vsel %vm7915, %v10306, %v10305
        %v10308 = vrot.slane %v10179, 1
        %v10309 = vsel %vm7918, %v10308, %v10307
        %v10310 = vpack.c.b16 %v10309, %v10295
        %10311 = vrot.lane.b32.xlu0 %v10227, 64
        %v10312 = vpop.permute.xlu0 %10311
        %10314 = vrot.lane.b32.xlu0 %v10273, 64
        %v10315 = vpop.permute.xlu0 %10314
        %v10317 = vsel %vm2827, %v10232, %v10279
        %v10320 = vsel %vm2827, %v10260, %v10281
        %v10324 = vsel %vm2827, %v10310, %v10312
        %v10327 = vsel %vm2827, %v10264, %v10315
        %v10329 = vld [vmem:[#allocation4] sm:$0xf]
        %v10330 = vld [vmem:[#allocation4 + $0x4] sm:$0xf]
        %v10331 = vld [vmem:[#allocation4 + $0x8] sm:$0xf]
        %v10332 = vld [vmem:[#allocation4 + $0xc] sm:$0xf]
        %v10333 = vld [vmem:[#allocation4 + $0x10] sm:$0xf]
        %v10334 = vld [vmem:[#allocation4 + $0x14] sm:$0xf]
        %v10335 = vld [vmem:[#allocation4 + $0x18] sm:$0xf]
        %v10336 = vld [vmem:[#allocation4 + $0x1c] sm:$0xf]
        %v10337 = vld [vmem:[#allocation4 + $0x20] sm:$0xf]
        %v10338 = vld [vmem:[#allocation4 + $0x24] sm:$0xf]
        %v10339 = vld [vmem:[#allocation4 + $0x28] sm:$0xf]
        %v10340 = vld [vmem:[#allocation4 + $0x2c] sm:$0xf]
        %v10341 = vld [vmem:[#allocation4 + $0x30] sm:$0xf]
        %v10342 = vld [vmem:[#allocation4 + $0x34] sm:$0xf]
        %v10343 = vld [vmem:[#allocation4 + $0x38] sm:$0xf]
        %v10344 = vld [vmem:[#allocation4 + $0x3c] sm:$0xf]
        %v10345 = vld [vmem:[#allocation4 + $0x40] sm:$0xf]
        %v10346 = vld [vmem:[#allocation4 + $0x44] sm:$0xf]
        %v10347 = vld [vmem:[#allocation4 + $0x48] sm:$0xf]
        %v10348 = vld [vmem:[#allocation4 + $0x4c] sm:$0xf]
        %v10349 = vld [vmem:[#allocation4 + $0x50] sm:$0xf]
        %v10350 = vld [vmem:[#allocation4 + $0x54] sm:$0xf]
        %v10351 = vld [vmem:[#allocation4 + $0x58] sm:$0xf]
        %v10352 = vld [vmem:[#allocation4 + $0x5c] sm:$0xf]
        %v10353 = vld [vmem:[#allocation4 + $0x60] sm:$0xf]
        %v10354 = vld [vmem:[#allocation4 + $0x64] sm:$0xf]
        %v10355 = vld [vmem:[#allocation4 + $0x68] sm:$0xf]
        %v10356 = vld [vmem:[#allocation4 + $0x6c] sm:$0xf]
        %v10357 = vld [vmem:[#allocation4 + $0x70] sm:$0xf]
        %v10358 = vld [vmem:[#allocation4 + $0x74] sm:$0xf]
        %v10359 = vld [vmem:[#allocation4 + $0x78] sm:$0xf]
        %v10360 = vld [vmem:[#allocation4 + $0x7c] sm:$0xf]
        %v10361 = vld [vmem:[#allocation4 + $0x80] sm:$0xf]
        %v10362 = vld [vmem:[#allocation4 + $0x84] sm:$0xf]
        %v10363 = vld [vmem:[#allocation4 + $0x88] sm:$0xf]
        %v10364 = vld [vmem:[#allocation4 + $0x8c] sm:$0xf]
        %v10365 = vld [vmem:[#allocation4 + $0x90] sm:$0xf]
        %v10366 = vld [vmem:[#allocation4 + $0x94] sm:$0xf]
        %v10367 = vld [vmem:[#allocation4 + $0x98] sm:$0xf]
        %v10368 = vld [vmem:[#allocation4 + $0x9c] sm:$0xf]
        %v10369 = vld [vmem:[#allocation4 + $0xa0] sm:$0xf]
        %v10370 = vld [vmem:[#allocation4 + $0xa4] sm:$0xf]
        %v10371 = vld [vmem:[#allocation4 + $0xa8] sm:$0xf]
        %v10372 = vld [vmem:[#allocation4 + $0xac] sm:$0xf]
        %v10373 = vld [vmem:[#allocation4 + $0xb0] sm:$0xf]
        %v10374 = vld [vmem:[#allocation4 + $0xb4] sm:$0xf]
        %v10375 = vld [vmem:[#allocation4 + $0xb8] sm:$0xf]
        %v10376 = vld [vmem:[#allocation4 + $0xbc] sm:$0xf]
        %v10377 = vld [vmem:[#allocation4 + $0xc0] sm:$0xf]
        %v10378 = vld [vmem:[#allocation4 + $0xc4] sm:$0xf]
        %v10379 = vld [vmem:[#allocation4 + $0xc8] sm:$0xf]
        %v10380 = vld [vmem:[#allocation4 + $0xcc] sm:$0xf]
        %v10381 = vld [vmem:[#allocation4 + $0xd0] sm:$0xf]
        %v10382 = vld [vmem:[#allocation4 + $0xd4] sm:$0xf]
        %v10383 = vld [vmem:[#allocation4 + $0xd8] sm:$0xf]
        %v10384 = vld [vmem:[#allocation4 + $0xdc] sm:$0xf]
        %v10385 = vld [vmem:[#allocation4 + $0xe0] sm:$0xf]
        %v10386 = vld [vmem:[#allocation4 + $0xe4] sm:$0xf]
        %v10387 = vld [vmem:[#allocation4 + $0xe8] sm:$0xf]
        %v10388 = vld [vmem:[#allocation4 + $0xec] sm:$0xf]
        %v10389 = vld [vmem:[#allocation4 + $0xf0] sm:$0xf]
        %v10390 = vld [vmem:[#allocation4 + $0xf4] sm:$0xf]
        %v10391 = vld [vmem:[#allocation4 + $0xf8] sm:$0xf]
        %v10392 = vld [vmem:[#allocation4 + $0xfc] sm:$0xf]
        %v10393 = vld [vmem:[#allocation4 + $0x100] sm:$0xf]
        %v10394 = vld [vmem:[#allocation4 + $0x104] sm:$0xf]
        %v10395 = vld [vmem:[#allocation4 + $0x108] sm:$0xf]
        %v10396 = vld [vmem:[#allocation4 + $0x10c] sm:$0xf]
        %v10397 = vld [vmem:[#allocation4 + $0x110] sm:$0xf]
        %v10398 = vld [vmem:[#allocation4 + $0x114] sm:$0xf]
        %v10399 = vld [vmem:[#allocation4 + $0x118] sm:$0xf]
        %v10400 = vld [vmem:[#allocation4 + $0x11c] sm:$0xf]
        %v10401 = vld [vmem:[%s10] sm:$0x1]
        %v10403 = vperm.slane %v10401, 0
        %v10477 = vunpack.c.l.b16 %v10329
        %v10478 = vunpack.c.l.b16 %v10330
        %v10479 = vunpack.c.l.b16 %v10331
        %v10480 = vunpack.c.l.b16 %v10332
        %v10481 = vunpack.c.l.b16 %v10333
        %v10482 = vunpack.c.l.b16 %v10334
        %v10483 = vunpack.c.l.b16 %v10335
        %v10484 = vunpack.c.l.b16 %v10336
        %v10485 = vunpack.c.l.b16 %v10337
        %v10486 = vunpack.c.l.b16 %v10338
        %v10487 = vunpack.c.l.b16 %v10339
        %v10488 = vunpack.c.l.b16 %v10340
        %v10489 = vunpack.c.l.b16 %v10341
        %v10490 = vunpack.c.l.b16 %v10342
        %v10491 = vunpack.c.l.b16 %v10343
        %v10492 = vunpack.c.l.b16 %v10344
        %v10493 = vunpack.c.l.b16 %v10345
        %v10494 = vunpack.c.l.b16 %v10346
        %v10495 = vunpack.c.l.b16 %v10347
        %v10496 = vunpack.c.l.b16 %v10348
        %v10497 = vunpack.c.l.b16 %v10349
        %v10498 = vunpack.c.l.b16 %v10350
        %v10499 = vunpack.c.l.b16 %v10351
        %v10500 = vunpack.c.l.b16 %v10352
        %v10501 = vunpack.c.l.b16 %v10353
        %v10502 = vunpack.c.l.b16 %v10354
        %v10503 = vunpack.c.l.b16 %v10355
        %v10504 = vunpack.c.l.b16 %v10356
        %v10505 = vunpack.c.l.b16 %v10357
        %v10506 = vunpack.c.l.b16 %v10358
        %v10507 = vunpack.c.l.b16 %v10359
        %v10508 = vunpack.c.l.b16 %v10360
        %v10509 = vunpack.c.l.b16 %v10361
        %v10510 = vunpack.c.l.b16 %v10362
        %v10511 = vunpack.c.l.b16 %v10363
        %v10512 = vunpack.c.l.b16 %v10364
        %v10513 = vunpack.c.l.b16 %v10365
        %v10514 = vunpack.c.l.b16 %v10366
        %v10515 = vunpack.c.l.b16 %v10367
        %v10516 = vunpack.c.l.b16 %v10368
        %v10517 = vunpack.c.l.b16 %v10369
        %v10518 = vunpack.c.l.b16 %v10370
        %v10519 = vunpack.c.l.b16 %v10371
        %v10520 = vunpack.c.l.b16 %v10372
        %v10521 = vunpack.c.l.b16 %v10373
        %v10522 = vunpack.c.l.b16 %v10374
        %v10523 = vunpack.c.l.b16 %v10375
        %v10524 = vunpack.c.l.b16 %v10376
        %v10525 = vunpack.c.l.b16 %v10377
        %v10526 = vunpack.c.l.b16 %v10378
        %v10527 = vunpack.c.l.b16 %v10379
        %v10528 = vunpack.c.l.b16 %v10380
        %v10529 = vunpack.c.l.b16 %v10381
        %v10530 = vunpack.c.l.b16 %v10382
        %v10531 = vunpack.c.l.b16 %v10383
        %v10532 = vunpack.c.l.b16 %v10384
        %v10533 = vunpack.c.l.b16 %v10385
        %v10534 = vunpack.c.l.b16 %v10386
        %v10535 = vunpack.c.l.b16 %v10387
        %v10536 = vunpack.c.l.b16 %v10388
        %v10537 = vunpack.c.l.b16 %v10389
        %v10538 = vunpack.c.l.b16 %v10390
        %v10539 = vunpack.c.l.b16 %v10391
        %v10540 = vunpack.c.l.b16 %v10392
        %v10541 = vunpack.c.l.b16 %v10393
        %v10542 = vunpack.c.l.b16 %v10394
        %v10543 = vunpack.c.l.b16 %v10395
        %v10544 = vunpack.c.l.b16 %v10396
        %v10545 = vunpack.c.l.b16 %v10397
        %v10546 = vunpack.c.l.b16 %v10398
        %v10547 = vunpack.c.l.b16 %v10399
        %v10548 = vunpack.c.l.b16 %v10400
        %v10549 = vpack.c.b16 %v10478, %v10477
        %v10550 = vpack.c.b16 %v10480, %v10479
        %v10551 = vpack.c.b16 %v10482, %v10481
        %v10552 = vpack.c.b16 %v10484, %v10483
        %v10553 = vpack.c.b16 %v10486, %v10485
        %v10554 = vpack.c.b16 %v10488, %v10487
        %v10555 = vpack.c.b16 %v10490, %v10489
        %v10556 = vpack.c.b16 %v10492, %v10491
        %v10557 = vpack.c.b16 %v10494, %v10493
        %v10558 = vpack.c.b16 %v10496, %v10495
        %v10559 = vpack.c.b16 %v10498, %v10497
        %v10560 = vpack.c.b16 %v10500, %v10499
        %v10561 = vpack.c.b16 %v10502, %v10501
        %v10562 = vpack.c.b16 %v10504, %v10503
        %v10563 = vpack.c.b16 %v10506, %v10505
        %v10564 = vpack.c.b16 %v10508, %v10507
        %v10565 = vpack.c.b16 %v10510, %v10509
        %v10566 = vpack.c.b16 %v10512, %v10511
        %v10567 = vpack.c.b16 %v10514, %v10513
        %v10568 = vpack.c.b16 %v10516, %v10515
        %v10569 = vpack.c.b16 %v10518, %v10517
        %v10570 = vpack.c.b16 %v10520, %v10519
        %v10571 = vpack.c.b16 %v10522, %v10521
        %v10572 = vpack.c.b16 %v10524, %v10523
        %v10573 = vpack.c.b16 %v10526, %v10525
        %v10574 = vpack.c.b16 %v10528, %v10527
        %v10575 = vpack.c.b16 %v10530, %v10529
        %v10576 = vpack.c.b16 %v10532, %v10531
        %v10577 = vpack.c.b16 %v10534, %v10533
        %v10578 = vpack.c.b16 %v10536, %v10535
        %v10579 = vpack.c.b16 %v10538, %v10537
        %v10580 = vpack.c.b16 %v10540, %v10539
        %v10581 = vpack.c.b16 %v10542, %v10541
        %v10582 = vpack.c.b16 %v10544, %v10543
        %v10583 = vpack.c.b16 %v10546, %v10545
        %v10584 = vpack.c.b16 %v10548, %v10547
        %v10621 = vsel %vm2827, %v10276, 0
        %10623 = vmatpush.bf16.msra.mxu0 %v10556
        %10624 = vmatpush.bf16.msra.mxu0 %v10555
        %10625 = vmatpush.bf16.msra.mxu0 %v10554
        %10626 = vmatpush.bf16.msra.mxu0 %v10553
        %10627 = vmatpush.bf16.msra.mxu0 %v10552
        %10628 = vmatpush.bf16.msra.mxu0 %v10551
        %10629 = vmatpush.bf16.msra.mxu0 %v10550
        %10630 = vmatpush.bf16.msra.mxu0 %v10549
        %10631 = vmatmul.bf16.gmra.mxu0 %v10317
        %v10632 = vpop.f32.mrf.mxu0
        %v10633 = vadd.f32 %v10403, %v10632
        %v10634 = vpop.f32.mrf.mxu0
        %v10635 = vadd.f32 %v10403, %v10634
        %10636 = vdwg.mxu0
        %10637 = vmatpush.bf16.msra.mxu0 %v10564
        %10638 = vmatpush.bf16.msra.mxu0 %v10563
        %10639 = vmatpush.bf16.msra.mxu0 %v10562
        %10640 = vmatpush.bf16.msra.mxu0 %v10561
        %10641 = vmatpush.bf16.msra.mxu0 %v10560
        %10642 = vmatpush.bf16.msra.mxu0 %v10559
        %10643 = vmatpush.bf16.msra.mxu0 %v10558
        %10644 = vmatpush.bf16.msra.mxu0 %v10557
        %10645 = vmatmul.bf16.gmra.mxu0 %v10320
        %v10646 = vpop.f32.mrf.mxu0
        %v10647 = vadd.f32 %v10633, %v10646
        %v10648 = vpop.f32.mrf.mxu0
        %v10649 = vadd.f32 %v10635, %v10648
        %10650 = vdwg.mxu0
        %10651 = vmatpush.bf16.msra.mxu0 %v10572
        %10652 = vmatpush.bf16.msra.mxu0 %v10571
        %10653 = vmatpush.bf16.msra.mxu0 %v10570
        %10654 = vmatpush.bf16.msra.mxu0 %v10569
        %10655 = vmatpush.bf16.msra.mxu0 %v10568
        %10656 = vmatpush.bf16.msra.mxu0 %v10567
        %10657 = vmatpush.bf16.msra.mxu0 %v10566
        %10658 = vmatpush.bf16.msra.mxu0 %v10565
        %10659 = vmatmul.bf16.gmra.mxu0 %v10324
        %v10660 = vpop.f32.mrf.mxu0
        %v10661 = vadd.f32 %v10647, %v10660
        %v10662 = vpop.f32.mrf.mxu0
        %v10663 = vadd.f32 %v10649, %v10662
        %10664 = vdwg.mxu0
        %10665 = vmatpush.bf16.msra.mxu0 %v10580
        %10666 = vmatpush.bf16.msra.mxu0 %v10579
        %10667 = vmatpush.bf16.msra.mxu0 %v10578
        %10668 = vmatpush.bf16.msra.mxu0 %v10577
        %10669 = vmatpush.bf16.msra.mxu0 %v10576
        %10670 = vmatpush.bf16.msra.mxu0 %v10575
        %10671 = vmatpush.bf16.msra.mxu0 %v10574
        %10672 = vmatpush.bf16.msra.mxu0 %v10573
        %10673 = vmatmul.bf16.gmra.mxu0 %v10327
        %v10674 = vpop.f32.mrf.mxu0
        %v10675 = vadd.f32 %v10661, %v10674
        %v10676 = vpop.f32.mrf.mxu0
        %v10677 = vadd.f32 %v10663, %v10676
        %10678 = vdwg.mxu0
        %10679 = vmatpush.bf16.msra.mxu0 0
        %10680 = vmatpush.bf16.msra.mxu0 0
        %10681 = vmatpush.bf16.msra.mxu0 0
        %10682 = vmatpush.bf16.msra.mxu0 0
        %10683 = vmatpush.bf16.msra.mxu0 %v10584
        %10684 = vmatpush.bf16.msra.mxu0 %v10583
        %10685 = vmatpush.bf16.msra.mxu0 %v10582
        %10686 = vmatpush.bf16.msra.mxu0 %v10581
        %10687 = vmatmul.bf16.gmra.mxu0 %v10621
        %v10688 = vpop.f32.mrf.mxu0
        %v10689 = vadd.f32 %v10675, %v10688
        %v10690 = vpop.f32.mrf.mxu0
        %v10691 = vadd.f32 %v10677, %v10690
        %10692 = vdwg.mxu0
        %v10693 = vmax.f32 %v10689, 0.0
        %v10694 = vmax.f32 %v10691, 0.0
        %v10695 = vpack.c.bf16 %v10693, %v10693
        %v10696 = vpack.c.bf16 %v10694, %v10694
        %v10699 = vunpack.c.l.b16 %v10695
        %v10700 = vunpack.c.l.b16 %v10696
        %v10701 = vpack.c.b16 %v10700, %v10699
        %v10703 = vshrl.u32 %v10701, 16
        %v10705 = vrot.slane %v10703, 7
        %v10706 = vshll.u32 %v10701, 16
        %v10708 = vor.u32 %v10705, %v10706
        %v10710 = vsel %vm1680, 0, %v10708
        %v10711 = vsel %vm10174, %v10710, 0
        %v10712 = vrot.slane %v10706, 1
        %v10713 = vor.u32 %v10703, %v10712
        %v10715 = vsel %vm2131, %v10713, 0
        %v10716 = vsel %vm10226, %v10715, 0
        %v10718 = vrot.slane %v10711, 6
        %v10720 = vsel %vm10230, 0, %v10718
        %v10721 = vrot.slane %v10701, 6
        %v10723 = vsel %vm10230, 0, %v10721
        %v10725 = vrot.slane %v10716, 6
        %v10727 = vsel %vm10230, 0, %v10725
        %v10728 = vrot.slane %v10711, 2
        %v10730 = vsel %vm10262, %v10728, 0
        %v10731 = vrot.slane %v10701, 2
        %v10733 = vsel %vm10262, %v10731, 0
        %v10734 = vrot.slane %v10716, 2
        %v10736 = vsel %vm10262, %v10734, 0
        %10738 = vrot.lane.b32.xlu0 %v10723, 64
        %v10739 = vpop.permute.xlu0 %10738
        %10740 = vrot.lane.b32.xlu0 %v10711, 64
        %v10741 = vpop.permute.xlu0 %10740
        %10742 = vrot.lane.b32.xlu0 %v10716, 64
        %v10743 = vpop.permute.xlu0 %10742
        %10745 = vrot.lane.b32.xlu0 %v10733, 64
        %v10746 = vpop.permute.xlu0 %10745
        %v10748 = vsel %vm2827, %v10720, %v10739
        %v10751 = vsel %vm2827, %v10727, %v10741
        %v10754 = vsel %vm2827, %v10701, %v10743
        %v10757 = vsel %vm2827, %v10730, %v10746
        %v10759 = vld [vmem:[#allocation6] sm:$0xf]
        %v10760 = vld [vmem:[#allocation6 + $0x4] sm:$0xf]
        %v10761 = vld [vmem:[#allocation6 + $0x8] sm:$0xf]
        %v10762 = vld [vmem:[#allocation6 + $0xc] sm:$0xf]
        %v10763 = vld [vmem:[#allocation6 + $0x10] sm:$0xf]
        %v10764 = vld [vmem:[#allocation6 + $0x14] sm:$0xf]
        %v10765 = vld [vmem:[#allocation6 + $0x18] sm:$0xf]
        %v10766 = vld [vmem:[#allocation6 + $0x1c] sm:$0xf]
        %v10767 = vld [vmem:[#allocation6 + $0x20] sm:$0xf]
        %v10768 = vld [vmem:[#allocation6 + $0x24] sm:$0xf]
        %v10769 = vld [vmem:[#allocation6 + $0x28] sm:$0xf]
        %v10770 = vld [vmem:[#allocation6 + $0x2c] sm:$0xf]
        %v10771 = vld [vmem:[#allocation6 + $0x30] sm:$0xf]
        %v10772 = vld [vmem:[#allocation6 + $0x34] sm:$0xf]
        %v10773 = vld [vmem:[#allocation6 + $0x38] sm:$0xf]
        %v10774 = vld [vmem:[#allocation6 + $0x3c] sm:$0xf]
        %v10775 = vld [vmem:[#allocation6 + $0x40] sm:$0xf]
        %v10776 = vld [vmem:[#allocation6 + $0x44] sm:$0xf]
        %v10777 = vld [vmem:[#allocation6 + $0x48] sm:$0xf]
        %v10778 = vld [vmem:[#allocation6 + $0x4c] sm:$0xf]
        %v10779 = vld [vmem:[#allocation6 + $0x50] sm:$0xf]
        %v10780 = vld [vmem:[#allocation6 + $0x54] sm:$0xf]
        %v10781 = vld [vmem:[#allocation6 + $0x58] sm:$0xf]
        %v10782 = vld [vmem:[#allocation6 + $0x5c] sm:$0xf]
        %v10783 = vld [vmem:[#allocation6 + $0x60] sm:$0xf]
        %v10784 = vld [vmem:[#allocation6 + $0x64] sm:$0xf]
        %v10785 = vld [vmem:[#allocation6 + $0x68] sm:$0xf]
        %v10786 = vld [vmem:[#allocation6 + $0x6c] sm:$0xf]
        %v10787 = vld [vmem:[#allocation6 + $0x70] sm:$0xf]
        %v10788 = vld [vmem:[#allocation6 + $0x74] sm:$0xf]
        %v10789 = vld [vmem:[#allocation6 + $0x78] sm:$0xf]
        %v10790 = vld [vmem:[#allocation6 + $0x7c] sm:$0xf]
        %v10791 = vld [vmem:[#allocation6 + $0x80] sm:$0xf]
        %v10792 = vld [vmem:[#allocation6 + $0x84] sm:$0xf]
        %v10793 = vld [vmem:[#allocation6 + $0x88] sm:$0xf]
        %v10794 = vld [vmem:[#allocation6 + $0x8c] sm:$0xf]
        %v10795 = vld [vmem:[#allocation6 + $0x90] sm:$0xf]
        %v10796 = vld [vmem:[#allocation6 + $0x94] sm:$0xf]
        %v10797 = vld [vmem:[#allocation6 + $0x98] sm:$0xf]
        %v10798 = vld [vmem:[#allocation6 + $0x9c] sm:$0xf]
        %v10799 = vld [vmem:[#allocation6 + $0xa0] sm:$0xf]
        %v10800 = vld [vmem:[#allocation6 + $0xa4] sm:$0xf]
        %v10801 = vld [vmem:[#allocation6 + $0xa8] sm:$0xf]
        %v10802 = vld [vmem:[#allocation6 + $0xac] sm:$0xf]
        %v10803 = vld [vmem:[#allocation6 + $0xb0] sm:$0xf]
        %v10804 = vld [vmem:[#allocation6 + $0xb4] sm:$0xf]
        %v10805 = vld [vmem:[#allocation6 + $0xb8] sm:$0xf]
        %v10806 = vld [vmem:[#allocation6 + $0xbc] sm:$0xf]
        %v10807 = vld [vmem:[#allocation6 + $0xc0] sm:$0xf]
        %v10808 = vld [vmem:[#allocation6 + $0xc4] sm:$0xf]
        %v10809 = vld [vmem:[#allocation6 + $0xc8] sm:$0xf]
        %v10810 = vld [vmem:[#allocation6 + $0xcc] sm:$0xf]
        %v10811 = vld [vmem:[#allocation6 + $0xd0] sm:$0xf]
        %v10812 = vld [vmem:[#allocation6 + $0xd4] sm:$0xf]
        %v10813 = vld [vmem:[#allocation6 + $0xd8] sm:$0xf]
        %v10814 = vld [vmem:[#allocation6 + $0xdc] sm:$0xf]
        %v10815 = vld [vmem:[#allocation6 + $0xe0] sm:$0xf]
        %v10816 = vld [vmem:[#allocation6 + $0xe4] sm:$0xf]
        %v10817 = vld [vmem:[#allocation6 + $0xe8] sm:$0xf]
        %v10818 = vld [vmem:[#allocation6 + $0xec] sm:$0xf]
        %v10819 = vld [vmem:[#allocation6 + $0xf0] sm:$0xf]
        %v10820 = vld [vmem:[#allocation6 + $0xf4] sm:$0xf]
        %v10821 = vld [vmem:[#allocation6 + $0xf8] sm:$0xf]
        %v10822 = vld [vmem:[#allocation6 + $0xfc] sm:$0xf]
        %v10823 = vld [vmem:[#allocation6 + $0x100] sm:$0xf]
        %v10824 = vld [vmem:[#allocation6 + $0x104] sm:$0xf]
        %v10825 = vld [vmem:[#allocation6 + $0x108] sm:$0xf]
        %v10826 = vld [vmem:[#allocation6 + $0x10c] sm:$0xf]
        %v10827 = vld [vmem:[#allocation6 + $0x110] sm:$0xf]
        %v10828 = vld [vmem:[#allocation6 + $0x114] sm:$0xf]
        %v10829 = vld [vmem:[#allocation6 + $0x118] sm:$0xf]
        %v10830 = vld [vmem:[#allocation6 + $0x11c] sm:$0xf]
        %v10831 = vld [vmem:[%s12] sm:$0x1]
        %v10833 = vperm.slane %v10831, 0
        %v10907 = vunpack.c.l.b16 %v10759
        %v10908 = vunpack.c.l.b16 %v10760
        %v10909 = vunpack.c.l.b16 %v10761
        %v10910 = vunpack.c.l.b16 %v10762
        %v10911 = vunpack.c.l.b16 %v10763
        %v10912 = vunpack.c.l.b16 %v10764
        %v10913 = vunpack.c.l.b16 %v10765
        %v10914 = vunpack.c.l.b16 %v10766
        %v10915 = vunpack.c.l.b16 %v10767
        %v10916 = vunpack.c.l.b16 %v10768
        %v10917 = vunpack.c.l.b16 %v10769
        %v10918 = vunpack.c.l.b16 %v10770
        %v10919 = vunpack.c.l.b16 %v10771
        %v10920 = vunpack.c.l.b16 %v10772
        %v10921 = vunpack.c.l.b16 %v10773
        %v10922 = vunpack.c.l.b16 %v10774
        %v10923 = vunpack.c.l.b16 %v10775
        %v10924 = vunpack.c.l.b16 %v10776
        %v10925 = vunpack.c.l.b16 %v10777
        %v10926 = vunpack.c.l.b16 %v10778
        %v10927 = vunpack.c.l.b16 %v10779
        %v10928 = vunpack.c.l.b16 %v10780
        %v10929 = vunpack.c.l.b16 %v10781
        %v10930 = vunpack.c.l.b16 %v10782
        %v10931 = vunpack.c.l.b16 %v10783
        %v10932 = vunpack.c.l.b16 %v10784
        %v10933 = vunpack.c.l.b16 %v10785
        %v10934 = vunpack.c.l.b16 %v10786
        %v10935 = vunpack.c.l.b16 %v10787
        %v10936 = vunpack.c.l.b16 %v10788
        %v10937 = vunpack.c.l.b16 %v10789
        %v10938 = vunpack.c.l.b16 %v10790
        %v10939 = vunpack.c.l.b16 %v10791
        %v10940 = vunpack.c.l.b16 %v10792
        %v10941 = vunpack.c.l.b16 %v10793
        %v10942 = vunpack.c.l.b16 %v10794
        %v10943 = vunpack.c.l.b16 %v10795
        %v10944 = vunpack.c.l.b16 %v10796
        %v10945 = vunpack.c.l.b16 %v10797
        %v10946 = vunpack.c.l.b16 %v10798
        %v10947 = vunpack.c.l.b16 %v10799
        %v10948 = vunpack.c.l.b16 %v10800
        %v10949 = vunpack.c.l.b16 %v10801
        %v10950 = vunpack.c.l.b16 %v10802
        %v10951 = vunpack.c.l.b16 %v10803
        %v10952 = vunpack.c.l.b16 %v10804
        %v10953 = vunpack.c.l.b16 %v10805
        %v10954 = vunpack.c.l.b16 %v10806
        %v10955 = vunpack.c.l.b16 %v10807
        %v10956 = vunpack.c.l.b16 %v10808
        %v10957 = vunpack.c.l.b16 %v10809
        %v10958 = vunpack.c.l.b16 %v10810
        %v10959 = vunpack.c.l.b16 %v10811
        %v10960 = vunpack.c.l.b16 %v10812
        %v10961 = vunpack.c.l.b16 %v10813
        %v10962 = vunpack.c.l.b16 %v10814
        %v10963 = vunpack.c.l.b16 %v10815
        %v10964 = vunpack.c.l.b16 %v10816
        %v10965 = vunpack.c.l.b16 %v10817
        %v10966 = vunpack.c.l.b16 %v10818
        %v10967 = vunpack.c.l.b16 %v10819
        %v10968 = vunpack.c.l.b16 %v10820
        %v10969 = vunpack.c.l.b16 %v10821
        %v10970 = vunpack.c.l.b16 %v10822
        %v10971 = vunpack.c.l.b16 %v10823
        %v10972 = vunpack.c.l.b16 %v10824
        %v10973 = vunpack.c.l.b16 %v10825
        %v10974 = vunpack.c.l.b16 %v10826
        %v10975 = vunpack.c.l.b16 %v10827
        %v10976 = vunpack.c.l.b16 %v10828
        %v10977 = vunpack.c.l.b16 %v10829
        %v10978 = vunpack.c.l.b16 %v10830
        %v10979 = vpack.c.b16 %v10908, %v10907
        %v10980 = vpack.c.b16 %v10910, %v10909
        %v10981 = vpack.c.b16 %v10912, %v10911
        %v10982 = vpack.c.b16 %v10914, %v10913
        %v10983 = vpack.c.b16 %v10916, %v10915
        %v10984 = vpack.c.b16 %v10918, %v10917
        %v10985 = vpack.c.b16 %v10920, %v10919
        %v10986 = vpack.c.b16 %v10922, %v10921
        %v10987 = vpack.c.b16 %v10924, %v10923
        %v10988 = vpack.c.b16 %v10926, %v10925
        %v10989 = vpack.c.b16 %v10928, %v10927
        %v10990 = vpack.c.b16 %v10930, %v10929
        %v10991 = vpack.c.b16 %v10932, %v10931
        %v10992 = vpack.c.b16 %v10934, %v10933
        %v10993 = vpack.c.b16 %v10936, %v10935
        %v10994 = vpack.c.b16 %v10938, %v10937
        %v10995 = vpack.c.b16 %v10940, %v10939
        %v10996 = vpack.c.b16 %v10942, %v10941
        %v10997 = vpack.c.b16 %v10944, %v10943
        %v10998 = vpack.c.b16 %v10946, %v10945
        %v10999 = vpack.c.b16 %v10948, %v10947
        %v11000 = vpack.c.b16 %v10950, %v10949
        %v11001 = vpack.c.b16 %v10952, %v10951
        %v11002 = vpack.c.b16 %v10954, %v10953
        %v11003 = vpack.c.b16 %v10956, %v10955
        %v11004 = vpack.c.b16 %v10958, %v10957
        %v11005 = vpack.c.b16 %v10960, %v10959
        %v11006 = vpack.c.b16 %v10962, %v10961
        %v11007 = vpack.c.b16 %v10964, %v10963
        %v11008 = vpack.c.b16 %v10966, %v10965
        %v11009 = vpack.c.b16 %v10968, %v10967
        %v11010 = vpack.c.b16 %v10970, %v10969
        %v11011 = vpack.c.b16 %v10972, %v10971
        %v11012 = vpack.c.b16 %v10974, %v10973
        %v11013 = vpack.c.b16 %v10976, %v10975
        %v11014 = vpack.c.b16 %v10978, %v10977
        %v11051 = vsel %vm2827, %v10736, 0
        %11053 = vmatpush.bf16.msra.mxu0 %v10986
        %11054 = vmatpush.bf16.msra.mxu0 %v10985
        %11055 = vmatpush.bf16.msra.mxu0 %v10984
        %11056 = vmatpush.bf16.msra.mxu0 %v10983
        %11057 = vmatpush.bf16.msra.mxu0 %v10982
        %11058 = vmatpush.bf16.msra.mxu0 %v10981
        %11059 = vmatpush.bf16.msra.mxu0 %v10980
        %11060 = vmatpush.bf16.msra.mxu0 %v10979
        %11061 = vmatmul.bf16.gmra.mxu0 %v10748
        %v11062 = vpop.f32.mrf.mxu0
        %v11063 = vadd.f32 %v10833, %v11062
        %v11064 = vpop.f32.mrf.mxu0
        %v11065 = vadd.f32 %v10833, %v11064
        %11066 = vdwg.mxu0
        %11067 = vmatpush.bf16.msra.mxu0 %v10994
        %11068 = vmatpush.bf16.msra.mxu0 %v10993
        %11069 = vmatpush.bf16.msra.mxu0 %v10992
        %11070 = vmatpush.bf16.msra.mxu0 %v10991
        %11071 = vmatpush.bf16.msra.mxu0 %v10990
        %11072 = vmatpush.bf16.msra.mxu0 %v10989
        %11073 = vmatpush.bf16.msra.mxu0 %v10988
        %11074 = vmatpush.bf16.msra.mxu0 %v10987
        %11075 = vmatmul.bf16.gmra.mxu0 %v10751
        %v11076 = vpop.f32.mrf.mxu0
        %v11077 = vadd.f32 %v11063, %v11076
        %v11078 = vpop.f32.mrf.mxu0
        %v11079 = vadd.f32 %v11065, %v11078
        %11080 = vdwg.mxu0
        %11081 = vmatpush.bf16.msra.mxu0 %v11002
        %11082 = vmatpush.bf16.msra.mxu0 %v11001
        %11083 = vmatpush.bf16.msra.mxu0 %v11000
        %11084 = vmatpush.bf16.msra.mxu0 %v10999
        %11085 = vmatpush.bf16.msra.mxu0 %v10998
        %11086 = vmatpush.bf16.msra.mxu0 %v10997
        %11087 = vmatpush.bf16.msra.mxu0 %v10996
        %11088 = vmatpush.bf16.msra.mxu0 %v10995
        %11089 = vmatmul.bf16.gmra.mxu0 %v10754
        %v11090 = vpop.f32.mrf.mxu0
        %v11091 = vadd.f32 %v11077, %v11090
        %v11092 = vpop.f32.mrf.mxu0
        %v11093 = vadd.f32 %v11079, %v11092
        %11094 = vdwg.mxu0
        %11095 = vmatpush.bf16.msra.mxu0 %v11010
        %11096 = vmatpush.bf16.msra.mxu0 %v11009
        %11097 = vmatpush.bf16.msra.mxu0 %v11008
        %11098 = vmatpush.bf16.msra.mxu0 %v11007
        %11099 = vmatpush.bf16.msra.mxu0 %v11006
        %11100 = vmatpush.bf16.msra.mxu0 %v11005
        %11101 = vmatpush.bf16.msra.mxu0 %v11004
        %11102 = vmatpush.bf16.msra.mxu0 %v11003
        %11103 = vmatmul.bf16.gmra.mxu0 %v10757
        %v11104 = vpop.f32.mrf.mxu0
        %v11105 = vadd.f32 %v11091, %v11104
        %v11106 = vpop.f32.mrf.mxu0
        %v11107 = vadd.f32 %v11093, %v11106
        %11108 = vdwg.mxu0
        %11109 = vmatpush.bf16.msra.mxu0 0
        %11110 = vmatpush.bf16.msra.mxu0 0
        %11111 = vmatpush.bf16.msra.mxu0 0
        %11112 = vmatpush.bf16.msra.mxu0 0
        %11113 = vmatpush.bf16.msra.mxu0 %v11014
        %11114 = vmatpush.bf16.msra.mxu0 %v11013
        %11115 = vmatpush.bf16.msra.mxu0 %v11012
        %11116 = vmatpush.bf16.msra.mxu0 %v11011
        %11117 = vmatmul.bf16.gmra.mxu0 %v11051
        %v11118 = vpop.f32.mrf.mxu0
        %v11119 = vadd.f32 %v11105, %v11118
        %v11120 = vpop.f32.mrf.mxu0
        %v11121 = vadd.f32 %v11107, %v11120
        %11122 = vdwg.mxu0
        %v11123 = vmax.f32 %v11119, 0.0
        %v11124 = vmax.f32 %v11121, 0.0
        %11125 = vst [vmem:[%s743] sm:$0xff] %v11123
        %11126 = vst [vmem:[%s743 + $0x8] sm:$0xff] %v11124
        %v11129 = vrot.slane %v10693, 2
        %v11130 = vrot.slane %v10693, 4
        %v11131 = vrot.slane %v10693, 6
        %v11132 = vrot.slane %v10694, 2
        %v11133 = vrot.slane %v10694, 4
        %v11134 = vrot.slane %v10694, 6
        %v11141 = vrot.slane %v10693, 7
        %v11142 = vrot.slane %v11141, 2
        %v11143 = vrot.slane %v11129, 7
        %v11144 = vrot.slane %v11143, 2
        %v11145 = vrot.slane %v10694, 7
        %v11146 = vrot.slane %v11145, 2
        %v11147 = vrot.slane %v11132, 7
        %v11148 = vrot.slane %v11147, 2
        %v11153 = vmax.f32 %v10693, %v11142
        %v11154 = vmax.f32 %v11129, %v11144
        %v11155 = vmax.f32 %v10694, %v11146
        %v11156 = vmax.f32 %v11132, %v11148
        %v11157 = vrot.slane %v11130, 7
        %v11158 = vrot.slane %v11157, 2
        %v11159 = vrot.slane %v11131, 7
        %v11160 = vrot.slane %v11159, 2
        %v11161 = vrot.slane %v11133, 7
        %v11162 = vrot.slane %v11161, 2
        %v11163 = vrot.slane %v11134, 7
        %v11164 = vrot.slane %v11163, 2
        %v11169 = vmax.f32 %v11130, %v11158
        %v11170 = vmax.f32 %v11131, %v11160
        %v11171 = vmax.f32 %v11133, %v11162
        %v11172 = vmax.f32 %v11134, %v11164
        %v11173 = vmax.f32 %v11153, %v11169
        %v11174 = vmax.f32 %v11154, %v11170
        %v11175 = vmax.f32 %v11155, %v11171
        %v11176 = vmax.f32 %v11156, %v11172
        %v11177 = vpack.c.bf16 %v11173, %v11173
        %v11178 = vpack.c.bf16 %v11174, %v11174
        %v11179 = vpack.c.bf16 %v11175, %v11175
        %v11180 = vpack.c.bf16 %v11176, %v11176
        %vm11181 = vcmp.lt.s32.totalorder %v784, 0
        %v11182 = vsub.s32 0, %v784
        %v11183 = vsel %vm11181, %v11182, %v784
        %v11184 = vshrl.u32 %v11183, 1
        %v11185 = vand.u32 %v11183, 1
        %v11186 = vsub.s32 0, %v11185
        %v11187 = vsel %vm11181, %v11186, %v11185
        %vm11188 = vcmp.ne.s32.totalorder %v11187, 0
        %vm11189 = vcmp.lt.s32.totalorder %v11187, 0
        %vm11190 = vmand %vm11189, %vm11188
        %v11191 = vadd.s32 %v11187, 2
        %v11192 = vsel %vm11190, %v11191, %v11187
        %vm11193 = vcmp.ne.s32.totalorder %v11192, 0
        %vm11194 = vcmp.ne.s32.totalorder %v11192, 1
        %v11198 = vunpack.c.l.b16 %v11177
        %v11199 = vunpack.c.l.b16 %v11178
        %v11200 = vunpack.c.l.b16 %v11179
        %v11201 = vpack.c.b16 %v11198, %v11198
        %v11202 = vpack.c.b16 %v11199, %v11199
        %v11203 = vpack.c.b16 %v11200, %v11200
        %v11204 = vunpack.c.l.b16 %v11201
        %v11205 = vunpack.c.l.b16 %v11202
        %v11206 = vunpack.c.l.b16 %v11203
        %v11207 = vrot.slane %v11204, 7
        %v11208 = vrot.slane %v11205, 6
        %v11209 = vsel %vm7903, %v11208, %v11207
        %v11210 = vrot.slane %v11206, 5
        %v11211 = vsel %vm7906, %v11210, %v11209
        %v11212 = vpack.c.b16 %v11211, %v11211
        %v11214 = vsel %vm1680, 0, %v11212
        %v11215 = vsel %vm11193, 1, 0
        %vm11216 = vcmp.eq.s32.totalorder %v11215, 1
        %vm11217 = vmpackc.low %vm11216, %vm11216
        %v11218 = vsel %vm11217, %v11214, 0
        %v11220 = vunpack.c.l.b16 %v11180
        %v11221 = vpack.c.b16 %v11220, %v11220
        %v11222 = vunpack.c.l.b16 %v11221
        %v11223 = vrot.slane %v11206, 7
        %v11224 = vsel %vm7921, %v11223, %v11205
        %v11225 = vrot.slane %v11222, 6
        %v11226 = vsel %vm7903, %v11225, %v11224
        %v11227 = vpack.c.b16 %v11226, %v11226
        %vm11229 = vcmask 1041408
        %vm11230 = vsmask.f32 1280
        %vm11231 = vmand %vm11229, %vm11230
        %v11232 = vsel %vm11231, %v11227, 0
        %v11233 = vsel %vm11194, 1, 0
        %vm11234 = vcmp.eq.s32.totalorder %v11233, 1
        %vm11235 = vmpackc.low %vm11234, %vm11234
        %v11236 = vsel %vm11235, %v11232, 0
        %v11238 = vrot.slane %v11218, 7
        %vm11239 = vcmask 1040384
        %v11241 = vsel %vm11239, 0, %v11238
        %v11242 = vrot.slane %v11204, 6
        %v11243 = vrot.slane %v11205, 5
        %v11244 = vsel %vm7906, %v11243, %v11242
        %v11245 = vpack.c.b16 %v11244, %v11244
        %v11247 = vsel %vm11239, 0, %v11245
        %v11249 = vrot.slane %v11236, 7
        %v11251 = vsel %vm11239, 0, %v11249
        %v11252 = vrot.slane %v11218, 1
        %v11254 = vsel %vm11239, %v11252, 0
        %v11255 = vrot.slane %v11222, 7
        %v11256 = vsel %vm7921, %v11255, %v11206
        %v11257 = vpack.c.b16 %v11256, %v11256
        %v11259 = vsel %vm11239, %v11257, 0
        %v11260 = vrot.slane %v11236, 1
        %v11262 = vsel %vm11239, %v11260, 0
        %11264 = vrot.lane.b32.xlu0 %v11247, 64
        %v11265 = vpop.permute.xlu0 %11264
        %11266 = vrot.lane.b32.xlu0 %v11218, 64
        %v11267 = vpop.permute.xlu0 %11266
        %v11268 = vrot.slane %v11205, 7
        %v11269 = vsel %vm7921, %v11268, %v11204
        %v11270 = vrot.slane %v11206, 6
        %v11271 = vsel %vm7903, %v11270, %v11269
        %v11272 = vrot.slane %v11222, 5
        %v11273 = vsel %vm7906, %v11272, %v11271
        %v11274 = vpack.c.b16 %v11273, %v11273
        %11275 = vrot.lane.b32.xlu0 %v11236, 64
        %v11276 = vpop.permute.xlu0 %11275
        %11278 = vrot.lane.b32.xlu0 %v11259, 64
        %v11279 = vpop.permute.xlu0 %11278
        %v11281 = vsel %vm2827, %v11241, %v11265
        %v11284 = vsel %vm2827, %v11251, %v11267
        %v11288 = vsel %vm2827, %v11274, %v11276
        %v11291 = vsel %vm2827, %v11254, %v11279
        %v11293 = vld [vmem:[#allocation7] sm:$0xf]
        %v11294 = vld [vmem:[#allocation7 + $0x4] sm:$0xf]
        %v11295 = vld [vmem:[#allocation7 + $0x8] sm:$0xf]
        %v11296 = vld [vmem:[#allocation7 + $0xc] sm:$0xf]
        %v11297 = vld [vmem:[#allocation7 + $0x10] sm:$0xf]
        %v11298 = vld [vmem:[#allocation7 + $0x14] sm:$0xf]
        %v11299 = vld [vmem:[#allocation7 + $0x18] sm:$0xf]
        %v11300 = vld [vmem:[#allocation7 + $0x1c] sm:$0xf]
        %v11301 = vld [vmem:[#allocation7 + $0x20] sm:$0xf]
        %v11302 = vld [vmem:[#allocation7 + $0x24] sm:$0xf]
        %v11303 = vld [vmem:[#allocation7 + $0x28] sm:$0xf]
        %v11304 = vld [vmem:[#allocation7 + $0x2c] sm:$0xf]
        %v11305 = vld [vmem:[#allocation7 + $0x30] sm:$0xf]
        %v11306 = vld [vmem:[#allocation7 + $0x34] sm:$0xf]
        %v11307 = vld [vmem:[#allocation7 + $0x38] sm:$0xf]
        %v11308 = vld [vmem:[#allocation7 + $0x3c] sm:$0xf]
        %v11309 = vld [vmem:[#allocation7 + $0x40] sm:$0xf]
        %v11310 = vld [vmem:[#allocation7 + $0x44] sm:$0xf]
        %v11311 = vld [vmem:[#allocation7 + $0x48] sm:$0xf]
        %v11312 = vld [vmem:[#allocation7 + $0x4c] sm:$0xf]
        %v11313 = vld [vmem:[#allocation7 + $0x50] sm:$0xf]
        %v11314 = vld [vmem:[#allocation7 + $0x54] sm:$0xf]
        %v11315 = vld [vmem:[#allocation7 + $0x58] sm:$0xf]
        %v11316 = vld [vmem:[#allocation7 + $0x5c] sm:$0xf]
        %v11317 = vld [vmem:[#allocation7 + $0x60] sm:$0xf]
        %v11318 = vld [vmem:[#allocation7 + $0x64] sm:$0xf]
        %v11319 = vld [vmem:[#allocation7 + $0x68] sm:$0xf]
        %v11320 = vld [vmem:[#allocation7 + $0x6c] sm:$0xf]
        %v11321 = vld [vmem:[#allocation7 + $0x70] sm:$0xf]
        %v11322 = vld [vmem:[#allocation7 + $0x74] sm:$0xf]
        %v11323 = vld [vmem:[#allocation7 + $0x78] sm:$0xf]
        %v11324 = vld [vmem:[#allocation7 + $0x7c] sm:$0xf]
        %v11325 = vld [vmem:[#allocation7 + $0x80] sm:$0xf]
        %v11326 = vld [vmem:[#allocation7 + $0x84] sm:$0xf]
        %v11327 = vld [vmem:[#allocation7 + $0x88] sm:$0xf]
        %v11328 = vld [vmem:[#allocation7 + $0x8c] sm:$0xf]
        %v11329 = vld [vmem:[#allocation7 + $0x90] sm:$0xf]
        %v11330 = vld [vmem:[#allocation7 + $0x94] sm:$0xf]
        %v11331 = vld [vmem:[#allocation7 + $0x98] sm:$0xf]
        %v11332 = vld [vmem:[#allocation7 + $0x9c] sm:$0xf]
        %v11333 = vld [vmem:[#allocation7 + $0xa0] sm:$0xf]
        %v11334 = vld [vmem:[#allocation7 + $0xa4] sm:$0xf]
        %v11335 = vld [vmem:[#allocation7 + $0xa8] sm:$0xf]
        %v11336 = vld [vmem:[#allocation7 + $0xac] sm:$0xf]
        %v11337 = vld [vmem:[#allocation7 + $0xb0] sm:$0xf]
        %v11338 = vld [vmem:[#allocation7 + $0xb4] sm:$0xf]
        %v11339 = vld [vmem:[#allocation7 + $0xb8] sm:$0xf]
        %v11340 = vld [vmem:[#allocation7 + $0xbc] sm:$0xf]
        %v11341 = vld [vmem:[#allocation7 + $0xc0] sm:$0xf]
        %v11342 = vld [vmem:[#allocation7 + $0xc4] sm:$0xf]
        %v11343 = vld [vmem:[#allocation7 + $0xc8] sm:$0xf]
        %v11344 = vld [vmem:[#allocation7 + $0xcc] sm:$0xf]
        %v11345 = vld [vmem:[#allocation7 + $0xd0] sm:$0xf]
        %v11346 = vld [vmem:[#allocation7 + $0xd4] sm:$0xf]
        %v11347 = vld [vmem:[#allocation7 + $0xd8] sm:$0xf]
        %v11348 = vld [vmem:[#allocation7 + $0xdc] sm:$0xf]
        %v11349 = vld [vmem:[#allocation7 + $0xe0] sm:$0xf]
        %v11350 = vld [vmem:[#allocation7 + $0xe4] sm:$0xf]
        %v11351 = vld [vmem:[#allocation7 + $0xe8] sm:$0xf]
        %v11352 = vld [vmem:[#allocation7 + $0xec] sm:$0xf]
        %v11353 = vld [vmem:[#allocation7 + $0xf0] sm:$0xf]
        %v11354 = vld [vmem:[#allocation7 + $0xf4] sm:$0xf]
        %v11355 = vld [vmem:[#allocation7 + $0xf8] sm:$0xf]
        %v11356 = vld [vmem:[#allocation7 + $0xfc] sm:$0xf]
        %v11357 = vld [vmem:[#allocation7 + $0x100] sm:$0xf]
        %v11358 = vld [vmem:[#allocation7 + $0x104] sm:$0xf]
        %v11359 = vld [vmem:[#allocation7 + $0x108] sm:$0xf]
        %v11360 = vld [vmem:[#allocation7 + $0x10c] sm:$0xf]
        %v11361 = vld [vmem:[#allocation7 + $0x110] sm:$0xf]
        %v11362 = vld [vmem:[#allocation7 + $0x114] sm:$0xf]
        %v11363 = vld [vmem:[#allocation7 + $0x118] sm:$0xf]
        %v11364 = vld [vmem:[#allocation7 + $0x11c] sm:$0xf]
        %v11365 = vld [vmem:[%s14] sm:$0x1]
        %v11367 = vperm.slane %v11365, 0
        %v11441 = vunpack.c.l.b16 %v11293
        %v11442 = vunpack.c.l.b16 %v11294
        %v11443 = vunpack.c.l.b16 %v11295
        %v11444 = vunpack.c.l.b16 %v11296
        %v11445 = vunpack.c.l.b16 %v11297
        %v11446 = vunpack.c.l.b16 %v11298
        %v11447 = vunpack.c.l.b16 %v11299
        %v11448 = vunpack.c.l.b16 %v11300
        %v11449 = vunpack.c.l.b16 %v11301
        %v11450 = vunpack.c.l.b16 %v11302
        %v11451 = vunpack.c.l.b16 %v11303
        %v11452 = vunpack.c.l.b16 %v11304
        %v11453 = vunpack.c.l.b16 %v11305
        %v11454 = vunpack.c.l.b16 %v11306
        %v11455 = vunpack.c.l.b16 %v11307
        %v11456 = vunpack.c.l.b16 %v11308
        %v11457 = vunpack.c.l.b16 %v11309
        %v11458 = vunpack.c.l.b16 %v11310
        %v11459 = vunpack.c.l.b16 %v11311
        %v11460 = vunpack.c.l.b16 %v11312
        %v11461 = vunpack.c.l.b16 %v11313
        %v11462 = vunpack.c.l.b16 %v11314
        %v11463 = vunpack.c.l.b16 %v11315
        %v11464 = vunpack.c.l.b16 %v11316
        %v11465 = vunpack.c.l.b16 %v11317
        %v11466 = vunpack.c.l.b16 %v11318
        %v11467 = vunpack.c.l.b16 %v11319
        %v11468 = vunpack.c.l.b16 %v11320
        %v11469 = vunpack.c.l.b16 %v11321
        %v11470 = vunpack.c.l.b16 %v11322
        %v11471 = vunpack.c.l.b16 %v11323
        %v11472 = vunpack.c.l.b16 %v11324
        %v11473 = vunpack.c.l.b16 %v11325
        %v11474 = vunpack.c.l.b16 %v11326
        %v11475 = vunpack.c.l.b16 %v11327
        %v11476 = vunpack.c.l.b16 %v11328
        %v11477 = vunpack.c.l.b16 %v11329
        %v11478 = vunpack.c.l.b16 %v11330
        %v11479 = vunpack.c.l.b16 %v11331
        %v11480 = vunpack.c.l.b16 %v11332
        %v11481 = vunpack.c.l.b16 %v11333
        %v11482 = vunpack.c.l.b16 %v11334
        %v11483 = vunpack.c.l.b16 %v11335
        %v11484 = vunpack.c.l.b16 %v11336
        %v11485 = vunpack.c.l.b16 %v11337
        %v11486 = vunpack.c.l.b16 %v11338
        %v11487 = vunpack.c.l.b16 %v11339
        %v11488 = vunpack.c.l.b16 %v11340
        %v11489 = vunpack.c.l.b16 %v11341
        %v11490 = vunpack.c.l.b16 %v11342
        %v11491 = vunpack.c.l.b16 %v11343
        %v11492 = vunpack.c.l.b16 %v11344
        %v11493 = vunpack.c.l.b16 %v11345
        %v11494 = vunpack.c.l.b16 %v11346
        %v11495 = vunpack.c.l.b16 %v11347
        %v11496 = vunpack.c.l.b16 %v11348
        %v11497 = vunpack.c.l.b16 %v11349
        %v11498 = vunpack.c.l.b16 %v11350
        %v11499 = vunpack.c.l.b16 %v11351
        %v11500 = vunpack.c.l.b16 %v11352
        %v11501 = vunpack.c.l.b16 %v11353
        %v11502 = vunpack.c.l.b16 %v11354
        %v11503 = vunpack.c.l.b16 %v11355
        %v11504 = vunpack.c.l.b16 %v11356
        %v11505 = vunpack.c.l.b16 %v11357
        %v11506 = vunpack.c.l.b16 %v11358
        %v11507 = vunpack.c.l.b16 %v11359
        %v11508 = vunpack.c.l.b16 %v11360
        %v11509 = vunpack.c.l.b16 %v11361
        %v11510 = vunpack.c.l.b16 %v11362
        %v11511 = vunpack.c.l.b16 %v11363
        %v11512 = vunpack.c.l.b16 %v11364
        %v11513 = vpack.c.b16 %v11442, %v11441
        %v11514 = vpack.c.b16 %v11444, %v11443
        %v11515 = vpack.c.b16 %v11446, %v11445
        %v11516 = vpack.c.b16 %v11448, %v11447
        %v11517 = vpack.c.b16 %v11450, %v11449
        %v11518 = vpack.c.b16 %v11452, %v11451
        %v11519 = vpack.c.b16 %v11454, %v11453
        %v11520 = vpack.c.b16 %v11456, %v11455
        %v11521 = vpack.c.b16 %v11458, %v11457
        %v11522 = vpack.c.b16 %v11460, %v11459
        %v11523 = vpack.c.b16 %v11462, %v11461
        %v11524 = vpack.c.b16 %v11464, %v11463
        %v11525 = vpack.c.b16 %v11466, %v11465
        %v11526 = vpack.c.b16 %v11468, %v11467
        %v11527 = vpack.c.b16 %v11470, %v11469
        %v11528 = vpack.c.b16 %v11472, %v11471
        %v11529 = vpack.c.b16 %v11474, %v11473
        %v11530 = vpack.c.b16 %v11476, %v11475
        %v11531 = vpack.c.b16 %v11478, %v11477
        %v11532 = vpack.c.b16 %v11480, %v11479
        %v11533 = vpack.c.b16 %v11482, %v11481
        %v11534 = vpack.c.b16 %v11484, %v11483
        %v11535 = vpack.c.b16 %v11486, %v11485
        %v11536 = vpack.c.b16 %v11488, %v11487
        %v11537 = vpack.c.b16 %v11490, %v11489
        %v11538 = vpack.c.b16 %v11492, %v11491
        %v11539 = vpack.c.b16 %v11494, %v11493
        %v11540 = vpack.c.b16 %v11496, %v11495
        %v11541 = vpack.c.b16 %v11498, %v11497
        %v11542 = vpack.c.b16 %v11500, %v11499
        %v11543 = vpack.c.b16 %v11502, %v11501
        %v11544 = vpack.c.b16 %v11504, %v11503
        %v11545 = vpack.c.b16 %v11506, %v11505
        %v11546 = vpack.c.b16 %v11508, %v11507
        %v11547 = vpack.c.b16 %v11510, %v11509
        %v11548 = vpack.c.b16 %v11512, %v11511
        %v11585 = vsel %vm2827, %v11262, 0
        %11587 = vmatpush.bf16.msra.mxu0 %v11520
        %11588 = vmatpush.bf16.msra.mxu0 %v11519
        %11589 = vmatpush.bf16.msra.mxu0 %v11518
        %11590 = vmatpush.bf16.msra.mxu0 %v11517
        %11591 = vmatpush.bf16.msra.mxu0 %v11516
        %11592 = vmatpush.bf16.msra.mxu0 %v11515
        %11593 = vmatpush.bf16.msra.mxu0 %v11514
        %11594 = vmatpush.bf16.msra.mxu0 %v11513
        %11595 = vmatmul.bf16.gmra.mxu0 %v11281
        %v11596 = vpop.f32.mrf.mxu0
        %v11597 = vadd.f32 %v11367, %v11596
        %v11598 = vpop.f32.mrf.mxu0
        %11599 = vdwg.mxu0
        %11600 = vmatpush.bf16.msra.mxu0 %v11528
        %11601 = vmatpush.bf16.msra.mxu0 %v11527
        %11602 = vmatpush.bf16.msra.mxu0 %v11526
        %11603 = vmatpush.bf16.msra.mxu0 %v11525
        %11604 = vmatpush.bf16.msra.mxu0 %v11524
        %11605 = vmatpush.bf16.msra.mxu0 %v11523
        %11606 = vmatpush.bf16.msra.mxu0 %v11522
        %11607 = vmatpush.bf16.msra.mxu0 %v11521
        %11608 = vmatmul.bf16.gmra.mxu0 %v11284
        %v11609 = vpop.f32.mrf.mxu0
        %v11610 = vadd.f32 %v11597, %v11609
        %v11611 = vpop.f32.mrf.mxu0
        %11612 = vdwg.mxu0
        %11613 = vmatpush.bf16.msra.mxu0 %v11536
        %11614 = vmatpush.bf16.msra.mxu0 %v11535
        %11615 = vmatpush.bf16.msra.mxu0 %v11534
        %11616 = vmatpush.bf16.msra.mxu0 %v11533
        %11617 = vmatpush.bf16.msra.mxu0 %v11532
        %11618 = vmatpush.bf16.msra.mxu0 %v11531
        %11619 = vmatpush.bf16.msra.mxu0 %v11530
        %11620 = vmatpush.bf16.msra.mxu0 %v11529
        %11621 = vmatmul.bf16.gmra.mxu0 %v11288
        %v11622 = vpop.f32.mrf.mxu0
        %v11623 = vadd.f32 %v11610, %v11622
        %v11624 = vpop.f32.mrf.mxu0
        %11625 = vdwg.mxu0
        %11626 = vmatpush.bf16.msra.mxu0 %v11544
        %11627 = vmatpush.bf16.msra.mxu0 %v11543
        %11628 = vmatpush.bf16.msra.mxu0 %v11542
        %11629 = vmatpush.bf16.msra.mxu0 %v11541
        %11630 = vmatpush.bf16.msra.mxu0 %v11540
        %11631 = vmatpush.bf16.msra.mxu0 %v11539
        %11632 = vmatpush.bf16.msra.mxu0 %v11538
        %11633 = vmatpush.bf16.msra.mxu0 %v11537
        %11634 = vmatmul.bf16.gmra.mxu0 %v11291
        %v11635 = vpop.f32.mrf.mxu0
        %v11636 = vadd.f32 %v11623, %v11635
        %v11637 = vpop.f32.mrf.mxu0
        %11638 = vdwg.mxu0
        %11639 = vmatpush.bf16.msra.mxu0 0
        %11640 = vmatpush.bf16.msra.mxu0 0
        %11641 = vmatpush.bf16.msra.mxu0 0
        %11642 = vmatpush.bf16.msra.mxu0 0
        %11643 = vmatpush.bf16.msra.mxu0 %v11548
        %11644 = vmatpush.bf16.msra.mxu0 %v11547
        %11645 = vmatpush.bf16.msra.mxu0 %v11546
        %11646 = vmatpush.bf16.msra.mxu0 %v11545
        %11647 = vmatmul.bf16.gmra.mxu0 %v11585
        %v11648 = vpop.f32.mrf.mxu0
        %v11649 = vadd.f32 %v11636, %v11648
        %v11650 = vpop.f32.mrf.mxu0
        %11651 = vdwg.mxu0
        %v11652 = vmax.f32 %v11649, 0.0
        %v11653 = vpack.c.bf16 %v11652, %v11652
        %v11655 = vunpack.c.l.b16 %v11653
        %v11656 = vpack.c.b16 %v11655, %v11655
        %v11658 = vshrl.u32 %v11656, 16
        %v11660 = vrot.slane %v11658, 7
        %v11661 = vshll.u32 %v11656, 16
        %v11663 = vor.u32 %v11660, %v11661
        %v11665 = vsel %vm1680, 0, %v11663
        %v11666 = vsel %vm11217, %v11665, 0
        %v11667 = vrot.slane %v11661, 1
        %v11668 = vor.u32 %v11658, %v11667
        %v11670 = vsel %vm11231, %v11668, 0
        %v11671 = vsel %vm11235, %v11670, 0
        %v11673 = vrot.slane %v11666, 7
        %v11675 = vsel %vm11239, 0, %v11673
        %v11676 = vrot.slane %v11656, 7
        %v11678 = vsel %vm11239, 0, %v11676
        %v11680 = vrot.slane %v11671, 7
        %v11682 = vsel %vm11239, 0, %v11680
        %v11683 = vrot.slane %v11666, 1
        %v11685 = vsel %vm11239, %v11683, 0
        %v11686 = vrot.slane %v11656, 1
        %v11688 = vsel %vm11239, %v11686, 0
        %v11689 = vrot.slane %v11671, 1
        %v11691 = vsel %vm11239, %v11689, 0
        %11693 = vrot.lane.b32.xlu0 %v11678, 64
        %v11694 = vpop.permute.xlu0 %11693
        %11695 = vrot.lane.b32.xlu0 %v11666, 64
        %v11696 = vpop.permute.xlu0 %11695
        %11697 = vrot.lane.b32.xlu0 %v11671, 64
        %v11698 = vpop.permute.xlu0 %11697
        %11700 = vrot.lane.b32.xlu0 %v11688, 64
        %v11701 = vpop.permute.xlu0 %11700
        %v11703 = vsel %vm2827, %v11675, %v11694
        %v11706 = vsel %vm2827, %v11682, %v11696
        %v11710 = vsel %vm2827, %v11653, %v11698
        %v11713 = vsel %vm2827, %v11685, %v11701
        %v11715 = vld [vmem:[#allocation9] sm:$0xf]
        %v11716 = vld [vmem:[#allocation9 + $0x4] sm:$0xf]
        %v11717 = vld [vmem:[#allocation9 + $0x8] sm:$0xf]
        %v11718 = vld [vmem:[#allocation9 + $0xc] sm:$0xf]
        %v11719 = vld [vmem:[#allocation9 + $0x10] sm:$0xf]
        %v11720 = vld [vmem:[#allocation9 + $0x14] sm:$0xf]
        %v11721 = vld [vmem:[#allocation9 + $0x18] sm:$0xf]
        %v11722 = vld [vmem:[#allocation9 + $0x1c] sm:$0xf]
        %v11723 = vld [vmem:[#allocation9 + $0x20] sm:$0xf]
        %v11724 = vld [vmem:[#allocation9 + $0x24] sm:$0xf]
        %v11725 = vld [vmem:[#allocation9 + $0x28] sm:$0xf]
        %v11726 = vld [vmem:[#allocation9 + $0x2c] sm:$0xf]
        %v11727 = vld [vmem:[#allocation9 + $0x30] sm:$0xf]
        %v11728 = vld [vmem:[#allocation9 + $0x34] sm:$0xf]
        %v11729 = vld [vmem:[#allocation9 + $0x38] sm:$0xf]
        %v11730 = vld [vmem:[#allocation9 + $0x3c] sm:$0xf]
        %v11731 = vld [vmem:[#allocation9 + $0x40] sm:$0xf]
        %v11732 = vld [vmem:[#allocation9 + $0x44] sm:$0xf]
        %v11733 = vld [vmem:[#allocation9 + $0x48] sm:$0xf]
        %v11734 = vld [vmem:[#allocation9 + $0x4c] sm:$0xf]
        %v11735 = vld [vmem:[#allocation9 + $0x50] sm:$0xf]
        %v11736 = vld [vmem:[#allocation9 + $0x54] sm:$0xf]
        %v11737 = vld [vmem:[#allocation9 + $0x58] sm:$0xf]
        %v11738 = vld [vmem:[#allocation9 + $0x5c] sm:$0xf]
        %v11739 = vld [vmem:[#allocation9 + $0x60] sm:$0xf]
        %v11740 = vld [vmem:[#allocation9 + $0x64] sm:$0xf]
        %v11741 = vld [vmem:[#allocation9 + $0x68] sm:$0xf]
        %v11742 = vld [vmem:[#allocation9 + $0x6c] sm:$0xf]
        %v11743 = vld [vmem:[#allocation9 + $0x70] sm:$0xf]
        %v11744 = vld [vmem:[#allocation9 + $0x74] sm:$0xf]
        %v11745 = vld [vmem:[#allocation9 + $0x78] sm:$0xf]
        %v11746 = vld [vmem:[#allocation9 + $0x7c] sm:$0xf]
        %v11747 = vld [vmem:[#allocation9 + $0x80] sm:$0xf]
        %v11748 = vld [vmem:[#allocation9 + $0x84] sm:$0xf]
        %v11749 = vld [vmem:[#allocation9 + $0x88] sm:$0xf]
        %v11750 = vld [vmem:[#allocation9 + $0x8c] sm:$0xf]
        %v11751 = vld [vmem:[#allocation9 + $0x90] sm:$0xf]
        %v11752 = vld [vmem:[#allocation9 + $0x94] sm:$0xf]
        %v11753 = vld [vmem:[#allocation9 + $0x98] sm:$0xf]
        %v11754 = vld [vmem:[#allocation9 + $0x9c] sm:$0xf]
        %v11755 = vld [vmem:[#allocation9 + $0xa0] sm:$0xf]
        %v11756 = vld [vmem:[#allocation9 + $0xa4] sm:$0xf]
        %v11757 = vld [vmem:[#allocation9 + $0xa8] sm:$0xf]
        %v11758 = vld [vmem:[#allocation9 + $0xac] sm:$0xf]
        %v11759 = vld [vmem:[#allocation9 + $0xb0] sm:$0xf]
        %v11760 = vld [vmem:[#allocation9 + $0xb4] sm:$0xf]
        %v11761 = vld [vmem:[#allocation9 + $0xb8] sm:$0xf]
        %v11762 = vld [vmem:[#allocation9 + $0xbc] sm:$0xf]
        %v11763 = vld [vmem:[#allocation9 + $0xc0] sm:$0xf]
        %v11764 = vld [vmem:[#allocation9 + $0xc4] sm:$0xf]
        %v11765 = vld [vmem:[#allocation9 + $0xc8] sm:$0xf]
        %v11766 = vld [vmem:[#allocation9 + $0xcc] sm:$0xf]
        %v11767 = vld [vmem:[#allocation9 + $0xd0] sm:$0xf]
        %v11768 = vld [vmem:[#allocation9 + $0xd4] sm:$0xf]
        %v11769 = vld [vmem:[#allocation9 + $0xd8] sm:$0xf]
        %v11770 = vld [vmem:[#allocation9 + $0xdc] sm:$0xf]
        %v11771 = vld [vmem:[#allocation9 + $0xe0] sm:$0xf]
        %v11772 = vld [vmem:[#allocation9 + $0xe4] sm:$0xf]
        %v11773 = vld [vmem:[#allocation9 + $0xe8] sm:$0xf]
        %v11774 = vld [vmem:[#allocation9 + $0xec] sm:$0xf]
        %v11775 = vld [vmem:[#allocation9 + $0xf0] sm:$0xf]
        %v11776 = vld [vmem:[#allocation9 + $0xf4] sm:$0xf]
        %v11777 = vld [vmem:[#allocation9 + $0xf8] sm:$0xf]
        %v11778 = vld [vmem:[#allocation9 + $0xfc] sm:$0xf]
        %v11779 = vld [vmem:[#allocation9 + $0x100] sm:$0xf]
        %v11780 = vld [vmem:[#allocation9 + $0x104] sm:$0xf]
        %v11781 = vld [vmem:[#allocation9 + $0x108] sm:$0xf]
        %v11782 = vld [vmem:[#allocation9 + $0x10c] sm:$0xf]
        %v11783 = vld [vmem:[#allocation9 + $0x110] sm:$0xf]
        %v11784 = vld [vmem:[#allocation9 + $0x114] sm:$0xf]
        %v11785 = vld [vmem:[#allocation9 + $0x118] sm:$0xf]
        %v11786 = vld [vmem:[#allocation9 + $0x11c] sm:$0xf]
        %v11787 = vld [vmem:[%s16] sm:$0x1]
        %v11789 = vperm.slane %v11787, 0
        %v11863 = vunpack.c.l.b16 %v11715
        %v11864 = vunpack.c.l.b16 %v11716
        %v11865 = vunpack.c.l.b16 %v11717
        %v11866 = vunpack.c.l.b16 %v11718
        %v11867 = vunpack.c.l.b16 %v11719
        %v11868 = vunpack.c.l.b16 %v11720
        %v11869 = vunpack.c.l.b16 %v11721
        %v11870 = vunpack.c.l.b16 %v11722
        %v11871 = vunpack.c.l.b16 %v11723
        %v11872 = vunpack.c.l.b16 %v11724
        %v11873 = vunpack.c.l.b16 %v11725
        %v11874 = vunpack.c.l.b16 %v11726
        %v11875 = vunpack.c.l.b16 %v11727
        %v11876 = vunpack.c.l.b16 %v11728
        %v11877 = vunpack.c.l.b16 %v11729
        %v11878 = vunpack.c.l.b16 %v11730
        %v11879 = vunpack.c.l.b16 %v11731
        %v11880 = vunpack.c.l.b16 %v11732
        %v11881 = vunpack.c.l.b16 %v11733
        %v11882 = vunpack.c.l.b16 %v11734
        %v11883 = vunpack.c.l.b16 %v11735
        %v11884 = vunpack.c.l.b16 %v11736
        %v11885 = vunpack.c.l.b16 %v11737
        %v11886 = vunpack.c.l.b16 %v11738
        %v11887 = vunpack.c.l.b16 %v11739
        %v11888 = vunpack.c.l.b16 %v11740
        %v11889 = vunpack.c.l.b16 %v11741
        %v11890 = vunpack.c.l.b16 %v11742
        %v11891 = vunpack.c.l.b16 %v11743
        %v11892 = vunpack.c.l.b16 %v11744
        %v11893 = vunpack.c.l.b16 %v11745
        %v11894 = vunpack.c.l.b16 %v11746
        %v11895 = vunpack.c.l.b16 %v11747
        %v11896 = vunpack.c.l.b16 %v11748
        %v11897 = vunpack.c.l.b16 %v11749
        %v11898 = vunpack.c.l.b16 %v11750
        %v11899 = vunpack.c.l.b16 %v11751
        %v11900 = vunpack.c.l.b16 %v11752
        %v11901 = vunpack.c.l.b16 %v11753
        %v11902 = vunpack.c.l.b16 %v11754
        %v11903 = vunpack.c.l.b16 %v11755
        %v11904 = vunpack.c.l.b16 %v11756
        %v11905 = vunpack.c.l.b16 %v11757
        %v11906 = vunpack.c.l.b16 %v11758
        %v11907 = vunpack.c.l.b16 %v11759
        %v11908 = vunpack.c.l.b16 %v11760
        %v11909 = vunpack.c.l.b16 %v11761
        %v11910 = vunpack.c.l.b16 %v11762
        %v11911 = vunpack.c.l.b16 %v11763
        %v11912 = vunpack.c.l.b16 %v11764
        %v11913 = vunpack.c.l.b16 %v11765
        %v11914 = vunpack.c.l.b16 %v11766
        %v11915 = vunpack.c.l.b16 %v11767
        %v11916 = vunpack.c.l.b16 %v11768
        %v11917 = vunpack.c.l.b16 %v11769
        %v11918 = vunpack.c.l.b16 %v11770
        %v11919 = vunpack.c.l.b16 %v11771
        %v11920 = vunpack.c.l.b16 %v11772
        %v11921 = vunpack.c.l.b16 %v11773
        %v11922 = vunpack.c.l.b16 %v11774
        %v11923 = vunpack.c.l.b16 %v11775
        %v11924 = vunpack.c.l.b16 %v11776
        %v11925 = vunpack.c.l.b16 %v11777
        %v11926 = vunpack.c.l.b16 %v11778
        %v11927 = vunpack.c.l.b16 %v11779
        %v11928 = vunpack.c.l.b16 %v11780
        %v11929 = vunpack.c.l.b16 %v11781
        %v11930 = vunpack.c.l.b16 %v11782
        %v11931 = vunpack.c.l.b16 %v11783
        %v11932 = vunpack.c.l.b16 %v11784
        %v11933 = vunpack.c.l.b16 %v11785
        %v11934 = vunpack.c.l.b16 %v11786
        %v11935 = vpack.c.b16 %v11864, %v11863
        %v11936 = vpack.c.b16 %v11866, %v11865
        %v11937 = vpack.c.b16 %v11868, %v11867
        %v11938 = vpack.c.b16 %v11870, %v11869
        %v11939 = vpack.c.b16 %v11872, %v11871
        %v11940 = vpack.c.b16 %v11874, %v11873
        %v11941 = vpack.c.b16 %v11876, %v11875
        %v11942 = vpack.c.b16 %v11878, %v11877
        %v11943 = vpack.c.b16 %v11880, %v11879
        %v11944 = vpack.c.b16 %v11882, %v11881
        %v11945 = vpack.c.b16 %v11884, %v11883
        %v11946 = vpack.c.b16 %v11886, %v11885
        %v11947 = vpack.c.b16 %v11888, %v11887
        %v11948 = vpack.c.b16 %v11890, %v11889
        %v11949 = vpack.c.b16 %v11892, %v11891
        %v11950 = vpack.c.b16 %v11894, %v11893
        %v11951 = vpack.c.b16 %v11896, %v11895
        %v11952 = vpack.c.b16 %v11898, %v11897
        %v11953 = vpack.c.b16 %v11900, %v11899
        %v11954 = vpack.c.b16 %v11902, %v11901
        %v11955 = vpack.c.b16 %v11904, %v11903
        %v11956 = vpack.c.b16 %v11906, %v11905
        %v11957 = vpack.c.b16 %v11908, %v11907
        %v11958 = vpack.c.b16 %v11910, %v11909
        %v11959 = vpack.c.b16 %v11912, %v11911
        %v11960 = vpack.c.b16 %v11914, %v11913
        %v11961 = vpack.c.b16 %v11916, %v11915
        %v11962 = vpack.c.b16 %v11918, %v11917
        %v11963 = vpack.c.b16 %v11920, %v11919
        %v11964 = vpack.c.b16 %v11922, %v11921
        %v11965 = vpack.c.b16 %v11924, %v11923
        %v11966 = vpack.c.b16 %v11926, %v11925
        %v11967 = vpack.c.b16 %v11928, %v11927
        %v11968 = vpack.c.b16 %v11930, %v11929
        %v11969 = vpack.c.b16 %v11932, %v11931
        %v11970 = vpack.c.b16 %v11934, %v11933
        %v12007 = vsel %vm2827, %v11691, 0
        %12009 = vmatpush.bf16.msra.mxu0 %v11942
        %12010 = vmatpush.bf16.msra.mxu0 %v11941
        %12011 = vmatpush.bf16.msra.mxu0 %v11940
        %12012 = vmatpush.bf16.msra.mxu0 %v11939
        %12013 = vmatpush.bf16.msra.mxu0 %v11938
        %12014 = vmatpush.bf16.msra.mxu0 %v11937
        %12015 = vmatpush.bf16.msra.mxu0 %v11936
        %12016 = vmatpush.bf16.msra.mxu0 %v11935
        %12017 = vmatmul.bf16.gmra.mxu0 %v11703
        %v12018 = vpop.f32.mrf.mxu0
        %v12019 = vadd.f32 %v11789, %v12018
        %v12020 = vpop.f32.mrf.mxu0
        %12021 = vdwg.mxu0
        %12022 = vmatpush.bf16.msra.mxu0 %v11950
        %12023 = vmatpush.bf16.msra.mxu0 %v11949
        %12024 = vmatpush.bf16.msra.mxu0 %v11948
        %12025 = vmatpush.bf16.msra.mxu0 %v11947
        %12026 = vmatpush.bf16.msra.mxu0 %v11946
        %12027 = vmatpush.bf16.msra.mxu0 %v11945
        %12028 = vmatpush.bf16.msra.mxu0 %v11944
        %12029 = vmatpush.bf16.msra.mxu0 %v11943
        %12030 = vmatmul.bf16.gmra.mxu0 %v11706
        %v12031 = vpop.f32.mrf.mxu0
        %v12032 = vadd.f32 %v12019, %v12031
        %v12033 = vpop.f32.mrf.mxu0
        %12034 = vdwg.mxu0
        %12035 = vmatpush.bf16.msra.mxu0 %v11958
        %12036 = vmatpush.bf16.msra.mxu0 %v11957
        %12037 = vmatpush.bf16.msra.mxu0 %v11956
        %12038 = vmatpush.bf16.msra.mxu0 %v11955
        %12039 = vmatpush.bf16.msra.mxu0 %v11954
        %12040 = vmatpush.bf16.msra.mxu0 %v11953
        %12041 = vmatpush.bf16.msra.mxu0 %v11952
        %12042 = vmatpush.bf16.msra.mxu0 %v11951
        %12043 = vmatmul.bf16.gmra.mxu0 %v11710
        %v12044 = vpop.f32.mrf.mxu0
        %v12045 = vadd.f32 %v12032, %v12044
        %v12046 = vpop.f32.mrf.mxu0
        %12047 = vdwg.mxu0
        %12048 = vmatpush.bf16.msra.mxu0 %v11966
        %12049 = vmatpush.bf16.msra.mxu0 %v11965
        %12050 = vmatpush.bf16.msra.mxu0 %v11964
        %12051 = vmatpush.bf16.msra.mxu0 %v11963
        %12052 = vmatpush.bf16.msra.mxu0 %v11962
        %12053 = vmatpush.bf16.msra.mxu0 %v11961
        %12054 = vmatpush.bf16.msra.mxu0 %v11960
        %12055 = vmatpush.bf16.msra.mxu0 %v11959
        %12056 = vmatmul.bf16.gmra.mxu0 %v11713
        %v12057 = vpop.f32.mrf.mxu0
        %v12058 = vadd.f32 %v12045, %v12057
        %v12059 = vpop.f32.mrf.mxu0
        %12060 = vdwg.mxu0
        %12061 = vmatpush.bf16.msra.mxu0 0
        %12062 = vmatpush.bf16.msra.mxu0 0
        %12063 = vmatpush.bf16.msra.mxu0 0
        %12064 = vmatpush.bf16.msra.mxu0 0
        %12065 = vmatpush.bf16.msra.mxu0 %v11970
        %12066 = vmatpush.bf16.msra.mxu0 %v11969
        %12067 = vmatpush.bf16.msra.mxu0 %v11968
        %12068 = vmatpush.bf16.msra.mxu0 %v11967
        %12069 = vmatmul.bf16.gmra.mxu0 %v12007
        %v12070 = vpop.f32.mrf.mxu0
        %v12071 = vadd.f32 %v12058, %v12070
        %v12072 = vpop.f32.mrf.mxu0
        %12073 = vdwg.mxu0
        %v12074 = vmax.f32 %v12071, 0.0
        %12075 = vst [vmem:[%s747] sm:$0xf] %v12074
        %p12076 = scmp.lt.s32.totalorder %s35, 1
        %s12077 = scalar_select %p12076, %s35, 1
        %s12078 = smul.addr %s12077, 32
        %s12079 = smul.addr %s12078, 8
        %s12080 = scalar_lea.vmem %s17, %s12079
        %p12081 = scmp.lt.s32.totalorder %s35, 1
        %s12082 = scalar_select %p12081, %s35, 1
        %s12083 = smul.addr %s12082, 8
        %s12084 = smul.addr %s12083, 8
        %s12085 = scalar_lea.vmem %s18, %s12084
        %p12086 = scmp.lt.s32.totalorder %s35, 1
        %s12087 = scalar_select %p12086, %s35, 1
        %s12088 = smul.addr %s12087, 2
        %s12089 = smul.addr %s12088, 8
        %s12090 = scalar_lea.vmem %s19, %s12089
        %p12091 = scmp.lt.s32.totalorder %s35, 1
        %s12092 = scalar_select %p12091, %s35, 1
        %s12093 = smul.addr %s12092, 4
        %s12094 = scalar_lea.vmem %s20, %s12093
        // Predicated region
        $region109: #{encoder_forward.1} parent=87 // pred_check
          %p12095 = pneg %p415
        $region110: #{encoder_forward.1} parent=87 // pred_check_branch
          %12097 = sbr.rel (%p12095) target = $region112
        $region111: #{encoder_forward.1} parent=87 // pred_region
          _
        $region112: #{encoder_forward.1} parent=87 // pred_fallthru
          _
        // Predicated region
        $region113: #{encoder_forward.1} parent=87 // pred_check
          %p12098 = pneg %p441
        $region114: #{encoder_forward.1} parent=87 // pred_check_branch
          %12100 = sbr.rel (%p12098) target = $region116
        $region115: #{encoder_forward.1} parent=87 // pred_region
          _
        $region116: #{encoder_forward.1} parent=87 // pred_fallthru
          _
        // Predicated region
        $region117: #{encoder_forward.1} parent=87 // pred_check
          %p12101 = pneg %p467
        $region118: #{encoder_forward.1} parent=87 // pred_check_branch
          %12103 = sbr.rel (%p12101) target = $region120
        $region119: #{encoder_forward.1} parent=87 // pred_region
          _
        $region120: #{encoder_forward.1} parent=87 // pred_fallthru
          _
        // Predicated region
        $region121: #{encoder_forward.1} parent=87 // pred_check
          %p12104 = pneg %p493
        $region122: #{encoder_forward.1} parent=87 // pred_check_branch
          %12106 = sbr.rel (%p12104) target = $region124
        $region123: #{encoder_forward.1} parent=87 // pred_region
          _
        $region124: #{encoder_forward.1} parent=87 // pred_fallthru
          _
      $region88: #{encoder_forward.1} parent=5 // pred_fallthru
        _
      %p12107 = scmp.le.s32.totalorder 2, %s30
      // Predicated region
      $region125: #{encoder_forward.1} parent=5 // pred_check
        %p12108 = pneg %p12107
      $region126: #{encoder_forward.1} parent=5 // pred_check_branch
        %12110 = sbr.rel (%p12108) target = $region128
      $region127: #{encoder_forward.1} parent=5 // pred_region
        %s12111 = ssub.s32 %s30, 2
        // Predicated region
        $region129: #{encoder_forward.1} parent=127 // pred_check
          %p12112 = pneg %p421
        $region130: #{encoder_forward.1} parent=127 // pred_check_branch
          %12114 = sbr.rel (%p12112) target = $region132
        $region131: #{encoder_forward.1} parent=127 // pred_region
          %p12115 = scmp.lt.s32.totalorder %s36, 1
          %s12116 = scalar_select %p12115, %s36, 1
          %s12117 = smul.addr %s12116, 32
          %s12118 = smul.addr %s12117, 8
          %s12119 = scalar_lea.vmem %s17, %s12118
        $region132: #{encoder_forward.1} parent=127 // pred_fallthru
          _
        // Predicated region
        $region133: #{encoder_forward.1} parent=127 // pred_check
          %p12120 = pneg %p447
        $region134: #{encoder_forward.1} parent=127 // pred_check_branch
          %12122 = sbr.rel (%p12120) target = $region136
        $region135: #{encoder_forward.1} parent=127 // pred_region
          %p12123 = scmp.lt.s32.totalorder %s36, 1
          %s12124 = scalar_select %p12123, %s36, 1
          %s12125 = smul.addr %s12124, 8
          %s12126 = smul.addr %s12125, 8
          %s12127 = scalar_lea.vmem %s18, %s12126
        $region136: #{encoder_forward.1} parent=127 // pred_fallthru
          _
        // Predicated region
        $region137: #{encoder_forward.1} parent=127 // pred_check
          %p12128 = pneg %p473
        $region138: #{encoder_forward.1} parent=127 // pred_check_branch
          %12130 = sbr.rel (%p12128) target = $region140
        $region139: #{encoder_forward.1} parent=127 // pred_region
          %p12131 = scmp.lt.s32.totalorder %s36, 1
          %s12132 = scalar_select %p12131, %s36, 1
          %s12133 = smul.addr %s12132, 2
          %s12134 = smul.addr %s12133, 8
          %s12135 = scalar_lea.vmem %s19, %s12134
        $region140: #{encoder_forward.1} parent=127 // pred_fallthru
          _
        // Predicated region
        $region141: #{encoder_forward.1} parent=127 // pred_check
          %p12136 = pneg %p499
        $region142: #{encoder_forward.1} parent=127 // pred_check_branch
          %12138 = sbr.rel (%p12136) target = $region144
        $region143: #{encoder_forward.1} parent=127 // pred_region
          %p12139 = scmp.lt.s32.totalorder %s36, 1
          %s12140 = scalar_select %p12139, %s36, 1
          %s12141 = smul.addr %s12140, 4
          %s12142 = scalar_lea.vmem %s20, %s12141
        $region144: #{encoder_forward.1} parent=127 // pred_fallthru
          _
      $region128: #{encoder_forward.1} parent=5 // pred_fallthru
        _
    $region6: #{encoder_forward.1} parent=1 // loop_footer
      %s34 = sadd.s32 1, %s30
    $region7: #{encoder_forward.1} parent=1 // loop_footer_branch
      %29 = sbr.rel target = $region3
    $region8: #{encoder_forward.1} parent=1 // loop_exit
      _
    %12143 = vsyncpa [#allocation3], 1
    %s12144 = scalar_lea.sflag [#allocation3], 1
    %12145 = vsyncpa %s12144, 1
    %12146 = vsyncpa [#allocation5], 1
    %12147 = vsyncpa [#allocation8], 1

</llo_original>
